<compile_context>
chip_gen: v5e
topology: v5e:2x2
jax: 0.10.0
libtpu: 0.0.40
codegen_flags: <defaults>
</compile_context>

<pallas_src>
import functools

import jax
import jax.numpy as jnp
from jax.experimental import pallas as pl
from jax.experimental.pallas import tpu as pltpu

EPS = 1e-5          # PyTorch InstanceNorm2d default eps
LANE = 128


def _round_up(x, m):
    return (x + m - 1) // m * m


@functools.lru_cache(maxsize=None)
def _vmem_limit_bytes():
    # ~half of physical VMEM, capped at 64 MiB: 32 MiB on v7x (64 MiB/TC),
    # 64 MiB on v5e/v6e (128 MiB). Per-call footprint is only a few MiB anyway.
    try:
        cap = int(pltpu.get_tpu_info().vmem_capacity_bytes)
    except Exception:
        return 32 * 1024 * 1024
    return int(min(cap // 2, 64 * 1024 * 1024))


def _choose_tp(P, cp):
    """Row tile for the P (=Hout*Wout) axis: bounds VMEM independent of image
    size while keeping the f32 accumulator around <= 2 MiB."""
    if P <= 512:
        return _round_up(P, 8)
    return max(512, min(2048, (2 * 1024 * 1024) // (4 * cp) // 8 * 8))


def _choose_k_tiling(K):
    """Return (Kp, tk). Small K -> a single reduction step. Large K -> the
    128-multiple tile that minimizes inner grid steps with <=15% zero-padding
    (e.g. res-block K=2304 -> Kp=2560, tk=512: 5 steps instead of 9)."""
    kp = _round_up(K, LANE)
    if kp <= 1024:
        return kp, kp
    best = None
    for tk in (512, 384, 256, 128):
        kpt = _round_up(K, tk)
        if (kpt - K) / K <= 0.15:
            steps = kpt // tk
            if best is None or steps < best[0]:
                best = (steps, kpt, tk)
    if best is None:                      # unreachable for K > 1024, kept for safety
        return _round_up(K, 512), 512
    return best[1], best[2]


# ----------------------------- Pallas kernels ------------------------------ #

def _mm_stats_kernel(p_ref, w_ref, y_ref, stats_ref, acc_ref):
    """Pass 1: bf16 matmul tiles accumulated in f32 over the K grid axis; at the
    last K step write the pre-norm tile (f32) and per-tile (sum, sum^2) stats."""
    k = pl.program_id(2)

    @pl.when(k == 0)
    def _():
        acc_ref[...] = jnp.zeros_like(acc_ref)

    acc_ref[...] += jnp.dot(p_ref[0], w_ref[...],
                            preferred_element_type=jnp.float32)

    @pl.when(k == pl.num_programs(2) - 1)
    def _():
        y = acc_ref[...]
        y_ref[0] = y
        s = jnp.sum(y, axis=0, keepdims=True)
        sq = jnp.sum(y * y, axis=0, keepdims=True)
        stats_ref[0, 0] = jnp.concatenate([s, sq], axis=0)


def _mm_bias_act_kernel(p_ref, w_ref, b_ref, o_ref, acc_ref, *, act):
    """Single-pass matmul + bias + activation (tanh tail: no InstanceNorm)."""
    k = pl.program_id(2)

    @pl.when(k == 0)
    def _():
        acc_ref[...] = jnp.zeros_like(acc_ref)

    acc_ref[...] += jnp.dot(p_ref[0], w_ref[...],
                            preferred_element_type=jnp.float32)

    @pl.when(k == pl.num_programs(2) - 1)
    def _():
        y = acc_ref[...] + b_ref[...]
        if act == "tanh":
            y = jnp.tanh(y)
        o_ref[0] = y.astype(o_ref.dtype)


def _norm_kernel(y_ref, ms_ref, *refs, relu, has_res):
    """Pass 2: apply InstanceNorm (+ ReLU / + residual), emit bf16."""
    o_ref = refs[-1]
    ms = ms_ref[0]                                   # (2, Cp): [mean; rstd]
    out = (y_ref[0] - ms[0:1, :]) * ms[1:2, :]
    if relu:
        out = jnp.maximum(out, 0.0)
    if has_res:
        out = out + refs[0][0].astype(jnp.float32)
    o_ref[0] = out.astype(o_ref.dtype)


# ----------------------------- kernel runners ------------------------------ #

def _run_matmul_stats(patches, w2d, *, tp, tk):
    N, Pp, Kp = patches.shape
    Cp = w2d.shape[1]
    nP, nK = Pp // tp, Kp // tk
    cost = pl.CostEstimate(
        flops=2 * N * Pp * Kp * Cp,
        transcendentals=0,
        bytes_accessed=int(patches.size * 2 + N * nP * w2d.size * 2
                           + N * Pp * Cp * 4 + N * nP * 2 * Cp * 4))
    return pl.pallas_call(
        _mm_stats_kernel,
        out_shape=(jax.ShapeDtypeStruct((N, Pp, Cp), jnp.float32),
                   jax.ShapeDtypeStruct((N, nP, 2, Cp), jnp.float32)),
        grid_spec=pltpu.PrefetchScalarGridSpec(
            num_scalar_prefetch=0,
            grid=(N, nP, nK),                 # batch, P tiles, K reduction (inner)
            in_specs=[
                pl.BlockSpec((1, tp, tk), lambda n, p, k: (n, p, k)),
                pl.BlockSpec((tk, Cp), lambda n, p, k: (k, 0)),
            ],
            out_specs=[
                pl.BlockSpec((1, tp, Cp), lambda n, p, k: (n, p, 0)),
                pl.BlockSpec((1, 1, 2, Cp), lambda n, p, k: (n, p, 0, 0)),
            ],
            scratch_shapes=[pltpu.VMEM((tp, Cp), jnp.float32)],
        ),
        compiler_params=pltpu.CompilerParams(
            dimension_semantics=("parallel", "parallel", "arbitrary"),
            vmem_limit_bytes=_vmem_limit_bytes()),
        cost_estimate=cost,
    )(patches, w2d)


def _run_matmul_bias_act(patches, w2d, b2d, *, tp, tk, act, out_dtype):
    N, Pp, Kp = patches.shape
    Cp = w2d.shape[1]
    nP, nK = Pp // tp, Kp // tk
    cost = pl.CostEstimate(
        flops=2 * N * Pp * Kp * Cp,
        transcendentals=(N * Pp * Cp if act == "tanh" else 0),
        bytes_accessed=int(patches.size * 2 + N * nP * w2d.size * 2
                           + N * Pp * Cp * jnp.dtype(out_dtype).itemsize))
    return pl.pallas_call(
        functools.partial(_mm_bias_act_kernel, act=act),
        out_shape=jax.ShapeDtypeStruct((N, Pp, Cp), out_dtype),
        grid_spec=pltpu.PrefetchScalarGridSpec(
            num_scalar_prefetch=0,
            grid=(N, nP, nK),
            in_specs=[
                pl.BlockSpec((1, tp, tk), lambda n, p, k: (n, p, k)),
                pl.BlockSpec((tk, Cp), lambda n, p, k: (k, 0)),
                pl.BlockSpec((1, Cp), lambda n, p, k: (0, 0)),   # tiny, K-invariant
            ],
            out_specs=pl.BlockSpec((1, tp, Cp), lambda n, p, k: (n, p, 0)),
            scratch_shapes=[pltpu.VMEM((tp, Cp), jnp.float32)],
        ),
        compiler_params=pltpu.CompilerParams(
            dimension_semantics=("parallel", "parallel", "arbitrary"),
            vmem_limit_bytes=_vmem_limit_bytes()),
        cost_estimate=cost,
    )(patches, w2d, b2d)


def _run_instancenorm(y, ms, residual, *, tp, relu, out_dtype):
    N, Pp, Cp = y.shape
    nP = Pp // tp
    in_specs = [
        pl.BlockSpec((1, tp, Cp), lambda n, p: (n, p, 0)),
        pl.BlockSpec((1, 2, Cp), lambda n, p: (n, 0, 0)),
    ]
    args = [y, ms]
    if residual is not None:
        in_specs.append(pl.BlockSpec((1, tp, Cp), lambda n, p: (n, p, 0)))
        args.append(residual)
    res_bytes = residual.size * residual.dtype.itemsize if residual is not None else 0
    cost = pl.CostEstimate(
        flops=4 * N * Pp * Cp, transcendentals=0,
        bytes_accessed=int(y.size * 4 + ms.size * 4 + res_bytes
                           + N * Pp * Cp * jnp.dtype(out_dtype).itemsize))
    return pl.pallas_call(
        functools.partial(_norm_kernel, relu=relu, has_res=residual is not None),
        out_shape=jax.ShapeDtypeStruct((N, Pp, Cp), out_dtype),
        grid_spec=pltpu.PrefetchScalarGridSpec(
            num_scalar_prefetch=0,
            grid=(N, nP),
            in_specs=in_specs,
            out_specs=pl.BlockSpec((1, tp, Cp), lambda n, p: (n, p, 0)),
        ),
        compiler_params=pltpu.CompilerParams(
            dimension_semantics=("parallel", "parallel"),
            vmem_limit_bytes=_vmem_limit_bytes()),
        cost_estimate=cost,
    )(*args)


# ------------------------------- JAX glue ---------------------------------- #

def _extract_patches(xp, kh, kw, stride, Hout, Wout):
    # im2col: patch feature order is (kh, kw, cin) — matches the weight reshape.
    cols = []
    for i in range(kh):
        for j in range(kw):
            cols.append(
                xp[:, i:i + stride * (Hout - 1) + 1:stride,
                      j:j + stride * (Wout - 1) + 1:stride, :])
    return jnp.concatenate(cols, axis=-1)            # (N, Hout, Wout, kh*kw*Cin)


def _im2col(x, kh, kw, stride, Kp, cp_eff):
    """Returns (patches (N, Pp, Kp) bf16, P, Hout, Wout, tp)."""
    N = x.shape[0]
    Hout = (x.shape[1] - kh) // stride + 1
    Wout = (x.shape[2] - kw) // stride + 1
    P = Hout * Wout
    K = kh * kw * x.shape[3]
    tp = _choose_tp(P, cp_eff)
    Pp = _round_up(P, tp)
    patches = _extract_patches(x, kh, kw, stride, Hout, Wout).reshape(N, P, K)
    patches = jnp.pad(patches, ((0, 0), (0, Pp - P), (0, Kp - K)))
    return patches.astype(jnp.bfloat16), P, Hout, Wout, tp


def _instance_norm_stats(stats, count):
    """stats: (N, nP, 2, C) per-tile (sum, sum^2) -> (N, 2, C) = [mean; rstd].
    Zero-padded P rows contribute exactly 0 (no pre-IN bias), so dividing by the
    true element count is exact."""
    s = jnp.sum(stats, axis=1)
    mean = s[:, 0] / count
    var = jnp.maximum(s[:, 1] / count - mean * mean, 0.0)
    rstd = jax.lax.rsqrt(var + EPS)
    return jnp.stack([mean, rstd], axis=1)


def conv2d_pallas(x, wprep, *, stride=1, pad=0, pad_mode="constant",
                  mode="in_relu", residual=None):
    """x: NHWC. wprep: prepared Conv2d operands. mode in {in_relu, in_res, tanh}."""
    meta = wprep["meta"]
    kh, kw, Cout, Cp, Kp, tk = (meta["kh"], meta["kw"], meta["Cout"],
                                meta["Cp"], meta["Kp"], meta["tk"])
    if pad > 0:
        x = jnp.pad(x, ((0, 0), (pad, pad), (pad, pad), (0, 0)), mode=pad_mode)
    patches, P, Hout, Wout, tp = _im2col(x, kh, kw, stride, Kp, Cp)
    N, Pp = patches.shape[0], patches.shape[1]

    if mode == "tanh":
        out = _run_matmul_bias_act(patches, wprep["w2d"], wprep["b2d"],
                                   tp=tp, tk=tk, act="tanh",
                                   out_dtype=jnp.float32)
        return out[:, :P, :Cout].reshape(N, Hout, Wout, Cout)

    # InstanceNorm path (conv bias is dropped: IN's mean subtraction cancels it).
    y, stats = _run_matmul_stats(patches, wprep["w2d"], tp=tp, tk=tk)
    ms = _instance_norm_stats(stats, float(P))
    r = None
    if residual is not None:
        r = residual.reshape(N, P, residual.shape[-1]).astype(jnp.bfloat16)
        r = jnp.pad(r, ((0, 0), (0, Pp - P), (0, Cp - r.shape[-1])))
    out = _run_instancenorm(y, ms, r, tp=tp, relu=(mode == "in_relu"),
                            out_dtype=jnp.bfloat16)
    return out[:, :P, :Cout].reshape(N, Hout, Wout, Cout)


def conv_transpose2d_pallas(x, wprep):
    """ConvTranspose2d(3x3, stride 2, pad 1, output_pad 1) + IN + ReLU via the
    sub-pixel decomposition: one 2x2-patch matmul on the undilated input produces
    the 4 output phases (no zero-dilation / 36x HBM expansion), then a shared
    InstanceNorm (stats pooled over the 4 phases) and a pixel-shuffle in glue."""
    meta = wprep["meta"]
    Cout, Cp, Kp, tk = meta["Cout"], meta["Cp"], meta["Kp"], meta["tk"]
    N, H, W, _ = x.shape
    xe = jnp.pad(x, ((0, 0), (0, 1), (0, 1), (0, 0)))       # bottom/right zero halo
    patches, P, _, _, tp = _im2col(xe, 2, 2, 1, Kp, wprep["w2d"].shape[1])

    y, stats = _run_matmul_stats(patches, wprep["w2d"], tp=tp, tk=tk)
    stats = stats.reshape(N, -1, 2, 4, Cp).sum(axis=3)      # pool the 4 phases
    ms = jnp.tile(_instance_norm_stats(stats, 4.0 * P), (1, 1, 4))
    out = _run_instancenorm(y, ms, None, tp=tp, relu=True, out_dtype=jnp.bfloat16)

    out = out[:, :P, :].reshape(N, H, W, 2, 2, Cp)[..., :Cout]
    out = jnp.transpose(out, (0, 1, 3, 2, 4, 5)).reshape(N, 2 * H, 2 * W, Cout)
    return out


# --------------------- one-time parameter preparation ----------------------- #

def _prep_conv_weight(w, b=None, *, use_bias):
    """Reformat a PyTorch Conv2d weight (Cout, Cin, kh, kw) into the lane-dense
    (Kp, Cp) bf16 matmul operand. Done once, OUTSIDE the jitted forward."""
    Cout, Cin, kh, kw = w.shape
    K = kh * kw * Cin
    Kp, tk = _choose_k_tiling(K)
    Cp = _round_up(Cout, LANE)
    w2d = jnp.transpose(w, (2, 3, 1, 0)).reshape(K, Cout)
    w2d = jnp.pad(w2d, ((0, Kp - K), (0, Cp - Cout))).astype(jnp.bfloat16)
    prep = {"w2d": w2d,
            "meta": dict(kh=kh, kw=kw, Cout=Cout, Cp=Cp, K=K, Kp=Kp, tk=tk)}
    if use_bias:
        prep["b2d"] = jnp.pad(b, (0, Cp - Cout)).reshape(1, Cp).astype(jnp.float32)
    return prep


def _prep_convtranspose_weight(w):
    """Combined sub-pixel weight for ConvTranspose2d(3x3, s=2, p=1, out_pad=1).
    Column groups g = 2*r + s (output row/col parity); rows ordered (dy, dx, cin)
    to match _extract_patches on the 2x2 undilated patches. Its bias is followed
    by InstanceNorm, hence dropped."""
    Cin, Cout = w.shape[0], w.shape[1]
    Cp = _round_up(Cout, LANE)
    zeros = jnp.zeros((Cin, Cout), w.dtype)
    rows = []
    for dy in (0, 1):
        for dx in (0, 1):
            groups = []
            for r in (0, 1):
                for s in (0, 1):
                    ky, kx = r + 1 - 2 * dy, s + 1 - 2 * dx
                    sub = w[:, :, ky, kx] if (0 <= ky <= 2 and 0 <= kx <= 2) else zeros
                    groups.append(jnp.pad(sub, ((0, 0), (0, Cp - Cout))))
            rows.append(jnp.concatenate(groups, axis=1))     # (Cin, 4*Cp)
    w2d = jnp.concatenate(rows, axis=0)                      # (4*Cin, 4*Cp)
    K = 4 * Cin
    Kp, tk = _choose_k_tiling(K)
    w2d = jnp.pad(w2d, ((0, Kp - K), (0, 0))).astype(jnp.bfloat16)
    return {"w2d": w2d, "meta": dict(Cout=Cout, Cp=Cp, K=K, Kp=Kp, tk=tk)}


def prepare_generator_params(params):
    """One-time (outside-jit) reformat of PyTorch-layout params into kernel
    operands. Pre-IN conv biases are dropped (exactly cancelled by IN)."""
    return {
        "head": _prep_conv_weight(params["head"][0], use_bias=False),
        "down": [_prep_conv_weight(w, use_bias=False) for (w, _) in params["down"]],
        "res": [(_prep_conv_weight(w1, use_bias=False),
                 _prep_conv_weight(w2, use_bias=False))
                for ((w1, _), (w2, _)) in params["res"]],
        "up": [_prep_convtranspose_weight(w) for (w, _) in params["up"]],
        "tail": _prep_conv_weight(*params["tail"], use_bias=True),
    }


# --------------------------- Parameters & forward --------------------------- #

def _init_conv(key, cout, cin, k):
    wkey, bkey = jax.random.split(key)
    w = jax.random.normal(wkey, (cout, cin, k, k), jnp.float32) * 0.1
    b = jax.random.normal(bkey, (cout,), jnp.float32) * 0.1
    return w, b


def init_generator_params(key, in_channels, out_channels, num_filters,
                          num_layers, num_sampling):
    keys = iter(jax.random.split(key, 128))
    params = {}
    params["head"] = _init_conv(next(keys), num_filters, in_channels, 7)
    params["down"] = []
    for i in range(num_sampling):
        mult = 2 ** i
        params["down"].append(
            _init_conv(next(keys), num_filters * mult * 2, num_filters * mult, 3))
    dim = num_filters * 2 ** num_sampling
    params["res"] = []
    for _ in range(num_layers):
        params["res"].append((_init_conv(next(keys), dim, dim, 3),
                              _init_conv(next(keys), dim, dim, 3)))
    params["up"] = []
    for i in range(num_sampling):
        mult = 2 ** (num_sampling - i)
        cin, cout = num_filters * mult, num_filters * mult // 2
        wkey, bkey = jax.random.split(next(keys))
        w = jax.random.normal(wkey, (cin, cout, 3, 3), jnp.float32) * 0.1  # ConvT layout
        b = jax.random.normal(bkey, (cout,), jnp.float32) * 0.1
        params["up"].append((w, b))
    params["tail"] = _init_conv(next(keys), out_channels, num_filters, 7)
    return params


def generator_forward(prep, x_nchw, *, in_channels, out_channels):
    x = jnp.transpose(x_nchw, (0, 2, 3, 1)).astype(jnp.bfloat16)   # NCHW -> NHWC
    # head: ReflectionPad2d(in_channels) + Conv7x7 + IN + ReLU
    x = conv2d_pallas(x, prep["head"], stride=1, pad=in_channels,
                      pad_mode="reflect", mode="in_relu")
    # downsampling: Conv3x3 stride 2 pad 1 + IN + ReLU
    for wp in prep["down"]:
        x = conv2d_pallas(x, wp, stride=2, pad=1, pad_mode="constant",
                          mode="in_relu")
    # resnet blocks: (reflect-pad conv + IN + ReLU, reflect-pad conv + IN) + x
    for wp1, wp2 in prep["res"]:
        h = conv2d_pallas(x, wp1, stride=1, pad=1, pad_mode="reflect",
                          mode="in_relu")
        x = conv2d_pallas(h, wp2, stride=1, pad=1, pad_mode="reflect",
                          mode="in_res", residual=x)
    # upsampling: ConvTranspose3x3 stride 2 pad 1 out_pad 1 + IN + ReLU
    for wp in prep["up"]:
        x = conv_transpose2d_pallas(x, wp)
    # tail: ReflectionPad2d(out_channels) + Conv7x7 + bias + Tanh
    x = conv2d_pallas(x, prep["tail"], stride=1, pad=out_channels,
                      pad_mode="reflect", mode="tanh")
    return jnp.transpose(x, (0, 3, 1, 2))                           # NHWC -> NCHW


if __name__ == "__main__":
    in_channels, out_channels = 3, 3
    num_filters, num_layers, num_sampling = 8, 2, 1

    key = jax.random.PRNGKey(0)
    pkey, xkey = jax.random.split(key)
    params = init_generator_params(pkey, in_channels, out_channels,
                                   num_filters, num_layers, num_sampling)
    prep = prepare_generator_params(params)   # one-time weight reformat, outside jit
    x = jax.random.normal(xkey, (2, in_channels, 16, 16), jnp.float32)

    fwd = jax.jit(functools.partial(generator_forward, prep,
                                    in_channels=in_channels,
                                    out_channels=out_channels))
    y = fwd(x)
    jax.block_until_ready(y)
    assert y.shape == (2, out_channels, 16, 16), y.shape
    assert bool(jnp.all(jnp.isfinite(y)))
    print("KERNEL_OK")
</pallas_src>

<mosaic_0001>
module attributes {stable_mosaic.version = 11 : i64} {
  func.func @_mm_stats_kernel(%arg0: i32, %arg1: i32, %arg2: i32, %arg3: memref<1x256x256xbf16, #tpu.memory_space<vmem>>, %arg4: memref<256x128xbf16, #tpu.memory_space<vmem>>, %arg5: memref<1x256x128xf32, #tpu.memory_space<vmem>>, %arg6: memref<1x1x2x128xf32, #tpu.memory_space<vmem>>, %arg7: memref<256x128xf32, #tpu.memory_space<vmem>>) attributes {dimension_semantics = [#tpu.dimension_semantics<parallel>, #tpu.dimension_semantics<parallel>, #tpu.dimension_semantics<arbitrary>], iteration_bounds = array<i64: 2, 1, 1>, scalar_prefetch = 0 : i64, scratch_operands = 1 : i64, tpu.core_type = #tpu.core_type<tc>, window_params = [{transform_indices = @transform_0, window_bounds = array<i64: 1, 256, 256>}, {transform_indices = @transform_1, window_bounds = array<i64: 256, 128>}, {transform_indices = @transform_2, window_bounds = array<i64: 1, 256, 128>}, {transform_indices = @transform_3, window_bounds = array<i64: 1, 1, 2, 128>}]} {
    %c0_i32 = arith.constant 0 : i32
    %0 = arith.cmpi eq, %arg2, %c0_i32 : i32
    %1 = arith.extui %0 : i1 to i32
    %c0_i32_0 = arith.constant 0 : i32
    %2 = arith.cmpi ne, %1, %c0_i32_0 : i32
    scf.if %2 {
      %cst_11 = arith.constant 0.000000e+00 : f32
      %13 = vector.broadcast %cst_11 : f32 to vector<256x128xf32>
      %c0_12 = arith.constant 0 : index
      %c0_13 = arith.constant 0 : index
      %14 = vector.load %arg7[%c0_12, %c0_13] : memref<256x128xf32, #tpu.memory_space<vmem>>, vector<256x128xf32>
      tpu.vector_store %arg7[%c0_12, %c0_13], %13 {strides = array<i32>} : memref<256x128xf32, #tpu.memory_space<vmem>>, vector<256x128xf32>,
    } else {
    }
    %c0 = arith.constant 0 : index
    %c0_1 = arith.constant 0 : index
    %3 = vector.load %arg7[%c0, %c0_1] : memref<256x128xf32, #tpu.memory_space<vmem>>, vector<256x128xf32>
    %c0_2 = arith.constant 0 : index
    %c0_3 = arith.constant 0 : index
    %c0_4 = arith.constant 0 : index
    %4 = vector.load %arg3[%c0_2, %c0_3, %c0_4] : memref<1x256x256xbf16, #tpu.memory_space<vmem>>, vector<1x256x256xbf16>
    %5 = vector.shape_cast %4 : vector<1x256x256xbf16> to vector<256x256xbf16>
    %c0_5 = arith.constant 0 : index
    %c0_6 = arith.constant 0 : index
    %6 = vector.load %arg4[%c0_5, %c0_6] : memref<256x128xbf16, #tpu.memory_space<vmem>>, vector<256x128xbf16>
    %cst = arith.constant dense<0.000000e+00> : vector<256x128xf32>
    %7 = tpu.matmul %5, %6, %cst {dimension_numbers = #tpu.dot_dimension_numbers<[1], [0], [0], [1], [0, 0, 1, 1], [], []>} : vector<256x256xbf16>, vector<256x128xbf16>, vector<256x128xf32> -> vector<256x128xf32>
    %8 = arith.addf %3, %7 : vector<256x128xf32>
    %c0_7 = arith.constant 0 : index
    %c0_8 = arith.constant 0 : index
    %9 = vector.load %arg7[%c0_7, %c0_8] : memref<256x128xf32, #tpu.memory_space<vmem>>, vector<256x128xf32>
    tpu.vector_store %arg7[%c0_7, %c0_8], %8 {strides = array<i32>} : memref<256x128xf32, #tpu.memory_space<vmem>>, vector<256x128xf32>,
    %c0_i32_9 = arith.constant 0 : i32
    %10 = arith.cmpi eq, %arg2, %c0_i32_9 : i32
    %11 = arith.extui %10 : i1 to i32
    %c0_i32_10 = arith.constant 0 : i32
    %12 = arith.cmpi ne, %11, %c0_i32_10 : i32
    scf.if %12 {
      %c0_11 = arith.constant 0 : index
      %c0_12 = arith.constant 0 : index
      %13 = vector.load %arg7[%c0_11, %c0_12] : memref<256x128xf32, #tpu.memory_space<vmem>>, vector<256x128xf32>
      %c0_13 = arith.constant 0 : index
      %c0_14 = arith.constant 0 : index
      %c0_15 = arith.constant 0 : index
      %14 = vector.load %arg5[%c0_13, %c0_14, %c0_15] : memref<1x256x128xf32, #tpu.memory_space<vmem>>, vector<1x256x128xf32>
      %15 = vector.shape_cast %14 : vector<1x256x128xf32> to vector<256x128xf32>
      %16 = vector.shape_cast %13 : vector<256x128xf32> to vector<1x256x128xf32>
      tpu.vector_store %arg5[%c0_13, %c0_14, %c0_15], %16 {strides = array<i32>} : memref<1x256x128xf32, #tpu.memory_space<vmem>>, vector<1x256x128xf32>,
      %cst_16 = arith.constant dense<0.000000e+00> : vector<128xf32>
      %17 = vector.multi_reduction <add>, %13, %cst_16 [0] : vector<256x128xf32> to vector<128xf32>
      %18 = vector.shape_cast %17 : vector<128xf32> to vector<1x128xf32>
      %19 = arith.mulf %13, %13 : vector<256x128xf32>
      %cst_17 = arith.constant dense<0.000000e+00> : vector<128xf32>
      %20 = vector.multi_reduction <add>, %19, %cst_17 [0] : vector<256x128xf32> to vector<128xf32>
      %21 = vector.shape_cast %20 : vector<128xf32> to vector<1x128xf32>
      %22 = tpu.concatenate %18, %21 in 0 : vector<1x128xf32>, vector<1x128xf32> -> vector<2x128xf32>
      %c0_18 = arith.constant 0 : index
      %c0_19 = arith.constant 0 : index
      %c0_20 = arith.constant 0 : index
      %c0_21 = arith.constant 0 : index
      %23 = vector.load %arg6[%c0_18, %c0_19, %c0_20, %c0_21] : memref<1x1x2x128xf32, #tpu.memory_space<vmem>>, vector<1x1x2x128xf32>
      %24 = vector.shape_cast %23 : vector<1x1x2x128xf32> to vector<2x128xf32>
      %25 = vector.shape_cast %22 : vector<2x128xf32> to vector<1x1x2x128xf32>
      tpu.vector_store %arg6[%c0_18, %c0_19, %c0_20, %c0_21], %25 {strides = array<i32>} : memref<1x1x2x128xf32, #tpu.memory_space<vmem>>, vector<1x1x2x128xf32>,
    } else {
    }
    return
  }
  func.func @transform_0(%arg0: i32, %arg1: i32, %arg2: i32) -> (i32, i32, i32) {
    %c0_i32 = arith.constant 0 : i32
    return %arg0, %arg1, %arg2 : i32, i32, i32
  }
  func.func @transform_1(%arg0: i32, %arg1: i32, %arg2: i32) -> (i32, i32) {
    %c0_i32 = arith.constant 0 : i32
    %c0_i32_0 = arith.constant 0 : i32
    return %arg2, %c0_i32 : i32, i32
  }
  func.func @transform_2(%arg0: i32, %arg1: i32, %arg2: i32) -> (i32, i32, i32) {
    %c0_i32 = arith.constant 0 : i32
    %c0_i32_0 = arith.constant 0 : i32
    return %arg0, %arg1, %c0_i32 : i32, i32, i32
  }
  func.func @transform_3(%arg0: i32, %arg1: i32, %arg2: i32) -> (i32, i32, i32, i32) {
    %c0_i32 = arith.constant 0 : i32
    %c0_i32_0 = arith.constant 0 : i32
    %c0_i32_1 = arith.constant 0 : i32
    return %arg0, %arg1, %c0_i32, %c0_i32_0 : i32, i32, i32, i32
  }
}

module attributes {stable_mosaic.version = 11 : i64} {
  func.func @_norm_kernel(%arg0: i32, %arg1: i32, %arg2: memref<1x256x128xf32, #tpu.memory_space<vmem>>, %arg3: memref<1x2x128xf32, #tpu.memory_space<vmem>>, %arg4: memref<1x256x128xbf16, #tpu.memory_space<vmem>>) attributes {dimension_semantics = [#tpu.dimension_semantics<parallel>, #tpu.dimension_semantics<parallel>], iteration_bounds = array<i64: 2, 1>, scalar_prefetch = 0 : i64, scratch_operands = 0 : i64, tpu.core_type = #tpu.core_type<tc>, window_params = [{transform_indices = @transform_0, window_bounds = array<i64: 1, 256, 128>}, {transform_indices = @transform_1, window_bounds = array<i64: 1, 2, 128>}, {transform_indices = @transform_2, window_bounds = array<i64: 1, 256, 128>}]} {
    %c0 = arith.constant 0 : index
    %c0_0 = arith.constant 0 : index
    %c0_1 = arith.constant 0 : index
    %0 = vector.load %arg3[%c0, %c0_0, %c0_1] : memref<1x2x128xf32, #tpu.memory_space<vmem>>, vector<1x2x128xf32>
    %1 = vector.shape_cast %0 : vector<1x2x128xf32> to vector<2x128xf32>
    %c0_2 = arith.constant 0 : index
    %c0_3 = arith.constant 0 : index
    %c0_4 = arith.constant 0 : index
    %2 = vector.load %arg2[%c0_2, %c0_3, %c0_4] : memref<1x256x128xf32, #tpu.memory_space<vmem>>, vector<1x256x128xf32>
    %3 = vector.shape_cast %2 : vector<1x256x128xf32> to vector<256x128xf32>
    %4 = vector.extract_strided_slice %1 {offsets = [0, 0], sizes = [1, 128], strides = [1, 1]} : vector<2x128xf32> to vector<1x128xf32>
    %5 = vector.broadcast %4 : vector<1x128xf32> to vector<256x128xf32>
    %6 = arith.subf %3, %5 : vector<256x128xf32>
    %7 = vector.extract_strided_slice %1 {offsets = [1, 0], sizes = [1, 128], strides = [1, 1]} : vector<2x128xf32> to vector<1x128xf32>
    %8 = vector.broadcast %7 : vector<1x128xf32> to vector<256x128xf32>
    %9 = arith.mulf %6, %8 : vector<256x128xf32>
    %cst = arith.constant 0.000000e+00 : f32
    %10 = vector.broadcast %cst : f32 to vector<256x128xf32>
    %11 = arith.maximumf %9, %10 : vector<256x128xf32>
    %12 = arith.truncf %11 : vector<256x128xf32> to vector<256x128xbf16>
    %c0_5 = arith.constant 0 : index
    %c0_6 = arith.constant 0 : index
    %c0_7 = arith.constant 0 : index
    %13 = vector.load %arg4[%c0_5, %c0_6, %c0_7] : memref<1x256x128xbf16, #tpu.memory_space<vmem>>, vector<1x256x128xbf16>
    %14 = vector.shape_cast %13 : vector<1x256x128xbf16> to vector<256x128xbf16>
    %15 = vector.shape_cast %12 : vector<256x128xbf16> to vector<1x256x128xbf16>
    tpu.vector_store %arg4[%c0_5, %c0_6, %c0_7], %15 {strides = array<i32>} : memref<1x256x128xbf16, #tpu.memory_space<vmem>>, vector<1x256x128xbf16>,
    return
  }
  func.func @transform_0(%arg0: i32, %arg1: i32) -> (i32, i32, i32) {
    %c0_i32 = arith.constant 0 : i32
    %c0_i32_0 = arith.constant 0 : i32
    return %arg0, %arg1, %c0_i32 : i32, i32, i32
  }
  func.func @transform_1(%arg0: i32, %arg1: i32) -> (i32, i32, i32) {
    %c0_i32 = arith.constant 0 : i32
    %c0_i32_0 = arith.constant 0 : i32
    %c0_i32_1 = arith.constant 0 : i32
    return %arg0, %c0_i32, %c0_i32_0 : i32, i32, i32
  }
  func.func @transform_2(%arg0: i32, %arg1: i32) -> (i32, i32, i32) {
    %c0_i32 = arith.constant 0 : i32
    %c0_i32_0 = arith.constant 0 : i32
    return %arg0, %arg1, %c0_i32 : i32, i32, i32
  }
}

module attributes {stable_mosaic.version = 11 : i64} {
  func.func @_mm_stats_kernel(%arg0: i32, %arg1: i32, %arg2: i32, %arg3: memref<1x64x128xbf16, #tpu.memory_space<vmem>>, %arg4: memref<128x128xbf16, #tpu.memory_space<vmem>>, %arg5: memref<1x64x128xf32, #tpu.memory_space<vmem>>, %arg6: memref<1x1x2x128xf32, #tpu.memory_space<vmem>>, %arg7: memref<64x128xf32, #tpu.memory_space<vmem>>) attributes {dimension_semantics = [#tpu.dimension_semantics<parallel>, #tpu.dimension_semantics<parallel>, #tpu.dimension_semantics<arbitrary>], iteration_bounds = array<i64: 2, 1, 1>, scalar_prefetch = 0 : i64, scratch_operands = 1 : i64, tpu.core_type = #tpu.core_type<tc>, window_params = [{transform_indices = @transform_0, window_bounds = array<i64: 1, 64, 128>}, {transform_indices = @transform_1, window_bounds = array<i64: 128, 128>}, {transform_indices = @transform_2, window_bounds = array<i64: 1, 64, 128>}, {transform_indices = @transform_3, window_bounds = array<i64: 1, 1, 2, 128>}]} {
    %c0_i32 = arith.constant 0 : i32
    %0 = arith.cmpi eq, %arg2, %c0_i32 : i32
    %1 = arith.extui %0 : i1 to i32
    %c0_i32_0 = arith.constant 0 : i32
    %2 = arith.cmpi ne, %1, %c0_i32_0 : i32
    scf.if %2 {
      %cst_11 = arith.constant 0.000000e+00 : f32
      %13 = vector.broadcast %cst_11 : f32 to vector<64x128xf32>
      %c0_12 = arith.constant 0 : index
      %c0_13 = arith.constant 0 : index
      %14 = vector.load %arg7[%c0_12, %c0_13] : memref<64x128xf32, #tpu.memory_space<vmem>>, vector<64x128xf32>
      tpu.vector_store %arg7[%c0_12, %c0_13], %13 {strides = array<i32>} : memref<64x128xf32, #tpu.memory_space<vmem>>, vector<64x128xf32>,
    } else {
    }
    %c0 = arith.constant 0 : index
    %c0_1 = arith.constant 0 : index
    %3 = vector.load %arg7[%c0, %c0_1] : memref<64x128xf32, #tpu.memory_space<vmem>>, vector<64x128xf32>
    %c0_2 = arith.constant 0 : index
    %c0_3 = arith.constant 0 : index
    %c0_4 = arith.constant 0 : index
    %4 = vector.load %arg3[%c0_2, %c0_3, %c0_4] : memref<1x64x128xbf16, #tpu.memory_space<vmem>>, vector<1x64x128xbf16>
    %5 = vector.shape_cast %4 : vector<1x64x128xbf16> to vector<64x128xbf16>
    %c0_5 = arith.constant 0 : index
    %c0_6 = arith.constant 0 : index
    %6 = vector.load %arg4[%c0_5, %c0_6] : memref<128x128xbf16, #tpu.memory_space<vmem>>, vector<128x128xbf16>
    %cst = arith.constant dense<0.000000e+00> : vector<64x128xf32>
    %7 = tpu.matmul %5, %6, %cst {dimension_numbers = #tpu.dot_dimension_numbers<[1], [0], [0], [1], [0, 0, 1, 1], [], []>} : vector<64x128xbf16>, vector<128x128xbf16>, vector<64x128xf32> -> vector<64x128xf32>
    %8 = arith.addf %3, %7 : vector<64x128xf32>
    %c0_7 = arith.constant 0 : index
    %c0_8 = arith.constant 0 : index
    %9 = vector.load %arg7[%c0_7, %c0_8] : memref<64x128xf32, #tpu.memory_space<vmem>>, vector<64x128xf32>
    tpu.vector_store %arg7[%c0_7, %c0_8], %8 {strides = array<i32>} : memref<64x128xf32, #tpu.memory_space<vmem>>, vector<64x128xf32>,
    %c0_i32_9 = arith.constant 0 : i32
    %10 = arith.cmpi eq, %arg2, %c0_i32_9 : i32
    %11 = arith.extui %10 : i1 to i32
    %c0_i32_10 = arith.constant 0 : i32
    %12 = arith.cmpi ne, %11, %c0_i32_10 : i32
    scf.if %12 {
      %c0_11 = arith.constant 0 : index
      %c0_12 = arith.constant 0 : index
      %13 = vector.load %arg7[%c0_11, %c0_12] : memref<64x128xf32, #tpu.memory_space<vmem>>, vector<64x128xf32>
      %c0_13 = arith.constant 0 : index
      %c0_14 = arith.constant 0 : index
      %c0_15 = arith.constant 0 : index
      %14 = vector.load %arg5[%c0_13, %c0_14, %c0_15] : memref<1x64x128xf32, #tpu.memory_space<vmem>>, vector<1x64x128xf32>
      %15 = vector.shape_cast %14 : vector<1x64x128xf32> to vector<64x128xf32>
      %16 = vector.shape_cast %13 : vector<64x128xf32> to vector<1x64x128xf32>
      tpu.vector_store %arg5[%c0_13, %c0_14, %c0_15], %16 {strides = array<i32>} : memref<1x64x128xf32, #tpu.memory_space<vmem>>, vector<1x64x128xf32>,
      %cst_16 = arith.constant dense<0.000000e+00> : vector<128xf32>
      %17 = vector.multi_reduction <add>, %13, %cst_16 [0] : vector<64x128xf32> to vector<128xf32>
      %18 = vector.shape_cast %17 : vector<128xf32> to vector<1x128xf32>
      %19 = arith.mulf %13, %13 : vector<64x128xf32>
      %cst_17 = arith.constant dense<0.000000e+00> : vector<128xf32>
      %20 = vector.multi_reduction <add>, %19, %cst_17 [0] : vector<64x128xf32> to vector<128xf32>
      %21 = vector.shape_cast %20 : vector<128xf32> to vector<1x128xf32>
      %22 = tpu.concatenate %18, %21 in 0 : vector<1x128xf32>, vector<1x128xf32> -> vector<2x128xf32>
      %c0_18 = arith.constant 0 : index
      %c0_19 = arith.constant 0 : index
      %c0_20 = arith.constant 0 : index
      %c0_21 = arith.constant 0 : index
      %23 = vector.load %arg6[%c0_18, %c0_19, %c0_20, %c0_21] : memref<1x1x2x128xf32, #tpu.memory_space<vmem>>, vector<1x1x2x128xf32>
      %24 = vector.shape_cast %23 : vector<1x1x2x128xf32> to vector<2x128xf32>
      %25 = vector.shape_cast %22 : vector<2x128xf32> to vector<1x1x2x128xf32>
      tpu.vector_store %arg6[%c0_18, %c0_19, %c0_20, %c0_21], %25 {strides = array<i32>} : memref<1x1x2x128xf32, #tpu.memory_space<vmem>>, vector<1x1x2x128xf32>,
    } else {
    }
    return
  }
  func.func @transform_0(%arg0: i32, %arg1: i32, %arg2: i32) -> (i32, i32, i32) {
    %c0_i32 = arith.constant 0 : i32
    return %arg0, %arg1, %arg2 : i32, i32, i32
  }
  func.func @transform_1(%arg0: i32, %arg1: i32, %arg2: i32) -> (i32, i32) {
    %c0_i32 = arith.constant 0 : i32
    %c0_i32_0 = arith.constant 0 : i32
    return %arg2, %c0_i32 : i32, i32
  }
  func.func @transform_2(%arg0: i32, %arg1: i32, %arg2: i32) -> (i32, i32, i32) {
    %c0_i32 = arith.constant 0 : i32
    %c0_i32_0 = arith.constant 0 : i32
    return %arg0, %arg1, %c0_i32 : i32, i32, i32
  }
  func.func @transform_3(%arg0: i32, %arg1: i32, %arg2: i32) -> (i32, i32, i32, i32) {
    %c0_i32 = arith.constant 0 : i32
    %c0_i32_0 = arith.constant 0 : i32
    %c0_i32_1 = arith.constant 0 : i32
    return %arg0, %arg1, %c0_i32, %c0_i32_0 : i32, i32, i32, i32
  }
}

module attributes {stable_mosaic.version = 11 : i64} {
  func.func @_norm_kernel(%arg0: i32, %arg1: i32, %arg2: memref<1x64x128xf32, #tpu.memory_space<vmem>>, %arg3: memref<1x2x128xf32, #tpu.memory_space<vmem>>, %arg4: memref<1x64x128xbf16, #tpu.memory_space<vmem>>) attributes {dimension_semantics = [#tpu.dimension_semantics<parallel>, #tpu.dimension_semantics<parallel>], iteration_bounds = array<i64: 2, 1>, scalar_prefetch = 0 : i64, scratch_operands = 0 : i64, tpu.core_type = #tpu.core_type<tc>, window_params = [{transform_indices = @transform_0, window_bounds = array<i64: 1, 64, 128>}, {transform_indices = @transform_1, window_bounds = array<i64: 1, 2, 128>}, {transform_indices = @transform_2, window_bounds = array<i64: 1, 64, 128>}]} {
    %c0 = arith.constant 0 : index
    %c0_0 = arith.constant 0 : index
    %c0_1 = arith.constant 0 : index
    %0 = vector.load %arg3[%c0, %c0_0, %c0_1] : memref<1x2x128xf32, #tpu.memory_space<vmem>>, vector<1x2x128xf32>
    %1 = vector.shape_cast %0 : vector<1x2x128xf32> to vector<2x128xf32>
    %c0_2 = arith.constant 0 : index
    %c0_3 = arith.constant 0 : index
    %c0_4 = arith.constant 0 : index
    %2 = vector.load %arg2[%c0_2, %c0_3, %c0_4] : memref<1x64x128xf32, #tpu.memory_space<vmem>>, vector<1x64x128xf32>
    %3 = vector.shape_cast %2 : vector<1x64x128xf32> to vector<64x128xf32>
    %4 = vector.extract_strided_slice %1 {offsets = [0, 0], sizes = [1, 128], strides = [1, 1]} : vector<2x128xf32> to vector<1x128xf32>
    %5 = vector.broadcast %4 : vector<1x128xf32> to vector<64x128xf32>
    %6 = arith.subf %3, %5 : vector<64x128xf32>
    %7 = vector.extract_strided_slice %1 {offsets = [1, 0], sizes = [1, 128], strides = [1, 1]} : vector<2x128xf32> to vector<1x128xf32>
    %8 = vector.broadcast %7 : vector<1x128xf32> to vector<64x128xf32>
    %9 = arith.mulf %6, %8 : vector<64x128xf32>
    %cst = arith.constant 0.000000e+00 : f32
    %10 = vector.broadcast %cst : f32 to vector<64x128xf32>
    %11 = arith.maximumf %9, %10 : vector<64x128xf32>
    %12 = arith.truncf %11 : vector<64x128xf32> to vector<64x128xbf16>
    %c0_5 = arith.constant 0 : index
    %c0_6 = arith.constant 0 : index
    %c0_7 = arith.constant 0 : index
    %13 = vector.load %arg4[%c0_5, %c0_6, %c0_7] : memref<1x64x128xbf16, #tpu.memory_space<vmem>>, vector<1x64x128xbf16>
    %14 = vector.shape_cast %13 : vector<1x64x128xbf16> to vector<64x128xbf16>
    %15 = vector.shape_cast %12 : vector<64x128xbf16> to vector<1x64x128xbf16>
    tpu.vector_store %arg4[%c0_5, %c0_6, %c0_7], %15 {strides = array<i32>} : memref<1x64x128xbf16, #tpu.memory_space<vmem>>, vector<1x64x128xbf16>,
    return
  }
  func.func @transform_0(%arg0: i32, %arg1: i32) -> (i32, i32, i32) {
    %c0_i32 = arith.constant 0 : i32
    %c0_i32_0 = arith.constant 0 : i32
    return %arg0, %arg1, %c0_i32 : i32, i32, i32
  }
  func.func @transform_1(%arg0: i32, %arg1: i32) -> (i32, i32, i32) {
    %c0_i32 = arith.constant 0 : i32
    %c0_i32_0 = arith.constant 0 : i32
    %c0_i32_1 = arith.constant 0 : i32
    return %arg0, %c0_i32, %c0_i32_0 : i32, i32, i32
  }
  func.func @transform_2(%arg0: i32, %arg1: i32) -> (i32, i32, i32) {
    %c0_i32 = arith.constant 0 : i32
    %c0_i32_0 = arith.constant 0 : i32
    return %arg0, %arg1, %c0_i32 : i32, i32, i32
  }
}

module attributes {stable_mosaic.version = 11 : i64} {
  func.func @_mm_stats_kernel(%arg0: i32, %arg1: i32, %arg2: i32, %arg3: memref<1x64x256xbf16, #tpu.memory_space<vmem>>, %arg4: memref<256x128xbf16, #tpu.memory_space<vmem>>, %arg5: memref<1x64x128xf32, #tpu.memory_space<vmem>>, %arg6: memref<1x1x2x128xf32, #tpu.memory_space<vmem>>, %arg7: memref<64x128xf32, #tpu.memory_space<vmem>>) attributes {dimension_semantics = [#tpu.dimension_semantics<parallel>, #tpu.dimension_semantics<parallel>, #tpu.dimension_semantics<arbitrary>], iteration_bounds = array<i64: 2, 1, 1>, scalar_prefetch = 0 : i64, scratch_operands = 1 : i64, tpu.core_type = #tpu.core_type<tc>, window_params = [{transform_indices = @transform_0, window_bounds = array<i64: 1, 64, 256>}, {transform_indices = @transform_1, window_bounds = array<i64: 256, 128>}, {transform_indices = @transform_2, window_bounds = array<i64: 1, 64, 128>}, {transform_indices = @transform_3, window_bounds = array<i64: 1, 1, 2, 128>}]} {
    %c0_i32 = arith.constant 0 : i32
    %0 = arith.cmpi eq, %arg2, %c0_i32 : i32
    %1 = arith.extui %0 : i1 to i32
    %c0_i32_0 = arith.constant 0 : i32
    %2 = arith.cmpi ne, %1, %c0_i32_0 : i32
    scf.if %2 {
      %cst_11 = arith.constant 0.000000e+00 : f32
      %13 = vector.broadcast %cst_11 : f32 to vector<64x128xf32>
      %c0_12 = arith.constant 0 : index
      %c0_13 = arith.constant 0 : index
      %14 = vector.load %arg7[%c0_12, %c0_13] : memref<64x128xf32, #tpu.memory_space<vmem>>, vector<64x128xf32>
      tpu.vector_store %arg7[%c0_12, %c0_13], %13 {strides = array<i32>} : memref<64x128xf32, #tpu.memory_space<vmem>>, vector<64x128xf32>,
    } else {
    }
    %c0 = arith.constant 0 : index
    %c0_1 = arith.constant 0 : index
    %3 = vector.load %arg7[%c0, %c0_1] : memref<64x128xf32, #tpu.memory_space<vmem>>, vector<64x128xf32>
    %c0_2 = arith.constant 0 : index
    %c0_3 = arith.constant 0 : index
    %c0_4 = arith.constant 0 : index
    %4 = vector.load %arg3[%c0_2, %c0_3, %c0_4] : memref<1x64x256xbf16, #tpu.memory_space<vmem>>, vector<1x64x256xbf16>
    %5 = vector.shape_cast %4 : vector<1x64x256xbf16> to vector<64x256xbf16>
    %c0_5 = arith.constant 0 : index
    %c0_6 = arith.constant 0 : index
    %6 = vector.load %arg4[%c0_5, %c0_6] : memref<256x128xbf16, #tpu.memory_space<vmem>>, vector<256x128xbf16>
    %cst = arith.constant dense<0.000000e+00> : vector<64x128xf32>
    %7 = tpu.matmul %5, %6, %cst {dimension_numbers = #tpu.dot_dimension_numbers<[1], [0], [0], [1], [0, 0, 1, 1], [], []>} : vector<64x256xbf16>, vector<256x128xbf16>, vector<64x128xf32> -> vector<64x128xf32>
    %8 = arith.addf %3, %7 : vector<64x128xf32>
    %c0_7 = arith.constant 0 : index
    %c0_8 = arith.constant 0 : index
    %9 = vector.load %arg7[%c0_7, %c0_8] : memref<64x128xf32, #tpu.memory_space<vmem>>, vector<64x128xf32>
    tpu.vector_store %arg7[%c0_7, %c0_8], %8 {strides = array<i32>} : memref<64x128xf32, #tpu.memory_space<vmem>>, vector<64x128xf32>,
    %c0_i32_9 = arith.constant 0 : i32
    %10 = arith.cmpi eq, %arg2, %c0_i32_9 : i32
    %11 = arith.extui %10 : i1 to i32
    %c0_i32_10 = arith.constant 0 : i32
    %12 = arith.cmpi ne, %11, %c0_i32_10 : i32
    scf.if %12 {
      %c0_11 = arith.constant 0 : index
      %c0_12 = arith.constant 0 : index
      %13 = vector.load %arg7[%c0_11, %c0_12] : memref<64x128xf32, #tpu.memory_space<vmem>>, vector<64x128xf32>
      %c0_13 = arith.constant 0 : index
      %c0_14 = arith.constant 0 : index
      %c0_15 = arith.constant 0 : index
      %14 = vector.load %arg5[%c0_13, %c0_14, %c0_15] : memref<1x64x128xf32, #tpu.memory_space<vmem>>, vector<1x64x128xf32>
      %15 = vector.shape_cast %14 : vector<1x64x128xf32> to vector<64x128xf32>
      %16 = vector.shape_cast %13 : vector<64x128xf32> to vector<1x64x128xf32>
      tpu.vector_store %arg5[%c0_13, %c0_14, %c0_15], %16 {strides = array<i32>} : memref<1x64x128xf32, #tpu.memory_space<vmem>>, vector<1x64x128xf32>,
      %cst_16 = arith.constant dense<0.000000e+00> : vector<128xf32>
      %17 = vector.multi_reduction <add>, %13, %cst_16 [0] : vector<64x128xf32> to vector<128xf32>
      %18 = vector.shape_cast %17 : vector<128xf32> to vector<1x128xf32>
      %19 = arith.mulf %13, %13 : vector<64x128xf32>
      %cst_17 = arith.constant dense<0.000000e+00> : vector<128xf32>
      %20 = vector.multi_reduction <add>, %19, %cst_17 [0] : vector<64x128xf32> to vector<128xf32>
      %21 = vector.shape_cast %20 : vector<128xf32> to vector<1x128xf32>
      %22 = tpu.concatenate %18, %21 in 0 : vector<1x128xf32>, vector<1x128xf32> -> vector<2x128xf32>
      %c0_18 = arith.constant 0 : index
      %c0_19 = arith.constant 0 : index
      %c0_20 = arith.constant 0 : index
      %c0_21 = arith.constant 0 : index
      %23 = vector.load %arg6[%c0_18, %c0_19, %c0_20, %c0_21] : memref<1x1x2x128xf32, #tpu.memory_space<vmem>>, vector<1x1x2x128xf32>
      %24 = vector.shape_cast %23 : vector<1x1x2x128xf32> to vector<2x128xf32>
      %25 = vector.shape_cast %22 : vector<2x128xf32> to vector<1x1x2x128xf32>
      tpu.vector_store %arg6[%c0_18, %c0_19, %c0_20, %c0_21], %25 {strides = array<i32>} : memref<1x1x2x128xf32, #tpu.memory_space<vmem>>, vector<1x1x2x128xf32>,
    } else {
    }
    return
  }
  func.func @transform_0(%arg0: i32, %arg1: i32, %arg2: i32) -> (i32, i32, i32) {
    %c0_i32 = arith.constant 0 : i32
    return %arg0, %arg1, %arg2 : i32, i32, i32
  }
  func.func @transform_1(%arg0: i32, %arg1: i32, %arg2: i32) -> (i32, i32) {
    %c0_i32 = arith.constant 0 : i32
    %c0_i32_0 = arith.constant 0 : i32
    return %arg2, %c0_i32 : i32, i32
  }
  func.func @transform_2(%arg0: i32, %arg1: i32, %arg2: i32) -> (i32, i32, i32) {
    %c0_i32 = arith.constant 0 : i32
    %c0_i32_0 = arith.constant 0 : i32
    return %arg0, %arg1, %c0_i32 : i32, i32, i32
  }
  func.func @transform_3(%arg0: i32, %arg1: i32, %arg2: i32) -> (i32, i32, i32, i32) {
    %c0_i32 = arith.constant 0 : i32
    %c0_i32_0 = arith.constant 0 : i32
    %c0_i32_1 = arith.constant 0 : i32
    return %arg0, %arg1, %c0_i32, %c0_i32_0 : i32, i32, i32, i32
  }
}

module attributes {stable_mosaic.version = 11 : i64} {
  func.func @_norm_kernel(%arg0: i32, %arg1: i32, %arg2: memref<1x64x128xf32, #tpu.memory_space<vmem>>, %arg3: memref<1x2x128xf32, #tpu.memory_space<vmem>>, %arg4: memref<1x64x128xbf16, #tpu.memory_space<vmem>>, %arg5: memref<1x64x128xbf16, #tpu.memory_space<vmem>>) attributes {dimension_semantics = [#tpu.dimension_semantics<parallel>, #tpu.dimension_semantics<parallel>], iteration_bounds = array<i64: 2, 1>, scalar_prefetch = 0 : i64, scratch_operands = 0 : i64, tpu.core_type = #tpu.core_type<tc>, window_params = [{transform_indices = @transform_0, window_bounds = array<i64: 1, 64, 128>}, {transform_indices = @transform_1, window_bounds = array<i64: 1, 2, 128>}, {transform_indices = @transform_2, window_bounds = array<i64: 1, 64, 128>}, {transform_indices = @transform_3, window_bounds = array<i64: 1, 64, 128>}]} {
    %c0 = arith.constant 0 : index
    %c0_0 = arith.constant 0 : index
    %c0_1 = arith.constant 0 : index
    %0 = vector.load %arg3[%c0, %c0_0, %c0_1] : memref<1x2x128xf32, #tpu.memory_space<vmem>>, vector<1x2x128xf32>
    %1 = vector.shape_cast %0 : vector<1x2x128xf32> to vector<2x128xf32>
    %c0_2 = arith.constant 0 : index
    %c0_3 = arith.constant 0 : index
    %c0_4 = arith.constant 0 : index
    %2 = vector.load %arg2[%c0_2, %c0_3, %c0_4] : memref<1x64x128xf32, #tpu.memory_space<vmem>>, vector<1x64x128xf32>
    %3 = vector.shape_cast %2 : vector<1x64x128xf32> to vector<64x128xf32>
    %4 = vector.extract_strided_slice %1 {offsets = [0, 0], sizes = [1, 128], strides = [1, 1]} : vector<2x128xf32> to vector<1x128xf32>
    %5 = vector.broadcast %4 : vector<1x128xf32> to vector<64x128xf32>
    %6 = arith.subf %3, %5 : vector<64x128xf32>
    %7 = vector.extract_strided_slice %1 {offsets = [1, 0], sizes = [1, 128], strides = [1, 1]} : vector<2x128xf32> to vector<1x128xf32>
    %8 = vector.broadcast %7 : vector<1x128xf32> to vector<64x128xf32>
    %9 = arith.mulf %6, %8 : vector<64x128xf32>
    %c0_5 = arith.constant 0 : index
    %c0_6 = arith.constant 0 : index
    %c0_7 = arith.constant 0 : index
    %10 = vector.load %arg4[%c0_5, %c0_6, %c0_7] : memref<1x64x128xbf16, #tpu.memory_space<vmem>>, vector<1x64x128xbf16>
    %11 = vector.shape_cast %10 : vector<1x64x128xbf16> to vector<64x128xbf16>
    %12 = arith.extf %11 : vector<64x128xbf16> to vector<64x128xf32>
    %13 = arith.addf %9, %12 : vector<64x128xf32>
    %14 = arith.truncf %13 : vector<64x128xf32> to vector<64x128xbf16>
    %c0_8 = arith.constant 0 : index
    %c0_9 = arith.constant 0 : index
    %c0_10 = arith.constant 0 : index
    %15 = vector.load %arg5[%c0_8, %c0_9, %c0_10] : memref<1x64x128xbf16, #tpu.memory_space<vmem>>, vector<1x64x128xbf16>
    %16 = vector.shape_cast %15 : vector<1x64x128xbf16> to vector<64x128xbf16>
    %17 = vector.shape_cast %14 : vector<64x128xbf16> to vector<1x64x128xbf16>
    tpu.vector_store %arg5[%c0_8, %c0_9, %c0_10], %17 {strides = array<i32>} : memref<1x64x128xbf16, #tpu.memory_space<vmem>>, vector<1x64x128xbf16>,
    return
  }
  func.func @transform_0(%arg0: i32, %arg1: i32) -> (i32, i32, i32) {
    %c0_i32 = arith.constant 0 : i32
    %c0_i32_0 = arith.constant 0 : i32
    return %arg0, %arg1, %c0_i32 : i32, i32, i32
  }
  func.func @transform_1(%arg0: i32, %arg1: i32) -> (i32, i32, i32) {
    %c0_i32 = arith.constant 0 : i32
    %c0_i32_0 = arith.constant 0 : i32
    %c0_i32_1 = arith.constant 0 : i32
    return %arg0, %c0_i32, %c0_i32_0 : i32, i32, i32
  }
  func.func @transform_2(%arg0: i32, %arg1: i32) -> (i32, i32, i32) {
    %c0_i32 = arith.constant 0 : i32
    %c0_i32_0 = arith.constant 0 : i32
    return %arg0, %arg1, %c0_i32 : i32, i32, i32
  }
  func.func @transform_3(%arg0: i32, %arg1: i32) -> (i32, i32, i32) {
    %c0_i32 = arith.constant 0 : i32
    %c0_i32_0 = arith.constant 0 : i32
    return %arg0, %arg1, %c0_i32 : i32, i32, i32
  }
}

module attributes {stable_mosaic.version = 11 : i64} {
  func.func @_mm_stats_kernel(%arg0: i32, %arg1: i32, %arg2: i32, %arg3: memref<1x64x128xbf16, #tpu.memory_space<vmem>>, %arg4: memref<128x512xbf16, #tpu.memory_space<vmem>>, %arg5: memref<1x64x512xf32, #tpu.memory_space<vmem>>, %arg6: memref<1x1x2x512xf32, #tpu.memory_space<vmem>>, %arg7: memref<64x512xf32, #tpu.memory_space<vmem>>) attributes {dimension_semantics = [#tpu.dimension_semantics<parallel>, #tpu.dimension_semantics<parallel>, #tpu.dimension_semantics<arbitrary>], iteration_bounds = array<i64: 2, 1, 1>, scalar_prefetch = 0 : i64, scratch_operands = 1 : i64, tpu.core_type = #tpu.core_type<tc>, window_params = [{transform_indices = @transform_0, window_bounds = array<i64: 1, 64, 128>}, {transform_indices = @transform_1, window_bounds = array<i64: 128, 512>}, {transform_indices = @transform_2, window_bounds = array<i64: 1, 64, 512>}, {transform_indices = @transform_3, window_bounds = array<i64: 1, 1, 2, 512>}]} {
    %c0_i32 = arith.constant 0 : i32
    %0 = arith.cmpi eq, %arg2, %c0_i32 : i32
    %1 = arith.extui %0 : i1 to i32
    %c0_i32_0 = arith.constant 0 : i32
    %2 = arith.cmpi ne, %1, %c0_i32_0 : i32
    scf.if %2 {
      %cst_11 = arith.constant 0.000000e+00 : f32
      %13 = vector.broadcast %cst_11 : f32 to vector<64x512xf32>
      %c0_12 = arith.constant 0 : index
      %c0_13 = arith.constant 0 : index
      %14 = vector.load %arg7[%c0_12, %c0_13] : memref<64x512xf32, #tpu.memory_space<vmem>>, vector<64x512xf32>
      tpu.vector_store %arg7[%c0_12, %c0_13], %13 {strides = array<i32>} : memref<64x512xf32, #tpu.memory_space<vmem>>, vector<64x512xf32>,
    } else {
    }
    %c0 = arith.constant 0 : index
    %c0_1 = arith.constant 0 : index
    %3 = vector.load %arg7[%c0, %c0_1] : memref<64x512xf32, #tpu.memory_space<vmem>>, vector<64x512xf32>
    %c0_2 = arith.constant 0 : index
    %c0_3 = arith.constant 0 : index
    %c0_4 = arith.constant 0 : index
    %4 = vector.load %arg3[%c0_2, %c0_3, %c0_4] : memref<1x64x128xbf16, #tpu.memory_space<vmem>>, vector<1x64x128xbf16>
    %5 = vector.shape_cast %4 : vector<1x64x128xbf16> to vector<64x128xbf16>
    %c0_5 = arith.constant 0 : index
    %c0_6 = arith.constant 0 : index
    %6 = vector.load %arg4[%c0_5, %c0_6] : memref<128x512xbf16, #tpu.memory_space<vmem>>, vector<128x512xbf16>
    %cst = arith.constant dense<0.000000e+00> : vector<64x512xf32>
    %7 = tpu.matmul %5, %6, %cst {dimension_numbers = #tpu.dot_dimension_numbers<[1], [0], [0], [1], [0, 0, 1, 1], [], []>} : vector<64x128xbf16>, vector<128x512xbf16>, vector<64x512xf32> -> vector<64x512xf32>
    %8 = arith.addf %3, %7 : vector<64x512xf32>
    %c0_7 = arith.constant 0 : index
    %c0_8 = arith.constant 0 : index
    %9 = vector.load %arg7[%c0_7, %c0_8] : memref<64x512xf32, #tpu.memory_space<vmem>>, vector<64x512xf32>
    tpu.vector_store %arg7[%c0_7, %c0_8], %8 {strides = array<i32>} : memref<64x512xf32, #tpu.memory_space<vmem>>, vector<64x512xf32>,
    %c0_i32_9 = arith.constant 0 : i32
    %10 = arith.cmpi eq, %arg2, %c0_i32_9 : i32
    %11 = arith.extui %10 : i1 to i32
    %c0_i32_10 = arith.constant 0 : i32
    %12 = arith.cmpi ne, %11, %c0_i32_10 : i32
    scf.if %12 {
      %c0_11 = arith.constant 0 : index
      %c0_12 = arith.constant 0 : index
      %13 = vector.load %arg7[%c0_11, %c0_12] : memref<64x512xf32, #tpu.memory_space<vmem>>, vector<64x512xf32>
      %c0_13 = arith.constant 0 : index
      %c0_14 = arith.constant 0 : index
      %c0_15 = arith.constant 0 : index
      %14 = vector.load %arg5[%c0_13, %c0_14, %c0_15] : memref<1x64x512xf32, #tpu.memory_space<vmem>>, vector<1x64x512xf32>
      %15 = vector.shape_cast %14 : vector<1x64x512xf32> to vector<64x512xf32>
      %16 = vector.shape_cast %13 : vector<64x512xf32> to vector<1x64x512xf32>
      tpu.vector_store %arg5[%c0_13, %c0_14, %c0_15], %16 {strides = array<i32>} : memref<1x64x512xf32, #tpu.memory_space<vmem>>, vector<1x64x512xf32>,
      %cst_16 = arith.constant dense<0.000000e+00> : vector<512xf32>
      %17 = vector.multi_reduction <add>, %13, %cst_16 [0] : vector<64x512xf32> to vector<512xf32>
      %18 = vector.shape_cast %17 : vector<512xf32> to vector<1x512xf32>
      %19 = arith.mulf %13, %13 : vector<64x512xf32>
      %cst_17 = arith.constant dense<0.000000e+00> : vector<512xf32>
      %20 = vector.multi_reduction <add>, %19, %cst_17 [0] : vector<64x512xf32> to vector<512xf32>
      %21 = vector.shape_cast %20 : vector<512xf32> to vector<1x512xf32>
      %22 = tpu.concatenate %18, %21 in 0 : vector<1x512xf32>, vector<1x512xf32> -> vector<2x512xf32>
      %c0_18 = arith.constant 0 : index
      %c0_19 = arith.constant 0 : index
      %c0_20 = arith.constant 0 : index
      %c0_21 = arith.constant 0 : index
      %23 = vector.load %arg6[%c0_18, %c0_19, %c0_20, %c0_21] : memref<1x1x2x512xf32, #tpu.memory_space<vmem>>, vector<1x1x2x512xf32>
      %24 = vector.shape_cast %23 : vector<1x1x2x512xf32> to vector<2x512xf32>
      %25 = vector.shape_cast %22 : vector<2x512xf32> to vector<1x1x2x512xf32>
      tpu.vector_store %arg6[%c0_18, %c0_19, %c0_20, %c0_21], %25 {strides = array<i32>} : memref<1x1x2x512xf32, #tpu.memory_space<vmem>>, vector<1x1x2x512xf32>,
    } else {
    }
    return
  }
  func.func @transform_0(%arg0: i32, %arg1: i32, %arg2: i32) -> (i32, i32, i32) {
    %c0_i32 = arith.constant 0 : i32
    return %arg0, %arg1, %arg2 : i32, i32, i32
  }
  func.func @transform_1(%arg0: i32, %arg1: i32, %arg2: i32) -> (i32, i32) {
    %c0_i32 = arith.constant 0 : i32
    %c0_i32_0 = arith.constant 0 : i32
    return %arg2, %c0_i32 : i32, i32
  }
  func.func @transform_2(%arg0: i32, %arg1: i32, %arg2: i32) -> (i32, i32, i32) {
    %c0_i32 = arith.constant 0 : i32
    %c0_i32_0 = arith.constant 0 : i32
    return %arg0, %arg1, %c0_i32 : i32, i32, i32
  }
  func.func @transform_3(%arg0: i32, %arg1: i32, %arg2: i32) -> (i32, i32, i32, i32) {
    %c0_i32 = arith.constant 0 : i32
    %c0_i32_0 = arith.constant 0 : i32
    %c0_i32_1 = arith.constant 0 : i32
    return %arg0, %arg1, %c0_i32, %c0_i32_0 : i32, i32, i32, i32
  }
}

module attributes {stable_mosaic.version = 11 : i64} {
  func.func @_norm_kernel(%arg0: i32, %arg1: i32, %arg2: memref<1x64x512xf32, #tpu.memory_space<vmem>>, %arg3: memref<1x2x512xf32, #tpu.memory_space<vmem>>, %arg4: memref<1x64x512xbf16, #tpu.memory_space<vmem>>) attributes {dimension_semantics = [#tpu.dimension_semantics<parallel>, #tpu.dimension_semantics<parallel>], iteration_bounds = array<i64: 2, 1>, scalar_prefetch = 0 : i64, scratch_operands = 0 : i64, tpu.core_type = #tpu.core_type<tc>, window_params = [{transform_indices = @transform_0, window_bounds = array<i64: 1, 64, 512>}, {transform_indices = @transform_1, window_bounds = array<i64: 1, 2, 512>}, {transform_indices = @transform_2, window_bounds = array<i64: 1, 64, 512>}]} {
    %c0 = arith.constant 0 : index
    %c0_0 = arith.constant 0 : index
    %c0_1 = arith.constant 0 : index
    %0 = vector.load %arg3[%c0, %c0_0, %c0_1] : memref<1x2x512xf32, #tpu.memory_space<vmem>>, vector<1x2x512xf32>
    %1 = vector.shape_cast %0 : vector<1x2x512xf32> to vector<2x512xf32>
    %c0_2 = arith.constant 0 : index
    %c0_3 = arith.constant 0 : index
    %c0_4 = arith.constant 0 : index
    %2 = vector.load %arg2[%c0_2, %c0_3, %c0_4] : memref<1x64x512xf32, #tpu.memory_space<vmem>>, vector<1x64x512xf32>
    %3 = vector.shape_cast %2 : vector<1x64x512xf32> to vector<64x512xf32>
    %4 = vector.extract_strided_slice %1 {offsets = [0, 0], sizes = [1, 512], strides = [1, 1]} : vector<2x512xf32> to vector<1x512xf32>
    %5 = vector.broadcast %4 : vector<1x512xf32> to vector<64x512xf32>
    %6 = arith.subf %3, %5 : vector<64x512xf32>
    %7 = vector.extract_strided_slice %1 {offsets = [1, 0], sizes = [1, 512], strides = [1, 1]} : vector<2x512xf32> to vector<1x512xf32>
    %8 = vector.broadcast %7 : vector<1x512xf32> to vector<64x512xf32>
    %9 = arith.mulf %6, %8 : vector<64x512xf32>
    %cst = arith.constant 0.000000e+00 : f32
    %10 = vector.broadcast %cst : f32 to vector<64x512xf32>
    %11 = arith.maximumf %9, %10 : vector<64x512xf32>
    %12 = arith.truncf %11 : vector<64x512xf32> to vector<64x512xbf16>
    %c0_5 = arith.constant 0 : index
    %c0_6 = arith.constant 0 : index
    %c0_7 = arith.constant 0 : index
    %13 = vector.load %arg4[%c0_5, %c0_6, %c0_7] : memref<1x64x512xbf16, #tpu.memory_space<vmem>>, vector<1x64x512xbf16>
    %14 = vector.shape_cast %13 : vector<1x64x512xbf16> to vector<64x512xbf16>
    %15 = vector.shape_cast %12 : vector<64x512xbf16> to vector<1x64x512xbf16>
    tpu.vector_store %arg4[%c0_5, %c0_6, %c0_7], %15 {strides = array<i32>} : memref<1x64x512xbf16, #tpu.memory_space<vmem>>, vector<1x64x512xbf16>,
    return
  }
  func.func @transform_0(%arg0: i32, %arg1: i32) -> (i32, i32, i32) {
    %c0_i32 = arith.constant 0 : i32
    %c0_i32_0 = arith.constant 0 : i32
    return %arg0, %arg1, %c0_i32 : i32, i32, i32
  }
  func.func @transform_1(%arg0: i32, %arg1: i32) -> (i32, i32, i32) {
    %c0_i32 = arith.constant 0 : i32
    %c0_i32_0 = arith.constant 0 : i32
    %c0_i32_1 = arith.constant 0 : i32
    return %arg0, %c0_i32, %c0_i32_0 : i32, i32, i32
  }
  func.func @transform_2(%arg0: i32, %arg1: i32) -> (i32, i32, i32) {
    %c0_i32 = arith.constant 0 : i32
    %c0_i32_0 = arith.constant 0 : i32
    return %arg0, %arg1, %c0_i32 : i32, i32, i32
  }
}

module attributes {stable_mosaic.version = 11 : i64} {
  func.func @_mm_bias_act_kernel(%arg0: i32, %arg1: i32, %arg2: i32, %arg3: memref<1x256x512xbf16, #tpu.memory_space<vmem>>, %arg4: memref<512x128xbf16, #tpu.memory_space<vmem>>, %arg5: memref<1x128xf32, #tpu.memory_space<vmem>>, %arg6: memref<1x256x128xf32, #tpu.memory_space<vmem>>, %arg7: memref<256x128xf32, #tpu.memory_space<vmem>>) attributes {dimension_semantics = [#tpu.dimension_semantics<parallel>, #tpu.dimension_semantics<parallel>, #tpu.dimension_semantics<arbitrary>], iteration_bounds = array<i64: 2, 1, 1>, scalar_prefetch = 0 : i64, scratch_operands = 1 : i64, tpu.core_type = #tpu.core_type<tc>, window_params = [{transform_indices = @transform_0, window_bounds = array<i64: 1, 256, 512>}, {transform_indices = @transform_1, window_bounds = array<i64: 512, 128>}, {pipeline_mode = #tpu.pipeline_mode<synchronous>, transform_indices = @transform_2, window_bounds = array<i64: 1, 128>}, {transform_indices = @transform_3, window_bounds = array<i64: 1, 256, 128>}]} {
    %c0_i32 = arith.constant 0 : i32
    %0 = arith.cmpi eq, %arg2, %c0_i32 : i32
    %1 = arith.extui %0 : i1 to i32
    %c0_i32_0 = arith.constant 0 : i32
    %2 = arith.cmpi ne, %1, %c0_i32_0 : i32
    scf.if %2 {
      %cst_11 = arith.constant 0.000000e+00 : f32
      %13 = vector.broadcast %cst_11 : f32 to vector<256x128xf32>
      %c0_12 = arith.constant 0 : index
      %c0_13 = arith.constant 0 : index
      %14 = vector.load %arg7[%c0_12, %c0_13] : memref<256x128xf32, #tpu.memory_space<vmem>>, vector<256x128xf32>
      tpu.vector_store %arg7[%c0_12, %c0_13], %13 {strides = array<i32>} : memref<256x128xf32, #tpu.memory_space<vmem>>, vector<256x128xf32>,
    } else {
    }
    %c0 = arith.constant 0 : index
    %c0_1 = arith.constant 0 : index
    %3 = vector.load %arg7[%c0, %c0_1] : memref<256x128xf32, #tpu.memory_space<vmem>>, vector<256x128xf32>
    %c0_2 = arith.constant 0 : index
    %c0_3 = arith.constant 0 : index
    %c0_4 = arith.constant 0 : index
    %4 = vector.load %arg3[%c0_2, %c0_3, %c0_4] : memref<1x256x512xbf16, #tpu.memory_space<vmem>>, vector<1x256x512xbf16>
    %5 = vector.shape_cast %4 : vector<1x256x512xbf16> to vector<256x512xbf16>
    %c0_5 = arith.constant 0 : index
    %c0_6 = arith.constant 0 : index
    %6 = vector.load %arg4[%c0_5, %c0_6] : memref<512x128xbf16, #tpu.memory_space<vmem>>, vector<512x128xbf16>
    %cst = arith.constant dense<0.000000e+00> : vector<256x128xf32>
    %7 = tpu.matmul %5, %6, %cst {dimension_numbers = #tpu.dot_dimension_numbers<[1], [0], [0], [1], [0, 0, 1, 1], [], []>} : vector<256x512xbf16>, vector<512x128xbf16>, vector<256x128xf32> -> vector<256x128xf32>
    %8 = arith.addf %3, %7 : vector<256x128xf32>
    %c0_7 = arith.constant 0 : index
    %c0_8 = arith.constant 0 : index
    %9 = vector.load %arg7[%c0_7, %c0_8] : memref<256x128xf32, #tpu.memory_space<vmem>>, vector<256x128xf32>
    tpu.vector_store %arg7[%c0_7, %c0_8], %8 {strides = array<i32>} : memref<256x128xf32, #tpu.memory_space<vmem>>, vector<256x128xf32>,
    %c0_i32_9 = arith.constant 0 : i32
    %10 = arith.cmpi eq, %arg2, %c0_i32_9 : i32
    %11 = arith.extui %10 : i1 to i32
    %c0_i32_10 = arith.constant 0 : i32
    %12 = arith.cmpi ne, %11, %c0_i32_10 : i32
    scf.if %12 {
      %c0_11 = arith.constant 0 : index
      %c0_12 = arith.constant 0 : index
      %13 = vector.load %arg7[%c0_11, %c0_12] : memref<256x128xf32, #tpu.memory_space<vmem>>, vector<256x128xf32>
      %c0_13 = arith.constant 0 : index
      %c0_14 = arith.constant 0 : index
      %14 = vector.load %arg5[%c0_13, %c0_14] : memref<1x128xf32, #tpu.memory_space<vmem>>, vector<1x128xf32>
      %15 = vector.broadcast %14 : vector<1x128xf32> to vector<256x128xf32>
      %16 = arith.addf %13, %15 : vector<256x128xf32>
      %17 = math.tanh %16 : vector<256x128xf32>
      %c0_15 = arith.constant 0 : index
      %c0_16 = arith.constant 0 : index
      %c0_17 = arith.constant 0 : index
      %18 = vector.load %arg6[%c0_15, %c0_16, %c0_17] : memref<1x256x128xf32, #tpu.memory_space<vmem>>, vector<1x256x128xf32>
      %19 = vector.shape_cast %18 : vector<1x256x128xf32> to vector<256x128xf32>
      %20 = vector.shape_cast %17 : vector<256x128xf32> to vector<1x256x128xf32>
      tpu.vector_store %arg6[%c0_15, %c0_16, %c0_17], %20 {strides = array<i32>} : memref<1x256x128xf32, #tpu.memory_space<vmem>>, vector<1x256x128xf32>,
    } else {
    }
    return
  }
  func.func @transform_0(%arg0: i32, %arg1: i32, %arg2: i32) -> (i32, i32, i32) {
    %c0_i32 = arith.constant 0 : i32
    return %arg0, %arg1, %arg2 : i32, i32, i32
  }
  func.func @transform_1(%arg0: i32, %arg1: i32, %arg2: i32) -> (i32, i32) {
    %c0_i32 = arith.constant 0 : i32
    %c0_i32_0 = arith.constant 0 : i32
    return %arg2, %c0_i32 : i32, i32
  }
  func.func @transform_2(%arg0: i32, %arg1: i32, %arg2: i32) -> (i32, i32) {
    %c0_i32 = arith.constant 0 : i32
    %c0_i32_0 = arith.constant 0 : i32
    %c0_i32_1 = arith.constant 0 : i32
    return %c0_i32, %c0_i32_0 : i32, i32
  }
  func.func @transform_3(%arg0: i32, %arg1: i32, %arg2: i32) -> (i32, i32, i32) {
    %c0_i32 = arith.constant 0 : i32
    %c0_i32_0 = arith.constant 0 : i32
    return %arg0, %arg1, %c0_i32 : i32, i32, i32
  }
}

</mosaic_0001>

<llo_original>
// kernel: generator_forward.16
$region0: #{generator_forward.16}
  #allocation0 [shape = 'u32[]', space=smem, size = 0x4, offset = 0x4, fixed_abs, tag = 'smem constant byte address 0x4 - core index']
  #allocation1 [shape = 'u32[72,128]{1,0:T(1,128)}', space=vmem, size = 0x9000, scoped, tag = 'internal scratch']
  %s0 = inlined_call_operand.vmem [shape: f32[2,256,128], index: 0, kind: input, shape index: {}]
  %s1 = inlined_call_operand.vmem [shape: f32[2,2,128], index: 1, kind: input, shape index: {}]
  %s2 = inlined_call_operand.vmem [shape: bf16[2,256,128], index: 2, kind: output, shape index: {}]
  %s3 = sld [smem:[#allocation0]]
  $region41: #{generator_forward.16} parent=0
    _
  %s5 = ssub.s32 1, %s3
  %s6 = scalar_select 0, %s5, %s3
  loop: start=0, step=1, limit=4
  $region2: #{generator_forward.16} parent=0 // loop_pre_header
    _
  $region3: #{generator_forward.16} parent=0 // loop_header
    %s8 = sphi 0, %s12
    %p9 = scmp.ge.s32.totalorder %s8, 4
    %s15 = sphi 0, %s27
    %s16 = sphi 0, %s23
    %s17 = sphi 0, %s15
    %s18 = sphi 0, %s16
    %s19 = sphi 0, %s17
    %s20 = sphi 0, %s18
    %s32 = sphi 0, %s34
    %s35 = sphi 0, %s32
    %s36 = sphi 0, %s35
    %s52 = sphi 0, %s36
    %s58 = sphi 0, %s60
    %s61 = sphi 0, %s58
    %s62 = sphi 0, %s61
    %s78 = sphi 0, %s62
    %s86 = sphi 0, %s88
    %s89 = sphi 0, %s86
    %s90 = sphi 0, %s89
    %s106 = sphi 0, %s90
  $region4: #{generator_forward.16} parent=0 // loop_header_branch
    %11 = sbr.rel (%p9) target = $region8
  $region5: #{generator_forward.16} parent=0 // loop_body
    %s13 = ssub.s32 %s8, 1
    %s14 = ssub.s32 %s8, 2
    %s21 = sadd.s32 1, %s16
    %p22 = scmp.ge.s32.totalorder %s21, 1
    %s23 = scalar_select %p22, 0, %s21
    %s24 = sadd.s32 1, %s15
    %s25 = scalar_select %p22, %s24, %s15
    %p26 = scmp.ge.s32.totalorder %s25, 2
    %s27 = scalar_select %p26, 0, %s25
    %s28 = ssub.s32 %s15, %s27
    %s29 = ssub.s32 %s16, %s23
    %s30 = sor.u32 %s28, %s29
    %p31 = scmp.eq.s32.totalorder %s30, 0
    %s33 = sadd.s32 %s32, 1
    %s34 = scalar_select %p31, %s32, %s33
    %p37 = pneg %p31
    %p38 = scmp.eq.s32.totalorder %s8, 1
    %p39 = por %p37, %p38
    %p40 = scmp.ne.s32.totalorder %s32, %s35
    %p41 = scmp.eq.s32.totalorder %s8, 0
    %p42 = por %p40, %p41
    %p43 = scmp.ne.s32.totalorder %s32, %s35
    %p44 = scmp.eq.s32.totalorder %s13, 1
    %p45 = por %p43, %p44
    %p46 = scmp.ne.s32.totalorder %s35, %s36
    %p47 = scmp.eq.s32.totalorder %s13, 0
    %p48 = por %p46, %p47
    %p49 = scmp.ne.s32.totalorder %s35, %s36
    %p50 = scmp.eq.s32.totalorder %s14, 1
    %p51 = por %p49, %p50
    %p53 = scmp.ne.s32.totalorder %s36, %s52
    %p54 = scmp.eq.s32.totalorder %s14, 0
    %p55 = por %p53, %p54
    %s56 = ssub.s32 %s15, %s27
    %p57 = scmp.eq.s32.totalorder %s56, 0
    %s59 = sadd.s32 %s58, 1
    %s60 = scalar_select %p57, %s58, %s59
    %p63 = pneg %p57
    %p64 = scmp.eq.s32.totalorder %s8, 1
    %p65 = por %p63, %p64
    %p66 = scmp.ne.s32.totalorder %s58, %s61
    %p67 = scmp.eq.s32.totalorder %s8, 0
    %p68 = por %p66, %p67
    %p69 = scmp.ne.s32.totalorder %s58, %s61
    %p70 = scmp.eq.s32.totalorder %s13, 1
    %p71 = por %p69, %p70
    %p72 = scmp.ne.s32.totalorder %s61, %s62
    %p73 = scmp.eq.s32.totalorder %s13, 0
    %p74 = por %p72, %p73
    %p75 = scmp.ne.s32.totalorder %s61, %s62
    %p76 = scmp.eq.s32.totalorder %s14, 1
    %p77 = por %p75, %p76
    %p79 = scmp.ne.s32.totalorder %s62, %s78
    %p80 = scmp.eq.s32.totalorder %s14, 0
    %p81 = por %p79, %p80
    %s82 = ssub.s32 %s15, %s27
    %s83 = ssub.s32 %s16, %s23
    %s84 = sor.u32 %s82, %s83
    %p85 = scmp.eq.s32.totalorder %s84, 0
    %s87 = sadd.s32 %s86, 1
    %s88 = scalar_select %p85, %s86, %s87
    %p91 = pneg %p85
    %p92 = scmp.eq.s32.totalorder %s8, 1
    %p93 = por %p91, %p92
    %p94 = scmp.ne.s32.totalorder %s86, %s89
    %p95 = scmp.eq.s32.totalorder %s8, 0
    %p96 = por %p94, %p95
    %p97 = scmp.ne.s32.totalorder %s86, %s89
    %p98 = scmp.eq.s32.totalorder %s13, 1
    %p99 = por %p97, %p98
    %p100 = scmp.ne.s32.totalorder %s89, %s90
    %p101 = scmp.eq.s32.totalorder %s13, 0
    %p102 = por %p100, %p101
    %p103 = scmp.ne.s32.totalorder %s89, %s90
    %p104 = scmp.eq.s32.totalorder %s14, 1
    %p105 = por %p103, %p104
    %p107 = scmp.ne.s32.totalorder %s90, %s106
    %p108 = scmp.eq.s32.totalorder %s14, 0
    %p109 = por %p107, %p108
    %p110 = scmp.le.s32.totalorder 1, %s8
    %p111 = scmp.lt.s32.totalorder %s8, 3
    %p112 = pnand %p110, %p111
    %p113 = pneg %p112
    // Predicated region
    $region9: #{generator_forward.16} parent=5 // pred_check
      _
    $region10: #{generator_forward.16} parent=5 // pred_check_branch
      %115 = sbr.rel (%p112) target = $region12
    $region11: #{generator_forward.16} parent=5 // pred_region
      %s116 = ssub.s32 %s8, 1
    $region12: #{generator_forward.16} parent=5 // pred_fallthru
      _
    %p117 = scmp.lt.s32.totalorder %s8, 2
    // Predicated region
    $region13: #{generator_forward.16} parent=5 // pred_check
      %p118 = pneg %p117
    $region14: #{generator_forward.16} parent=5 // pred_check_branch
      %120 = sbr.rel (%p118) target = $region16
    $region15: #{generator_forward.16} parent=5 // pred_region
      // Predicated region
      $region17: #{generator_forward.16} parent=15 // pred_check
        %p121 = pneg %p42
      $region18: #{generator_forward.16} parent=15 // pred_check_branch
        %123 = sbr.rel (%p121) target = $region20
      $region19: #{generator_forward.16} parent=15 // pred_region
        %s124 = smul.u32 32, %s16
        %p125 = scmp.lt.s32.totalorder %s15, 1
        %s126 = scalar_select %p125, %s15, 1
        %p127 = scmp.lt.s32.totalorder %s124, 31
        %s128 = scalar_select %p127, %s124, 31
        %s129 = smul.addr %s126, 32
        %s130 = sadd.s32 %s128, %s129
        %s131 = smul.addr %s130, 8
        %s132 = scalar_lea.vmem %s0, %s131
        %s133 = smul.u32 32, %s16
      $region20: #{generator_forward.16} parent=15 // pred_fallthru
        _
      // Predicated region
      $region21: #{generator_forward.16} parent=15 // pred_check
        %p134 = pneg %p68
      $region22: #{generator_forward.16} parent=15 // pred_check_branch
        %136 = sbr.rel (%p134) target = $region24
      $region23: #{generator_forward.16} parent=15 // pred_region
        %p137 = scmp.lt.s32.totalorder %s15, 1
        %s138 = scalar_select %p137, %s15, 1
        %s139 = smul.addr %s138, 2
        %s140 = scalar_lea.vmem %s1, %s139
      $region24: #{generator_forward.16} parent=15 // pred_fallthru
        _
    $region16: #{generator_forward.16} parent=5 // pred_fallthru
      _
    %p141 = scmp.le.s32.totalorder 1, %s8
    %p142 = scmp.lt.s32.totalorder %s8, 3
    %p143 = pnand %p141, %p142
    %p144 = pneg %p143
    // Predicated region
    $region25: #{generator_forward.16} parent=5 // pred_check
      _
    $region26: #{generator_forward.16} parent=5 // pred_check_branch
      %146 = sbr.rel (%p143) target = $region28
    $region27: #{generator_forward.16} parent=5 // pred_region
      %s147 = ssub.s32 %s8, 1
      %s148 = smul.u32 32, %s18
      %p149 = scmp.lt.s32.totalorder %s17, 1
      %s150 = scalar_select %p149, %s17, 1
      %p151 = scmp.lt.s32.totalorder %s148, 31
      %s152 = scalar_select %p151, %s148, 31
      %s153 = smul.addr %s150, 32
      %s154 = sadd.s32 %s152, %s153
      %s155 = smul.addr %s154, 8
      %s156 = scalar_lea.vmem %s0, %s155
      %p157 = pneg %p48
      %p158 = pneg %p45
      %p159 = scmp.lt.s32.totalorder %s17, 1
      %s160 = scalar_select %p159, %s17, 1
      %s161 = smul.addr %s160, 2
      %s162 = scalar_lea.vmem %s1, %s161
      %p163 = pneg %p74
      %p164 = pneg %p71
      %p165 = pneg %p102
      %p166 = pneg %p99
      %s167 = smul.u32 32, %s18
      %p168 = scmp.lt.s32.totalorder %s17, 1
      %s169 = scalar_select %p168, %s17, 1
      %p170 = scmp.lt.s32.totalorder %s167, 31
      %s171 = scalar_select %p170, %s167, 31
      %s172 = smul.addr %s169, 32
      %s173 = sadd.s32 %s171, %s172
      %s174 = smul.addr %s173, 4
      %s175 = scalar_lea.vmem %s2, %s174
      %s176 = smul.u32 32, %s18
      %p177 = scmp.lt.s32.totalorder %s17, 1
      %s178 = scalar_select %p177, %s17, 1
      %p179 = scmp.lt.s32.totalorder %s176, 31
      %s180 = scalar_select %p179, %s176, 31
      %s181 = smul.addr %s178, 32
      %s182 = sadd.s32 %s180, %s181
      %s183 = smul.addr %s182, 8
      %s184 = scalar_lea.vmem %s0, %s183
      %s185 = smul.u32 32, %s18
      %p186 = scmp.lt.s32.totalorder %s17, 1
      %s187 = scalar_select %p186, %s17, 1
      %s188 = smul.addr %s187, 2
      %s189 = scalar_lea.vmem %s1, %s188
      %s190 = smul.u32 32, %s18
      %p191 = scmp.lt.s32.totalorder %s17, 1
      %s192 = scalar_select %p191, %s17, 1
      %p193 = scmp.lt.s32.totalorder %s190, 31
      %s194 = scalar_select %p193, %s190, 31
      %s195 = smul.addr %s192, 32
      %s196 = sadd.s32 %s194, %s195
      %s197 = smul.addr %s196, 4
      %s198 = scalar_lea.vmem %s2, %s197
      %s199 = smul.u32 32, %s18
      %v200 = vld [vmem:[%s189] sm:$0x3]
      %v201 = vld [vmem:[%s184] sm:$0xff]
      %v202 = vld [vmem:[%s184 + $0x8] sm:$0xff]
      %v203 = vld [vmem:[%s184 + $0x10] sm:$0xff]
      %v204 = vld [vmem:[%s184 + $0x18] sm:$0xff]
      %v205 = vld [vmem:[%s184 + $0x20] sm:$0xff]
      %v206 = vld [vmem:[%s184 + $0x28] sm:$0xff]
      %v207 = vld [vmem:[%s184 + $0x30] sm:$0xff]
      %v208 = vld [vmem:[%s184 + $0x38] sm:$0xff]
      %v209 = vld [vmem:[%s184 + $0x40] sm:$0xff]
      %v210 = vld [vmem:[%s184 + $0x48] sm:$0xff]
      %v211 = vld [vmem:[%s184 + $0x50] sm:$0xff]
      %v212 = vld [vmem:[%s184 + $0x58] sm:$0xff]
      %v213 = vld [vmem:[%s184 + $0x60] sm:$0xff]
      %v214 = vld [vmem:[%s184 + $0x68] sm:$0xff]
      %v215 = vld [vmem:[%s184 + $0x70] sm:$0xff]
      %v216 = vld [vmem:[%s184 + $0x78] sm:$0xff]
      %v217 = vld [vmem:[%s184 + $0x80] sm:$0xff]
      %v218 = vld [vmem:[%s184 + $0x88] sm:$0xff]
      %v219 = vld [vmem:[%s184 + $0x90] sm:$0xff]
      %v220 = vld [vmem:[%s184 + $0x98] sm:$0xff]
      %v221 = vld [vmem:[%s184 + $0xa0] sm:$0xff]
      %v222 = vld [vmem:[%s184 + $0xa8] sm:$0xff]
      %v223 = vld [vmem:[%s184 + $0xb0] sm:$0xff]
      %v224 = vld [vmem:[%s184 + $0xb8] sm:$0xff]
      %v225 = vld [vmem:[%s184 + $0xc0] sm:$0xff]
      %v226 = vld [vmem:[%s184 + $0xc8] sm:$0xff]
      %v227 = vld [vmem:[%s184 + $0xd0] sm:$0xff]
      %v228 = vld [vmem:[%s184 + $0xd8] sm:$0xff]
      %v229 = vld [vmem:[%s184 + $0xe0] sm:$0xff]
      %v230 = vld [vmem:[%s184 + $0xe8] sm:$0xff]
      %v231 = vld [vmem:[%s184 + $0xf0] sm:$0xff]
      %v232 = vld [vmem:[%s184 + $0xf8] sm:$0xff]
      %v233 = vperm.slane %v200, 0
      %v234 = vsub.f32 %v201, %v233
      %v235 = vsub.f32 %v202, %v233
      %v236 = vsub.f32 %v203, %v233
      %v237 = vsub.f32 %v204, %v233
      %v238 = vsub.f32 %v205, %v233
      %v239 = vsub.f32 %v206, %v233
      %v240 = vsub.f32 %v207, %v233
      %v241 = vsub.f32 %v208, %v233
      %v242 = vsub.f32 %v209, %v233
      %v243 = vsub.f32 %v210, %v233
      %v244 = vsub.f32 %v211, %v233
      %v245 = vsub.f32 %v212, %v233
      %v246 = vsub.f32 %v213, %v233
      %v247 = vsub.f32 %v214, %v233
      %v248 = vsub.f32 %v215, %v233
      %v249 = vsub.f32 %v216, %v233
      %v250 = vsub.f32 %v217, %v233
      %v251 = vsub.f32 %v218, %v233
      %v252 = vsub.f32 %v219, %v233
      %v253 = vsub.f32 %v220, %v233
      %v254 = vsub.f32 %v221, %v233
      %v255 = vsub.f32 %v222, %v233
      %v256 = vsub.f32 %v223, %v233
      %v257 = vsub.f32 %v224, %v233
      %v258 = vsub.f32 %v225, %v233
      %v259 = vsub.f32 %v226, %v233
      %v260 = vsub.f32 %v227, %v233
      %v261 = vsub.f32 %v228, %v233
      %v262 = vsub.f32 %v229, %v233
      %v263 = vsub.f32 %v230, %v233
      %v264 = vsub.f32 %v231, %v233
      %v265 = vsub.f32 %v232, %v233
      %v266 = vperm.slane %v200, 1
      %v267 = vmul.f32 %v234, %v266
      %v268 = vmul.f32 %v235, %v266
      %v269 = vmul.f32 %v236, %v266
      %v270 = vmul.f32 %v237, %v266
      %v271 = vmul.f32 %v238, %v266
      %v272 = vmul.f32 %v239, %v266
      %v273 = vmul.f32 %v240, %v266
      %v274 = vmul.f32 %v241, %v266
      %v275 = vmul.f32 %v242, %v266
      %v276 = vmul.f32 %v243, %v266
      %v277 = vmul.f32 %v244, %v266
      %v278 = vmul.f32 %v245, %v266
      %v279 = vmul.f32 %v246, %v266
      %v280 = vmul.f32 %v247, %v266
      %v281 = vmul.f32 %v248, %v266
      %v282 = vmul.f32 %v249, %v266
      %v283 = vmul.f32 %v250, %v266
      %v284 = vmul.f32 %v251, %v266
      %v285 = vmul.f32 %v252, %v266
      %v286 = vmul.f32 %v253, %v266
      %v287 = vmul.f32 %v254, %v266
      %v288 = vmul.f32 %v255, %v266
      %v289 = vmul.f32 %v256, %v266
      %v290 = vmul.f32 %v257, %v266
      %v291 = vmul.f32 %v258, %v266
      %v292 = vmul.f32 %v259, %v266
      %v293 = vmul.f32 %v260, %v266
      %v294 = vmul.f32 %v261, %v266
      %v295 = vmul.f32 %v262, %v266
      %v296 = vmul.f32 %v263, %v266
      %v297 = vmul.f32 %v264, %v266
      %v298 = vmul.f32 %v265, %v266
      %v299 = vmax.f32 %v267, 0.0
      %v300 = vmax.f32 %v268, 0.0
      %v301 = vmax.f32 %v269, 0.0
      %v302 = vmax.f32 %v270, 0.0
      %v303 = vmax.f32 %v271, 0.0
      %v304 = vmax.f32 %v272, 0.0
      %v305 = vmax.f32 %v273, 0.0
      %v306 = vmax.f32 %v274, 0.0
      %v307 = vmax.f32 %v275, 0.0
      %v308 = vmax.f32 %v276, 0.0
      %v309 = vmax.f32 %v277, 0.0
      %v310 = vmax.f32 %v278, 0.0
      %v311 = vmax.f32 %v279, 0.0
      %v312 = vmax.f32 %v280, 0.0
      %v313 = vmax.f32 %v281, 0.0
      %v314 = vmax.f32 %v282, 0.0
      %v315 = vmax.f32 %v283, 0.0
      %v316 = vmax.f32 %v284, 0.0
      %v317 = vmax.f32 %v285, 0.0
      %v318 = vmax.f32 %v286, 0.0
      %v319 = vmax.f32 %v287, 0.0
      %v320 = vmax.f32 %v288, 0.0
      %v321 = vmax.f32 %v289, 0.0
      %v322 = vmax.f32 %v290, 0.0
      %v323 = vmax.f32 %v291, 0.0
      %v324 = vmax.f32 %v292, 0.0
      %v325 = vmax.f32 %v293, 0.0
      %v326 = vmax.f32 %v294, 0.0
      %v327 = vmax.f32 %v295, 0.0
      %v328 = vmax.f32 %v296, 0.0
      %v329 = vmax.f32 %v297, 0.0
      %v330 = vmax.f32 %v298, 0.0
      %v331 = vpack.c.bf16 %v299, %v299
      %v332 = vpack.c.bf16 %v300, %v300
      %v333 = vpack.c.bf16 %v301, %v301
      %v334 = vpack.c.bf16 %v302, %v302
      %v335 = vpack.c.bf16 %v303, %v303
      %v336 = vpack.c.bf16 %v304, %v304
      %v337 = vpack.c.bf16 %v305, %v305
      %v338 = vpack.c.bf16 %v306, %v306
      %v339 = vpack.c.bf16 %v307, %v307
      %v340 = vpack.c.bf16 %v308, %v308
      %v341 = vpack.c.bf16 %v309, %v309
      %v342 = vpack.c.bf16 %v310, %v310
      %v343 = vpack.c.bf16 %v311, %v311
      %v344 = vpack.c.bf16 %v312, %v312
      %v345 = vpack.c.bf16 %v313, %v313
      %v346 = vpack.c.bf16 %v314, %v314
      %v347 = vpack.c.bf16 %v315, %v315
      %v348 = vpack.c.bf16 %v316, %v316
      %v349 = vpack.c.bf16 %v317, %v317
      %v350 = vpack.c.bf16 %v318, %v318
      %v351 = vpack.c.bf16 %v319, %v319
      %v352 = vpack.c.bf16 %v320, %v320
      %v353 = vpack.c.bf16 %v321, %v321
      %v354 = vpack.c.bf16 %v322, %v322
      %v355 = vpack.c.bf16 %v323, %v323
      %v356 = vpack.c.bf16 %v324, %v324
      %v357 = vpack.c.bf16 %v325, %v325
      %v358 = vpack.c.bf16 %v326, %v326
      %v359 = vpack.c.bf16 %v327, %v327
      %v360 = vpack.c.bf16 %v328, %v328
      %v361 = vpack.c.bf16 %v329, %v329
      %v362 = vpack.c.bf16 %v330, %v330
      %363 = vst [vmem:[%s198] sm:$0xf] %v331
      %364 = vst [vmem:[%s198 + $0x4] sm:$0xf] %v332
      %365 = vst [vmem:[%s198 + $0x8] sm:$0xf] %v333
      %366 = vst [vmem:[%s198 + $0xc] sm:$0xf] %v334
      %367 = vst [vmem:[%s198 + $0x10] sm:$0xf] %v335
      %368 = vst [vmem:[%s198 + $0x14] sm:$0xf] %v336
      %369 = vst [vmem:[%s198 + $0x18] sm:$0xf] %v337
      %370 = vst [vmem:[%s198 + $0x1c] sm:$0xf] %v338
      %371 = vst [vmem:[%s198 + $0x20] sm:$0xf] %v339
      %372 = vst [vmem:[%s198 + $0x24] sm:$0xf] %v340
      %373 = vst [vmem:[%s198 + $0x28] sm:$0xf] %v341
      %374 = vst [vmem:[%s198 + $0x2c] sm:$0xf] %v342
      %375 = vst [vmem:[%s198 + $0x30] sm:$0xf] %v343
      %376 = vst [vmem:[%s198 + $0x34] sm:$0xf] %v344
      %377 = vst [vmem:[%s198 + $0x38] sm:$0xf] %v345
      %378 = vst [vmem:[%s198 + $0x3c] sm:$0xf] %v346
      %379 = vst [vmem:[%s198 + $0x40] sm:$0xf] %v347
      %380 = vst [vmem:[%s198 + $0x44] sm:$0xf] %v348
      %381 = vst [vmem:[%s198 + $0x48] sm:$0xf] %v349
      %382 = vst [vmem:[%s198 + $0x4c] sm:$0xf] %v350
      %383 = vst [vmem:[%s198 + $0x50] sm:$0xf] %v351
      %384 = vst [vmem:[%s198 + $0x54] sm:$0xf] %v352
      %385 = vst [vmem:[%s198 + $0x58] sm:$0xf] %v353
      %386 = vst [vmem:[%s198 + $0x5c] sm:$0xf] %v354
      %387 = vst [vmem:[%s198 + $0x60] sm:$0xf] %v355
      %388 = vst [vmem:[%s198 + $0x64] sm:$0xf] %v356
      %389 = vst [vmem:[%s198 + $0x68] sm:$0xf] %v357
      %390 = vst [vmem:[%s198 + $0x6c] sm:$0xf] %v358
      %391 = vst [vmem:[%s198 + $0x70] sm:$0xf] %v359
      %392 = vst [vmem:[%s198 + $0x74] sm:$0xf] %v360
      %393 = vst [vmem:[%s198 + $0x78] sm:$0xf] %v361
      %394 = vst [vmem:[%s198 + $0x7c] sm:$0xf] %v362
      %s395 = smul.u32 32, %s18
      %p396 = scmp.lt.s32.totalorder %s17, 1
      %s397 = scalar_select %p396, %s17, 1
      %p398 = scmp.lt.s32.totalorder %s395, 31
      %s399 = scalar_select %p398, %s395, 31
      %s400 = smul.addr %s397, 32
      %s401 = sadd.s32 %s399, %s400
      %s402 = smul.addr %s401, 4
      %s403 = scalar_lea.vmem %s2, %s402
      // Predicated region
      $region29: #{generator_forward.16} parent=27 // pred_check
        %p404 = pneg %p99
      $region30: #{generator_forward.16} parent=27 // pred_check_branch
        %406 = sbr.rel (%p404) target = $region32
      $region31: #{generator_forward.16} parent=27 // pred_region
        %s407 = smul.u32 32, %s18
      $region32: #{generator_forward.16} parent=27 // pred_fallthru
        _
    $region28: #{generator_forward.16} parent=5 // pred_fallthru
      _
    %p408 = scmp.le.s32.totalorder 2, %s8
    // Predicated region
    $region33: #{generator_forward.16} parent=5 // pred_check
      %p409 = pneg %p408
    $region34: #{generator_forward.16} parent=5 // pred_check_branch
      %411 = sbr.rel (%p409) target = $region36
    $region35: #{generator_forward.16} parent=5 // pred_region
      %s412 = ssub.s32 %s8, 2
      // Predicated region
      $region37: #{generator_forward.16} parent=35 // pred_check
        %p413 = pneg %p105
      $region38: #{generator_forward.16} parent=35 // pred_check_branch
        %415 = sbr.rel (%p413) target = $region40
      $region39: #{generator_forward.16} parent=35 // pred_region
        %s416 = smul.u32 32, %s20
        %p417 = scmp.lt.s32.totalorder %s19, 1
        %s418 = scalar_select %p417, %s19, 1
        %p419 = scmp.lt.s32.totalorder %s416, 31
        %s420 = scalar_select %p419, %s416, 31
        %s421 = smul.addr %s418, 32
        %s422 = sadd.s32 %s420, %s421
        %s423 = smul.addr %s422, 4
        %s424 = scalar_lea.vmem %s2, %s423
      $region40: #{generator_forward.16} parent=35 // pred_fallthru
        _
    $region36: #{generator_forward.16} parent=5 // pred_fallthru
      _
  $region6: #{generator_forward.16} parent=0 // loop_footer
    %s12 = sadd.s32 1, %s8
  $region7: #{generator_forward.16} parent=0 // loop_footer_branch
    %7 = sbr.rel target = $region3
  $region8: #{generator_forward.16} parent=0 // loop_exit
    _

// kernel: generator_forward.15
$region0: #{generator_forward.15}
  #allocation0 [shape = 'u32[]', space=smem, size = 0x4, offset = 0x4, fixed_abs, tag = 'smem constant byte address 0x4 - core index']
  #allocation1 [shape = 'u32[72,128]{1,0:T(1,128)}', space=vmem, size = 0x9000, scoped, tag = 'internal scratch']
  #allocation2 [shape = 'f32[256,128]{1,0:T(8,128)}', space=vmem, size = 0x20000, scoped, tag = 'scratch operand']
  %s0 = inlined_call_operand.vmem [shape: bf16[2,256,256], index: 0, kind: input, shape index: {}]
  %s1 = inlined_call_operand.vmem [shape: bf16[256,128], index: 1, kind: input, shape index: {}]
  %s2 = inlined_call_operand.vmem [shape: f32[2,256,128], index: 2, kind: output, shape index: {0}]
  %s3 = inlined_call_operand.vmem [shape: f32[2,1,2,128], index: 3, kind: output, shape index: {1}]
  %4 = xla_tuple %s2, %s3
  %s5 = sld [smem:[#allocation0]]
  $region57: #{generator_forward.15} parent=0
    _
  %s7 = ssub.s32 1, %s5
  %s8 = scalar_select 0, %s7, %s5
  loop: start=0, step=1, limit=4
  $region2: #{generator_forward.15} parent=0 // loop_pre_header
    _
  $region3: #{generator_forward.15} parent=0 // loop_header
    %s10 = sphi 0, %s14
    %p11 = scmp.ge.s32.totalorder %s10, 4
    %s17 = sphi 0, %s36
    %s18 = sphi 0, %s32
    %s19 = sphi 0, %s28
    %s20 = sphi 0, %s17
    %s21 = sphi 0, %s18
    %s22 = sphi 0, %s19
    %s23 = sphi 0, %s20
    %s24 = sphi 0, %s21
    %s25 = sphi 0, %s22
    %s43 = sphi 0, %s45
    %s46 = sphi 0, %s43
    %s47 = sphi 0, %s46
    %s63 = sphi 0, %s47
    %s69 = sphi 0, %s71
    %s72 = sphi 0, %s69
    %s73 = sphi 0, %s72
    %s89 = sphi 0, %s73
    %s97 = sphi 0, %s99
    %s100 = sphi 0, %s97
    %s101 = sphi 0, %s100
    %s117 = sphi 0, %s101
    %s125 = sphi 0, %s127
    %s128 = sphi 0, %s125
    %s129 = sphi 0, %s128
    %s145 = sphi 0, %s129
  $region4: #{generator_forward.15} parent=0 // loop_header_branch
    %13 = sbr.rel (%p11) target = $region8
  $region5: #{generator_forward.15} parent=0 // loop_body
    %s15 = ssub.s32 %s10, 1
    %s16 = ssub.s32 %s10, 2
    %s26 = sadd.s32 1, %s19
    %p27 = scmp.ge.s32.totalorder %s26, 1
    %s28 = scalar_select %p27, 0, %s26
    %s29 = sadd.s32 1, %s18
    %s30 = scalar_select %p27, %s29, %s18
    %p31 = scmp.ge.s32.totalorder %s30, 1
    %s32 = scalar_select %p31, 0, %s30
    %s33 = sadd.s32 1, %s17
    %s34 = scalar_select %p31, %s33, %s17
    %p35 = scmp.ge.s32.totalorder %s34, 2
    %s36 = scalar_select %p35, 0, %s34
    %s37 = ssub.s32 %s17, %s36
    %s38 = ssub.s32 %s18, %s32
    %s39 = sor.u32 %s37, %s38
    %s40 = ssub.s32 %s19, %s28
    %s41 = sor.u32 %s39, %s40
    %p42 = scmp.eq.s32.totalorder %s41, 0
    %s44 = sadd.s32 %s43, 1
    %s45 = scalar_select %p42, %s43, %s44
    %p48 = pneg %p42
    %p49 = scmp.eq.s32.totalorder %s10, 1
    %p50 = por %p48, %p49
    %p51 = scmp.ne.s32.totalorder %s43, %s46
    %p52 = scmp.eq.s32.totalorder %s10, 0
    %p53 = por %p51, %p52
    %p54 = scmp.ne.s32.totalorder %s43, %s46
    %p55 = scmp.eq.s32.totalorder %s15, 1
    %p56 = por %p54, %p55
    %p57 = scmp.ne.s32.totalorder %s46, %s47
    %p58 = scmp.eq.s32.totalorder %s15, 0
    %p59 = por %p57, %p58
    %p60 = scmp.ne.s32.totalorder %s46, %s47
    %p61 = scmp.eq.s32.totalorder %s16, 1
    %p62 = por %p60, %p61
    %p64 = scmp.ne.s32.totalorder %s47, %s63
    %p65 = scmp.eq.s32.totalorder %s16, 0
    %p66 = por %p64, %p65
    %s67 = ssub.s32 %s19, %s28
    %p68 = scmp.eq.s32.totalorder %s67, 0
    %s70 = sadd.s32 %s69, 1
    %s71 = scalar_select %p68, %s69, %s70
    %p74 = pneg %p68
    %p75 = scmp.eq.s32.totalorder %s10, 1
    %p76 = por %p74, %p75
    %p77 = scmp.ne.s32.totalorder %s69, %s72
    %p78 = scmp.eq.s32.totalorder %s10, 0
    %p79 = por %p77, %p78
    %p80 = scmp.ne.s32.totalorder %s69, %s72
    %p81 = scmp.eq.s32.totalorder %s15, 1
    %p82 = por %p80, %p81
    %p83 = scmp.ne.s32.totalorder %s72, %s73
    %p84 = scmp.eq.s32.totalorder %s15, 0
    %p85 = por %p83, %p84
    %p86 = scmp.ne.s32.totalorder %s72, %s73
    %p87 = scmp.eq.s32.totalorder %s16, 1
    %p88 = por %p86, %p87
    %p90 = scmp.ne.s32.totalorder %s73, %s89
    %p91 = scmp.eq.s32.totalorder %s16, 0
    %p92 = por %p90, %p91
    %s93 = ssub.s32 %s17, %s36
    %s94 = ssub.s32 %s18, %s32
    %s95 = sor.u32 %s93, %s94
    %p96 = scmp.eq.s32.totalorder %s95, 0
    %s98 = sadd.s32 %s97, 1
    %s99 = scalar_select %p96, %s97, %s98
    %p102 = pneg %p96
    %p103 = scmp.eq.s32.totalorder %s10, 1
    %p104 = por %p102, %p103
    %p105 = scmp.ne.s32.totalorder %s97, %s100
    %p106 = scmp.eq.s32.totalorder %s10, 0
    %p107 = por %p105, %p106
    %p108 = scmp.ne.s32.totalorder %s97, %s100
    %p109 = scmp.eq.s32.totalorder %s15, 1
    %p110 = por %p108, %p109
    %p111 = scmp.ne.s32.totalorder %s100, %s101
    %p112 = scmp.eq.s32.totalorder %s15, 0
    %p113 = por %p111, %p112
    %p114 = scmp.ne.s32.totalorder %s100, %s101
    %p115 = scmp.eq.s32.totalorder %s16, 1
    %p116 = por %p114, %p115
    %p118 = scmp.ne.s32.totalorder %s101, %s117
    %p119 = scmp.eq.s32.totalorder %s16, 0
    %p120 = por %p118, %p119
    %s121 = ssub.s32 %s17, %s36
    %s122 = ssub.s32 %s18, %s32
    %s123 = sor.u32 %s121, %s122
    %p124 = scmp.eq.s32.totalorder %s123, 0
    %s126 = sadd.s32 %s125, 1
    %s127 = scalar_select %p124, %s125, %s126
    %p130 = pneg %p124
    %p131 = scmp.eq.s32.totalorder %s10, 1
    %p132 = por %p130, %p131
    %p133 = scmp.ne.s32.totalorder %s125, %s128
    %p134 = scmp.eq.s32.totalorder %s10, 0
    %p135 = por %p133, %p134
    %p136 = scmp.ne.s32.totalorder %s125, %s128
    %p137 = scmp.eq.s32.totalorder %s15, 1
    %p138 = por %p136, %p137
    %p139 = scmp.ne.s32.totalorder %s128, %s129
    %p140 = scmp.eq.s32.totalorder %s15, 0
    %p141 = por %p139, %p140
    %p142 = scmp.ne.s32.totalorder %s128, %s129
    %p143 = scmp.eq.s32.totalorder %s16, 1
    %p144 = por %p142, %p143
    %p146 = scmp.ne.s32.totalorder %s129, %s145
    %p147 = scmp.eq.s32.totalorder %s16, 0
    %p148 = por %p146, %p147
    %p149 = scmp.le.s32.totalorder 1, %s10
    %p150 = scmp.lt.s32.totalorder %s10, 3
    %p151 = pnand %p149, %p150
    %p152 = pneg %p151
    // Predicated region
    $region9: #{generator_forward.15} parent=5 // pred_check
      _
    $region10: #{generator_forward.15} parent=5 // pred_check_branch
      %154 = sbr.rel (%p151) target = $region12
    $region11: #{generator_forward.15} parent=5 // pred_region
      %s155 = ssub.s32 %s10, 1
      // Predicated region
      $region13: #{generator_forward.15} parent=11 // pred_check
        %p156 = pneg %p85
      $region14: #{generator_forward.15} parent=11 // pred_check_branch
        %158 = sbr.rel (%p156) target = $region16
      $region15: #{generator_forward.15} parent=11 // pred_region
        %s159 = smul.u32 32, %s22
        %p160 = scmp.lt.s32.totalorder %s159, 31
        %s161 = scalar_select %p160, %s159, 31
        %s162 = smul.addr %s161, 4
        %s163 = scalar_lea.vmem %s1, %s162
        %s164 = smul.u32 32, %s22
      $region16: #{generator_forward.15} parent=11 // pred_fallthru
        _
    $region12: #{generator_forward.15} parent=5 // pred_fallthru
      _
    %p165 = scmp.lt.s32.totalorder %s10, 2
    // Predicated region
    $region17: #{generator_forward.15} parent=5 // pred_check
      %p166 = pneg %p165
    $region18: #{generator_forward.15} parent=5 // pred_check_branch
      %168 = sbr.rel (%p166) target = $region20
    $region19: #{generator_forward.15} parent=5 // pred_region
      // Predicated region
      $region21: #{generator_forward.15} parent=19 // pred_check
        %p169 = pneg %p53
      $region22: #{generator_forward.15} parent=19 // pred_check_branch
        %171 = sbr.rel (%p169) target = $region24
      $region23: #{generator_forward.15} parent=19 // pred_region
        %s172 = smul.u32 32, %s18
        %s173 = smul.u32 2, %s19
        %p174 = scmp.lt.s32.totalorder %s17, 1
        %s175 = scalar_select %p174, %s17, 1
        %p176 = scmp.lt.s32.totalorder %s172, 31
        %s177 = scalar_select %p176, %s172, 31
        %p178 = scmp.lt.s32.totalorder %s173, 1
        %s179 = scalar_select %p178, %s173, 1
        %s180 = smul.addr %s177, 2
        %s181 = sadd.s32 %s179, %s180
        %s182 = smul.addr %s175, 64
        %s183 = sadd.s32 %s181, %s182
        %s184 = smul.addr %s183, 4
        %s185 = scalar_lea.vmem %s0, %s184
        %s186 = smul.u32 32, %s18
        %s187 = smul.u32 2, %s19
      $region24: #{generator_forward.15} parent=19 // pred_fallthru
        _
    $region20: #{generator_forward.15} parent=5 // pred_fallthru
      _
    %p188 = scmp.le.s32.totalorder 1, %s10
    %p189 = scmp.lt.s32.totalorder %s10, 3
    %p190 = pnand %p188, %p189
    %p191 = pneg %p190
    // Predicated region
    $region25: #{generator_forward.15} parent=5 // pred_check
      _
    $region26: #{generator_forward.15} parent=5 // pred_check_branch
      %193 = sbr.rel (%p190) target = $region28
    $region27: #{generator_forward.15} parent=5 // pred_region
      %s194 = ssub.s32 %s10, 1
      %s195 = smul.u32 32, %s21
      %s196 = smul.u32 2, %s22
      %p197 = scmp.lt.s32.totalorder %s20, 1
      %s198 = scalar_select %p197, %s20, 1
      %p199 = scmp.lt.s32.totalorder %s195, 31
      %s200 = scalar_select %p199, %s195, 31
      %p201 = scmp.lt.s32.totalorder %s196, 1
      %s202 = scalar_select %p201, %s196, 1
      %s203 = smul.addr %s200, 2
      %s204 = sadd.s32 %s202, %s203
      %s205 = smul.addr %s198, 64
      %s206 = sadd.s32 %s204, %s205
      %s207 = smul.addr %s206, 4
      %s208 = scalar_lea.vmem %s0, %s207
      %p209 = pneg %p59
      %p210 = pneg %p56
      %s211 = smul.u32 32, %s22
      %p212 = scmp.lt.s32.totalorder %s211, 31
      %s213 = scalar_select %p212, %s211, 31
      %s214 = smul.addr %s213, 4
      %s215 = scalar_lea.vmem %s1, %s214
      %p216 = pneg %p85
      %p217 = pneg %p82
      %p218 = pneg %p113
      %p219 = pneg %p110
      %s220 = smul.u32 32, %s21
      %p221 = scmp.lt.s32.totalorder %s20, 1
      %s222 = scalar_select %p221, %s20, 1
      %p223 = scmp.lt.s32.totalorder %s220, 31
      %s224 = scalar_select %p223, %s220, 31
      %s225 = smul.addr %s222, 32
      %s226 = sadd.s32 %s224, %s225
      %s227 = smul.addr %s226, 8
      %s228 = scalar_lea.vmem %s2, %s227
      %p229 = pneg %p141
      %p230 = pneg %p138
      %p231 = scmp.lt.s32.totalorder %s20, 1
      %s232 = scalar_select %p231, %s20, 1
      %p233 = scmp.lt.s32.totalorder %s21, 0
      %s234 = scalar_select %p233, %s21, 0
      %s235 = sadd.s32 %s234, %s232
      %s236 = smul.addr %s235, 2
      %s237 = scalar_lea.vmem %s3, %s236
      %s238 = smul.u32 32, %s21
      %s239 = smul.u32 2, %s22
      %p240 = scmp.lt.s32.totalorder %s20, 1
      %s241 = scalar_select %p240, %s20, 1
      %p242 = scmp.lt.s32.totalorder %s238, 31
      %s243 = scalar_select %p242, %s238, 31
      %p244 = scmp.lt.s32.totalorder %s239, 1
      %s245 = scalar_select %p244, %s239, 1
      %s246 = smul.addr %s243, 2
      %s247 = sadd.s32 %s245, %s246
      %s248 = smul.addr %s241, 64
      %s249 = sadd.s32 %s247, %s248
      %s250 = smul.addr %s249, 4
      %s251 = scalar_lea.vmem %s0, %s250
      %s252 = smul.u32 32, %s21
      %s253 = smul.u32 2, %s22
      %s254 = smul.u32 32, %s22
      %p255 = scmp.lt.s32.totalorder %s254, 31
      %s256 = scalar_select %p255, %s254, 31
      %s257 = smul.addr %s256, 4
      %s258 = scalar_lea.vmem %s1, %s257
      %s259 = smul.u32 32, %s22
      %s260 = smul.u32 32, %s21
      %p261 = scmp.lt.s32.totalorder %s20, 1
      %s262 = scalar_select %p261, %s20, 1
      %p263 = scmp.lt.s32.totalorder %s260, 31
      %s264 = scalar_select %p263, %s260, 31
      %s265 = smul.addr %s262, 32
      %s266 = sadd.s32 %s264, %s265
      %s267 = smul.addr %s266, 8
      %s268 = scalar_lea.vmem %s2, %s267
      %s269 = smul.u32 32, %s21
      %p270 = scmp.lt.s32.totalorder %s20, 1
      %s271 = scalar_select %p270, %s20, 1
      %p272 = scmp.lt.s32.totalorder %s21, 0
      %s273 = scalar_select %p272, %s21, 0
      %s274 = sadd.s32 %s273, %s271
      %s275 = smul.addr %s274, 2
      %s276 = scalar_lea.vmem %s3, %s275
      %p277 = scmp.eq.s32.totalorder %s22, 0
      // Predicated region
      $region29: #{generator_forward.15} parent=27 // pred_check
        %p278 = pneg %p277
      $region30: #{generator_forward.15} parent=27 // pred_check_branch
        %280 = sbr.rel (%p278) target = $region32
      $region31: #{generator_forward.15} parent=27 // pred_region
        %281 = vst [vmem:[#allocation2] sm:$0xff] 0.0
        %282 = vst [vmem:[#allocation2 + $0x8] sm:$0xff] 0.0
        %283 = vst [vmem:[#allocation2 + $0x10] sm:$0xff] 0.0
        %284 = vst [vmem:[#allocation2 + $0x18] sm:$0xff] 0.0
        %285 = vst [vmem:[#allocation2 + $0x20] sm:$0xff] 0.0
        %286 = vst [vmem:[#allocation2 + $0x28] sm:$0xff] 0.0
        %287 = vst [vmem:[#allocation2 + $0x30] sm:$0xff] 0.0
        %288 = vst [vmem:[#allocation2 + $0x38] sm:$0xff] 0.0
        %289 = vst [vmem:[#allocation2 + $0x40] sm:$0xff] 0.0
        %290 = vst [vmem:[#allocation2 + $0x48] sm:$0xff] 0.0
        %291 = vst [vmem:[#allocation2 + $0x50] sm:$0xff] 0.0
        %292 = vst [vmem:[#allocation2 + $0x58] sm:$0xff] 0.0
        %293 = vst [vmem:[#allocation2 + $0x60] sm:$0xff] 0.0
        %294 = vst [vmem:[#allocation2 + $0x68] sm:$0xff] 0.0
        %295 = vst [vmem:[#allocation2 + $0x70] sm:$0xff] 0.0
        %296 = vst [vmem:[#allocation2 + $0x78] sm:$0xff] 0.0
        %297 = vst [vmem:[#allocation2 + $0x80] sm:$0xff] 0.0
        %298 = vst [vmem:[#allocation2 + $0x88] sm:$0xff] 0.0
        %299 = vst [vmem:[#allocation2 + $0x90] sm:$0xff] 0.0
        %300 = vst [vmem:[#allocation2 + $0x98] sm:$0xff] 0.0
        %301 = vst [vmem:[#allocation2 + $0xa0] sm:$0xff] 0.0
        %302 = vst [vmem:[#allocation2 + $0xa8] sm:$0xff] 0.0
        %303 = vst [vmem:[#allocation2 + $0xb0] sm:$0xff] 0.0
        %304 = vst [vmem:[#allocation2 + $0xb8] sm:$0xff] 0.0
        %305 = vst [vmem:[#allocation2 + $0xc0] sm:$0xff] 0.0
        %306 = vst [vmem:[#allocation2 + $0xc8] sm:$0xff] 0.0
        %307 = vst [vmem:[#allocation2 + $0xd0] sm:$0xff] 0.0
        %308 = vst [vmem:[#allocation2 + $0xd8] sm:$0xff] 0.0
        %309 = vst [vmem:[#allocation2 + $0xe0] sm:$0xff] 0.0
        %310 = vst [vmem:[#allocation2 + $0xe8] sm:$0xff] 0.0
        %311 = vst [vmem:[#allocation2 + $0xf0] sm:$0xff] 0.0
        %312 = vst [vmem:[#allocation2 + $0xf8] sm:$0xff] 0.0
      $region32: #{generator_forward.15} parent=27 // pred_fallthru
        _
      %v313 = vld [vmem:[#allocation2] sm:$0xff]
      %v314 = vld [vmem:[#allocation2 + $0x8] sm:$0xff]
      %v315 = vld [vmem:[#allocation2 + $0x10] sm:$0xff]
      %v316 = vld [vmem:[#allocation2 + $0x18] sm:$0xff]
      %v317 = vld [vmem:[#allocation2 + $0x20] sm:$0xff]
      %v318 = vld [vmem:[#allocation2 + $0x28] sm:$0xff]
      %v319 = vld [vmem:[#allocation2 + $0x30] sm:$0xff]
      %v320 = vld [vmem:[#allocation2 + $0x38] sm:$0xff]
      %v321 = vld [vmem:[#allocation2 + $0x40] sm:$0xff]
      %v322 = vld [vmem:[#allocation2 + $0x48] sm:$0xff]
      %v323 = vld [vmem:[#allocation2 + $0x50] sm:$0xff]
      %v324 = vld [vmem:[#allocation2 + $0x58] sm:$0xff]
      %v325 = vld [vmem:[#allocation2 + $0x60] sm:$0xff]
      %v326 = vld [vmem:[#allocation2 + $0x68] sm:$0xff]
      %v327 = vld [vmem:[#allocation2 + $0x70] sm:$0xff]
      %v328 = vld [vmem:[#allocation2 + $0x78] sm:$0xff]
      %v329 = vld [vmem:[#allocation2 + $0x80] sm:$0xff]
      %v330 = vld [vmem:[#allocation2 + $0x88] sm:$0xff]
      %v331 = vld [vmem:[#allocation2 + $0x90] sm:$0xff]
      %v332 = vld [vmem:[#allocation2 + $0x98] sm:$0xff]
      %v333 = vld [vmem:[#allocation2 + $0xa0] sm:$0xff]
      %v334 = vld [vmem:[#allocation2 + $0xa8] sm:$0xff]
      %v335 = vld [vmem:[#allocation2 + $0xb0] sm:$0xff]
      %v336 = vld [vmem:[#allocation2 + $0xb8] sm:$0xff]
      %v337 = vld [vmem:[#allocation2 + $0xc0] sm:$0xff]
      %v338 = vld [vmem:[#allocation2 + $0xc8] sm:$0xff]
      %v339 = vld [vmem:[#allocation2 + $0xd0] sm:$0xff]
      %v340 = vld [vmem:[#allocation2 + $0xd8] sm:$0xff]
      %v341 = vld [vmem:[#allocation2 + $0xe0] sm:$0xff]
      %v342 = vld [vmem:[#allocation2 + $0xe8] sm:$0xff]
      %v343 = vld [vmem:[#allocation2 + $0xf0] sm:$0xff]
      %v344 = vld [vmem:[#allocation2 + $0xf8] sm:$0xff]
      %v345 = vld [vmem:[%s251] sm:$0xff]
      %v346 = vld [vmem:[%s251 + $0x8] sm:$0xff]
      %v347 = vld [vmem:[%s251 + $0x10] sm:$0xff]
      %v348 = vld [vmem:[%s251 + $0x18] sm:$0xff]
      %v349 = vld [vmem:[%s251 + $0x20] sm:$0xff]
      %v350 = vld [vmem:[%s251 + $0x28] sm:$0xff]
      %v351 = vld [vmem:[%s251 + $0x30] sm:$0xff]
      %v352 = vld [vmem:[%s251 + $0x38] sm:$0xff]
      %v353 = vld [vmem:[%s251 + $0x40] sm:$0xff]
      %v354 = vld [vmem:[%s251 + $0x48] sm:$0xff]
      %v355 = vld [vmem:[%s251 + $0x50] sm:$0xff]
      %v356 = vld [vmem:[%s251 + $0x58] sm:$0xff]
      %v357 = vld [vmem:[%s251 + $0x60] sm:$0xff]
      %v358 = vld [vmem:[%s251 + $0x68] sm:$0xff]
      %v359 = vld [vmem:[%s251 + $0x70] sm:$0xff]
      %v360 = vld [vmem:[%s251 + $0x78] sm:$0xff]
      %v361 = vld [vmem:[%s251 + $0x80] sm:$0xff]
      %v362 = vld [vmem:[%s251 + $0x88] sm:$0xff]
      %v363 = vld [vmem:[%s251 + $0x90] sm:$0xff]
      %v364 = vld [vmem:[%s251 + $0x98] sm:$0xff]
      %v365 = vld [vmem:[%s251 + $0xa0] sm:$0xff]
      %v366 = vld [vmem:[%s251 + $0xa8] sm:$0xff]
      %v367 = vld [vmem:[%s251 + $0xb0] sm:$0xff]
      %v368 = vld [vmem:[%s251 + $0xb8] sm:$0xff]
      %v369 = vld [vmem:[%s251 + $0xc0] sm:$0xff]
      %v370 = vld [vmem:[%s251 + $0xc8] sm:$0xff]
      %v371 = vld [vmem:[%s251 + $0xd0] sm:$0xff]
      %v372 = vld [vmem:[%s251 + $0xd8] sm:$0xff]
      %v373 = vld [vmem:[%s251 + $0xe0] sm:$0xff]
      %v374 = vld [vmem:[%s251 + $0xe8] sm:$0xff]
      %v375 = vld [vmem:[%s251 + $0xf0] sm:$0xff]
      %v376 = vld [vmem:[%s251 + $0xf8] sm:$0xff]
      %v377 = vld [vmem:[%s258] sm:$0xf]
      %v378 = vld [vmem:[%s258 + $0x4] sm:$0xf]
      %v379 = vld [vmem:[%s258 + $0x8] sm:$0xf]
      %v380 = vld [vmem:[%s258 + $0xc] sm:$0xf]
      %v381 = vld [vmem:[%s258 + $0x10] sm:$0xf]
      %v382 = vld [vmem:[%s258 + $0x14] sm:$0xf]
      %v383 = vld [vmem:[%s258 + $0x18] sm:$0xf]
      %v384 = vld [vmem:[%s258 + $0x1c] sm:$0xf]
      %v385 = vld [vmem:[%s258 + $0x20] sm:$0xf]
      %v386 = vld [vmem:[%s258 + $0x24] sm:$0xf]
      %v387 = vld [vmem:[%s258 + $0x28] sm:$0xf]
      %v388 = vld [vmem:[%s258 + $0x2c] sm:$0xf]
      %v389 = vld [vmem:[%s258 + $0x30] sm:$0xf]
      %v390 = vld [vmem:[%s258 + $0x34] sm:$0xf]
      %v391 = vld [vmem:[%s258 + $0x38] sm:$0xf]
      %v392 = vld [vmem:[%s258 + $0x3c] sm:$0xf]
      %v393 = vld [vmem:[%s258 + $0x40] sm:$0xf]
      %v394 = vld [vmem:[%s258 + $0x44] sm:$0xf]
      %v395 = vld [vmem:[%s258 + $0x48] sm:$0xf]
      %v396 = vld [vmem:[%s258 + $0x4c] sm:$0xf]
      %v397 = vld [vmem:[%s258 + $0x50] sm:$0xf]
      %v398 = vld [vmem:[%s258 + $0x54] sm:$0xf]
      %v399 = vld [vmem:[%s258 + $0x58] sm:$0xf]
      %v400 = vld [vmem:[%s258 + $0x5c] sm:$0xf]
      %v401 = vld [vmem:[%s258 + $0x60] sm:$0xf]
      %v402 = vld [vmem:[%s258 + $0x64] sm:$0xf]
      %v403 = vld [vmem:[%s258 + $0x68] sm:$0xf]
      %v404 = vld [vmem:[%s258 + $0x6c] sm:$0xf]
      %v405 = vld [vmem:[%s258 + $0x70] sm:$0xf]
      %v406 = vld [vmem:[%s258 + $0x74] sm:$0xf]
      %v407 = vld [vmem:[%s258 + $0x78] sm:$0xf]
      %v408 = vld [vmem:[%s258 + $0x7c] sm:$0xf]
      %v441 = vunpack.c.l.b16 %v345
      %v442 = vunpack.c.h.b16 %v345
      %v443 = vunpack.c.l.b16 %v346
      %v444 = vunpack.c.h.b16 %v346
      %v445 = vunpack.c.l.b16 %v347
      %v446 = vunpack.c.h.b16 %v347
      %v447 = vunpack.c.l.b16 %v348
      %v448 = vunpack.c.h.b16 %v348
      %v449 = vunpack.c.l.b16 %v349
      %v450 = vunpack.c.h.b16 %v349
      %v451 = vunpack.c.l.b16 %v350
      %v452 = vunpack.c.h.b16 %v350
      %v453 = vunpack.c.l.b16 %v351
      %v454 = vunpack.c.h.b16 %v351
      %v455 = vunpack.c.l.b16 %v352
      %v456 = vunpack.c.h.b16 %v352
      %v457 = vunpack.c.l.b16 %v353
      %v458 = vunpack.c.h.b16 %v353
      %v459 = vunpack.c.l.b16 %v354
      %v460 = vunpack.c.h.b16 %v354
      %v461 = vunpack.c.l.b16 %v355
      %v462 = vunpack.c.h.b16 %v355
      %v463 = vunpack.c.l.b16 %v356
      %v464 = vunpack.c.h.b16 %v356
      %v465 = vunpack.c.l.b16 %v357
      %v466 = vunpack.c.h.b16 %v357
      %v467 = vunpack.c.l.b16 %v358
      %v468 = vunpack.c.h.b16 %v358
      %v469 = vunpack.c.l.b16 %v359
      %v470 = vunpack.c.h.b16 %v359
      %v471 = vunpack.c.l.b16 %v360
      %v472 = vunpack.c.h.b16 %v360
      %v473 = vunpack.c.l.b16 %v361
      %v474 = vunpack.c.h.b16 %v361
      %v475 = vunpack.c.l.b16 %v362
      %v476 = vunpack.c.h.b16 %v362
      %v477 = vunpack.c.l.b16 %v363
      %v478 = vunpack.c.h.b16 %v363
      %v479 = vunpack.c.l.b16 %v364
      %v480 = vunpack.c.h.b16 %v364
      %v481 = vunpack.c.l.b16 %v365
      %v482 = vunpack.c.h.b16 %v365
      %v483 = vunpack.c.l.b16 %v366
      %v484 = vunpack.c.h.b16 %v366
      %v485 = vunpack.c.l.b16 %v367
      %v486 = vunpack.c.h.b16 %v367
      %v487 = vunpack.c.l.b16 %v368
      %v488 = vunpack.c.h.b16 %v368
      %v489 = vunpack.c.l.b16 %v369
      %v490 = vunpack.c.h.b16 %v369
      %v491 = vunpack.c.l.b16 %v370
      %v492 = vunpack.c.h.b16 %v370
      %v493 = vunpack.c.l.b16 %v371
      %v494 = vunpack.c.h.b16 %v371
      %v495 = vunpack.c.l.b16 %v372
      %v496 = vunpack.c.h.b16 %v372
      %v497 = vunpack.c.l.b16 %v373
      %v498 = vunpack.c.h.b16 %v373
      %v499 = vunpack.c.l.b16 %v374
      %v500 = vunpack.c.h.b16 %v374
      %v501 = vunpack.c.l.b16 %v375
      %v502 = vunpack.c.h.b16 %v375
      %v503 = vunpack.c.l.b16 %v376
      %v504 = vunpack.c.h.b16 %v376
      %v505 = vpack.c.b16 %v443, %v441
      %v506 = vpack.c.b16 %v444, %v442
      %v507 = vpack.c.b16 %v447, %v445
      %v508 = vpack.c.b16 %v448, %v446
      %v509 = vpack.c.b16 %v451, %v449
      %v510 = vpack.c.b16 %v452, %v450
      %v511 = vpack.c.b16 %v455, %v453
      %v512 = vpack.c.b16 %v456, %v454
      %v513 = vpack.c.b16 %v459, %v457
      %v514 = vpack.c.b16 %v460, %v458
      %v515 = vpack.c.b16 %v463, %v461
      %v516 = vpack.c.b16 %v464, %v462
      %v517 = vpack.c.b16 %v467, %v465
      %v518 = vpack.c.b16 %v468, %v466
      %v519 = vpack.c.b16 %v471, %v469
      %v520 = vpack.c.b16 %v472, %v470
      %v521 = vpack.c.b16 %v475, %v473
      %v522 = vpack.c.b16 %v476, %v474
      %v523 = vpack.c.b16 %v479, %v477
      %v524 = vpack.c.b16 %v480, %v478
      %v525 = vpack.c.b16 %v483, %v481
      %v526 = vpack.c.b16 %v484, %v482
      %v527 = vpack.c.b16 %v487, %v485
      %v528 = vpack.c.b16 %v488, %v486
      %v529 = vpack.c.b16 %v491, %v489
      %v530 = vpack.c.b16 %v492, %v490
      %v531 = vpack.c.b16 %v495, %v493
      %v532 = vpack.c.b16 %v496, %v494
      %v533 = vpack.c.b16 %v499, %v497
      %v534 = vpack.c.b16 %v500, %v498
      %v535 = vpack.c.b16 %v503, %v501
      %v536 = vpack.c.b16 %v504, %v502
      %v601 = vunpack.c.l.b16 %v377
      %v602 = vunpack.c.l.b16 %v378
      %v603 = vunpack.c.l.b16 %v379
      %v604 = vunpack.c.l.b16 %v380
      %v605 = vunpack.c.l.b16 %v381
      %v606 = vunpack.c.l.b16 %v382
      %v607 = vunpack.c.l.b16 %v383
      %v608 = vunpack.c.l.b16 %v384
      %v609 = vunpack.c.l.b16 %v385
      %v610 = vunpack.c.l.b16 %v386
      %v611 = vunpack.c.l.b16 %v387
      %v612 = vunpack.c.l.b16 %v388
      %v613 = vunpack.c.l.b16 %v389
      %v614 = vunpack.c.l.b16 %v390
      %v615 = vunpack.c.l.b16 %v391
      %v616 = vunpack.c.l.b16 %v392
      %v617 = vunpack.c.l.b16 %v393
      %v618 = vunpack.c.l.b16 %v394
      %v619 = vunpack.c.l.b16 %v395
      %v620 = vunpack.c.l.b16 %v396
      %v621 = vunpack.c.l.b16 %v397
      %v622 = vunpack.c.l.b16 %v398
      %v623 = vunpack.c.l.b16 %v399
      %v624 = vunpack.c.l.b16 %v400
      %v625 = vunpack.c.l.b16 %v401
      %v626 = vunpack.c.l.b16 %v402
      %v627 = vunpack.c.l.b16 %v403
      %v628 = vunpack.c.l.b16 %v404
      %v629 = vunpack.c.l.b16 %v405
      %v630 = vunpack.c.l.b16 %v406
      %v631 = vunpack.c.l.b16 %v407
      %v632 = vunpack.c.l.b16 %v408
      %v633 = vpack.c.b16 %v602, %v601
      %v634 = vpack.c.b16 %v604, %v603
      %v635 = vpack.c.b16 %v606, %v605
      %v636 = vpack.c.b16 %v608, %v607
      %v637 = vpack.c.b16 %v610, %v609
      %v638 = vpack.c.b16 %v612, %v611
      %v639 = vpack.c.b16 %v614, %v613
      %v640 = vpack.c.b16 %v616, %v615
      %v641 = vpack.c.b16 %v618, %v617
      %v642 = vpack.c.b16 %v620, %v619
      %v643 = vpack.c.b16 %v622, %v621
      %v644 = vpack.c.b16 %v624, %v623
      %v645 = vpack.c.b16 %v626, %v625
      %v646 = vpack.c.b16 %v628, %v627
      %v647 = vpack.c.b16 %v630, %v629
      %v648 = vpack.c.b16 %v632, %v631
      %665 = vmatpush.bf16.msra.mxu0 %v640
      %666 = vmatpush.bf16.msra.mxu0 %v639
      %667 = vmatpush.bf16.msra.mxu0 %v638
      %668 = vmatpush.bf16.msra.mxu0 %v637
      %669 = vmatpush.bf16.msra.mxu0 %v636
      %670 = vmatpush.bf16.msra.mxu0 %v635
      %671 = vmatpush.bf16.msra.mxu0 %v634
      %672 = vmatpush.bf16.msra.mxu0 %v633
      %673 = vmatmul.bf16.gmra.mxu0 %v505
      %v674 = vpop.f32.mrf.mxu0
      %v675 = vadd.f32 0.0, %v674
      %v676 = vpop.f32.mrf.mxu0
      %v677 = vadd.f32 0.0, %v676
      %678 = vmatmul.bf16.gmra.mxu0 %v507
      %v679 = vpop.f32.mrf.mxu0
      %v680 = vadd.f32 0.0, %v679
      %v681 = vpop.f32.mrf.mxu0
      %v682 = vadd.f32 0.0, %v681
      %683 = vmatmul.bf16.gmra.mxu0 %v509
      %v684 = vpop.f32.mrf.mxu0
      %v685 = vadd.f32 0.0, %v684
      %v686 = vpop.f32.mrf.mxu0
      %v687 = vadd.f32 0.0, %v686
      %688 = vmatmul.bf16.gmra.mxu0 %v511
      %v689 = vpop.f32.mrf.mxu0
      %v690 = vadd.f32 0.0, %v689
      %v691 = vpop.f32.mrf.mxu0
      %v692 = vadd.f32 0.0, %v691
      %693 = vmatmul.bf16.gmra.mxu0 %v513
      %v694 = vpop.f32.mrf.mxu0
      %v695 = vadd.f32 0.0, %v694
      %v696 = vpop.f32.mrf.mxu0
      %v697 = vadd.f32 0.0, %v696
      %698 = vmatmul.bf16.gmra.mxu0 %v515
      %v699 = vpop.f32.mrf.mxu0
      %v700 = vadd.f32 0.0, %v699
      %v701 = vpop.f32.mrf.mxu0
      %v702 = vadd.f32 0.0, %v701
      %703 = vmatmul.bf16.gmra.mxu0 %v517
      %v704 = vpop.f32.mrf.mxu0
      %v705 = vadd.f32 0.0, %v704
      %v706 = vpop.f32.mrf.mxu0
      %v707 = vadd.f32 0.0, %v706
      %708 = vmatmul.bf16.gmra.mxu0 %v519
      %v709 = vpop.f32.mrf.mxu0
      %v710 = vadd.f32 0.0, %v709
      %v711 = vpop.f32.mrf.mxu0
      %v712 = vadd.f32 0.0, %v711
      %713 = vmatmul.bf16.gmra.mxu0 %v521
      %v714 = vpop.f32.mrf.mxu0
      %v715 = vadd.f32 0.0, %v714
      %v716 = vpop.f32.mrf.mxu0
      %v717 = vadd.f32 0.0, %v716
      %718 = vmatmul.bf16.gmra.mxu0 %v523
      %v719 = vpop.f32.mrf.mxu0
      %v720 = vadd.f32 0.0, %v719
      %v721 = vpop.f32.mrf.mxu0
      %v722 = vadd.f32 0.0, %v721
      %723 = vmatmul.bf16.gmra.mxu0 %v525
      %v724 = vpop.f32.mrf.mxu0
      %v725 = vadd.f32 0.0, %v724
      %v726 = vpop.f32.mrf.mxu0
      %v727 = vadd.f32 0.0, %v726
      %728 = vmatmul.bf16.gmra.mxu0 %v527
      %v729 = vpop.f32.mrf.mxu0
      %v730 = vadd.f32 0.0, %v729
      %v731 = vpop.f32.mrf.mxu0
      %v732 = vadd.f32 0.0, %v731
      %733 = vmatmul.bf16.gmra.mxu0 %v529
      %v734 = vpop.f32.mrf.mxu0
      %v735 = vadd.f32 0.0, %v734
      %v736 = vpop.f32.mrf.mxu0
      %v737 = vadd.f32 0.0, %v736
      %738 = vmatmul.bf16.gmra.mxu0 %v531
      %v739 = vpop.f32.mrf.mxu0
      %v740 = vadd.f32 0.0, %v739
      %v741 = vpop.f32.mrf.mxu0
      %v742 = vadd.f32 0.0, %v741
      %743 = vmatmul.bf16.gmra.mxu0 %v533
      %v744 = vpop.f32.mrf.mxu0
      %v745 = vadd.f32 0.0, %v744
      %v746 = vpop.f32.mrf.mxu0
      %v747 = vadd.f32 0.0, %v746
      %748 = vmatmul.bf16.gmra.mxu0 %v535
      %v749 = vpop.f32.mrf.mxu0
      %v750 = vadd.f32 0.0, %v749
      %v751 = vpop.f32.mrf.mxu0
      %v752 = vadd.f32 0.0, %v751
      %753 = vdwg.mxu0
      %754 = vmatpush.bf16.msra.mxu0 %v648
      %755 = vmatpush.bf16.msra.mxu0 %v647
      %756 = vmatpush.bf16.msra.mxu0 %v646
      %757 = vmatpush.bf16.msra.mxu0 %v645
      %758 = vmatpush.bf16.msra.mxu0 %v644
      %759 = vmatpush.bf16.msra.mxu0 %v643
      %760 = vmatpush.bf16.msra.mxu0 %v642
      %761 = vmatpush.bf16.msra.mxu0 %v641
      %762 = vmatmul.bf16.gmra.mxu0 %v506
      %v763 = vpop.f32.mrf.mxu0
      %v764 = vadd.f32 %v675, %v763
      %v765 = vpop.f32.mrf.mxu0
      %v766 = vadd.f32 %v677, %v765
      %767 = vmatmul.bf16.gmra.mxu0 %v508
      %v768 = vpop.f32.mrf.mxu0
      %v769 = vadd.f32 %v680, %v768
      %v770 = vpop.f32.mrf.mxu0
      %v771 = vadd.f32 %v682, %v770
      %772 = vmatmul.bf16.gmra.mxu0 %v510
      %v773 = vpop.f32.mrf.mxu0
      %v774 = vadd.f32 %v685, %v773
      %v775 = vpop.f32.mrf.mxu0
      %v776 = vadd.f32 %v687, %v775
      %777 = vmatmul.bf16.gmra.mxu0 %v512
      %v778 = vpop.f32.mrf.mxu0
      %v779 = vadd.f32 %v690, %v778
      %v780 = vpop.f32.mrf.mxu0
      %v781 = vadd.f32 %v692, %v780
      %782 = vmatmul.bf16.gmra.mxu0 %v514
      %v783 = vpop.f32.mrf.mxu0
      %v784 = vadd.f32 %v695, %v783
      %v785 = vpop.f32.mrf.mxu0
      %v786 = vadd.f32 %v697, %v785
      %787 = vmatmul.bf16.gmra.mxu0 %v516
      %v788 = vpop.f32.mrf.mxu0
      %v789 = vadd.f32 %v700, %v788
      %v790 = vpop.f32.mrf.mxu0
      %v791 = vadd.f32 %v702, %v790
      %792 = vmatmul.bf16.gmra.mxu0 %v518
      %v793 = vpop.f32.mrf.mxu0
      %v794 = vadd.f32 %v705, %v793
      %v795 = vpop.f32.mrf.mxu0
      %v796 = vadd.f32 %v707, %v795
      %797 = vmatmul.bf16.gmra.mxu0 %v520
      %v798 = vpop.f32.mrf.mxu0
      %v799 = vadd.f32 %v710, %v798
      %v800 = vpop.f32.mrf.mxu0
      %v801 = vadd.f32 %v712, %v800
      %802 = vmatmul.bf16.gmra.mxu0 %v522
      %v803 = vpop.f32.mrf.mxu0
      %v804 = vadd.f32 %v715, %v803
      %v805 = vpop.f32.mrf.mxu0
      %v806 = vadd.f32 %v717, %v805
      %807 = vmatmul.bf16.gmra.mxu0 %v524
      %v808 = vpop.f32.mrf.mxu0
      %v809 = vadd.f32 %v720, %v808
      %v810 = vpop.f32.mrf.mxu0
      %v811 = vadd.f32 %v722, %v810
      %812 = vmatmul.bf16.gmra.mxu0 %v526
      %v813 = vpop.f32.mrf.mxu0
      %v814 = vadd.f32 %v725, %v813
      %v815 = vpop.f32.mrf.mxu0
      %v816 = vadd.f32 %v727, %v815
      %817 = vmatmul.bf16.gmra.mxu0 %v528
      %v818 = vpop.f32.mrf.mxu0
      %v819 = vadd.f32 %v730, %v818
      %v820 = vpop.f32.mrf.mxu0
      %v821 = vadd.f32 %v732, %v820
      %822 = vmatmul.bf16.gmra.mxu0 %v530
      %v823 = vpop.f32.mrf.mxu0
      %v824 = vadd.f32 %v735, %v823
      %v825 = vpop.f32.mrf.mxu0
      %v826 = vadd.f32 %v737, %v825
      %827 = vmatmul.bf16.gmra.mxu0 %v532
      %v828 = vpop.f32.mrf.mxu0
      %v829 = vadd.f32 %v740, %v828
      %v830 = vpop.f32.mrf.mxu0
      %v831 = vadd.f32 %v742, %v830
      %832 = vmatmul.bf16.gmra.mxu0 %v534
      %v833 = vpop.f32.mrf.mxu0
      %v834 = vadd.f32 %v745, %v833
      %v835 = vpop.f32.mrf.mxu0
      %v836 = vadd.f32 %v747, %v835
      %837 = vmatmul.bf16.gmra.mxu0 %v536
      %v838 = vpop.f32.mrf.mxu0
      %v839 = vadd.f32 %v750, %v838
      %v840 = vpop.f32.mrf.mxu0
      %v841 = vadd.f32 %v752, %v840
      %842 = vdwg.mxu0
      %v843 = vadd.f32 %v313, %v764
      %v844 = vadd.f32 %v314, %v766
      %v845 = vadd.f32 %v315, %v769
      %v846 = vadd.f32 %v316, %v771
      %v847 = vadd.f32 %v317, %v774
      %v848 = vadd.f32 %v318, %v776
      %v849 = vadd.f32 %v319, %v779
      %v850 = vadd.f32 %v320, %v781
      %v851 = vadd.f32 %v321, %v784
      %v852 = vadd.f32 %v322, %v786
      %v853 = vadd.f32 %v323, %v789
      %v854 = vadd.f32 %v324, %v791
      %v855 = vadd.f32 %v325, %v794
      %v856 = vadd.f32 %v326, %v796
      %v857 = vadd.f32 %v327, %v799
      %v858 = vadd.f32 %v328, %v801
      %v859 = vadd.f32 %v329, %v804
      %v860 = vadd.f32 %v330, %v806
      %v861 = vadd.f32 %v331, %v809
      %v862 = vadd.f32 %v332, %v811
      %v863 = vadd.f32 %v333, %v814
      %v864 = vadd.f32 %v334, %v816
      %v865 = vadd.f32 %v335, %v819
      %v866 = vadd.f32 %v336, %v821
      %v867 = vadd.f32 %v337, %v824
      %v868 = vadd.f32 %v338, %v826
      %v869 = vadd.f32 %v339, %v829
      %v870 = vadd.f32 %v340, %v831
      %v871 = vadd.f32 %v341, %v834
      %v872 = vadd.f32 %v342, %v836
      %v873 = vadd.f32 %v343, %v839
      %v874 = vadd.f32 %v344, %v841
      %875 = vst [vmem:[#allocation2] sm:$0xff] %v843
      %876 = vst [vmem:[#allocation2 + $0x8] sm:$0xff] %v844
      %877 = vst [vmem:[#allocation2 + $0x10] sm:$0xff] %v845
      %878 = vst [vmem:[#allocation2 + $0x18] sm:$0xff] %v846
      %879 = vst [vmem:[#allocation2 + $0x20] sm:$0xff] %v847
      %880 = vst [vmem:[#allocation2 + $0x28] sm:$0xff] %v848
      %881 = vst [vmem:[#allocation2 + $0x30] sm:$0xff] %v849
      %882 = vst [vmem:[#allocation2 + $0x38] sm:$0xff] %v850
      %883 = vst [vmem:[#allocation2 + $0x40] sm:$0xff] %v851
      %884 = vst [vmem:[#allocation2 + $0x48] sm:$0xff] %v852
      %885 = vst [vmem:[#allocation2 + $0x50] sm:$0xff] %v853
      %886 = vst [vmem:[#allocation2 + $0x58] sm:$0xff] %v854
      %887 = vst [vmem:[#allocation2 + $0x60] sm:$0xff] %v855
      %888 = vst [vmem:[#allocation2 + $0x68] sm:$0xff] %v856
      %889 = vst [vmem:[#allocation2 + $0x70] sm:$0xff] %v857
      %890 = vst [vmem:[#allocation2 + $0x78] sm:$0xff] %v858
      %891 = vst [vmem:[#allocation2 + $0x80] sm:$0xff] %v859
      %892 = vst [vmem:[#allocation2 + $0x88] sm:$0xff] %v860
      %893 = vst [vmem:[#allocation2 + $0x90] sm:$0xff] %v861
      %894 = vst [vmem:[#allocation2 + $0x98] sm:$0xff] %v862
      %895 = vst [vmem:[#allocation2 + $0xa0] sm:$0xff] %v863
      %896 = vst [vmem:[#allocation2 + $0xa8] sm:$0xff] %v864
      %897 = vst [vmem:[#allocation2 + $0xb0] sm:$0xff] %v865
      %898 = vst [vmem:[#allocation2 + $0xb8] sm:$0xff] %v866
      %899 = vst [vmem:[#allocation2 + $0xc0] sm:$0xff] %v867
      %900 = vst [vmem:[#allocation2 + $0xc8] sm:$0xff] %v868
      %901 = vst [vmem:[#allocation2 + $0xd0] sm:$0xff] %v869
      %902 = vst [vmem:[#allocation2 + $0xd8] sm:$0xff] %v870
      %903 = vst [vmem:[#allocation2 + $0xe0] sm:$0xff] %v871
      %904 = vst [vmem:[#allocation2 + $0xe8] sm:$0xff] %v872
      %905 = vst [vmem:[#allocation2 + $0xf0] sm:$0xff] %v873
      %906 = vst [vmem:[#allocation2 + $0xf8] sm:$0xff] %v874
      // Predicated region
      $region33: #{generator_forward.15} parent=27 // pred_check
        %p907 = pneg %p277
      $region34: #{generator_forward.15} parent=27 // pred_check_branch
        %909 = sbr.rel (%p907) target = $region36
      $region35: #{generator_forward.15} parent=27 // pred_region
        %v910 = vld [vmem:[#allocation2] sm:$0xff]
        %v911 = vld [vmem:[#allocation2 + $0x8] sm:$0xff]
        %v912 = vld [vmem:[#allocation2 + $0x10] sm:$0xff]
        %v913 = vld [vmem:[#allocation2 + $0x18] sm:$0xff]
        %v914 = vld [vmem:[#allocation2 + $0x20] sm:$0xff]
        %v915 = vld [vmem:[#allocation2 + $0x28] sm:$0xff]
        %v916 = vld [vmem:[#allocation2 + $0x30] sm:$0xff]
        %v917 = vld [vmem:[#allocation2 + $0x38] sm:$0xff]
        %v918 = vld [vmem:[#allocation2 + $0x40] sm:$0xff]
        %v919 = vld [vmem:[#allocation2 + $0x48] sm:$0xff]
        %v920 = vld [vmem:[#allocation2 + $0x50] sm:$0xff]
        %v921 = vld [vmem:[#allocation2 + $0x58] sm:$0xff]
        %v922 = vld [vmem:[#allocation2 + $0x60] sm:$0xff]
        %v923 = vld [vmem:[#allocation2 + $0x68] sm:$0xff]
        %v924 = vld [vmem:[#allocation2 + $0x70] sm:$0xff]
        %v925 = vld [vmem:[#allocation2 + $0x78] sm:$0xff]
        %v926 = vld [vmem:[#allocation2 + $0x80] sm:$0xff]
        %v927 = vld [vmem:[#allocation2 + $0x88] sm:$0xff]
        %v928 = vld [vmem:[#allocation2 + $0x90] sm:$0xff]
        %v929 = vld [vmem:[#allocation2 + $0x98] sm:$0xff]
        %v930 = vld [vmem:[#allocation2 + $0xa0] sm:$0xff]
        %v931 = vld [vmem:[#allocation2 + $0xa8] sm:$0xff]
        %v932 = vld [vmem:[#allocation2 + $0xb0] sm:$0xff]
        %v933 = vld [vmem:[#allocation2 + $0xb8] sm:$0xff]
        %v934 = vld [vmem:[#allocation2 + $0xc0] sm:$0xff]
        %v935 = vld [vmem:[#allocation2 + $0xc8] sm:$0xff]
        %v936 = vld [vmem:[#allocation2 + $0xd0] sm:$0xff]
        %v937 = vld [vmem:[#allocation2 + $0xd8] sm:$0xff]
        %v938 = vld [vmem:[#allocation2 + $0xe0] sm:$0xff]
        %v939 = vld [vmem:[#allocation2 + $0xe8] sm:$0xff]
        %v940 = vld [vmem:[#allocation2 + $0xf0] sm:$0xff]
        %v941 = vld [vmem:[#allocation2 + $0xf8] sm:$0xff]
        %942 = vst [vmem:[%s268] sm:$0xff] %v910
        %943 = vst [vmem:[%s268 + $0x8] sm:$0xff] %v911
        %944 = vst [vmem:[%s268 + $0x10] sm:$0xff] %v912
        %945 = vst [vmem:[%s268 + $0x18] sm:$0xff] %v913
        %946 = vst [vmem:[%s268 + $0x20] sm:$0xff] %v914
        %947 = vst [vmem:[%s268 + $0x28] sm:$0xff] %v915
        %948 = vst [vmem:[%s268 + $0x30] sm:$0xff] %v916
        %949 = vst [vmem:[%s268 + $0x38] sm:$0xff] %v917
        %950 = vst [vmem:[%s268 + $0x40] sm:$0xff] %v918
        %951 = vst [vmem:[%s268 + $0x48] sm:$0xff] %v919
        %952 = vst [vmem:[%s268 + $0x50] sm:$0xff] %v920
        %953 = vst [vmem:[%s268 + $0x58] sm:$0xff] %v921
        %954 = vst [vmem:[%s268 + $0x60] sm:$0xff] %v922
        %955 = vst [vmem:[%s268 + $0x68] sm:$0xff] %v923
        %956 = vst [vmem:[%s268 + $0x70] sm:$0xff] %v924
        %957 = vst [vmem:[%s268 + $0x78] sm:$0xff] %v925
        %958 = vst [vmem:[%s268 + $0x80] sm:$0xff] %v926
        %959 = vst [vmem:[%s268 + $0x88] sm:$0xff] %v927
        %960 = vst [vmem:[%s268 + $0x90] sm:$0xff] %v928
        %961 = vst [vmem:[%s268 + $0x98] sm:$0xff] %v929
        %962 = vst [vmem:[%s268 + $0xa0] sm:$0xff] %v930
        %963 = vst [vmem:[%s268 + $0xa8] sm:$0xff] %v931
        %964 = vst [vmem:[%s268 + $0xb0] sm:$0xff] %v932
        %965 = vst [vmem:[%s268 + $0xb8] sm:$0xff] %v933
        %966 = vst [vmem:[%s268 + $0xc0] sm:$0xff] %v934
        %967 = vst [vmem:[%s268 + $0xc8] sm:$0xff] %v935
        %968 = vst [vmem:[%s268 + $0xd0] sm:$0xff] %v936
        %969 = vst [vmem:[%s268 + $0xd8] sm:$0xff] %v937
        %970 = vst [vmem:[%s268 + $0xe0] sm:$0xff] %v938
        %971 = vst [vmem:[%s268 + $0xe8] sm:$0xff] %v939
        %972 = vst [vmem:[%s268 + $0xf0] sm:$0xff] %v940
        %973 = vst [vmem:[%s268 + $0xf8] sm:$0xff] %v941
        %v974 = vadd.f32 %v910, %v911
        %v975 = vadd.f32 %v974, %v912
        %v976 = vadd.f32 %v975, %v913
        %v977 = vadd.f32 %v976, %v914
        %v978 = vadd.f32 %v977, %v915
        %v979 = vadd.f32 %v978, %v916
        %v980 = vadd.f32 %v979, %v917
        %v981 = vadd.f32 %v980, %v918
        %v982 = vadd.f32 %v981, %v919
        %v983 = vadd.f32 %v982, %v920
        %v984 = vadd.f32 %v983, %v921
        %v985 = vadd.f32 %v984, %v922
        %v986 = vadd.f32 %v985, %v923
        %v987 = vadd.f32 %v986, %v924
        %v988 = vadd.f32 %v987, %v925
        %v989 = vadd.f32 %v988, %v926
        %v990 = vadd.f32 %v989, %v927
        %v991 = vadd.f32 %v990, %v928
        %v992 = vadd.f32 %v991, %v929
        %v993 = vadd.f32 %v992, %v930
        %v994 = vadd.f32 %v993, %v931
        %v995 = vadd.f32 %v994, %v932
        %v996 = vadd.f32 %v995, %v933
        %v997 = vadd.f32 %v996, %v934
        %v998 = vadd.f32 %v997, %v935
        %v999 = vadd.f32 %v998, %v936
        %v1000 = vadd.f32 %v999, %v937
        %v1001 = vadd.f32 %v1000, %v938
        %v1002 = vadd.f32 %v1001, %v939
        %v1003 = vadd.f32 %v1002, %v940
        %v1004 = vadd.f32 %v1003, %v941
        %v1005 = vrot.slane %v1004, 4
        %v1006 = vadd.f32 %v1004, %v1005
        %v1007 = vrot.slane %v1006, 2
        %v1008 = vadd.f32 %v1006, %v1007
        %v1009 = vrot.slane %v1008, 1
        %v1010 = vadd.f32 %v1008, %v1009
        %v1011 = vmul.f32 %v910, %v910
        %v1012 = vmul.f32 %v911, %v911
        %v1013 = vmul.f32 %v912, %v912
        %v1014 = vmul.f32 %v913, %v913
        %v1015 = vmul.f32 %v914, %v914
        %v1016 = vmul.f32 %v915, %v915
        %v1017 = vmul.f32 %v916, %v916
        %v1018 = vmul.f32 %v917, %v917
        %v1019 = vmul.f32 %v918, %v918
        %v1020 = vmul.f32 %v919, %v919
        %v1021 = vmul.f32 %v920, %v920
        %v1022 = vmul.f32 %v921, %v921
        %v1023 = vmul.f32 %v922, %v922
        %v1024 = vmul.f32 %v923, %v923
        %v1025 = vmul.f32 %v924, %v924
        %v1026 = vmul.f32 %v925, %v925
        %v1027 = vmul.f32 %v926, %v926
        %v1028 = vmul.f32 %v927, %v927
        %v1029 = vmul.f32 %v928, %v928
        %v1030 = vmul.f32 %v929, %v929
        %v1031 = vmul.f32 %v930, %v930
        %v1032 = vmul.f32 %v931, %v931
        %v1033 = vmul.f32 %v932, %v932
        %v1034 = vmul.f32 %v933, %v933
        %v1035 = vmul.f32 %v934, %v934
        %v1036 = vmul.f32 %v935, %v935
        %v1037 = vmul.f32 %v936, %v936
        %v1038 = vmul.f32 %v937, %v937
        %v1039 = vmul.f32 %v938, %v938
        %v1040 = vmul.f32 %v939, %v939
        %v1041 = vmul.f32 %v940, %v940
        %v1042 = vmul.f32 %v941, %v941
        %v1043 = vadd.f32 %v1011, %v1012
        %v1044 = vadd.f32 %v1043, %v1013
        %v1045 = vadd.f32 %v1044, %v1014
        %v1046 = vadd.f32 %v1045, %v1015
        %v1047 = vadd.f32 %v1046, %v1016
        %v1048 = vadd.f32 %v1047, %v1017
        %v1049 = vadd.f32 %v1048, %v1018
        %v1050 = vadd.f32 %v1049, %v1019
        %v1051 = vadd.f32 %v1050, %v1020
        %v1052 = vadd.f32 %v1051, %v1021
        %v1053 = vadd.f32 %v1052, %v1022
        %v1054 = vadd.f32 %v1053, %v1023
        %v1055 = vadd.f32 %v1054, %v1024
        %v1056 = vadd.f32 %v1055, %v1025
        %v1057 = vadd.f32 %v1056, %v1026
        %v1058 = vadd.f32 %v1057, %v1027
        %v1059 = vadd.f32 %v1058, %v1028
        %v1060 = vadd.f32 %v1059, %v1029
        %v1061 = vadd.f32 %v1060, %v1030
        %v1062 = vadd.f32 %v1061, %v1031
        %v1063 = vadd.f32 %v1062, %v1032
        %v1064 = vadd.f32 %v1063, %v1033
        %v1065 = vadd.f32 %v1064, %v1034
        %v1066 = vadd.f32 %v1065, %v1035
        %v1067 = vadd.f32 %v1066, %v1036
        %v1068 = vadd.f32 %v1067, %v1037
        %v1069 = vadd.f32 %v1068, %v1038
        %v1070 = vadd.f32 %v1069, %v1039
        %v1071 = vadd.f32 %v1070, %v1040
        %v1072 = vadd.f32 %v1071, %v1041
        %v1073 = vadd.f32 %v1072, %v1042
        %v1074 = vrot.slane %v1073, 4
        %v1075 = vadd.f32 %v1073, %v1074
        %v1076 = vrot.slane %v1075, 2
        %v1077 = vadd.f32 %v1075, %v1076
        %v1078 = vrot.slane %v1077, 1
        %v1079 = vadd.f32 %v1077, %v1078
        %vm1080 = vcmask 1040384
        %v1081 = vsel %vm1080, %v1010, %v1079
        %1082 = vst [vmem:[%s276] sm:$0x3] %v1081
      $region36: #{generator_forward.15} parent=27 // pred_fallthru
        _
      %s1083 = smul.u32 32, %s21
      %p1084 = scmp.lt.s32.totalorder %s20, 1
      %s1085 = scalar_select %p1084, %s20, 1
      %p1086 = scmp.lt.s32.totalorder %s1083, 31
      %s1087 = scalar_select %p1086, %s1083, 31
      %s1088 = smul.addr %s1085, 32
      %s1089 = sadd.s32 %s1087, %s1088
      %s1090 = smul.addr %s1089, 8
      %s1091 = scalar_lea.vmem %s2, %s1090
      %p1092 = scmp.lt.s32.totalorder %s20, 1
      %s1093 = scalar_select %p1092, %s20, 1
      %p1094 = scmp.lt.s32.totalorder %s21, 0
      %s1095 = scalar_select %p1094, %s21, 0
      %s1096 = sadd.s32 %s1095, %s1093
      %s1097 = smul.addr %s1096, 2
      %s1098 = scalar_lea.vmem %s3, %s1097
      // Predicated region
      $region37: #{generator_forward.15} parent=27 // pred_check
        %p1099 = pneg %p110
      $region38: #{generator_forward.15} parent=27 // pred_check_branch
        %1101 = sbr.rel (%p1099) target = $region40
      $region39: #{generator_forward.15} parent=27 // pred_region
        %s1102 = smul.u32 32, %s21
      $region40: #{generator_forward.15} parent=27 // pred_fallthru
        _
      // Predicated region
      $region41: #{generator_forward.15} parent=27 // pred_check
        %p1103 = pneg %p138
      $region42: #{generator_forward.15} parent=27 // pred_check_branch
        %1105 = sbr.rel (%p1103) target = $region44
      $region43: #{generator_forward.15} parent=27 // pred_region
        _
      $region44: #{generator_forward.15} parent=27 // pred_fallthru
        _
    $region28: #{generator_forward.15} parent=5 // pred_fallthru
      _
    %p1106 = scmp.le.s32.totalorder 2, %s10
    // Predicated region
    $region45: #{generator_forward.15} parent=5 // pred_check
      %p1107 = pneg %p1106
    $region46: #{generator_forward.15} parent=5 // pred_check_branch
      %1109 = sbr.rel (%p1107) target = $region48
    $region47: #{generator_forward.15} parent=5 // pred_region
      %s1110 = ssub.s32 %s10, 2
      // Predicated region
      $region49: #{generator_forward.15} parent=47 // pred_check
        %p1111 = pneg %p116
      $region50: #{generator_forward.15} parent=47 // pred_check_branch
        %1113 = sbr.rel (%p1111) target = $region52
      $region51: #{generator_forward.15} parent=47 // pred_region
        %s1114 = smul.u32 32, %s24
        %p1115 = scmp.lt.s32.totalorder %s23, 1
        %s1116 = scalar_select %p1115, %s23, 1
        %p1117 = scmp.lt.s32.totalorder %s1114, 31
        %s1118 = scalar_select %p1117, %s1114, 31
        %s1119 = smul.addr %s1116, 32
        %s1120 = sadd.s32 %s1118, %s1119
        %s1121 = smul.addr %s1120, 8
        %s1122 = scalar_lea.vmem %s2, %s1121
      $region52: #{generator_forward.15} parent=47 // pred_fallthru
        _
      // Predicated region
      $region53: #{generator_forward.15} parent=47 // pred_check
        %p1123 = pneg %p144
      $region54: #{generator_forward.15} parent=47 // pred_check_branch
        %1125 = sbr.rel (%p1123) target = $region56
      $region55: #{generator_forward.15} parent=47 // pred_region
        %p1126 = scmp.lt.s32.totalorder %s23, 1
        %s1127 = scalar_select %p1126, %s23, 1
        %p1128 = scmp.lt.s32.totalorder %s24, 0
        %s1129 = scalar_select %p1128, %s24, 0
        %s1130 = sadd.s32 %s1129, %s1127
        %s1131 = smul.addr %s1130, 2
        %s1132 = scalar_lea.vmem %s3, %s1131
      $region56: #{generator_forward.15} parent=47 // pred_fallthru
        _
    $region48: #{generator_forward.15} parent=5 // pred_fallthru
      _
  $region6: #{generator_forward.15} parent=0 // loop_footer
    %s14 = sadd.s32 1, %s10
  $region7: #{generator_forward.15} parent=0 // loop_footer_branch
    %9 = sbr.rel target = $region3
  $region8: #{generator_forward.15} parent=0 // loop_exit
    _

// kernel: generator_forward.17
$region0: #{generator_forward.17}
  #allocation0 [shape = 'u32[]', space=smem, size = 0x4, offset = 0x4, fixed_abs, tag = 'smem constant byte address 0x4 - core index']
  #allocation1 [shape = 'u32[72,128]{1,0:T(1,128)}', space=vmem, size = 0x9000, scoped, tag = 'internal scratch']
  #allocation2 [shape = 'f32[64,128]{1,0:T(8,128)}', space=vmem, size = 0x8000, scoped, tag = 'scratch operand']
  %s0 = inlined_call_operand.vmem [shape: bf16[2,64,128], index: 0, kind: input, shape index: {}]
  %s1 = inlined_call_operand.vmem [shape: bf16[128,128], index: 1, kind: input, shape index: {}]
  %s2 = inlined_call_operand.vmem [shape: f32[2,64,128], index: 2, kind: output, shape index: {0}]
  %s3 = inlined_call_operand.vmem [shape: f32[2,1,2,128], index: 3, kind: output, shape index: {1}]
  %4 = xla_tuple %s2, %s3
  %s5 = sld [smem:[#allocation0]]
  $region57: #{generator_forward.17} parent=0
    _
  %s7 = ssub.s32 1, %s5
  %s8 = scalar_select 0, %s7, %s5
  loop: start=0, step=1, limit=4
  $region2: #{generator_forward.17} parent=0 // loop_pre_header
    _
  $region3: #{generator_forward.17} parent=0 // loop_header
    %s10 = sphi 0, %s14
    %p11 = scmp.ge.s32.totalorder %s10, 4
    %s17 = sphi 0, %s36
    %s18 = sphi 0, %s32
    %s19 = sphi 0, %s28
    %s20 = sphi 0, %s17
    %s21 = sphi 0, %s18
    %s22 = sphi 0, %s19
    %s23 = sphi 0, %s20
    %s24 = sphi 0, %s21
    %s25 = sphi 0, %s22
    %s43 = sphi 0, %s45
    %s46 = sphi 0, %s43
    %s47 = sphi 0, %s46
    %s63 = sphi 0, %s47
    %s69 = sphi 0, %s71
    %s72 = sphi 0, %s69
    %s73 = sphi 0, %s72
    %s89 = sphi 0, %s73
    %s97 = sphi 0, %s99
    %s100 = sphi 0, %s97
    %s101 = sphi 0, %s100
    %s117 = sphi 0, %s101
    %s125 = sphi 0, %s127
    %s128 = sphi 0, %s125
    %s129 = sphi 0, %s128
    %s145 = sphi 0, %s129
  $region4: #{generator_forward.17} parent=0 // loop_header_branch
    %13 = sbr.rel (%p11) target = $region8
  $region5: #{generator_forward.17} parent=0 // loop_body
    %s15 = ssub.s32 %s10, 1
    %s16 = ssub.s32 %s10, 2
    %s26 = sadd.s32 1, %s19
    %p27 = scmp.ge.s32.totalorder %s26, 1
    %s28 = scalar_select %p27, 0, %s26
    %s29 = sadd.s32 1, %s18
    %s30 = scalar_select %p27, %s29, %s18
    %p31 = scmp.ge.s32.totalorder %s30, 1
    %s32 = scalar_select %p31, 0, %s30
    %s33 = sadd.s32 1, %s17
    %s34 = scalar_select %p31, %s33, %s17
    %p35 = scmp.ge.s32.totalorder %s34, 2
    %s36 = scalar_select %p35, 0, %s34
    %s37 = ssub.s32 %s17, %s36
    %s38 = ssub.s32 %s18, %s32
    %s39 = sor.u32 %s37, %s38
    %s40 = ssub.s32 %s19, %s28
    %s41 = sor.u32 %s39, %s40
    %p42 = scmp.eq.s32.totalorder %s41, 0
    %s44 = sadd.s32 %s43, 1
    %s45 = scalar_select %p42, %s43, %s44
    %p48 = pneg %p42
    %p49 = scmp.eq.s32.totalorder %s10, 1
    %p50 = por %p48, %p49
    %p51 = scmp.ne.s32.totalorder %s43, %s46
    %p52 = scmp.eq.s32.totalorder %s10, 0
    %p53 = por %p51, %p52
    %p54 = scmp.ne.s32.totalorder %s43, %s46
    %p55 = scmp.eq.s32.totalorder %s15, 1
    %p56 = por %p54, %p55
    %p57 = scmp.ne.s32.totalorder %s46, %s47
    %p58 = scmp.eq.s32.totalorder %s15, 0
    %p59 = por %p57, %p58
    %p60 = scmp.ne.s32.totalorder %s46, %s47
    %p61 = scmp.eq.s32.totalorder %s16, 1
    %p62 = por %p60, %p61
    %p64 = scmp.ne.s32.totalorder %s47, %s63
    %p65 = scmp.eq.s32.totalorder %s16, 0
    %p66 = por %p64, %p65
    %s67 = ssub.s32 %s19, %s28
    %p68 = scmp.eq.s32.totalorder %s67, 0
    %s70 = sadd.s32 %s69, 1
    %s71 = scalar_select %p68, %s69, %s70
    %p74 = pneg %p68
    %p75 = scmp.eq.s32.totalorder %s10, 1
    %p76 = por %p74, %p75
    %p77 = scmp.ne.s32.totalorder %s69, %s72
    %p78 = scmp.eq.s32.totalorder %s10, 0
    %p79 = por %p77, %p78
    %p80 = scmp.ne.s32.totalorder %s69, %s72
    %p81 = scmp.eq.s32.totalorder %s15, 1
    %p82 = por %p80, %p81
    %p83 = scmp.ne.s32.totalorder %s72, %s73
    %p84 = scmp.eq.s32.totalorder %s15, 0
    %p85 = por %p83, %p84
    %p86 = scmp.ne.s32.totalorder %s72, %s73
    %p87 = scmp.eq.s32.totalorder %s16, 1
    %p88 = por %p86, %p87
    %p90 = scmp.ne.s32.totalorder %s73, %s89
    %p91 = scmp.eq.s32.totalorder %s16, 0
    %p92 = por %p90, %p91
    %s93 = ssub.s32 %s17, %s36
    %s94 = ssub.s32 %s18, %s32
    %s95 = sor.u32 %s93, %s94
    %p96 = scmp.eq.s32.totalorder %s95, 0
    %s98 = sadd.s32 %s97, 1
    %s99 = scalar_select %p96, %s97, %s98
    %p102 = pneg %p96
    %p103 = scmp.eq.s32.totalorder %s10, 1
    %p104 = por %p102, %p103
    %p105 = scmp.ne.s32.totalorder %s97, %s100
    %p106 = scmp.eq.s32.totalorder %s10, 0
    %p107 = por %p105, %p106
    %p108 = scmp.ne.s32.totalorder %s97, %s100
    %p109 = scmp.eq.s32.totalorder %s15, 1
    %p110 = por %p108, %p109
    %p111 = scmp.ne.s32.totalorder %s100, %s101
    %p112 = scmp.eq.s32.totalorder %s15, 0
    %p113 = por %p111, %p112
    %p114 = scmp.ne.s32.totalorder %s100, %s101
    %p115 = scmp.eq.s32.totalorder %s16, 1
    %p116 = por %p114, %p115
    %p118 = scmp.ne.s32.totalorder %s101, %s117
    %p119 = scmp.eq.s32.totalorder %s16, 0
    %p120 = por %p118, %p119
    %s121 = ssub.s32 %s17, %s36
    %s122 = ssub.s32 %s18, %s32
    %s123 = sor.u32 %s121, %s122
    %p124 = scmp.eq.s32.totalorder %s123, 0
    %s126 = sadd.s32 %s125, 1
    %s127 = scalar_select %p124, %s125, %s126
    %p130 = pneg %p124
    %p131 = scmp.eq.s32.totalorder %s10, 1
    %p132 = por %p130, %p131
    %p133 = scmp.ne.s32.totalorder %s125, %s128
    %p134 = scmp.eq.s32.totalorder %s10, 0
    %p135 = por %p133, %p134
    %p136 = scmp.ne.s32.totalorder %s125, %s128
    %p137 = scmp.eq.s32.totalorder %s15, 1
    %p138 = por %p136, %p137
    %p139 = scmp.ne.s32.totalorder %s128, %s129
    %p140 = scmp.eq.s32.totalorder %s15, 0
    %p141 = por %p139, %p140
    %p142 = scmp.ne.s32.totalorder %s128, %s129
    %p143 = scmp.eq.s32.totalorder %s16, 1
    %p144 = por %p142, %p143
    %p146 = scmp.ne.s32.totalorder %s129, %s145
    %p147 = scmp.eq.s32.totalorder %s16, 0
    %p148 = por %p146, %p147
    %p149 = scmp.le.s32.totalorder 1, %s10
    %p150 = scmp.lt.s32.totalorder %s10, 3
    %p151 = pnand %p149, %p150
    %p152 = pneg %p151
    // Predicated region
    $region9: #{generator_forward.17} parent=5 // pred_check
      _
    $region10: #{generator_forward.17} parent=5 // pred_check_branch
      %154 = sbr.rel (%p151) target = $region12
    $region11: #{generator_forward.17} parent=5 // pred_region
      %s155 = ssub.s32 %s10, 1
      // Predicated region
      $region13: #{generator_forward.17} parent=11 // pred_check
        %p156 = pneg %p85
      $region14: #{generator_forward.17} parent=11 // pred_check_branch
        %158 = sbr.rel (%p156) target = $region16
      $region15: #{generator_forward.17} parent=11 // pred_region
        %s159 = smul.u32 16, %s22
        %p160 = scmp.lt.s32.totalorder %s159, 15
        %s161 = scalar_select %p160, %s159, 15
        %s162 = smul.addr %s161, 4
        %s163 = scalar_lea.vmem %s1, %s162
        %s164 = smul.u32 16, %s22
      $region16: #{generator_forward.17} parent=11 // pred_fallthru
        _
    $region12: #{generator_forward.17} parent=5 // pred_fallthru
      _
    %p165 = scmp.lt.s32.totalorder %s10, 2
    // Predicated region
    $region17: #{generator_forward.17} parent=5 // pred_check
      %p166 = pneg %p165
    $region18: #{generator_forward.17} parent=5 // pred_check_branch
      %168 = sbr.rel (%p166) target = $region20
    $region19: #{generator_forward.17} parent=5 // pred_region
      // Predicated region
      $region21: #{generator_forward.17} parent=19 // pred_check
        %p169 = pneg %p53
      $region22: #{generator_forward.17} parent=19 // pred_check_branch
        %171 = sbr.rel (%p169) target = $region24
      $region23: #{generator_forward.17} parent=19 // pred_region
        %s172 = smul.u32 8, %s18
        %p173 = scmp.lt.s32.totalorder %s17, 1
        %s174 = scalar_select %p173, %s17, 1
        %p175 = scmp.lt.s32.totalorder %s172, 7
        %s176 = scalar_select %p175, %s172, 7
        %p177 = scmp.lt.s32.totalorder %s19, 0
        %s178 = scalar_select %p177, %s19, 0
        %s179 = sadd.s32 %s178, %s176
        %s180 = smul.addr %s174, 8
        %s181 = sadd.s32 %s179, %s180
        %s182 = smul.addr %s181, 4
        %s183 = scalar_lea.vmem %s0, %s182
        %s184 = smul.u32 8, %s18
      $region24: #{generator_forward.17} parent=19 // pred_fallthru
        _
    $region20: #{generator_forward.17} parent=5 // pred_fallthru
      _
    %p185 = scmp.le.s32.totalorder 1, %s10
    %p186 = scmp.lt.s32.totalorder %s10, 3
    %p187 = pnand %p185, %p186
    %p188 = pneg %p187
    // Predicated region
    $region25: #{generator_forward.17} parent=5 // pred_check
      _
    $region26: #{generator_forward.17} parent=5 // pred_check_branch
      %190 = sbr.rel (%p187) target = $region28
    $region27: #{generator_forward.17} parent=5 // pred_region
      %s191 = ssub.s32 %s10, 1
      %s192 = smul.u32 8, %s21
      %p193 = scmp.lt.s32.totalorder %s20, 1
      %s194 = scalar_select %p193, %s20, 1
      %p195 = scmp.lt.s32.totalorder %s192, 7
      %s196 = scalar_select %p195, %s192, 7
      %p197 = scmp.lt.s32.totalorder %s22, 0
      %s198 = scalar_select %p197, %s22, 0
      %s199 = sadd.s32 %s198, %s196
      %s200 = smul.addr %s194, 8
      %s201 = sadd.s32 %s199, %s200
      %s202 = smul.addr %s201, 4
      %s203 = scalar_lea.vmem %s0, %s202
      %p204 = pneg %p59
      %p205 = pneg %p56
      %s206 = smul.u32 16, %s22
      %p207 = scmp.lt.s32.totalorder %s206, 15
      %s208 = scalar_select %p207, %s206, 15
      %s209 = smul.addr %s208, 4
      %s210 = scalar_lea.vmem %s1, %s209
      %p211 = pneg %p85
      %p212 = pneg %p82
      %p213 = pneg %p113
      %p214 = pneg %p110
      %s215 = smul.u32 8, %s21
      %p216 = scmp.lt.s32.totalorder %s20, 1
      %s217 = scalar_select %p216, %s20, 1
      %p218 = scmp.lt.s32.totalorder %s215, 7
      %s219 = scalar_select %p218, %s215, 7
      %s220 = smul.addr %s217, 8
      %s221 = sadd.s32 %s219, %s220
      %s222 = smul.addr %s221, 8
      %s223 = scalar_lea.vmem %s2, %s222
      %p224 = pneg %p141
      %p225 = pneg %p138
      %p226 = scmp.lt.s32.totalorder %s20, 1
      %s227 = scalar_select %p226, %s20, 1
      %p228 = scmp.lt.s32.totalorder %s21, 0
      %s229 = scalar_select %p228, %s21, 0
      %s230 = sadd.s32 %s229, %s227
      %s231 = smul.addr %s230, 2
      %s232 = scalar_lea.vmem %s3, %s231
      %s233 = smul.u32 8, %s21
      %p234 = scmp.lt.s32.totalorder %s20, 1
      %s235 = scalar_select %p234, %s20, 1
      %p236 = scmp.lt.s32.totalorder %s233, 7
      %s237 = scalar_select %p236, %s233, 7
      %p238 = scmp.lt.s32.totalorder %s22, 0
      %s239 = scalar_select %p238, %s22, 0
      %s240 = sadd.s32 %s239, %s237
      %s241 = smul.addr %s235, 8
      %s242 = sadd.s32 %s240, %s241
      %s243 = smul.addr %s242, 4
      %s244 = scalar_lea.vmem %s0, %s243
      %s245 = smul.u32 8, %s21
      %s246 = smul.u32 16, %s22
      %p247 = scmp.lt.s32.totalorder %s246, 15
      %s248 = scalar_select %p247, %s246, 15
      %s249 = smul.addr %s248, 4
      %s250 = scalar_lea.vmem %s1, %s249
      %s251 = smul.u32 16, %s22
      %s252 = smul.u32 8, %s21
      %p253 = scmp.lt.s32.totalorder %s20, 1
      %s254 = scalar_select %p253, %s20, 1
      %p255 = scmp.lt.s32.totalorder %s252, 7
      %s256 = scalar_select %p255, %s252, 7
      %s257 = smul.addr %s254, 8
      %s258 = sadd.s32 %s256, %s257
      %s259 = smul.addr %s258, 8
      %s260 = scalar_lea.vmem %s2, %s259
      %s261 = smul.u32 8, %s21
      %p262 = scmp.lt.s32.totalorder %s20, 1
      %s263 = scalar_select %p262, %s20, 1
      %p264 = scmp.lt.s32.totalorder %s21, 0
      %s265 = scalar_select %p264, %s21, 0
      %s266 = sadd.s32 %s265, %s263
      %s267 = smul.addr %s266, 2
      %s268 = scalar_lea.vmem %s3, %s267
      %p269 = scmp.eq.s32.totalorder %s22, 0
      // Predicated region
      $region29: #{generator_forward.17} parent=27 // pred_check
        %p270 = pneg %p269
      $region30: #{generator_forward.17} parent=27 // pred_check_branch
        %272 = sbr.rel (%p270) target = $region32
      $region31: #{generator_forward.17} parent=27 // pred_region
        %273 = vst [vmem:[#allocation2] sm:$0xff] 0.0
        %274 = vst [vmem:[#allocation2 + $0x8] sm:$0xff] 0.0
        %275 = vst [vmem:[#allocation2 + $0x10] sm:$0xff] 0.0
        %276 = vst [vmem:[#allocation2 + $0x18] sm:$0xff] 0.0
        %277 = vst [vmem:[#allocation2 + $0x20] sm:$0xff] 0.0
        %278 = vst [vmem:[#allocation2 + $0x28] sm:$0xff] 0.0
        %279 = vst [vmem:[#allocation2 + $0x30] sm:$0xff] 0.0
        %280 = vst [vmem:[#allocation2 + $0x38] sm:$0xff] 0.0
      $region32: #{generator_forward.17} parent=27 // pred_fallthru
        _
      %v281 = vld [vmem:[#allocation2] sm:$0xff]
      %v282 = vld [vmem:[#allocation2 + $0x8] sm:$0xff]
      %v283 = vld [vmem:[#allocation2 + $0x10] sm:$0xff]
      %v284 = vld [vmem:[#allocation2 + $0x18] sm:$0xff]
      %v285 = vld [vmem:[#allocation2 + $0x20] sm:$0xff]
      %v286 = vld [vmem:[#allocation2 + $0x28] sm:$0xff]
      %v287 = vld [vmem:[#allocation2 + $0x30] sm:$0xff]
      %v288 = vld [vmem:[#allocation2 + $0x38] sm:$0xff]
      %v289 = vld [vmem:[%s244] sm:$0xf]
      %v290 = vld [vmem:[%s244 + $0x4] sm:$0xf]
      %v291 = vld [vmem:[%s244 + $0x8] sm:$0xf]
      %v292 = vld [vmem:[%s244 + $0xc] sm:$0xf]
      %v293 = vld [vmem:[%s244 + $0x10] sm:$0xf]
      %v294 = vld [vmem:[%s244 + $0x14] sm:$0xf]
      %v295 = vld [vmem:[%s244 + $0x18] sm:$0xf]
      %v296 = vld [vmem:[%s244 + $0x1c] sm:$0xf]
      %v297 = vld [vmem:[%s250] sm:$0xf]
      %v298 = vld [vmem:[%s250 + $0x4] sm:$0xf]
      %v299 = vld [vmem:[%s250 + $0x8] sm:$0xf]
      %v300 = vld [vmem:[%s250 + $0xc] sm:$0xf]
      %v301 = vld [vmem:[%s250 + $0x10] sm:$0xf]
      %v302 = vld [vmem:[%s250 + $0x14] sm:$0xf]
      %v303 = vld [vmem:[%s250 + $0x18] sm:$0xf]
      %v304 = vld [vmem:[%s250 + $0x1c] sm:$0xf]
      %v305 = vld [vmem:[%s250 + $0x20] sm:$0xf]
      %v306 = vld [vmem:[%s250 + $0x24] sm:$0xf]
      %v307 = vld [vmem:[%s250 + $0x28] sm:$0xf]
      %v308 = vld [vmem:[%s250 + $0x2c] sm:$0xf]
      %v309 = vld [vmem:[%s250 + $0x30] sm:$0xf]
      %v310 = vld [vmem:[%s250 + $0x34] sm:$0xf]
      %v311 = vld [vmem:[%s250 + $0x38] sm:$0xf]
      %v312 = vld [vmem:[%s250 + $0x3c] sm:$0xf]
      %v321 = vunpack.c.l.b16 %v289
      %v322 = vunpack.c.l.b16 %v290
      %v323 = vunpack.c.l.b16 %v291
      %v324 = vunpack.c.l.b16 %v292
      %v325 = vunpack.c.l.b16 %v293
      %v326 = vunpack.c.l.b16 %v294
      %v327 = vunpack.c.l.b16 %v295
      %v328 = vunpack.c.l.b16 %v296
      %v329 = vpack.c.b16 %v322, %v321
      %v330 = vpack.c.b16 %v324, %v323
      %v331 = vpack.c.b16 %v326, %v325
      %v332 = vpack.c.b16 %v328, %v327
      %v353 = vunpack.c.l.b16 %v297
      %v354 = vunpack.c.l.b16 %v298
      %v355 = vunpack.c.l.b16 %v299
      %v356 = vunpack.c.l.b16 %v300
      %v357 = vunpack.c.l.b16 %v301
      %v358 = vunpack.c.l.b16 %v302
      %v359 = vunpack.c.l.b16 %v303
      %v360 = vunpack.c.l.b16 %v304
      %v361 = vunpack.c.l.b16 %v305
      %v362 = vunpack.c.l.b16 %v306
      %v363 = vunpack.c.l.b16 %v307
      %v364 = vunpack.c.l.b16 %v308
      %v365 = vunpack.c.l.b16 %v309
      %v366 = vunpack.c.l.b16 %v310
      %v367 = vunpack.c.l.b16 %v311
      %v368 = vunpack.c.l.b16 %v312
      %v369 = vpack.c.b16 %v354, %v353
      %v370 = vpack.c.b16 %v356, %v355
      %v371 = vpack.c.b16 %v358, %v357
      %v372 = vpack.c.b16 %v360, %v359
      %v373 = vpack.c.b16 %v362, %v361
      %v374 = vpack.c.b16 %v364, %v363
      %v375 = vpack.c.b16 %v366, %v365
      %v376 = vpack.c.b16 %v368, %v367
      %385 = vmatpush.bf16.msra.mxu0 %v376
      %386 = vmatpush.bf16.msra.mxu0 %v375
      %387 = vmatpush.bf16.msra.mxu0 %v374
      %388 = vmatpush.bf16.msra.mxu0 %v373
      %389 = vmatpush.bf16.msra.mxu0 %v372
      %390 = vmatpush.bf16.msra.mxu0 %v371
      %391 = vmatpush.bf16.msra.mxu0 %v370
      %392 = vmatpush.bf16.msra.mxu0 %v369
      %393 = vmatmul.bf16.gmra.mxu0 %v329
      %v394 = vpop.f32.mrf.mxu0
      %v395 = vadd.f32 0.0, %v394
      %v396 = vpop.f32.mrf.mxu0
      %v397 = vadd.f32 0.0, %v396
      %398 = vmatmul.bf16.gmra.mxu0 %v330
      %v399 = vpop.f32.mrf.mxu0
      %v400 = vadd.f32 0.0, %v399
      %v401 = vpop.f32.mrf.mxu0
      %v402 = vadd.f32 0.0, %v401
      %403 = vmatmul.bf16.gmra.mxu0 %v331
      %v404 = vpop.f32.mrf.mxu0
      %v405 = vadd.f32 0.0, %v404
      %v406 = vpop.f32.mrf.mxu0
      %v407 = vadd.f32 0.0, %v406
      %408 = vmatmul.bf16.gmra.mxu0 %v332
      %v409 = vpop.f32.mrf.mxu0
      %v410 = vadd.f32 0.0, %v409
      %v411 = vpop.f32.mrf.mxu0
      %v412 = vadd.f32 0.0, %v411
      %413 = vdwg.mxu0
      %v414 = vadd.f32 %v281, %v395
      %v415 = vadd.f32 %v282, %v397
      %v416 = vadd.f32 %v283, %v400
      %v417 = vadd.f32 %v284, %v402
      %v418 = vadd.f32 %v285, %v405
      %v419 = vadd.f32 %v286, %v407
      %v420 = vadd.f32 %v287, %v410
      %v421 = vadd.f32 %v288, %v412
      %422 = vst [vmem:[#allocation2] sm:$0xff] %v414
      %423 = vst [vmem:[#allocation2 + $0x8] sm:$0xff] %v415
      %424 = vst [vmem:[#allocation2 + $0x10] sm:$0xff] %v416
      %425 = vst [vmem:[#allocation2 + $0x18] sm:$0xff] %v417
      %426 = vst [vmem:[#allocation2 + $0x20] sm:$0xff] %v418
      %427 = vst [vmem:[#allocation2 + $0x28] sm:$0xff] %v419
      %428 = vst [vmem:[#allocation2 + $0x30] sm:$0xff] %v420
      %429 = vst [vmem:[#allocation2 + $0x38] sm:$0xff] %v421
      // Predicated region
      $region33: #{generator_forward.17} parent=27 // pred_check
        %p430 = pneg %p269
      $region34: #{generator_forward.17} parent=27 // pred_check_branch
        %432 = sbr.rel (%p430) target = $region36
      $region35: #{generator_forward.17} parent=27 // pred_region
        %v433 = vld [vmem:[#allocation2] sm:$0xff]
        %v434 = vld [vmem:[#allocation2 + $0x8] sm:$0xff]
        %v435 = vld [vmem:[#allocation2 + $0x10] sm:$0xff]
        %v436 = vld [vmem:[#allocation2 + $0x18] sm:$0xff]
        %v437 = vld [vmem:[#allocation2 + $0x20] sm:$0xff]
        %v438 = vld [vmem:[#allocation2 + $0x28] sm:$0xff]
        %v439 = vld [vmem:[#allocation2 + $0x30] sm:$0xff]
        %v440 = vld [vmem:[#allocation2 + $0x38] sm:$0xff]
        %441 = vst [vmem:[%s260] sm:$0xff] %v433
        %442 = vst [vmem:[%s260 + $0x8] sm:$0xff] %v434
        %443 = vst [vmem:[%s260 + $0x10] sm:$0xff] %v435
        %444 = vst [vmem:[%s260 + $0x18] sm:$0xff] %v436
        %445 = vst [vmem:[%s260 + $0x20] sm:$0xff] %v437
        %446 = vst [vmem:[%s260 + $0x28] sm:$0xff] %v438
        %447 = vst [vmem:[%s260 + $0x30] sm:$0xff] %v439
        %448 = vst [vmem:[%s260 + $0x38] sm:$0xff] %v440
        %v449 = vadd.f32 %v433, %v434
        %v450 = vadd.f32 %v449, %v435
        %v451 = vadd.f32 %v450, %v436
        %v452 = vadd.f32 %v451, %v437
        %v453 = vadd.f32 %v452, %v438
        %v454 = vadd.f32 %v453, %v439
        %v455 = vadd.f32 %v454, %v440
        %v456 = vrot.slane %v455, 4
        %v457 = vadd.f32 %v455, %v456
        %v458 = vrot.slane %v457, 2
        %v459 = vadd.f32 %v457, %v458
        %v460 = vrot.slane %v459, 1
        %v461 = vadd.f32 %v459, %v460
        %v462 = vmul.f32 %v433, %v433
        %v463 = vmul.f32 %v434, %v434
        %v464 = vmul.f32 %v435, %v435
        %v465 = vmul.f32 %v436, %v436
        %v466 = vmul.f32 %v437, %v437
        %v467 = vmul.f32 %v438, %v438
        %v468 = vmul.f32 %v439, %v439
        %v469 = vmul.f32 %v440, %v440
        %v470 = vadd.f32 %v462, %v463
        %v471 = vadd.f32 %v470, %v464
        %v472 = vadd.f32 %v471, %v465
        %v473 = vadd.f32 %v472, %v466
        %v474 = vadd.f32 %v473, %v467
        %v475 = vadd.f32 %v474, %v468
        %v476 = vadd.f32 %v475, %v469
        %v477 = vrot.slane %v476, 4
        %v478 = vadd.f32 %v476, %v477
        %v479 = vrot.slane %v478, 2
        %v480 = vadd.f32 %v478, %v479
        %v481 = vrot.slane %v480, 1
        %v482 = vadd.f32 %v480, %v481
        %vm483 = vcmask 1040384
        %v484 = vsel %vm483, %v461, %v482
        %485 = vst [vmem:[%s268] sm:$0x3] %v484
      $region36: #{generator_forward.17} parent=27 // pred_fallthru
        _
      %s486 = smul.u32 8, %s21
      %p487 = scmp.lt.s32.totalorder %s20, 1
      %s488 = scalar_select %p487, %s20, 1
      %p489 = scmp.lt.s32.totalorder %s486, 7
      %s490 = scalar_select %p489, %s486, 7
      %s491 = smul.addr %s488, 8
      %s492 = sadd.s32 %s490, %s491
      %s493 = smul.addr %s492, 8
      %s494 = scalar_lea.vmem %s2, %s493
      %p495 = scmp.lt.s32.totalorder %s20, 1
      %s496 = scalar_select %p495, %s20, 1
      %p497 = scmp.lt.s32.totalorder %s21, 0
      %s498 = scalar_select %p497, %s21, 0
      %s499 = sadd.s32 %s498, %s496
      %s500 = smul.addr %s499, 2
      %s501 = scalar_lea.vmem %s3, %s500
      // Predicated region
      $region37: #{generator_forward.17} parent=27 // pred_check
        %p502 = pneg %p110
      $region38: #{generator_forward.17} parent=27 // pred_check_branch
        %504 = sbr.rel (%p502) target = $region40
      $region39: #{generator_forward.17} parent=27 // pred_region
        %s505 = smul.u32 8, %s21
      $region40: #{generator_forward.17} parent=27 // pred_fallthru
        _
      // Predicated region
      $region41: #{generator_forward.17} parent=27 // pred_check
        %p506 = pneg %p138
      $region42: #{generator_forward.17} parent=27 // pred_check_branch
        %508 = sbr.rel (%p506) target = $region44
      $region43: #{generator_forward.17} parent=27 // pred_region
        _
      $region44: #{generator_forward.17} parent=27 // pred_fallthru
        _
    $region28: #{generator_forward.17} parent=5 // pred_fallthru
      _
    %p509 = scmp.le.s32.totalorder 2, %s10
    // Predicated region
    $region45: #{generator_forward.17} parent=5 // pred_check
      %p510 = pneg %p509
    $region46: #{generator_forward.17} parent=5 // pred_check_branch
      %512 = sbr.rel (%p510) target = $region48
    $region47: #{generator_forward.17} parent=5 // pred_region
      %s513 = ssub.s32 %s10, 2
      // Predicated region
      $region49: #{generator_forward.17} parent=47 // pred_check
        %p514 = pneg %p116
      $region50: #{generator_forward.17} parent=47 // pred_check_branch
        %516 = sbr.rel (%p514) target = $region52
      $region51: #{generator_forward.17} parent=47 // pred_region
        %s517 = smul.u32 8, %s24
        %p518 = scmp.lt.s32.totalorder %s23, 1
        %s519 = scalar_select %p518, %s23, 1
        %p520 = scmp.lt.s32.totalorder %s517, 7
        %s521 = scalar_select %p520, %s517, 7
        %s522 = smul.addr %s519, 8
        %s523 = sadd.s32 %s521, %s522
        %s524 = smul.addr %s523, 8
        %s525 = scalar_lea.vmem %s2, %s524
      $region52: #{generator_forward.17} parent=47 // pred_fallthru
        _
      // Predicated region
      $region53: #{generator_forward.17} parent=47 // pred_check
        %p526 = pneg %p144
      $region54: #{generator_forward.17} parent=47 // pred_check_branch
        %528 = sbr.rel (%p526) target = $region56
      $region55: #{generator_forward.17} parent=47 // pred_region
        %p529 = scmp.lt.s32.totalorder %s23, 1
        %s530 = scalar_select %p529, %s23, 1
        %p531 = scmp.lt.s32.totalorder %s24, 0
        %s532 = scalar_select %p531, %s24, 0
        %s533 = sadd.s32 %s532, %s530
        %s534 = smul.addr %s533, 2
        %s535 = scalar_lea.vmem %s3, %s534
      $region56: #{generator_forward.17} parent=47 // pred_fallthru
        _
    $region48: #{generator_forward.17} parent=5 // pred_fallthru
      _
  $region6: #{generator_forward.17} parent=0 // loop_footer
    %s14 = sadd.s32 1, %s10
  $region7: #{generator_forward.17} parent=0 // loop_footer_branch
    %9 = sbr.rel target = $region3
  $region8: #{generator_forward.17} parent=0 // loop_exit
    _

// kernel: generator_forward.18
$region0: #{generator_forward.18}
  #allocation0 [shape = 'u32[]', space=smem, size = 0x4, offset = 0x4, fixed_abs, tag = 'smem constant byte address 0x4 - core index']
  #allocation1 [shape = 'u32[72,128]{1,0:T(1,128)}', space=vmem, size = 0x9000, scoped, tag = 'internal scratch']
  %s0 = inlined_call_operand.vmem [shape: f32[2,64,128], index: 0, kind: input, shape index: {}]
  %s1 = inlined_call_operand.vmem [shape: f32[2,2,128], index: 1, kind: input, shape index: {}]
  %s2 = inlined_call_operand.vmem [shape: bf16[2,64,128], index: 2, kind: output, shape index: {}]
  %s3 = sld [smem:[#allocation0]]
  $region41: #{generator_forward.18} parent=0
    _
  %s5 = ssub.s32 1, %s3
  %s6 = scalar_select 0, %s5, %s3
  loop: start=0, step=1, limit=4
  $region2: #{generator_forward.18} parent=0 // loop_pre_header
    _
  $region3: #{generator_forward.18} parent=0 // loop_header
    %s8 = sphi 0, %s12
    %p9 = scmp.ge.s32.totalorder %s8, 4
    %s15 = sphi 0, %s27
    %s16 = sphi 0, %s23
    %s17 = sphi 0, %s15
    %s18 = sphi 0, %s16
    %s19 = sphi 0, %s17
    %s20 = sphi 0, %s18
    %s32 = sphi 0, %s34
    %s35 = sphi 0, %s32
    %s36 = sphi 0, %s35
    %s52 = sphi 0, %s36
    %s58 = sphi 0, %s60
    %s61 = sphi 0, %s58
    %s62 = sphi 0, %s61
    %s78 = sphi 0, %s62
    %s86 = sphi 0, %s88
    %s89 = sphi 0, %s86
    %s90 = sphi 0, %s89
    %s106 = sphi 0, %s90
  $region4: #{generator_forward.18} parent=0 // loop_header_branch
    %11 = sbr.rel (%p9) target = $region8
  $region5: #{generator_forward.18} parent=0 // loop_body
    %s13 = ssub.s32 %s8, 1
    %s14 = ssub.s32 %s8, 2
    %s21 = sadd.s32 1, %s16
    %p22 = scmp.ge.s32.totalorder %s21, 1
    %s23 = scalar_select %p22, 0, %s21
    %s24 = sadd.s32 1, %s15
    %s25 = scalar_select %p22, %s24, %s15
    %p26 = scmp.ge.s32.totalorder %s25, 2
    %s27 = scalar_select %p26, 0, %s25
    %s28 = ssub.s32 %s15, %s27
    %s29 = ssub.s32 %s16, %s23
    %s30 = sor.u32 %s28, %s29
    %p31 = scmp.eq.s32.totalorder %s30, 0
    %s33 = sadd.s32 %s32, 1
    %s34 = scalar_select %p31, %s32, %s33
    %p37 = pneg %p31
    %p38 = scmp.eq.s32.totalorder %s8, 1
    %p39 = por %p37, %p38
    %p40 = scmp.ne.s32.totalorder %s32, %s35
    %p41 = scmp.eq.s32.totalorder %s8, 0
    %p42 = por %p40, %p41
    %p43 = scmp.ne.s32.totalorder %s32, %s35
    %p44 = scmp.eq.s32.totalorder %s13, 1
    %p45 = por %p43, %p44
    %p46 = scmp.ne.s32.totalorder %s35, %s36
    %p47 = scmp.eq.s32.totalorder %s13, 0
    %p48 = por %p46, %p47
    %p49 = scmp.ne.s32.totalorder %s35, %s36
    %p50 = scmp.eq.s32.totalorder %s14, 1
    %p51 = por %p49, %p50
    %p53 = scmp.ne.s32.totalorder %s36, %s52
    %p54 = scmp.eq.s32.totalorder %s14, 0
    %p55 = por %p53, %p54
    %s56 = ssub.s32 %s15, %s27
    %p57 = scmp.eq.s32.totalorder %s56, 0
    %s59 = sadd.s32 %s58, 1
    %s60 = scalar_select %p57, %s58, %s59
    %p63 = pneg %p57
    %p64 = scmp.eq.s32.totalorder %s8, 1
    %p65 = por %p63, %p64
    %p66 = scmp.ne.s32.totalorder %s58, %s61
    %p67 = scmp.eq.s32.totalorder %s8, 0
    %p68 = por %p66, %p67
    %p69 = scmp.ne.s32.totalorder %s58, %s61
    %p70 = scmp.eq.s32.totalorder %s13, 1
    %p71 = por %p69, %p70
    %p72 = scmp.ne.s32.totalorder %s61, %s62
    %p73 = scmp.eq.s32.totalorder %s13, 0
    %p74 = por %p72, %p73
    %p75 = scmp.ne.s32.totalorder %s61, %s62
    %p76 = scmp.eq.s32.totalorder %s14, 1
    %p77 = por %p75, %p76
    %p79 = scmp.ne.s32.totalorder %s62, %s78
    %p80 = scmp.eq.s32.totalorder %s14, 0
    %p81 = por %p79, %p80
    %s82 = ssub.s32 %s15, %s27
    %s83 = ssub.s32 %s16, %s23
    %s84 = sor.u32 %s82, %s83
    %p85 = scmp.eq.s32.totalorder %s84, 0
    %s87 = sadd.s32 %s86, 1
    %s88 = scalar_select %p85, %s86, %s87
    %p91 = pneg %p85
    %p92 = scmp.eq.s32.totalorder %s8, 1
    %p93 = por %p91, %p92
    %p94 = scmp.ne.s32.totalorder %s86, %s89
    %p95 = scmp.eq.s32.totalorder %s8, 0
    %p96 = por %p94, %p95
    %p97 = scmp.ne.s32.totalorder %s86, %s89
    %p98 = scmp.eq.s32.totalorder %s13, 1
    %p99 = por %p97, %p98
    %p100 = scmp.ne.s32.totalorder %s89, %s90
    %p101 = scmp.eq.s32.totalorder %s13, 0
    %p102 = por %p100, %p101
    %p103 = scmp.ne.s32.totalorder %s89, %s90
    %p104 = scmp.eq.s32.totalorder %s14, 1
    %p105 = por %p103, %p104
    %p107 = scmp.ne.s32.totalorder %s90, %s106
    %p108 = scmp.eq.s32.totalorder %s14, 0
    %p109 = por %p107, %p108
    %p110 = scmp.le.s32.totalorder 1, %s8
    %p111 = scmp.lt.s32.totalorder %s8, 3
    %p112 = pnand %p110, %p111
    %p113 = pneg %p112
    // Predicated region
    $region9: #{generator_forward.18} parent=5 // pred_check
      _
    $region10: #{generator_forward.18} parent=5 // pred_check_branch
      %115 = sbr.rel (%p112) target = $region12
    $region11: #{generator_forward.18} parent=5 // pred_region
      %s116 = ssub.s32 %s8, 1
    $region12: #{generator_forward.18} parent=5 // pred_fallthru
      _
    %p117 = scmp.lt.s32.totalorder %s8, 2
    // Predicated region
    $region13: #{generator_forward.18} parent=5 // pred_check
      %p118 = pneg %p117
    $region14: #{generator_forward.18} parent=5 // pred_check_branch
      %120 = sbr.rel (%p118) target = $region16
    $region15: #{generator_forward.18} parent=5 // pred_region
      // Predicated region
      $region17: #{generator_forward.18} parent=15 // pred_check
        %p121 = pneg %p42
      $region18: #{generator_forward.18} parent=15 // pred_check_branch
        %123 = sbr.rel (%p121) target = $region20
      $region19: #{generator_forward.18} parent=15 // pred_region
        %s124 = smul.u32 8, %s16
        %p125 = scmp.lt.s32.totalorder %s15, 1
        %s126 = scalar_select %p125, %s15, 1
        %p127 = scmp.lt.s32.totalorder %s124, 7
        %s128 = scalar_select %p127, %s124, 7
        %s129 = smul.addr %s126, 8
        %s130 = sadd.s32 %s128, %s129
        %s131 = smul.addr %s130, 8
        %s132 = scalar_lea.vmem %s0, %s131
        %s133 = smul.u32 8, %s16
      $region20: #{generator_forward.18} parent=15 // pred_fallthru
        _
      // Predicated region
      $region21: #{generator_forward.18} parent=15 // pred_check
        %p134 = pneg %p68
      $region22: #{generator_forward.18} parent=15 // pred_check_branch
        %136 = sbr.rel (%p134) target = $region24
      $region23: #{generator_forward.18} parent=15 // pred_region
        %p137 = scmp.lt.s32.totalorder %s15, 1
        %s138 = scalar_select %p137, %s15, 1
        %s139 = smul.addr %s138, 2
        %s140 = scalar_lea.vmem %s1, %s139
      $region24: #{generator_forward.18} parent=15 // pred_fallthru
        _
    $region16: #{generator_forward.18} parent=5 // pred_fallthru
      _
    %p141 = scmp.le.s32.totalorder 1, %s8
    %p142 = scmp.lt.s32.totalorder %s8, 3
    %p143 = pnand %p141, %p142
    %p144 = pneg %p143
    // Predicated region
    $region25: #{generator_forward.18} parent=5 // pred_check
      _
    $region26: #{generator_forward.18} parent=5 // pred_check_branch
      %146 = sbr.rel (%p143) target = $region28
    $region27: #{generator_forward.18} parent=5 // pred_region
      %s147 = ssub.s32 %s8, 1
      %s148 = smul.u32 8, %s18
      %p149 = scmp.lt.s32.totalorder %s17, 1
      %s150 = scalar_select %p149, %s17, 1
      %p151 = scmp.lt.s32.totalorder %s148, 7
      %s152 = scalar_select %p151, %s148, 7
      %s153 = smul.addr %s150, 8
      %s154 = sadd.s32 %s152, %s153
      %s155 = smul.addr %s154, 8
      %s156 = scalar_lea.vmem %s0, %s155
      %p157 = pneg %p48
      %p158 = pneg %p45
      %p159 = scmp.lt.s32.totalorder %s17, 1
      %s160 = scalar_select %p159, %s17, 1
      %s161 = smul.addr %s160, 2
      %s162 = scalar_lea.vmem %s1, %s161
      %p163 = pneg %p74
      %p164 = pneg %p71
      %p165 = pneg %p102
      %p166 = pneg %p99
      %s167 = smul.u32 8, %s18
      %p168 = scmp.lt.s32.totalorder %s17, 1
      %s169 = scalar_select %p168, %s17, 1
      %p170 = scmp.lt.s32.totalorder %s167, 7
      %s171 = scalar_select %p170, %s167, 7
      %s172 = smul.addr %s169, 8
      %s173 = sadd.s32 %s171, %s172
      %s174 = smul.addr %s173, 4
      %s175 = scalar_lea.vmem %s2, %s174
      %s176 = smul.u32 8, %s18
      %p177 = scmp.lt.s32.totalorder %s17, 1
      %s178 = scalar_select %p177, %s17, 1
      %p179 = scmp.lt.s32.totalorder %s176, 7
      %s180 = scalar_select %p179, %s176, 7
      %s181 = smul.addr %s178, 8
      %s182 = sadd.s32 %s180, %s181
      %s183 = smul.addr %s182, 8
      %s184 = scalar_lea.vmem %s0, %s183
      %s185 = smul.u32 8, %s18
      %p186 = scmp.lt.s32.totalorder %s17, 1
      %s187 = scalar_select %p186, %s17, 1
      %s188 = smul.addr %s187, 2
      %s189 = scalar_lea.vmem %s1, %s188
      %s190 = smul.u32 8, %s18
      %p191 = scmp.lt.s32.totalorder %s17, 1
      %s192 = scalar_select %p191, %s17, 1
      %p193 = scmp.lt.s32.totalorder %s190, 7
      %s194 = scalar_select %p193, %s190, 7
      %s195 = smul.addr %s192, 8
      %s196 = sadd.s32 %s194, %s195
      %s197 = smul.addr %s196, 4
      %s198 = scalar_lea.vmem %s2, %s197
      %s199 = smul.u32 8, %s18
      %v200 = vld [vmem:[%s189] sm:$0x3]
      %v201 = vld [vmem:[%s184] sm:$0xff]
      %v202 = vld [vmem:[%s184 + $0x8] sm:$0xff]
      %v203 = vld [vmem:[%s184 + $0x10] sm:$0xff]
      %v204 = vld [vmem:[%s184 + $0x18] sm:$0xff]
      %v205 = vld [vmem:[%s184 + $0x20] sm:$0xff]
      %v206 = vld [vmem:[%s184 + $0x28] sm:$0xff]
      %v207 = vld [vmem:[%s184 + $0x30] sm:$0xff]
      %v208 = vld [vmem:[%s184 + $0x38] sm:$0xff]
      %v209 = vperm.slane %v200, 0
      %v210 = vsub.f32 %v201, %v209
      %v211 = vsub.f32 %v202, %v209
      %v212 = vsub.f32 %v203, %v209
      %v213 = vsub.f32 %v204, %v209
      %v214 = vsub.f32 %v205, %v209
      %v215 = vsub.f32 %v206, %v209
      %v216 = vsub.f32 %v207, %v209
      %v217 = vsub.f32 %v208, %v209
      %v218 = vperm.slane %v200, 1
      %v219 = vmul.f32 %v210, %v218
      %v220 = vmul.f32 %v211, %v218
      %v221 = vmul.f32 %v212, %v218
      %v222 = vmul.f32 %v213, %v218
      %v223 = vmul.f32 %v214, %v218
      %v224 = vmul.f32 %v215, %v218
      %v225 = vmul.f32 %v216, %v218
      %v226 = vmul.f32 %v217, %v218
      %v227 = vmax.f32 %v219, 0.0
      %v228 = vmax.f32 %v220, 0.0
      %v229 = vmax.f32 %v221, 0.0
      %v230 = vmax.f32 %v222, 0.0
      %v231 = vmax.f32 %v223, 0.0
      %v232 = vmax.f32 %v224, 0.0
      %v233 = vmax.f32 %v225, 0.0
      %v234 = vmax.f32 %v226, 0.0
      %v235 = vpack.c.bf16 %v227, %v227
      %v236 = vpack.c.bf16 %v228, %v228
      %v237 = vpack.c.bf16 %v229, %v229
      %v238 = vpack.c.bf16 %v230, %v230
      %v239 = vpack.c.bf16 %v231, %v231
      %v240 = vpack.c.bf16 %v232, %v232
      %v241 = vpack.c.bf16 %v233, %v233
      %v242 = vpack.c.bf16 %v234, %v234
      %243 = vst [vmem:[%s198] sm:$0xf] %v235
      %244 = vst [vmem:[%s198 + $0x4] sm:$0xf] %v236
      %245 = vst [vmem:[%s198 + $0x8] sm:$0xf] %v237
      %246 = vst [vmem:[%s198 + $0xc] sm:$0xf] %v238
      %247 = vst [vmem:[%s198 + $0x10] sm:$0xf] %v239
      %248 = vst [vmem:[%s198 + $0x14] sm:$0xf] %v240
      %249 = vst [vmem:[%s198 + $0x18] sm:$0xf] %v241
      %250 = vst [vmem:[%s198 + $0x1c] sm:$0xf] %v242
      %s251 = smul.u32 8, %s18
      %p252 = scmp.lt.s32.totalorder %s17, 1
      %s253 = scalar_select %p252, %s17, 1
      %p254 = scmp.lt.s32.totalorder %s251, 7
      %s255 = scalar_select %p254, %s251, 7
      %s256 = smul.addr %s253, 8
      %s257 = sadd.s32 %s255, %s256
      %s258 = smul.addr %s257, 4
      %s259 = scalar_lea.vmem %s2, %s258
      // Predicated region
      $region29: #{generator_forward.18} parent=27 // pred_check
        %p260 = pneg %p99
      $region30: #{generator_forward.18} parent=27 // pred_check_branch
        %262 = sbr.rel (%p260) target = $region32
      $region31: #{generator_forward.18} parent=27 // pred_region
        %s263 = smul.u32 8, %s18
      $region32: #{generator_forward.18} parent=27 // pred_fallthru
        _
    $region28: #{generator_forward.18} parent=5 // pred_fallthru
      _
    %p264 = scmp.le.s32.totalorder 2, %s8
    // Predicated region
    $region33: #{generator_forward.18} parent=5 // pred_check
      %p265 = pneg %p264
    $region34: #{generator_forward.18} parent=5 // pred_check_branch
      %267 = sbr.rel (%p265) target = $region36
    $region35: #{generator_forward.18} parent=5 // pred_region
      %s268 = ssub.s32 %s8, 2
      // Predicated region
      $region37: #{generator_forward.18} parent=35 // pred_check
        %p269 = pneg %p105
      $region38: #{generator_forward.18} parent=35 // pred_check_branch
        %271 = sbr.rel (%p269) target = $region40
      $region39: #{generator_forward.18} parent=35 // pred_region
        %s272 = smul.u32 8, %s20
        %p273 = scmp.lt.s32.totalorder %s19, 1
        %s274 = scalar_select %p273, %s19, 1
        %p275 = scmp.lt.s32.totalorder %s272, 7
        %s276 = scalar_select %p275, %s272, 7
        %s277 = smul.addr %s274, 8
        %s278 = sadd.s32 %s276, %s277
        %s279 = smul.addr %s278, 4
        %s280 = scalar_lea.vmem %s2, %s279
      $region40: #{generator_forward.18} parent=35 // pred_fallthru
        _
    $region36: #{generator_forward.18} parent=5 // pred_fallthru
      _
  $region6: #{generator_forward.18} parent=0 // loop_footer
    %s12 = sadd.s32 1, %s8
  $region7: #{generator_forward.18} parent=0 // loop_footer_branch
    %7 = sbr.rel target = $region3
  $region8: #{generator_forward.18} parent=0 // loop_exit
    _

// kernel: generator_forward.22
$region0: #{generator_forward.22}
  #allocation0 [shape = 'u32[]', space=smem, size = 0x4, offset = 0x4, fixed_abs, tag = 'smem constant byte address 0x4 - core index']
  #allocation1 [shape = 'u32[72,128]{1,0:T(1,128)}', space=vmem, size = 0x9000, scoped, tag = 'internal scratch']
  %s0 = inlined_call_operand.vmem [shape: f32[2,64,128], index: 0, kind: input, shape index: {}]
  %s1 = inlined_call_operand.vmem [shape: f32[2,2,128], index: 1, kind: input, shape index: {}]
  %s2 = inlined_call_operand.vmem [shape: bf16[2,64,128], index: 2, kind: input, shape index: {}]
  %s3 = inlined_call_operand.vmem [shape: bf16[2,64,128], index: 3, kind: output, shape index: {}]
  %s4 = sld [smem:[#allocation0]]
  $region45: #{generator_forward.22} parent=0
    _
  %s6 = ssub.s32 1, %s4
  %s7 = scalar_select 0, %s6, %s4
  loop: start=0, step=1, limit=4
  $region2: #{generator_forward.22} parent=0 // loop_pre_header
    _
  $region3: #{generator_forward.22} parent=0 // loop_header
    %s9 = sphi 0, %s13
    %p10 = scmp.ge.s32.totalorder %s9, 4
    %s16 = sphi 0, %s28
    %s17 = sphi 0, %s24
    %s18 = sphi 0, %s16
    %s19 = sphi 0, %s17
    %s20 = sphi 0, %s18
    %s21 = sphi 0, %s19
    %s33 = sphi 0, %s35
    %s36 = sphi 0, %s33
    %s37 = sphi 0, %s36
    %s53 = sphi 0, %s37
    %s59 = sphi 0, %s61
    %s62 = sphi 0, %s59
    %s63 = sphi 0, %s62
    %s79 = sphi 0, %s63
    %s87 = sphi 0, %s89
    %s90 = sphi 0, %s87
    %s91 = sphi 0, %s90
    %s107 = sphi 0, %s91
    %s115 = sphi 0, %s117
    %s118 = sphi 0, %s115
    %s119 = sphi 0, %s118
    %s135 = sphi 0, %s119
  $region4: #{generator_forward.22} parent=0 // loop_header_branch
    %12 = sbr.rel (%p10) target = $region8
  $region5: #{generator_forward.22} parent=0 // loop_body
    %s14 = ssub.s32 %s9, 1
    %s15 = ssub.s32 %s9, 2
    %s22 = sadd.s32 1, %s17
    %p23 = scmp.ge.s32.totalorder %s22, 1
    %s24 = scalar_select %p23, 0, %s22
    %s25 = sadd.s32 1, %s16
    %s26 = scalar_select %p23, %s25, %s16
    %p27 = scmp.ge.s32.totalorder %s26, 2
    %s28 = scalar_select %p27, 0, %s26
    %s29 = ssub.s32 %s16, %s28
    %s30 = ssub.s32 %s17, %s24
    %s31 = sor.u32 %s29, %s30
    %p32 = scmp.eq.s32.totalorder %s31, 0
    %s34 = sadd.s32 %s33, 1
    %s35 = scalar_select %p32, %s33, %s34
    %p38 = pneg %p32
    %p39 = scmp.eq.s32.totalorder %s9, 1
    %p40 = por %p38, %p39
    %p41 = scmp.ne.s32.totalorder %s33, %s36
    %p42 = scmp.eq.s32.totalorder %s9, 0
    %p43 = por %p41, %p42
    %p44 = scmp.ne.s32.totalorder %s33, %s36
    %p45 = scmp.eq.s32.totalorder %s14, 1
    %p46 = por %p44, %p45
    %p47 = scmp.ne.s32.totalorder %s36, %s37
    %p48 = scmp.eq.s32.totalorder %s14, 0
    %p49 = por %p47, %p48
    %p50 = scmp.ne.s32.totalorder %s36, %s37
    %p51 = scmp.eq.s32.totalorder %s15, 1
    %p52 = por %p50, %p51
    %p54 = scmp.ne.s32.totalorder %s37, %s53
    %p55 = scmp.eq.s32.totalorder %s15, 0
    %p56 = por %p54, %p55
    %s57 = ssub.s32 %s16, %s28
    %p58 = scmp.eq.s32.totalorder %s57, 0
    %s60 = sadd.s32 %s59, 1
    %s61 = scalar_select %p58, %s59, %s60
    %p64 = pneg %p58
    %p65 = scmp.eq.s32.totalorder %s9, 1
    %p66 = por %p64, %p65
    %p67 = scmp.ne.s32.totalorder %s59, %s62
    %p68 = scmp.eq.s32.totalorder %s9, 0
    %p69 = por %p67, %p68
    %p70 = scmp.ne.s32.totalorder %s59, %s62
    %p71 = scmp.eq.s32.totalorder %s14, 1
    %p72 = por %p70, %p71
    %p73 = scmp.ne.s32.totalorder %s62, %s63
    %p74 = scmp.eq.s32.totalorder %s14, 0
    %p75 = por %p73, %p74
    %p76 = scmp.ne.s32.totalorder %s62, %s63
    %p77 = scmp.eq.s32.totalorder %s15, 1
    %p78 = por %p76, %p77
    %p80 = scmp.ne.s32.totalorder %s63, %s79
    %p81 = scmp.eq.s32.totalorder %s15, 0
    %p82 = por %p80, %p81
    %s83 = ssub.s32 %s16, %s28
    %s84 = ssub.s32 %s17, %s24
    %s85 = sor.u32 %s83, %s84
    %p86 = scmp.eq.s32.totalorder %s85, 0
    %s88 = sadd.s32 %s87, 1
    %s89 = scalar_select %p86, %s87, %s88
    %p92 = pneg %p86
    %p93 = scmp.eq.s32.totalorder %s9, 1
    %p94 = por %p92, %p93
    %p95 = scmp.ne.s32.totalorder %s87, %s90
    %p96 = scmp.eq.s32.totalorder %s9, 0
    %p97 = por %p95, %p96
    %p98 = scmp.ne.s32.totalorder %s87, %s90
    %p99 = scmp.eq.s32.totalorder %s14, 1
    %p100 = por %p98, %p99
    %p101 = scmp.ne.s32.totalorder %s90, %s91
    %p102 = scmp.eq.s32.totalorder %s14, 0
    %p103 = por %p101, %p102
    %p104 = scmp.ne.s32.totalorder %s90, %s91
    %p105 = scmp.eq.s32.totalorder %s15, 1
    %p106 = por %p104, %p105
    %p108 = scmp.ne.s32.totalorder %s91, %s107
    %p109 = scmp.eq.s32.totalorder %s15, 0
    %p110 = por %p108, %p109
    %s111 = ssub.s32 %s16, %s28
    %s112 = ssub.s32 %s17, %s24
    %s113 = sor.u32 %s111, %s112
    %p114 = scmp.eq.s32.totalorder %s113, 0
    %s116 = sadd.s32 %s115, 1
    %s117 = scalar_select %p114, %s115, %s116
    %p120 = pneg %p114
    %p121 = scmp.eq.s32.totalorder %s9, 1
    %p122 = por %p120, %p121
    %p123 = scmp.ne.s32.totalorder %s115, %s118
    %p124 = scmp.eq.s32.totalorder %s9, 0
    %p125 = por %p123, %p124
    %p126 = scmp.ne.s32.totalorder %s115, %s118
    %p127 = scmp.eq.s32.totalorder %s14, 1
    %p128 = por %p126, %p127
    %p129 = scmp.ne.s32.totalorder %s118, %s119
    %p130 = scmp.eq.s32.totalorder %s14, 0
    %p131 = por %p129, %p130
    %p132 = scmp.ne.s32.totalorder %s118, %s119
    %p133 = scmp.eq.s32.totalorder %s15, 1
    %p134 = por %p132, %p133
    %p136 = scmp.ne.s32.totalorder %s119, %s135
    %p137 = scmp.eq.s32.totalorder %s15, 0
    %p138 = por %p136, %p137
    %p139 = scmp.le.s32.totalorder 1, %s9
    %p140 = scmp.lt.s32.totalorder %s9, 3
    %p141 = pnand %p139, %p140
    %p142 = pneg %p141
    // Predicated region
    $region9: #{generator_forward.22} parent=5 // pred_check
      _
    $region10: #{generator_forward.22} parent=5 // pred_check_branch
      %144 = sbr.rel (%p141) target = $region12
    $region11: #{generator_forward.22} parent=5 // pred_region
      %s145 = ssub.s32 %s9, 1
    $region12: #{generator_forward.22} parent=5 // pred_fallthru
      _
    %p146 = scmp.lt.s32.totalorder %s9, 2
    // Predicated region
    $region13: #{generator_forward.22} parent=5 // pred_check
      %p147 = pneg %p146
    $region14: #{generator_forward.22} parent=5 // pred_check_branch
      %149 = sbr.rel (%p147) target = $region16
    $region15: #{generator_forward.22} parent=5 // pred_region
      // Predicated region
      $region17: #{generator_forward.22} parent=15 // pred_check
        %p150 = pneg %p43
      $region18: #{generator_forward.22} parent=15 // pred_check_branch
        %152 = sbr.rel (%p150) target = $region20
      $region19: #{generator_forward.22} parent=15 // pred_region
        %s153 = smul.u32 8, %s17
        %p154 = scmp.lt.s32.totalorder %s16, 1
        %s155 = scalar_select %p154, %s16, 1
        %p156 = scmp.lt.s32.totalorder %s153, 7
        %s157 = scalar_select %p156, %s153, 7
        %s158 = smul.addr %s155, 8
        %s159 = sadd.s32 %s157, %s158
        %s160 = smul.addr %s159, 8
        %s161 = scalar_lea.vmem %s0, %s160
        %s162 = smul.u32 8, %s17
      $region20: #{generator_forward.22} parent=15 // pred_fallthru
        _
      // Predicated region
      $region21: #{generator_forward.22} parent=15 // pred_check
        %p163 = pneg %p69
      $region22: #{generator_forward.22} parent=15 // pred_check_branch
        %165 = sbr.rel (%p163) target = $region24
      $region23: #{generator_forward.22} parent=15 // pred_region
        %p166 = scmp.lt.s32.totalorder %s16, 1
        %s167 = scalar_select %p166, %s16, 1
        %s168 = smul.addr %s167, 2
        %s169 = scalar_lea.vmem %s1, %s168
      $region24: #{generator_forward.22} parent=15 // pred_fallthru
        _
      // Predicated region
      $region25: #{generator_forward.22} parent=15 // pred_check
        %p170 = pneg %p97
      $region26: #{generator_forward.22} parent=15 // pred_check_branch
        %172 = sbr.rel (%p170) target = $region28
      $region27: #{generator_forward.22} parent=15 // pred_region
        %s173 = smul.u32 8, %s17
        %p174 = scmp.lt.s32.totalorder %s16, 1
        %s175 = scalar_select %p174, %s16, 1
        %p176 = scmp.lt.s32.totalorder %s173, 7
        %s177 = scalar_select %p176, %s173, 7
        %s178 = smul.addr %s175, 8
        %s179 = sadd.s32 %s177, %s178
        %s180 = smul.addr %s179, 4
        %s181 = scalar_lea.vmem %s2, %s180
        %s182 = smul.u32 8, %s17
      $region28: #{generator_forward.22} parent=15 // pred_fallthru
        _
    $region16: #{generator_forward.22} parent=5 // pred_fallthru
      _
    %p183 = scmp.le.s32.totalorder 1, %s9
    %p184 = scmp.lt.s32.totalorder %s9, 3
    %p185 = pnand %p183, %p184
    %p186 = pneg %p185
    // Predicated region
    $region29: #{generator_forward.22} parent=5 // pred_check
      _
    $region30: #{generator_forward.22} parent=5 // pred_check_branch
      %188 = sbr.rel (%p185) target = $region32
    $region31: #{generator_forward.22} parent=5 // pred_region
      %s189 = ssub.s32 %s9, 1
      %s190 = smul.u32 8, %s19
      %p191 = scmp.lt.s32.totalorder %s18, 1
      %s192 = scalar_select %p191, %s18, 1
      %p193 = scmp.lt.s32.totalorder %s190, 7
      %s194 = scalar_select %p193, %s190, 7
      %s195 = smul.addr %s192, 8
      %s196 = sadd.s32 %s194, %s195
      %s197 = smul.addr %s196, 8
      %s198 = scalar_lea.vmem %s0, %s197
      %p199 = pneg %p49
      %p200 = pneg %p46
      %p201 = scmp.lt.s32.totalorder %s18, 1
      %s202 = scalar_select %p201, %s18, 1
      %s203 = smul.addr %s202, 2
      %s204 = scalar_lea.vmem %s1, %s203
      %p205 = pneg %p75
      %p206 = pneg %p72
      %s207 = smul.u32 8, %s19
      %p208 = scmp.lt.s32.totalorder %s18, 1
      %s209 = scalar_select %p208, %s18, 1
      %p210 = scmp.lt.s32.totalorder %s207, 7
      %s211 = scalar_select %p210, %s207, 7
      %s212 = smul.addr %s209, 8
      %s213 = sadd.s32 %s211, %s212
      %s214 = smul.addr %s213, 4
      %s215 = scalar_lea.vmem %s2, %s214
      %p216 = pneg %p103
      %p217 = pneg %p100
      %p218 = pneg %p131
      %p219 = pneg %p128
      %s220 = smul.u32 8, %s19
      %p221 = scmp.lt.s32.totalorder %s18, 1
      %s222 = scalar_select %p221, %s18, 1
      %p223 = scmp.lt.s32.totalorder %s220, 7
      %s224 = scalar_select %p223, %s220, 7
      %s225 = smul.addr %s222, 8
      %s226 = sadd.s32 %s224, %s225
      %s227 = smul.addr %s226, 4
      %s228 = scalar_lea.vmem %s3, %s227
      %s229 = smul.u32 8, %s19
      %p230 = scmp.lt.s32.totalorder %s18, 1
      %s231 = scalar_select %p230, %s18, 1
      %p232 = scmp.lt.s32.totalorder %s229, 7
      %s233 = scalar_select %p232, %s229, 7
      %s234 = smul.addr %s231, 8
      %s235 = sadd.s32 %s233, %s234
      %s236 = smul.addr %s235, 8
      %s237 = scalar_lea.vmem %s0, %s236
      %s238 = smul.u32 8, %s19
      %p239 = scmp.lt.s32.totalorder %s18, 1
      %s240 = scalar_select %p239, %s18, 1
      %s241 = smul.addr %s240, 2
      %s242 = scalar_lea.vmem %s1, %s241
      %s243 = smul.u32 8, %s19
      %p244 = scmp.lt.s32.totalorder %s18, 1
      %s245 = scalar_select %p244, %s18, 1
      %p246 = scmp.lt.s32.totalorder %s243, 7
      %s247 = scalar_select %p246, %s243, 7
      %s248 = smul.addr %s245, 8
      %s249 = sadd.s32 %s247, %s248
      %s250 = smul.addr %s249, 4
      %s251 = scalar_lea.vmem %s2, %s250
      %s252 = smul.u32 8, %s19
      %s253 = smul.u32 8, %s19
      %p254 = scmp.lt.s32.totalorder %s18, 1
      %s255 = scalar_select %p254, %s18, 1
      %p256 = scmp.lt.s32.totalorder %s253, 7
      %s257 = scalar_select %p256, %s253, 7
      %s258 = smul.addr %s255, 8
      %s259 = sadd.s32 %s257, %s258
      %s260 = smul.addr %s259, 4
      %s261 = scalar_lea.vmem %s3, %s260
      %s262 = smul.u32 8, %s19
      %v263 = vld [vmem:[%s242] sm:$0x3]
      %v264 = vld [vmem:[%s237] sm:$0xff]
      %v265 = vld [vmem:[%s237 + $0x8] sm:$0xff]
      %v266 = vld [vmem:[%s237 + $0x10] sm:$0xff]
      %v267 = vld [vmem:[%s237 + $0x18] sm:$0xff]
      %v268 = vld [vmem:[%s237 + $0x20] sm:$0xff]
      %v269 = vld [vmem:[%s237 + $0x28] sm:$0xff]
      %v270 = vld [vmem:[%s237 + $0x30] sm:$0xff]
      %v271 = vld [vmem:[%s237 + $0x38] sm:$0xff]
      %v272 = vperm.slane %v263, 0
      %v273 = vsub.f32 %v264, %v272
      %v274 = vsub.f32 %v265, %v272
      %v275 = vsub.f32 %v266, %v272
      %v276 = vsub.f32 %v267, %v272
      %v277 = vsub.f32 %v268, %v272
      %v278 = vsub.f32 %v269, %v272
      %v279 = vsub.f32 %v270, %v272
      %v280 = vsub.f32 %v271, %v272
      %v281 = vperm.slane %v263, 1
      %v282 = vmul.f32 %v273, %v281
      %v283 = vmul.f32 %v274, %v281
      %v284 = vmul.f32 %v275, %v281
      %v285 = vmul.f32 %v276, %v281
      %v286 = vmul.f32 %v277, %v281
      %v287 = vmul.f32 %v278, %v281
      %v288 = vmul.f32 %v279, %v281
      %v289 = vmul.f32 %v280, %v281
      %v290 = vld [vmem:[%s251] sm:$0xf]
      %v291 = vld [vmem:[%s251 + $0x4] sm:$0xf]
      %v292 = vld [vmem:[%s251 + $0x8] sm:$0xf]
      %v293 = vld [vmem:[%s251 + $0xc] sm:$0xf]
      %v294 = vld [vmem:[%s251 + $0x10] sm:$0xf]
      %v295 = vld [vmem:[%s251 + $0x14] sm:$0xf]
      %v296 = vld [vmem:[%s251 + $0x18] sm:$0xf]
      %v297 = vld [vmem:[%s251 + $0x1c] sm:$0xf]
      %v298 = vunpack.c.l.bf16 %v290
      %v299 = vunpack.c.l.bf16 %v291
      %v300 = vunpack.c.l.bf16 %v292
      %v301 = vunpack.c.l.bf16 %v293
      %v302 = vunpack.c.l.bf16 %v294
      %v303 = vunpack.c.l.bf16 %v295
      %v304 = vunpack.c.l.bf16 %v296
      %v305 = vunpack.c.l.bf16 %v297
      %v306 = vadd.f32 %v282, %v298
      %v307 = vadd.f32 %v283, %v299
      %v308 = vadd.f32 %v284, %v300
      %v309 = vadd.f32 %v285, %v301
      %v310 = vadd.f32 %v286, %v302
      %v311 = vadd.f32 %v287, %v303
      %v312 = vadd.f32 %v288, %v304
      %v313 = vadd.f32 %v289, %v305
      %v314 = vpack.c.bf16 %v306, %v306
      %v315 = vpack.c.bf16 %v307, %v307
      %v316 = vpack.c.bf16 %v308, %v308
      %v317 = vpack.c.bf16 %v309, %v309
      %v318 = vpack.c.bf16 %v310, %v310
      %v319 = vpack.c.bf16 %v311, %v311
      %v320 = vpack.c.bf16 %v312, %v312
      %v321 = vpack.c.bf16 %v313, %v313
      %322 = vst [vmem:[%s261] sm:$0xf] %v314
      %323 = vst [vmem:[%s261 + $0x4] sm:$0xf] %v315
      %324 = vst [vmem:[%s261 + $0x8] sm:$0xf] %v316
      %325 = vst [vmem:[%s261 + $0xc] sm:$0xf] %v317
      %326 = vst [vmem:[%s261 + $0x10] sm:$0xf] %v318
      %327 = vst [vmem:[%s261 + $0x14] sm:$0xf] %v319
      %328 = vst [vmem:[%s261 + $0x18] sm:$0xf] %v320
      %329 = vst [vmem:[%s261 + $0x1c] sm:$0xf] %v321
      %s330 = smul.u32 8, %s19
      %p331 = scmp.lt.s32.totalorder %s18, 1
      %s332 = scalar_select %p331, %s18, 1
      %p333 = scmp.lt.s32.totalorder %s330, 7
      %s334 = scalar_select %p333, %s330, 7
      %s335 = smul.addr %s332, 8
      %s336 = sadd.s32 %s334, %s335
      %s337 = smul.addr %s336, 4
      %s338 = scalar_lea.vmem %s3, %s337
      // Predicated region
      $region33: #{generator_forward.22} parent=31 // pred_check
        %p339 = pneg %p128
      $region34: #{generator_forward.22} parent=31 // pred_check_branch
        %341 = sbr.rel (%p339) target = $region36
      $region35: #{generator_forward.22} parent=31 // pred_region
        %s342 = smul.u32 8, %s19
      $region36: #{generator_forward.22} parent=31 // pred_fallthru
        _
    $region32: #{generator_forward.22} parent=5 // pred_fallthru
      _
    %p343 = scmp.le.s32.totalorder 2, %s9
    // Predicated region
    $region37: #{generator_forward.22} parent=5 // pred_check
      %p344 = pneg %p343
    $region38: #{generator_forward.22} parent=5 // pred_check_branch
      %346 = sbr.rel (%p344) target = $region40
    $region39: #{generator_forward.22} parent=5 // pred_region
      %s347 = ssub.s32 %s9, 2
      // Predicated region
      $region41: #{generator_forward.22} parent=39 // pred_check
        %p348 = pneg %p134
      $region42: #{generator_forward.22} parent=39 // pred_check_branch
        %350 = sbr.rel (%p348) target = $region44
      $region43: #{generator_forward.22} parent=39 // pred_region
        %s351 = smul.u32 8, %s21
        %p352 = scmp.lt.s32.totalorder %s20, 1
        %s353 = scalar_select %p352, %s20, 1
        %p354 = scmp.lt.s32.totalorder %s351, 7
        %s355 = scalar_select %p354, %s351, 7
        %s356 = smul.addr %s353, 8
        %s357 = sadd.s32 %s355, %s356
        %s358 = smul.addr %s357, 4
        %s359 = scalar_lea.vmem %s3, %s358
      $region44: #{generator_forward.22} parent=39 // pred_fallthru
        _
    $region40: #{generator_forward.22} parent=5 // pred_fallthru
      _
  $region6: #{generator_forward.22} parent=0 // loop_footer
    %s13 = sadd.s32 1, %s9
  $region7: #{generator_forward.22} parent=0 // loop_footer_branch
    %8 = sbr.rel target = $region3
  $region8: #{generator_forward.22} parent=0 // loop_exit
    _

// kernel: generator_forward.19
$region0: #{generator_forward.19}
  #allocation0 [shape = 'u32[]', space=smem, size = 0x4, offset = 0x4, fixed_abs, tag = 'smem constant byte address 0x4 - core index']
  #allocation1 [shape = 'u32[72,128]{1,0:T(1,128)}', space=vmem, size = 0x9000, scoped, tag = 'internal scratch']
  #allocation2 [shape = 'f32[64,128]{1,0:T(8,128)}', space=vmem, size = 0x8000, scoped, tag = 'scratch operand']
  %s0 = inlined_call_operand.vmem [shape: bf16[2,64,256], index: 0, kind: input, shape index: {}]
  %s1 = inlined_call_operand.vmem [shape: bf16[256,128], index: 1, kind: input, shape index: {}]
  %s2 = inlined_call_operand.vmem [shape: f32[2,64,128], index: 2, kind: output, shape index: {0}]
  %s3 = inlined_call_operand.vmem [shape: f32[2,1,2,128], index: 3, kind: output, shape index: {1}]
  %4 = xla_tuple %s2, %s3
  %s5 = sld [smem:[#allocation0]]
  $region57: #{generator_forward.19} parent=0
    _
  %s7 = ssub.s32 1, %s5
  %s8 = scalar_select 0, %s7, %s5
  loop: start=0, step=1, limit=4
  $region2: #{generator_forward.19} parent=0 // loop_pre_header
    _
  $region3: #{generator_forward.19} parent=0 // loop_header
    %s10 = sphi 0, %s14
    %p11 = scmp.ge.s32.totalorder %s10, 4
    %s17 = sphi 0, %s36
    %s18 = sphi 0, %s32
    %s19 = sphi 0, %s28
    %s20 = sphi 0, %s17
    %s21 = sphi 0, %s18
    %s22 = sphi 0, %s19
    %s23 = sphi 0, %s20
    %s24 = sphi 0, %s21
    %s25 = sphi 0, %s22
    %s43 = sphi 0, %s45
    %s46 = sphi 0, %s43
    %s47 = sphi 0, %s46
    %s63 = sphi 0, %s47
    %s69 = sphi 0, %s71
    %s72 = sphi 0, %s69
    %s73 = sphi 0, %s72
    %s89 = sphi 0, %s73
    %s97 = sphi 0, %s99
    %s100 = sphi 0, %s97
    %s101 = sphi 0, %s100
    %s117 = sphi 0, %s101
    %s125 = sphi 0, %s127
    %s128 = sphi 0, %s125
    %s129 = sphi 0, %s128
    %s145 = sphi 0, %s129
  $region4: #{generator_forward.19} parent=0 // loop_header_branch
    %13 = sbr.rel (%p11) target = $region8
  $region5: #{generator_forward.19} parent=0 // loop_body
    %s15 = ssub.s32 %s10, 1
    %s16 = ssub.s32 %s10, 2
    %s26 = sadd.s32 1, %s19
    %p27 = scmp.ge.s32.totalorder %s26, 1
    %s28 = scalar_select %p27, 0, %s26
    %s29 = sadd.s32 1, %s18
    %s30 = scalar_select %p27, %s29, %s18
    %p31 = scmp.ge.s32.totalorder %s30, 1
    %s32 = scalar_select %p31, 0, %s30
    %s33 = sadd.s32 1, %s17
    %s34 = scalar_select %p31, %s33, %s17
    %p35 = scmp.ge.s32.totalorder %s34, 2
    %s36 = scalar_select %p35, 0, %s34
    %s37 = ssub.s32 %s17, %s36
    %s38 = ssub.s32 %s18, %s32
    %s39 = sor.u32 %s37, %s38
    %s40 = ssub.s32 %s19, %s28
    %s41 = sor.u32 %s39, %s40
    %p42 = scmp.eq.s32.totalorder %s41, 0
    %s44 = sadd.s32 %s43, 1
    %s45 = scalar_select %p42, %s43, %s44
    %p48 = pneg %p42
    %p49 = scmp.eq.s32.totalorder %s10, 1
    %p50 = por %p48, %p49
    %p51 = scmp.ne.s32.totalorder %s43, %s46
    %p52 = scmp.eq.s32.totalorder %s10, 0
    %p53 = por %p51, %p52
    %p54 = scmp.ne.s32.totalorder %s43, %s46
    %p55 = scmp.eq.s32.totalorder %s15, 1
    %p56 = por %p54, %p55
    %p57 = scmp.ne.s32.totalorder %s46, %s47
    %p58 = scmp.eq.s32.totalorder %s15, 0
    %p59 = por %p57, %p58
    %p60 = scmp.ne.s32.totalorder %s46, %s47
    %p61 = scmp.eq.s32.totalorder %s16, 1
    %p62 = por %p60, %p61
    %p64 = scmp.ne.s32.totalorder %s47, %s63
    %p65 = scmp.eq.s32.totalorder %s16, 0
    %p66 = por %p64, %p65
    %s67 = ssub.s32 %s19, %s28
    %p68 = scmp.eq.s32.totalorder %s67, 0
    %s70 = sadd.s32 %s69, 1
    %s71 = scalar_select %p68, %s69, %s70
    %p74 = pneg %p68
    %p75 = scmp.eq.s32.totalorder %s10, 1
    %p76 = por %p74, %p75
    %p77 = scmp.ne.s32.totalorder %s69, %s72
    %p78 = scmp.eq.s32.totalorder %s10, 0
    %p79 = por %p77, %p78
    %p80 = scmp.ne.s32.totalorder %s69, %s72
    %p81 = scmp.eq.s32.totalorder %s15, 1
    %p82 = por %p80, %p81
    %p83 = scmp.ne.s32.totalorder %s72, %s73
    %p84 = scmp.eq.s32.totalorder %s15, 0
    %p85 = por %p83, %p84
    %p86 = scmp.ne.s32.totalorder %s72, %s73
    %p87 = scmp.eq.s32.totalorder %s16, 1
    %p88 = por %p86, %p87
    %p90 = scmp.ne.s32.totalorder %s73, %s89
    %p91 = scmp.eq.s32.totalorder %s16, 0
    %p92 = por %p90, %p91
    %s93 = ssub.s32 %s17, %s36
    %s94 = ssub.s32 %s18, %s32
    %s95 = sor.u32 %s93, %s94
    %p96 = scmp.eq.s32.totalorder %s95, 0
    %s98 = sadd.s32 %s97, 1
    %s99 = scalar_select %p96, %s97, %s98
    %p102 = pneg %p96
    %p103 = scmp.eq.s32.totalorder %s10, 1
    %p104 = por %p102, %p103
    %p105 = scmp.ne.s32.totalorder %s97, %s100
    %p106 = scmp.eq.s32.totalorder %s10, 0
    %p107 = por %p105, %p106
    %p108 = scmp.ne.s32.totalorder %s97, %s100
    %p109 = scmp.eq.s32.totalorder %s15, 1
    %p110 = por %p108, %p109
    %p111 = scmp.ne.s32.totalorder %s100, %s101
    %p112 = scmp.eq.s32.totalorder %s15, 0
    %p113 = por %p111, %p112
    %p114 = scmp.ne.s32.totalorder %s100, %s101
    %p115 = scmp.eq.s32.totalorder %s16, 1
    %p116 = por %p114, %p115
    %p118 = scmp.ne.s32.totalorder %s101, %s117
    %p119 = scmp.eq.s32.totalorder %s16, 0
    %p120 = por %p118, %p119
    %s121 = ssub.s32 %s17, %s36
    %s122 = ssub.s32 %s18, %s32
    %s123 = sor.u32 %s121, %s122
    %p124 = scmp.eq.s32.totalorder %s123, 0
    %s126 = sadd.s32 %s125, 1
    %s127 = scalar_select %p124, %s125, %s126
    %p130 = pneg %p124
    %p131 = scmp.eq.s32.totalorder %s10, 1
    %p132 = por %p130, %p131
    %p133 = scmp.ne.s32.totalorder %s125, %s128
    %p134 = scmp.eq.s32.totalorder %s10, 0
    %p135 = por %p133, %p134
    %p136 = scmp.ne.s32.totalorder %s125, %s128
    %p137 = scmp.eq.s32.totalorder %s15, 1
    %p138 = por %p136, %p137
    %p139 = scmp.ne.s32.totalorder %s128, %s129
    %p140 = scmp.eq.s32.totalorder %s15, 0
    %p141 = por %p139, %p140
    %p142 = scmp.ne.s32.totalorder %s128, %s129
    %p143 = scmp.eq.s32.totalorder %s16, 1
    %p144 = por %p142, %p143
    %p146 = scmp.ne.s32.totalorder %s129, %s145
    %p147 = scmp.eq.s32.totalorder %s16, 0
    %p148 = por %p146, %p147
    %p149 = scmp.le.s32.totalorder 1, %s10
    %p150 = scmp.lt.s32.totalorder %s10, 3
    %p151 = pnand %p149, %p150
    %p152 = pneg %p151
    // Predicated region
    $region9: #{generator_forward.19} parent=5 // pred_check
      _
    $region10: #{generator_forward.19} parent=5 // pred_check_branch
      %154 = sbr.rel (%p151) target = $region12
    $region11: #{generator_forward.19} parent=5 // pred_region
      %s155 = ssub.s32 %s10, 1
      // Predicated region
      $region13: #{generator_forward.19} parent=11 // pred_check
        %p156 = pneg %p85
      $region14: #{generator_forward.19} parent=11 // pred_check_branch
        %158 = sbr.rel (%p156) target = $region16
      $region15: #{generator_forward.19} parent=11 // pred_region
        %s159 = smul.u32 32, %s22
        %p160 = scmp.lt.s32.totalorder %s159, 31
        %s161 = scalar_select %p160, %s159, 31
        %s162 = smul.addr %s161, 4
        %s163 = scalar_lea.vmem %s1, %s162
        %s164 = smul.u32 32, %s22
      $region16: #{generator_forward.19} parent=11 // pred_fallthru
        _
    $region12: #{generator_forward.19} parent=5 // pred_fallthru
      _
    %p165 = scmp.lt.s32.totalorder %s10, 2
    // Predicated region
    $region17: #{generator_forward.19} parent=5 // pred_check
      %p166 = pneg %p165
    $region18: #{generator_forward.19} parent=5 // pred_check_branch
      %168 = sbr.rel (%p166) target = $region20
    $region19: #{generator_forward.19} parent=5 // pred_region
      // Predicated region
      $region21: #{generator_forward.19} parent=19 // pred_check
        %p169 = pneg %p53
      $region22: #{generator_forward.19} parent=19 // pred_check_branch
        %171 = sbr.rel (%p169) target = $region24
      $region23: #{generator_forward.19} parent=19 // pred_region
        %s172 = smul.u32 8, %s18
        %s173 = smul.u32 2, %s19
        %p174 = scmp.lt.s32.totalorder %s17, 1
        %s175 = scalar_select %p174, %s17, 1
        %p176 = scmp.lt.s32.totalorder %s172, 7
        %s177 = scalar_select %p176, %s172, 7
        %p178 = scmp.lt.s32.totalorder %s173, 1
        %s179 = scalar_select %p178, %s173, 1
        %s180 = smul.addr %s177, 2
        %s181 = sadd.s32 %s179, %s180
        %s182 = smul.addr %s175, 16
        %s183 = sadd.s32 %s181, %s182
        %s184 = smul.addr %s183, 4
        %s185 = scalar_lea.vmem %s0, %s184
        %s186 = smul.u32 8, %s18
        %s187 = smul.u32 2, %s19
      $region24: #{generator_forward.19} parent=19 // pred_fallthru
        _
    $region20: #{generator_forward.19} parent=5 // pred_fallthru
      _
    %p188 = scmp.le.s32.totalorder 1, %s10
    %p189 = scmp.lt.s32.totalorder %s10, 3
    %p190 = pnand %p188, %p189
    %p191 = pneg %p190
    // Predicated region
    $region25: #{generator_forward.19} parent=5 // pred_check
      _
    $region26: #{generator_forward.19} parent=5 // pred_check_branch
      %193 = sbr.rel (%p190) target = $region28
    $region27: #{generator_forward.19} parent=5 // pred_region
      %s194 = ssub.s32 %s10, 1
      %s195 = smul.u32 8, %s21
      %s196 = smul.u32 2, %s22
      %p197 = scmp.lt.s32.totalorder %s20, 1
      %s198 = scalar_select %p197, %s20, 1
      %p199 = scmp.lt.s32.totalorder %s195, 7
      %s200 = scalar_select %p199, %s195, 7
      %p201 = scmp.lt.s32.totalorder %s196, 1
      %s202 = scalar_select %p201, %s196, 1
      %s203 = smul.addr %s200, 2
      %s204 = sadd.s32 %s202, %s203
      %s205 = smul.addr %s198, 16
      %s206 = sadd.s32 %s204, %s205
      %s207 = smul.addr %s206, 4
      %s208 = scalar_lea.vmem %s0, %s207
      %p209 = pneg %p59
      %p210 = pneg %p56
      %s211 = smul.u32 32, %s22
      %p212 = scmp.lt.s32.totalorder %s211, 31
      %s213 = scalar_select %p212, %s211, 31
      %s214 = smul.addr %s213, 4
      %s215 = scalar_lea.vmem %s1, %s214
      %p216 = pneg %p85
      %p217 = pneg %p82
      %p218 = pneg %p113
      %p219 = pneg %p110
      %s220 = smul.u32 8, %s21
      %p221 = scmp.lt.s32.totalorder %s20, 1
      %s222 = scalar_select %p221, %s20, 1
      %p223 = scmp.lt.s32.totalorder %s220, 7
      %s224 = scalar_select %p223, %s220, 7
      %s225 = smul.addr %s222, 8
      %s226 = sadd.s32 %s224, %s225
      %s227 = smul.addr %s226, 8
      %s228 = scalar_lea.vmem %s2, %s227
      %p229 = pneg %p141
      %p230 = pneg %p138
      %p231 = scmp.lt.s32.totalorder %s20, 1
      %s232 = scalar_select %p231, %s20, 1
      %p233 = scmp.lt.s32.totalorder %s21, 0
      %s234 = scalar_select %p233, %s21, 0
      %s235 = sadd.s32 %s234, %s232
      %s236 = smul.addr %s235, 2
      %s237 = scalar_lea.vmem %s3, %s236
      %s238 = smul.u32 8, %s21
      %s239 = smul.u32 2, %s22
      %p240 = scmp.lt.s32.totalorder %s20, 1
      %s241 = scalar_select %p240, %s20, 1
      %p242 = scmp.lt.s32.totalorder %s238, 7
      %s243 = scalar_select %p242, %s238, 7
      %p244 = scmp.lt.s32.totalorder %s239, 1
      %s245 = scalar_select %p244, %s239, 1
      %s246 = smul.addr %s243, 2
      %s247 = sadd.s32 %s245, %s246
      %s248 = smul.addr %s241, 16
      %s249 = sadd.s32 %s247, %s248
      %s250 = smul.addr %s249, 4
      %s251 = scalar_lea.vmem %s0, %s250
      %s252 = smul.u32 8, %s21
      %s253 = smul.u32 2, %s22
      %s254 = smul.u32 32, %s22
      %p255 = scmp.lt.s32.totalorder %s254, 31
      %s256 = scalar_select %p255, %s254, 31
      %s257 = smul.addr %s256, 4
      %s258 = scalar_lea.vmem %s1, %s257
      %s259 = smul.u32 32, %s22
      %s260 = smul.u32 8, %s21
      %p261 = scmp.lt.s32.totalorder %s20, 1
      %s262 = scalar_select %p261, %s20, 1
      %p263 = scmp.lt.s32.totalorder %s260, 7
      %s264 = scalar_select %p263, %s260, 7
      %s265 = smul.addr %s262, 8
      %s266 = sadd.s32 %s264, %s265
      %s267 = smul.addr %s266, 8
      %s268 = scalar_lea.vmem %s2, %s267
      %s269 = smul.u32 8, %s21
      %p270 = scmp.lt.s32.totalorder %s20, 1
      %s271 = scalar_select %p270, %s20, 1
      %p272 = scmp.lt.s32.totalorder %s21, 0
      %s273 = scalar_select %p272, %s21, 0
      %s274 = sadd.s32 %s273, %s271
      %s275 = smul.addr %s274, 2
      %s276 = scalar_lea.vmem %s3, %s275
      %p277 = scmp.eq.s32.totalorder %s22, 0
      // Predicated region
      $region29: #{generator_forward.19} parent=27 // pred_check
        %p278 = pneg %p277
      $region30: #{generator_forward.19} parent=27 // pred_check_branch
        %280 = sbr.rel (%p278) target = $region32
      $region31: #{generator_forward.19} parent=27 // pred_region
        %281 = vst [vmem:[#allocation2] sm:$0xff] 0.0
        %282 = vst [vmem:[#allocation2 + $0x8] sm:$0xff] 0.0
        %283 = vst [vmem:[#allocation2 + $0x10] sm:$0xff] 0.0
        %284 = vst [vmem:[#allocation2 + $0x18] sm:$0xff] 0.0
        %285 = vst [vmem:[#allocation2 + $0x20] sm:$0xff] 0.0
        %286 = vst [vmem:[#allocation2 + $0x28] sm:$0xff] 0.0
        %287 = vst [vmem:[#allocation2 + $0x30] sm:$0xff] 0.0
        %288 = vst [vmem:[#allocation2 + $0x38] sm:$0xff] 0.0
      $region32: #{generator_forward.19} parent=27 // pred_fallthru
        _
      %v289 = vld [vmem:[#allocation2] sm:$0xff]
      %v290 = vld [vmem:[#allocation2 + $0x8] sm:$0xff]
      %v291 = vld [vmem:[#allocation2 + $0x10] sm:$0xff]
      %v292 = vld [vmem:[#allocation2 + $0x18] sm:$0xff]
      %v293 = vld [vmem:[#allocation2 + $0x20] sm:$0xff]
      %v294 = vld [vmem:[#allocation2 + $0x28] sm:$0xff]
      %v295 = vld [vmem:[#allocation2 + $0x30] sm:$0xff]
      %v296 = vld [vmem:[#allocation2 + $0x38] sm:$0xff]
      %v297 = vld [vmem:[%s251] sm:$0xff]
      %v298 = vld [vmem:[%s251 + $0x8] sm:$0xff]
      %v299 = vld [vmem:[%s251 + $0x10] sm:$0xff]
      %v300 = vld [vmem:[%s251 + $0x18] sm:$0xff]
      %v301 = vld [vmem:[%s251 + $0x20] sm:$0xff]
      %v302 = vld [vmem:[%s251 + $0x28] sm:$0xff]
      %v303 = vld [vmem:[%s251 + $0x30] sm:$0xff]
      %v304 = vld [vmem:[%s251 + $0x38] sm:$0xff]
      %v305 = vld [vmem:[%s258] sm:$0xf]
      %v306 = vld [vmem:[%s258 + $0x4] sm:$0xf]
      %v307 = vld [vmem:[%s258 + $0x8] sm:$0xf]
      %v308 = vld [vmem:[%s258 + $0xc] sm:$0xf]
      %v309 = vld [vmem:[%s258 + $0x10] sm:$0xf]
      %v310 = vld [vmem:[%s258 + $0x14] sm:$0xf]
      %v311 = vld [vmem:[%s258 + $0x18] sm:$0xf]
      %v312 = vld [vmem:[%s258 + $0x1c] sm:$0xf]
      %v313 = vld [vmem:[%s258 + $0x20] sm:$0xf]
      %v314 = vld [vmem:[%s258 + $0x24] sm:$0xf]
      %v315 = vld [vmem:[%s258 + $0x28] sm:$0xf]
      %v316 = vld [vmem:[%s258 + $0x2c] sm:$0xf]
      %v317 = vld [vmem:[%s258 + $0x30] sm:$0xf]
      %v318 = vld [vmem:[%s258 + $0x34] sm:$0xf]
      %v319 = vld [vmem:[%s258 + $0x38] sm:$0xf]
      %v320 = vld [vmem:[%s258 + $0x3c] sm:$0xf]
      %v321 = vld [vmem:[%s258 + $0x40] sm:$0xf]
      %v322 = vld [vmem:[%s258 + $0x44] sm:$0xf]
      %v323 = vld [vmem:[%s258 + $0x48] sm:$0xf]
      %v324 = vld [vmem:[%s258 + $0x4c] sm:$0xf]
      %v325 = vld [vmem:[%s258 + $0x50] sm:$0xf]
      %v326 = vld [vmem:[%s258 + $0x54] sm:$0xf]
      %v327 = vld [vmem:[%s258 + $0x58] sm:$0xf]
      %v328 = vld [vmem:[%s258 + $0x5c] sm:$0xf]
      %v329 = vld [vmem:[%s258 + $0x60] sm:$0xf]
      %v330 = vld [vmem:[%s258 + $0x64] sm:$0xf]
      %v331 = vld [vmem:[%s258 + $0x68] sm:$0xf]
      %v332 = vld [vmem:[%s258 + $0x6c] sm:$0xf]
      %v333 = vld [vmem:[%s258 + $0x70] sm:$0xf]
      %v334 = vld [vmem:[%s258 + $0x74] sm:$0xf]
      %v335 = vld [vmem:[%s258 + $0x78] sm:$0xf]
      %v336 = vld [vmem:[%s258 + $0x7c] sm:$0xf]
      %v345 = vunpack.c.l.b16 %v297
      %v346 = vunpack.c.h.b16 %v297
      %v347 = vunpack.c.l.b16 %v298
      %v348 = vunpack.c.h.b16 %v298
      %v349 = vunpack.c.l.b16 %v299
      %v350 = vunpack.c.h.b16 %v299
      %v351 = vunpack.c.l.b16 %v300
      %v352 = vunpack.c.h.b16 %v300
      %v353 = vunpack.c.l.b16 %v301
      %v354 = vunpack.c.h.b16 %v301
      %v355 = vunpack.c.l.b16 %v302
      %v356 = vunpack.c.h.b16 %v302
      %v357 = vunpack.c.l.b16 %v303
      %v358 = vunpack.c.h.b16 %v303
      %v359 = vunpack.c.l.b16 %v304
      %v360 = vunpack.c.h.b16 %v304
      %v361 = vpack.c.b16 %v347, %v345
      %v362 = vpack.c.b16 %v348, %v346
      %v363 = vpack.c.b16 %v351, %v349
      %v364 = vpack.c.b16 %v352, %v350
      %v365 = vpack.c.b16 %v355, %v353
      %v366 = vpack.c.b16 %v356, %v354
      %v367 = vpack.c.b16 %v359, %v357
      %v368 = vpack.c.b16 %v360, %v358
      %v409 = vunpack.c.l.b16 %v305
      %v410 = vunpack.c.l.b16 %v306
      %v411 = vunpack.c.l.b16 %v307
      %v412 = vunpack.c.l.b16 %v308
      %v413 = vunpack.c.l.b16 %v309
      %v414 = vunpack.c.l.b16 %v310
      %v415 = vunpack.c.l.b16 %v311
      %v416 = vunpack.c.l.b16 %v312
      %v417 = vunpack.c.l.b16 %v313
      %v418 = vunpack.c.l.b16 %v314
      %v419 = vunpack.c.l.b16 %v315
      %v420 = vunpack.c.l.b16 %v316
      %v421 = vunpack.c.l.b16 %v317
      %v422 = vunpack.c.l.b16 %v318
      %v423 = vunpack.c.l.b16 %v319
      %v424 = vunpack.c.l.b16 %v320
      %v425 = vunpack.c.l.b16 %v321
      %v426 = vunpack.c.l.b16 %v322
      %v427 = vunpack.c.l.b16 %v323
      %v428 = vunpack.c.l.b16 %v324
      %v429 = vunpack.c.l.b16 %v325
      %v430 = vunpack.c.l.b16 %v326
      %v431 = vunpack.c.l.b16 %v327
      %v432 = vunpack.c.l.b16 %v328
      %v433 = vunpack.c.l.b16 %v329
      %v434 = vunpack.c.l.b16 %v330
      %v435 = vunpack.c.l.b16 %v331
      %v436 = vunpack.c.l.b16 %v332
      %v437 = vunpack.c.l.b16 %v333
      %v438 = vunpack.c.l.b16 %v334
      %v439 = vunpack.c.l.b16 %v335
      %v440 = vunpack.c.l.b16 %v336
      %v441 = vpack.c.b16 %v410, %v409
      %v442 = vpack.c.b16 %v412, %v411
      %v443 = vpack.c.b16 %v414, %v413
      %v444 = vpack.c.b16 %v416, %v415
      %v445 = vpack.c.b16 %v418, %v417
      %v446 = vpack.c.b16 %v420, %v419
      %v447 = vpack.c.b16 %v422, %v421
      %v448 = vpack.c.b16 %v424, %v423
      %v449 = vpack.c.b16 %v426, %v425
      %v450 = vpack.c.b16 %v428, %v427
      %v451 = vpack.c.b16 %v430, %v429
      %v452 = vpack.c.b16 %v432, %v431
      %v453 = vpack.c.b16 %v434, %v433
      %v454 = vpack.c.b16 %v436, %v435
      %v455 = vpack.c.b16 %v438, %v437
      %v456 = vpack.c.b16 %v440, %v439
      %473 = vmatpush.bf16.msra.mxu0 %v448
      %474 = vmatpush.bf16.msra.mxu0 %v447
      %475 = vmatpush.bf16.msra.mxu0 %v446
      %476 = vmatpush.bf16.msra.mxu0 %v445
      %477 = vmatpush.bf16.msra.mxu0 %v444
      %478 = vmatpush.bf16.msra.mxu0 %v443
      %479 = vmatpush.bf16.msra.mxu0 %v442
      %480 = vmatpush.bf16.msra.mxu0 %v441
      %481 = vmatmul.bf16.gmra.mxu0 %v361
      %v482 = vpop.f32.mrf.mxu0
      %v483 = vadd.f32 0.0, %v482
      %v484 = vpop.f32.mrf.mxu0
      %v485 = vadd.f32 0.0, %v484
      %486 = vmatmul.bf16.gmra.mxu0 %v363
      %v487 = vpop.f32.mrf.mxu0
      %v488 = vadd.f32 0.0, %v487
      %v489 = vpop.f32.mrf.mxu0
      %v490 = vadd.f32 0.0, %v489
      %491 = vmatmul.bf16.gmra.mxu0 %v365
      %v492 = vpop.f32.mrf.mxu0
      %v493 = vadd.f32 0.0, %v492
      %v494 = vpop.f32.mrf.mxu0
      %v495 = vadd.f32 0.0, %v494
      %496 = vmatmul.bf16.gmra.mxu0 %v367
      %v497 = vpop.f32.mrf.mxu0
      %v498 = vadd.f32 0.0, %v497
      %v499 = vpop.f32.mrf.mxu0
      %v500 = vadd.f32 0.0, %v499
      %501 = vdwg.mxu0
      %502 = vmatpush.bf16.msra.mxu0 %v456
      %503 = vmatpush.bf16.msra.mxu0 %v455
      %504 = vmatpush.bf16.msra.mxu0 %v454
      %505 = vmatpush.bf16.msra.mxu0 %v453
      %506 = vmatpush.bf16.msra.mxu0 %v452
      %507 = vmatpush.bf16.msra.mxu0 %v451
      %508 = vmatpush.bf16.msra.mxu0 %v450
      %509 = vmatpush.bf16.msra.mxu0 %v449
      %510 = vmatmul.bf16.gmra.mxu0 %v362
      %v511 = vpop.f32.mrf.mxu0
      %v512 = vadd.f32 %v483, %v511
      %v513 = vpop.f32.mrf.mxu0
      %v514 = vadd.f32 %v485, %v513
      %515 = vmatmul.bf16.gmra.mxu0 %v364
      %v516 = vpop.f32.mrf.mxu0
      %v517 = vadd.f32 %v488, %v516
      %v518 = vpop.f32.mrf.mxu0
      %v519 = vadd.f32 %v490, %v518
      %520 = vmatmul.bf16.gmra.mxu0 %v366
      %v521 = vpop.f32.mrf.mxu0
      %v522 = vadd.f32 %v493, %v521
      %v523 = vpop.f32.mrf.mxu0
      %v524 = vadd.f32 %v495, %v523
      %525 = vmatmul.bf16.gmra.mxu0 %v368
      %v526 = vpop.f32.mrf.mxu0
      %v527 = vadd.f32 %v498, %v526
      %v528 = vpop.f32.mrf.mxu0
      %v529 = vadd.f32 %v500, %v528
      %530 = vdwg.mxu0
      %v531 = vadd.f32 %v289, %v512
      %v532 = vadd.f32 %v290, %v514
      %v533 = vadd.f32 %v291, %v517
      %v534 = vadd.f32 %v292, %v519
      %v535 = vadd.f32 %v293, %v522
      %v536 = vadd.f32 %v294, %v524
      %v537 = vadd.f32 %v295, %v527
      %v538 = vadd.f32 %v296, %v529
      %539 = vst [vmem:[#allocation2] sm:$0xff] %v531
      %540 = vst [vmem:[#allocation2 + $0x8] sm:$0xff] %v532
      %541 = vst [vmem:[#allocation2 + $0x10] sm:$0xff] %v533
      %542 = vst [vmem:[#allocation2 + $0x18] sm:$0xff] %v534
      %543 = vst [vmem:[#allocation2 + $0x20] sm:$0xff] %v535
      %544 = vst [vmem:[#allocation2 + $0x28] sm:$0xff] %v536
      %545 = vst [vmem:[#allocation2 + $0x30] sm:$0xff] %v537
      %546 = vst [vmem:[#allocation2 + $0x38] sm:$0xff] %v538
      // Predicated region
      $region33: #{generator_forward.19} parent=27 // pred_check
        %p547 = pneg %p277
      $region34: #{generator_forward.19} parent=27 // pred_check_branch
        %549 = sbr.rel (%p547) target = $region36
      $region35: #{generator_forward.19} parent=27 // pred_region
        %v550 = vld [vmem:[#allocation2] sm:$0xff]
        %v551 = vld [vmem:[#allocation2 + $0x8] sm:$0xff]
        %v552 = vld [vmem:[#allocation2 + $0x10] sm:$0xff]
        %v553 = vld [vmem:[#allocation2 + $0x18] sm:$0xff]
        %v554 = vld [vmem:[#allocation2 + $0x20] sm:$0xff]
        %v555 = vld [vmem:[#allocation2 + $0x28] sm:$0xff]
        %v556 = vld [vmem:[#allocation2 + $0x30] sm:$0xff]
        %v557 = vld [vmem:[#allocation2 + $0x38] sm:$0xff]
        %558 = vst [vmem:[%s268] sm:$0xff] %v550
        %559 = vst [vmem:[%s268 + $0x8] sm:$0xff] %v551
        %560 = vst [vmem:[%s268 + $0x10] sm:$0xff] %v552
        %561 = vst [vmem:[%s268 + $0x18] sm:$0xff] %v553
        %562 = vst [vmem:[%s268 + $0x20] sm:$0xff] %v554
        %563 = vst [vmem:[%s268 + $0x28] sm:$0xff] %v555
        %564 = vst [vmem:[%s268 + $0x30] sm:$0xff] %v556
        %565 = vst [vmem:[%s268 + $0x38] sm:$0xff] %v557
        %v566 = vadd.f32 %v550, %v551
        %v567 = vadd.f32 %v566, %v552
        %v568 = vadd.f32 %v567, %v553
        %v569 = vadd.f32 %v568, %v554
        %v570 = vadd.f32 %v569, %v555
        %v571 = vadd.f32 %v570, %v556
        %v572 = vadd.f32 %v571, %v557
        %v573 = vrot.slane %v572, 4
        %v574 = vadd.f32 %v572, %v573
        %v575 = vrot.slane %v574, 2
        %v576 = vadd.f32 %v574, %v575
        %v577 = vrot.slane %v576, 1
        %v578 = vadd.f32 %v576, %v577
        %v579 = vmul.f32 %v550, %v550
        %v580 = vmul.f32 %v551, %v551
        %v581 = vmul.f32 %v552, %v552
        %v582 = vmul.f32 %v553, %v553
        %v583 = vmul.f32 %v554, %v554
        %v584 = vmul.f32 %v555, %v555
        %v585 = vmul.f32 %v556, %v556
        %v586 = vmul.f32 %v557, %v557
        %v587 = vadd.f32 %v579, %v580
        %v588 = vadd.f32 %v587, %v581
        %v589 = vadd.f32 %v588, %v582
        %v590 = vadd.f32 %v589, %v583
        %v591 = vadd.f32 %v590, %v584
        %v592 = vadd.f32 %v591, %v585
        %v593 = vadd.f32 %v592, %v586
        %v594 = vrot.slane %v593, 4
        %v595 = vadd.f32 %v593, %v594
        %v596 = vrot.slane %v595, 2
        %v597 = vadd.f32 %v595, %v596
        %v598 = vrot.slane %v597, 1
        %v599 = vadd.f32 %v597, %v598
        %vm600 = vcmask 1040384
        %v601 = vsel %vm600, %v578, %v599
        %602 = vst [vmem:[%s276] sm:$0x3] %v601
      $region36: #{generator_forward.19} parent=27 // pred_fallthru
        _
      %s603 = smul.u32 8, %s21
      %p604 = scmp.lt.s32.totalorder %s20, 1
      %s605 = scalar_select %p604, %s20, 1
      %p606 = scmp.lt.s32.totalorder %s603, 7
      %s607 = scalar_select %p606, %s603, 7
      %s608 = smul.addr %s605, 8
      %s609 = sadd.s32 %s607, %s608
      %s610 = smul.addr %s609, 8
      %s611 = scalar_lea.vmem %s2, %s610
      %p612 = scmp.lt.s32.totalorder %s20, 1
      %s613 = scalar_select %p612, %s20, 1
      %p614 = scmp.lt.s32.totalorder %s21, 0
      %s615 = scalar_select %p614, %s21, 0
      %s616 = sadd.s32 %s615, %s613
      %s617 = smul.addr %s616, 2
      %s618 = scalar_lea.vmem %s3, %s617
      // Predicated region
      $region37: #{generator_forward.19} parent=27 // pred_check
        %p619 = pneg %p110
      $region38: #{generator_forward.19} parent=27 // pred_check_branch
        %621 = sbr.rel (%p619) target = $region40
      $region39: #{generator_forward.19} parent=27 // pred_region
        %s622 = smul.u32 8, %s21
      $region40: #{generator_forward.19} parent=27 // pred_fallthru
        _
      // Predicated region
      $region41: #{generator_forward.19} parent=27 // pred_check
        %p623 = pneg %p138
      $region42: #{generator_forward.19} parent=27 // pred_check_branch
        %625 = sbr.rel (%p623) target = $region44
      $region43: #{generator_forward.19} parent=27 // pred_region
        _
      $region44: #{generator_forward.19} parent=27 // pred_fallthru
        _
    $region28: #{generator_forward.19} parent=5 // pred_fallthru
      _
    %p626 = scmp.le.s32.totalorder 2, %s10
    // Predicated region
    $region45: #{generator_forward.19} parent=5 // pred_check
      %p627 = pneg %p626
    $region46: #{generator_forward.19} parent=5 // pred_check_branch
      %629 = sbr.rel (%p627) target = $region48
    $region47: #{generator_forward.19} parent=5 // pred_region
      %s630 = ssub.s32 %s10, 2
      // Predicated region
      $region49: #{generator_forward.19} parent=47 // pred_check
        %p631 = pneg %p116
      $region50: #{generator_forward.19} parent=47 // pred_check_branch
        %633 = sbr.rel (%p631) target = $region52
      $region51: #{generator_forward.19} parent=47 // pred_region
        %s634 = smul.u32 8, %s24
        %p635 = scmp.lt.s32.totalorder %s23, 1
        %s636 = scalar_select %p635, %s23, 1
        %p637 = scmp.lt.s32.totalorder %s634, 7
        %s638 = scalar_select %p637, %s634, 7
        %s639 = smul.addr %s636, 8
        %s640 = sadd.s32 %s638, %s639
        %s641 = smul.addr %s640, 8
        %s642 = scalar_lea.vmem %s2, %s641
      $region52: #{generator_forward.19} parent=47 // pred_fallthru
        _
      // Predicated region
      $region53: #{generator_forward.19} parent=47 // pred_check
        %p643 = pneg %p144
      $region54: #{generator_forward.19} parent=47 // pred_check_branch
        %645 = sbr.rel (%p643) target = $region56
      $region55: #{generator_forward.19} parent=47 // pred_region
        %p646 = scmp.lt.s32.totalorder %s23, 1
        %s647 = scalar_select %p646, %s23, 1
        %p648 = scmp.lt.s32.totalorder %s24, 0
        %s649 = scalar_select %p648, %s24, 0
        %s650 = sadd.s32 %s649, %s647
        %s651 = smul.addr %s650, 2
        %s652 = scalar_lea.vmem %s3, %s651
      $region56: #{generator_forward.19} parent=47 // pred_fallthru
        _
    $region48: #{generator_forward.19} parent=5 // pred_fallthru
      _
  $region6: #{generator_forward.19} parent=0 // loop_footer
    %s14 = sadd.s32 1, %s10
  $region7: #{generator_forward.19} parent=0 // loop_footer_branch
    %9 = sbr.rel target = $region3
  $region8: #{generator_forward.19} parent=0 // loop_exit
    _

// kernel: tile.9
$region0: #{tile.9}
  %s0 = inlined_call_operand.vmem [shape: f32[2,2,4,128], index: 0, kind: input, shape index: {}]
  %s1 = inlined_call_operand.vmem [shape: f32[2,2,512], index: 1, kind: output, shape index: {}]
  $region1: #{tile.9} parent=0
    #allocation0 [shape = 'u8[32768]{0}', space=vmem, size = 0x8000, scoped, tag = 'scoped mem for output reshape']
    #allocation1 [shape = 'u8[16384]{0}', space=vmem, size = 0x4000, scoped, tag = 'scoped mem for input reshape']
    %s3 = ssub.s32 16, 1
    %s4 = scalar_lea.vmem %s0, 12
    %v5 = vld [vmem:[%s4] sm:%s3]
    %s6 = scalar_lea.vmem [#allocation1], 24
    %7 = vst [vmem:[%s6] sm:%s3] %v5
    %s8 = scalar_lea.vmem %s0, 8
    %v9 = vld [vmem:[%s8] sm:%s3]
    %s10 = scalar_lea.vmem [#allocation1], 16
    %11 = vst [vmem:[%s10] sm:%s3] %v9
    %s12 = scalar_lea.vmem %s0, 4
    %v13 = vld [vmem:[%s12] sm:%s3]
    %s14 = scalar_lea.vmem [#allocation1], 8
    %15 = vst [vmem:[%s14] sm:%s3] %v13
    %v16 = vld [vmem:[%s0] sm:%s3]
    %17 = vst [vmem:[#allocation1] sm:%s3] %v16
    %v18 = vld [vmem:[#allocation1] sm:$0xf]
    %19 = vst [vmem:[#allocation0] ss:$8 sm:$0xf] %v18
    %s20 = scalar_lea.vmem [#allocation1], 8
    %v21 = vld [vmem:[%s20] sm:$0xf]
    %s22 = scalar_lea.vmem [#allocation0], 1
    %23 = vst [vmem:[%s22] ss:$8 sm:$0xf] %v21
    %s24 = scalar_lea.vmem [#allocation1], 16
    %v25 = vld [vmem:[%s24] sm:$0xf]
    %s26 = scalar_lea.vmem [#allocation0], 32
    %27 = vst [vmem:[%s26] ss:$8 sm:$0xf] %v25
    %s28 = scalar_lea.vmem [#allocation1], 24
    %v29 = vld [vmem:[%s28] sm:$0xf]
    %s30 = scalar_lea.vmem [#allocation0], 33
    %31 = vst [vmem:[%s30] ss:$8 sm:$0xf] %v29
    %s33 = ssub.s32 4, 1
    %v34 = vld [vmem:[#allocation0] sm:%s33]
    %s36 = ssub.s32 4, 1
    %37 = vst [vmem:[%s1] sm:%s36] %v34
    %s38 = scalar_lea.vmem [#allocation0], 8
    %v39 = vld [vmem:[%s38] sm:%s33]
    %s41 = ssub.s32 4, 1
    %s42 = scalar_lea.vmem %s1, 2
    %43 = vst [vmem:[%s42] sm:%s41] %v39
    %s44 = scalar_lea.vmem [#allocation0], 16
    %v45 = vld [vmem:[%s44] sm:%s33]
    %s47 = ssub.s32 4, 1
    %s48 = scalar_lea.vmem %s1, 4
    %49 = vst [vmem:[%s48] sm:%s47] %v45
    %s50 = scalar_lea.vmem [#allocation0], 24
    %v51 = vld [vmem:[%s50] sm:%s33]
    %s53 = ssub.s32 4, 1
    %s54 = scalar_lea.vmem %s1, 6
    %55 = vst [vmem:[%s54] sm:%s53] %v51
    %s56 = scalar_lea.vmem [#allocation0], 32
    %v57 = vld [vmem:[%s56] sm:%s33]
    %s59 = ssub.s32 4, 1
    %s60 = scalar_lea.vmem %s1, 8
    %61 = vst [vmem:[%s60] sm:%s59] %v57
    %s62 = scalar_lea.vmem [#allocation0], 40
    %v63 = vld [vmem:[%s62] sm:%s33]
    %s65 = ssub.s32 4, 1
    %s66 = scalar_lea.vmem %s1, 10
    %67 = vst [vmem:[%s66] sm:%s65] %v63
    %s68 = scalar_lea.vmem [#allocation0], 48
    %v69 = vld [vmem:[%s68] sm:%s33]
    %s71 = ssub.s32 4, 1
    %s72 = scalar_lea.vmem %s1, 12
    %73 = vst [vmem:[%s72] sm:%s71] %v69
    %s74 = scalar_lea.vmem [#allocation0], 56
    %v75 = vld [vmem:[%s74] sm:%s33]
    %s77 = ssub.s32 4, 1
    %s78 = scalar_lea.vmem %s1, 14
    %79 = vst [vmem:[%s78] sm:%s77] %v75

// kernel: generator_forward.28
$region0: #{generator_forward.28}
  #allocation0 [shape = 'u32[]', space=smem, size = 0x4, offset = 0x4, fixed_abs, tag = 'smem constant byte address 0x4 - core index']
  #allocation1 [shape = 'u32[72,128]{1,0:T(1,128)}', space=vmem, size = 0x9000, scoped, tag = 'internal scratch']
  %s0 = inlined_call_operand.vmem [shape: f32[2,64,512], index: 0, kind: input, shape index: {}]
  %s1 = inlined_call_operand.vmem [shape: f32[2,2,512], index: 1, kind: input, shape index: {}]
  %s2 = inlined_call_operand.vmem [shape: bf16[2,64,512], index: 2, kind: output, shape index: {}]
  %s3 = sld [smem:[#allocation0]]
  $region41: #{generator_forward.28} parent=0
    _
  %s5 = ssub.s32 1, %s3
  %s6 = scalar_select 0, %s5, %s3
  loop: start=0, step=1, limit=4
  $region2: #{generator_forward.28} parent=0 // loop_pre_header
    _
  $region3: #{generator_forward.28} parent=0 // loop_header
    %s8 = sphi 0, %s12
    %p9 = scmp.ge.s32.totalorder %s8, 4
    %s15 = sphi 0, %s27
    %s16 = sphi 0, %s23
    %s17 = sphi 0, %s15
    %s18 = sphi 0, %s16
    %s19 = sphi 0, %s17
    %s20 = sphi 0, %s18
    %s32 = sphi 0, %s34
    %s35 = sphi 0, %s32
    %s36 = sphi 0, %s35
    %s52 = sphi 0, %s36
    %s58 = sphi 0, %s60
    %s61 = sphi 0, %s58
    %s62 = sphi 0, %s61
    %s78 = sphi 0, %s62
    %s86 = sphi 0, %s88
    %s89 = sphi 0, %s86
    %s90 = sphi 0, %s89
    %s106 = sphi 0, %s90
  $region4: #{generator_forward.28} parent=0 // loop_header_branch
    %11 = sbr.rel (%p9) target = $region8
  $region5: #{generator_forward.28} parent=0 // loop_body
    %s13 = ssub.s32 %s8, 1
    %s14 = ssub.s32 %s8, 2
    %s21 = sadd.s32 1, %s16
    %p22 = scmp.ge.s32.totalorder %s21, 1
    %s23 = scalar_select %p22, 0, %s21
    %s24 = sadd.s32 1, %s15
    %s25 = scalar_select %p22, %s24, %s15
    %p26 = scmp.ge.s32.totalorder %s25, 2
    %s27 = scalar_select %p26, 0, %s25
    %s28 = ssub.s32 %s15, %s27
    %s29 = ssub.s32 %s16, %s23
    %s30 = sor.u32 %s28, %s29
    %p31 = scmp.eq.s32.totalorder %s30, 0
    %s33 = sadd.s32 %s32, 1
    %s34 = scalar_select %p31, %s32, %s33
    %p37 = pneg %p31
    %p38 = scmp.eq.s32.totalorder %s8, 1
    %p39 = por %p37, %p38
    %p40 = scmp.ne.s32.totalorder %s32, %s35
    %p41 = scmp.eq.s32.totalorder %s8, 0
    %p42 = por %p40, %p41
    %p43 = scmp.ne.s32.totalorder %s32, %s35
    %p44 = scmp.eq.s32.totalorder %s13, 1
    %p45 = por %p43, %p44
    %p46 = scmp.ne.s32.totalorder %s35, %s36
    %p47 = scmp.eq.s32.totalorder %s13, 0
    %p48 = por %p46, %p47
    %p49 = scmp.ne.s32.totalorder %s35, %s36
    %p50 = scmp.eq.s32.totalorder %s14, 1
    %p51 = por %p49, %p50
    %p53 = scmp.ne.s32.totalorder %s36, %s52
    %p54 = scmp.eq.s32.totalorder %s14, 0
    %p55 = por %p53, %p54
    %s56 = ssub.s32 %s15, %s27
    %p57 = scmp.eq.s32.totalorder %s56, 0
    %s59 = sadd.s32 %s58, 1
    %s60 = scalar_select %p57, %s58, %s59
    %p63 = pneg %p57
    %p64 = scmp.eq.s32.totalorder %s8, 1
    %p65 = por %p63, %p64
    %p66 = scmp.ne.s32.totalorder %s58, %s61
    %p67 = scmp.eq.s32.totalorder %s8, 0
    %p68 = por %p66, %p67
    %p69 = scmp.ne.s32.totalorder %s58, %s61
    %p70 = scmp.eq.s32.totalorder %s13, 1
    %p71 = por %p69, %p70
    %p72 = scmp.ne.s32.totalorder %s61, %s62
    %p73 = scmp.eq.s32.totalorder %s13, 0
    %p74 = por %p72, %p73
    %p75 = scmp.ne.s32.totalorder %s61, %s62
    %p76 = scmp.eq.s32.totalorder %s14, 1
    %p77 = por %p75, %p76
    %p79 = scmp.ne.s32.totalorder %s62, %s78
    %p80 = scmp.eq.s32.totalorder %s14, 0
    %p81 = por %p79, %p80
    %s82 = ssub.s32 %s15, %s27
    %s83 = ssub.s32 %s16, %s23
    %s84 = sor.u32 %s82, %s83
    %p85 = scmp.eq.s32.totalorder %s84, 0
    %s87 = sadd.s32 %s86, 1
    %s88 = scalar_select %p85, %s86, %s87
    %p91 = pneg %p85
    %p92 = scmp.eq.s32.totalorder %s8, 1
    %p93 = por %p91, %p92
    %p94 = scmp.ne.s32.totalorder %s86, %s89
    %p95 = scmp.eq.s32.totalorder %s8, 0
    %p96 = por %p94, %p95
    %p97 = scmp.ne.s32.totalorder %s86, %s89
    %p98 = scmp.eq.s32.totalorder %s13, 1
    %p99 = por %p97, %p98
    %p100 = scmp.ne.s32.totalorder %s89, %s90
    %p101 = scmp.eq.s32.totalorder %s13, 0
    %p102 = por %p100, %p101
    %p103 = scmp.ne.s32.totalorder %s89, %s90
    %p104 = scmp.eq.s32.totalorder %s14, 1
    %p105 = por %p103, %p104
    %p107 = scmp.ne.s32.totalorder %s90, %s106
    %p108 = scmp.eq.s32.totalorder %s14, 0
    %p109 = por %p107, %p108
    %p110 = scmp.le.s32.totalorder 1, %s8
    %p111 = scmp.lt.s32.totalorder %s8, 3
    %p112 = pnand %p110, %p111
    %p113 = pneg %p112
    // Predicated region
    $region9: #{generator_forward.28} parent=5 // pred_check
      _
    $region10: #{generator_forward.28} parent=5 // pred_check_branch
      %115 = sbr.rel (%p112) target = $region12
    $region11: #{generator_forward.28} parent=5 // pred_region
      %s116 = ssub.s32 %s8, 1
    $region12: #{generator_forward.28} parent=5 // pred_fallthru
      _
    %p117 = scmp.lt.s32.totalorder %s8, 2
    // Predicated region
    $region13: #{generator_forward.28} parent=5 // pred_check
      %p118 = pneg %p117
    $region14: #{generator_forward.28} parent=5 // pred_check_branch
      %120 = sbr.rel (%p118) target = $region16
    $region15: #{generator_forward.28} parent=5 // pred_region
      // Predicated region
      $region17: #{generator_forward.28} parent=15 // pred_check
        %p121 = pneg %p42
      $region18: #{generator_forward.28} parent=15 // pred_check_branch
        %123 = sbr.rel (%p121) target = $region20
      $region19: #{generator_forward.28} parent=15 // pred_region
        %s124 = smul.u32 8, %s16
        %p125 = scmp.lt.s32.totalorder %s15, 1
        %s126 = scalar_select %p125, %s15, 1
        %p127 = scmp.lt.s32.totalorder %s124, 7
        %s128 = scalar_select %p127, %s124, 7
        %s129 = smul.addr %s128, 4
        %s130 = smul.addr %s126, 32
        %s131 = sadd.s32 %s129, %s130
        %s132 = smul.addr %s131, 8
        %s133 = scalar_lea.vmem %s0, %s132
        %s134 = smul.u32 8, %s16
      $region20: #{generator_forward.28} parent=15 // pred_fallthru
        _
      // Predicated region
      $region21: #{generator_forward.28} parent=15 // pred_check
        %p135 = pneg %p68
      $region22: #{generator_forward.28} parent=15 // pred_check_branch
        %137 = sbr.rel (%p135) target = $region24
      $region23: #{generator_forward.28} parent=15 // pred_region
        %p138 = scmp.lt.s32.totalorder %s15, 1
        %s139 = scalar_select %p138, %s15, 1
        %s140 = smul.addr %s139, 4
        %s141 = smul.addr %s140, 2
        %s142 = scalar_lea.vmem %s1, %s141
      $region24: #{generator_forward.28} parent=15 // pred_fallthru
        _
    $region16: #{generator_forward.28} parent=5 // pred_fallthru
      _
    %p143 = scmp.le.s32.totalorder 1, %s8
    %p144 = scmp.lt.s32.totalorder %s8, 3
    %p145 = pnand %p143, %p144
    %p146 = pneg %p145
    // Predicated region
    $region25: #{generator_forward.28} parent=5 // pred_check
      _
    $region26: #{generator_forward.28} parent=5 // pred_check_branch
      %148 = sbr.rel (%p145) target = $region28
    $region27: #{generator_forward.28} parent=5 // pred_region
      %s149 = ssub.s32 %s8, 1
      %s150 = smul.u32 8, %s18
      %p151 = scmp.lt.s32.totalorder %s17, 1
      %s152 = scalar_select %p151, %s17, 1
      %p153 = scmp.lt.s32.totalorder %s150, 7
      %s154 = scalar_select %p153, %s150, 7
      %s155 = smul.addr %s154, 4
      %s156 = smul.addr %s152, 32
      %s157 = sadd.s32 %s155, %s156
      %s158 = smul.addr %s157, 8
      %s159 = scalar_lea.vmem %s0, %s158
      %p160 = pneg %p48
      %p161 = pneg %p45
      %p162 = scmp.lt.s32.totalorder %s17, 1
      %s163 = scalar_select %p162, %s17, 1
      %s164 = smul.addr %s163, 4
      %s165 = smul.addr %s164, 2
      %s166 = scalar_lea.vmem %s1, %s165
      %p167 = pneg %p74
      %p168 = pneg %p71
      %p169 = pneg %p102
      %p170 = pneg %p99
      %s171 = smul.u32 8, %s18
      %p172 = scmp.lt.s32.totalorder %s17, 1
      %s173 = scalar_select %p172, %s17, 1
      %p174 = scmp.lt.s32.totalorder %s171, 7
      %s175 = scalar_select %p174, %s171, 7
      %s176 = smul.addr %s175, 4
      %s177 = smul.addr %s173, 32
      %s178 = sadd.s32 %s176, %s177
      %s179 = smul.addr %s178, 4
      %s180 = scalar_lea.vmem %s2, %s179
      %s181 = smul.u32 8, %s18
      %p182 = scmp.lt.s32.totalorder %s17, 1
      %s183 = scalar_select %p182, %s17, 1
      %p184 = scmp.lt.s32.totalorder %s181, 7
      %s185 = scalar_select %p184, %s181, 7
      %s186 = smul.addr %s185, 4
      %s187 = smul.addr %s183, 32
      %s188 = sadd.s32 %s186, %s187
      %s189 = smul.addr %s188, 8
      %s190 = scalar_lea.vmem %s0, %s189
      %s191 = smul.u32 8, %s18
      %p192 = scmp.lt.s32.totalorder %s17, 1
      %s193 = scalar_select %p192, %s17, 1
      %s194 = smul.addr %s193, 4
      %s195 = smul.addr %s194, 2
      %s196 = scalar_lea.vmem %s1, %s195
      %s197 = smul.u32 8, %s18
      %p198 = scmp.lt.s32.totalorder %s17, 1
      %s199 = scalar_select %p198, %s17, 1
      %p200 = scmp.lt.s32.totalorder %s197, 7
      %s201 = scalar_select %p200, %s197, 7
      %s202 = smul.addr %s201, 4
      %s203 = smul.addr %s199, 32
      %s204 = sadd.s32 %s202, %s203
      %s205 = smul.addr %s204, 4
      %s206 = scalar_lea.vmem %s2, %s205
      %s207 = smul.u32 8, %s18
      %v208 = vld [vmem:[%s196] sm:$0xff]
      %v209 = vld [vmem:[%s190] sm:$0xff]
      %v210 = vld [vmem:[%s190 + $0x8] sm:$0xff]
      %v211 = vld [vmem:[%s190 + $0x10] sm:$0xff]
      %v212 = vld [vmem:[%s190 + $0x18] sm:$0xff]
      %v213 = vld [vmem:[%s190 + $0x20] sm:$0xff]
      %v214 = vld [vmem:[%s190 + $0x28] sm:$0xff]
      %v215 = vld [vmem:[%s190 + $0x30] sm:$0xff]
      %v216 = vld [vmem:[%s190 + $0x38] sm:$0xff]
      %v217 = vld [vmem:[%s190 + $0x40] sm:$0xff]
      %v218 = vld [vmem:[%s190 + $0x48] sm:$0xff]
      %v219 = vld [vmem:[%s190 + $0x50] sm:$0xff]
      %v220 = vld [vmem:[%s190 + $0x58] sm:$0xff]
      %v221 = vld [vmem:[%s190 + $0x60] sm:$0xff]
      %v222 = vld [vmem:[%s190 + $0x68] sm:$0xff]
      %v223 = vld [vmem:[%s190 + $0x70] sm:$0xff]
      %v224 = vld [vmem:[%s190 + $0x78] sm:$0xff]
      %v225 = vld [vmem:[%s190 + $0x80] sm:$0xff]
      %v226 = vld [vmem:[%s190 + $0x88] sm:$0xff]
      %v227 = vld [vmem:[%s190 + $0x90] sm:$0xff]
      %v228 = vld [vmem:[%s190 + $0x98] sm:$0xff]
      %v229 = vld [vmem:[%s190 + $0xa0] sm:$0xff]
      %v230 = vld [vmem:[%s190 + $0xa8] sm:$0xff]
      %v231 = vld [vmem:[%s190 + $0xb0] sm:$0xff]
      %v232 = vld [vmem:[%s190 + $0xb8] sm:$0xff]
      %v233 = vld [vmem:[%s190 + $0xc0] sm:$0xff]
      %v234 = vld [vmem:[%s190 + $0xc8] sm:$0xff]
      %v235 = vld [vmem:[%s190 + $0xd0] sm:$0xff]
      %v236 = vld [vmem:[%s190 + $0xd8] sm:$0xff]
      %v237 = vld [vmem:[%s190 + $0xe0] sm:$0xff]
      %v238 = vld [vmem:[%s190 + $0xe8] sm:$0xff]
      %v239 = vld [vmem:[%s190 + $0xf0] sm:$0xff]
      %v240 = vld [vmem:[%s190 + $0xf8] sm:$0xff]
      %v242 = vperm.slane %v208, 0
      %v243 = vperm.slane %v208, 2
      %v244 = vperm.slane %v208, 4
      %v245 = vperm.slane %v208, 6
      %v250 = vperm.slane %v242, 0
      %v251 = vperm.slane %v243, 0
      %v252 = vperm.slane %v244, 0
      %v253 = vperm.slane %v245, 0
      %v254 = vsub.f32 %v209, %v250
      %v255 = vsub.f32 %v210, %v251
      %v256 = vsub.f32 %v211, %v252
      %v257 = vsub.f32 %v212, %v253
      %v258 = vsub.f32 %v213, %v250
      %v259 = vsub.f32 %v214, %v251
      %v260 = vsub.f32 %v215, %v252
      %v261 = vsub.f32 %v216, %v253
      %v262 = vsub.f32 %v217, %v250
      %v263 = vsub.f32 %v218, %v251
      %v264 = vsub.f32 %v219, %v252
      %v265 = vsub.f32 %v220, %v253
      %v266 = vsub.f32 %v221, %v250
      %v267 = vsub.f32 %v222, %v251
      %v268 = vsub.f32 %v223, %v252
      %v269 = vsub.f32 %v224, %v253
      %v270 = vsub.f32 %v225, %v250
      %v271 = vsub.f32 %v226, %v251
      %v272 = vsub.f32 %v227, %v252
      %v273 = vsub.f32 %v228, %v253
      %v274 = vsub.f32 %v229, %v250
      %v275 = vsub.f32 %v230, %v251
      %v276 = vsub.f32 %v231, %v252
      %v277 = vsub.f32 %v232, %v253
      %v278 = vsub.f32 %v233, %v250
      %v279 = vsub.f32 %v234, %v251
      %v280 = vsub.f32 %v235, %v252
      %v281 = vsub.f32 %v236, %v253
      %v282 = vsub.f32 %v237, %v250
      %v283 = vsub.f32 %v238, %v251
      %v284 = vsub.f32 %v239, %v252
      %v285 = vsub.f32 %v240, %v253
      %v286 = vperm.slane %v208, 1
      %v287 = vperm.slane %v208, 3
      %v288 = vperm.slane %v208, 5
      %v289 = vperm.slane %v208, 7
      %v294 = vperm.slane %v286, 1
      %v295 = vperm.slane %v287, 1
      %v296 = vperm.slane %v288, 1
      %v297 = vperm.slane %v289, 1
      %v298 = vmul.f32 %v254, %v294
      %v299 = vmul.f32 %v255, %v295
      %v300 = vmul.f32 %v256, %v296
      %v301 = vmul.f32 %v257, %v297
      %v302 = vmul.f32 %v258, %v294
      %v303 = vmul.f32 %v259, %v295
      %v304 = vmul.f32 %v260, %v296
      %v305 = vmul.f32 %v261, %v297
      %v306 = vmul.f32 %v262, %v294
      %v307 = vmul.f32 %v263, %v295
      %v308 = vmul.f32 %v264, %v296
      %v309 = vmul.f32 %v265, %v297
      %v310 = vmul.f32 %v266, %v294
      %v311 = vmul.f32 %v267, %v295
      %v312 = vmul.f32 %v268, %v296
      %v313 = vmul.f32 %v269, %v297
      %v314 = vmul.f32 %v270, %v294
      %v315 = vmul.f32 %v271, %v295
      %v316 = vmul.f32 %v272, %v296
      %v317 = vmul.f32 %v273, %v297
      %v318 = vmul.f32 %v274, %v294
      %v319 = vmul.f32 %v275, %v295
      %v320 = vmul.f32 %v276, %v296
      %v321 = vmul.f32 %v277, %v297
      %v322 = vmul.f32 %v278, %v294
      %v323 = vmul.f32 %v279, %v295
      %v324 = vmul.f32 %v280, %v296
      %v325 = vmul.f32 %v281, %v297
      %v326 = vmul.f32 %v282, %v294
      %v327 = vmul.f32 %v283, %v295
      %v328 = vmul.f32 %v284, %v296
      %v329 = vmul.f32 %v285, %v297
      %v330 = vmax.f32 %v298, 0.0
      %v331 = vmax.f32 %v299, 0.0
      %v332 = vmax.f32 %v300, 0.0
      %v333 = vmax.f32 %v301, 0.0
      %v334 = vmax.f32 %v302, 0.0
      %v335 = vmax.f32 %v303, 0.0
      %v336 = vmax.f32 %v304, 0.0
      %v337 = vmax.f32 %v305, 0.0
      %v338 = vmax.f32 %v306, 0.0
      %v339 = vmax.f32 %v307, 0.0
      %v340 = vmax.f32 %v308, 0.0
      %v341 = vmax.f32 %v309, 0.0
      %v342 = vmax.f32 %v310, 0.0
      %v343 = vmax.f32 %v311, 0.0
      %v344 = vmax.f32 %v312, 0.0
      %v345 = vmax.f32 %v313, 0.0
      %v346 = vmax.f32 %v314, 0.0
      %v347 = vmax.f32 %v315, 0.0
      %v348 = vmax.f32 %v316, 0.0
      %v349 = vmax.f32 %v317, 0.0
      %v350 = vmax.f32 %v318, 0.0
      %v351 = vmax.f32 %v319, 0.0
      %v352 = vmax.f32 %v320, 0.0
      %v353 = vmax.f32 %v321, 0.0
      %v354 = vmax.f32 %v322, 0.0
      %v355 = vmax.f32 %v323, 0.0
      %v356 = vmax.f32 %v324, 0.0
      %v357 = vmax.f32 %v325, 0.0
      %v358 = vmax.f32 %v326, 0.0
      %v359 = vmax.f32 %v327, 0.0
      %v360 = vmax.f32 %v328, 0.0
      %v361 = vmax.f32 %v329, 0.0
      %v362 = vpack.c.bf16 %v331, %v330
      %v363 = vpack.c.bf16 %v333, %v332
      %v364 = vpack.c.bf16 %v335, %v334
      %v365 = vpack.c.bf16 %v337, %v336
      %v366 = vpack.c.bf16 %v339, %v338
      %v367 = vpack.c.bf16 %v341, %v340
      %v368 = vpack.c.bf16 %v343, %v342
      %v369 = vpack.c.bf16 %v345, %v344
      %v370 = vpack.c.bf16 %v347, %v346
      %v371 = vpack.c.bf16 %v349, %v348
      %v372 = vpack.c.bf16 %v351, %v350
      %v373 = vpack.c.bf16 %v353, %v352
      %v374 = vpack.c.bf16 %v355, %v354
      %v375 = vpack.c.bf16 %v357, %v356
      %v376 = vpack.c.bf16 %v359, %v358
      %v377 = vpack.c.bf16 %v361, %v360
      %378 = vst [vmem:[%s206] sm:$0xff] %v362
      %379 = vst [vmem:[%s206 + $0x8] sm:$0xff] %v363
      %380 = vst [vmem:[%s206 + $0x10] sm:$0xff] %v364
      %381 = vst [vmem:[%s206 + $0x18] sm:$0xff] %v365
      %382 = vst [vmem:[%s206 + $0x20] sm:$0xff] %v366
      %383 = vst [vmem:[%s206 + $0x28] sm:$0xff] %v367
      %384 = vst [vmem:[%s206 + $0x30] sm:$0xff] %v368
      %385 = vst [vmem:[%s206 + $0x38] sm:$0xff] %v369
      %386 = vst [vmem:[%s206 + $0x40] sm:$0xff] %v370
      %387 = vst [vmem:[%s206 + $0x48] sm:$0xff] %v371
      %388 = vst [vmem:[%s206 + $0x50] sm:$0xff] %v372
      %389 = vst [vmem:[%s206 + $0x58] sm:$0xff] %v373
      %390 = vst [vmem:[%s206 + $0x60] sm:$0xff] %v374
      %391 = vst [vmem:[%s206 + $0x68] sm:$0xff] %v375
      %392 = vst [vmem:[%s206 + $0x70] sm:$0xff] %v376
      %393 = vst [vmem:[%s206 + $0x78] sm:$0xff] %v377
      %s394 = smul.u32 8, %s18
      %p395 = scmp.lt.s32.totalorder %s17, 1
      %s396 = scalar_select %p395, %s17, 1
      %p397 = scmp.lt.s32.totalorder %s394, 7
      %s398 = scalar_select %p397, %s394, 7
      %s399 = smul.addr %s398, 4
      %s400 = smul.addr %s396, 32
      %s401 = sadd.s32 %s399, %s400
      %s402 = smul.addr %s401, 4
      %s403 = scalar_lea.vmem %s2, %s402
      // Predicated region
      $region29: #{generator_forward.28} parent=27 // pred_check
        %p404 = pneg %p99
      $region30: #{generator_forward.28} parent=27 // pred_check_branch
        %406 = sbr.rel (%p404) target = $region32
      $region31: #{generator_forward.28} parent=27 // pred_region
        %s407 = smul.u32 8, %s18
      $region32: #{generator_forward.28} parent=27 // pred_fallthru
        _
    $region28: #{generator_forward.28} parent=5 // pred_fallthru
      _
    %p408 = scmp.le.s32.totalorder 2, %s8
    // Predicated region
    $region33: #{generator_forward.28} parent=5 // pred_check
      %p409 = pneg %p408
    $region34: #{generator_forward.28} parent=5 // pred_check_branch
      %411 = sbr.rel (%p409) target = $region36
    $region35: #{generator_forward.28} parent=5 // pred_region
      %s412 = ssub.s32 %s8, 2
      // Predicated region
      $region37: #{generator_forward.28} parent=35 // pred_check
        %p413 = pneg %p105
      $region38: #{generator_forward.28} parent=35 // pred_check_branch
        %415 = sbr.rel (%p413) target = $region40
      $region39: #{generator_forward.28} parent=35 // pred_region
        %s416 = smul.u32 8, %s20
        %p417 = scmp.lt.s32.totalorder %s19, 1
        %s418 = scalar_select %p417, %s19, 1
        %p419 = scmp.lt.s32.totalorder %s416, 7
        %s420 = scalar_select %p419, %s416, 7
        %s421 = smul.addr %s420, 4
        %s422 = smul.addr %s418, 32
        %s423 = sadd.s32 %s421, %s422
        %s424 = smul.addr %s423, 4
        %s425 = scalar_lea.vmem %s2, %s424
      $region40: #{generator_forward.28} parent=35 // pred_fallthru
        _
    $region36: #{generator_forward.28} parent=5 // pred_fallthru
      _
  $region6: #{generator_forward.28} parent=0 // loop_footer
    %s12 = sadd.s32 1, %s8
  $region7: #{generator_forward.28} parent=0 // loop_footer_branch
    %7 = sbr.rel target = $region3
  $region8: #{generator_forward.28} parent=0 // loop_exit
    _

// kernel: generator_forward.27
$region0: #{generator_forward.27}
  #allocation0 [shape = 'u32[]', space=smem, size = 0x4, offset = 0x4, fixed_abs, tag = 'smem constant byte address 0x4 - core index']
  #allocation1 [shape = 'u32[72,128]{1,0:T(1,128)}', space=vmem, size = 0x9000, scoped, tag = 'internal scratch']
  #allocation2 [shape = 'f32[64,512]{1,0:T(8,128)}', space=vmem, size = 0x20000, scoped, tag = 'scratch operand']
  %s0 = inlined_call_operand.vmem [shape: bf16[2,64,128], index: 0, kind: input, shape index: {}]
  %s1 = inlined_call_operand.vmem [shape: bf16[128,512], index: 1, kind: input, shape index: {}]
  %s2 = inlined_call_operand.vmem [shape: f32[2,64,512], index: 2, kind: output, shape index: {0}]
  %s3 = inlined_call_operand.vmem [shape: f32[2,1,2,512], index: 3, kind: output, shape index: {1}]
  %4 = xla_tuple %s2, %s3
  %s5 = sld [smem:[#allocation0]]
  $region57: #{generator_forward.27} parent=0
    _
  %s7 = ssub.s32 1, %s5
  %s8 = scalar_select 0, %s7, %s5
  loop: start=0, step=1, limit=4
  $region2: #{generator_forward.27} parent=0 // loop_pre_header
    _
  $region3: #{generator_forward.27} parent=0 // loop_header
    %s10 = sphi 0, %s14
    %p11 = scmp.ge.s32.totalorder %s10, 4
    %s17 = sphi 0, %s36
    %s18 = sphi 0, %s32
    %s19 = sphi 0, %s28
    %s20 = sphi 0, %s17
    %s21 = sphi 0, %s18
    %s22 = sphi 0, %s19
    %s23 = sphi 0, %s20
    %s24 = sphi 0, %s21
    %s25 = sphi 0, %s22
    %s43 = sphi 0, %s45
    %s46 = sphi 0, %s43
    %s47 = sphi 0, %s46
    %s63 = sphi 0, %s47
    %s69 = sphi 0, %s71
    %s72 = sphi 0, %s69
    %s73 = sphi 0, %s72
    %s89 = sphi 0, %s73
    %s97 = sphi 0, %s99
    %s100 = sphi 0, %s97
    %s101 = sphi 0, %s100
    %s117 = sphi 0, %s101
    %s125 = sphi 0, %s127
    %s128 = sphi 0, %s125
    %s129 = sphi 0, %s128
    %s145 = sphi 0, %s129
  $region4: #{generator_forward.27} parent=0 // loop_header_branch
    %13 = sbr.rel (%p11) target = $region8
  $region5: #{generator_forward.27} parent=0 // loop_body
    %s15 = ssub.s32 %s10, 1
    %s16 = ssub.s32 %s10, 2
    %s26 = sadd.s32 1, %s19
    %p27 = scmp.ge.s32.totalorder %s26, 1
    %s28 = scalar_select %p27, 0, %s26
    %s29 = sadd.s32 1, %s18
    %s30 = scalar_select %p27, %s29, %s18
    %p31 = scmp.ge.s32.totalorder %s30, 1
    %s32 = scalar_select %p31, 0, %s30
    %s33 = sadd.s32 1, %s17
    %s34 = scalar_select %p31, %s33, %s17
    %p35 = scmp.ge.s32.totalorder %s34, 2
    %s36 = scalar_select %p35, 0, %s34
    %s37 = ssub.s32 %s17, %s36
    %s38 = ssub.s32 %s18, %s32
    %s39 = sor.u32 %s37, %s38
    %s40 = ssub.s32 %s19, %s28
    %s41 = sor.u32 %s39, %s40
    %p42 = scmp.eq.s32.totalorder %s41, 0
    %s44 = sadd.s32 %s43, 1
    %s45 = scalar_select %p42, %s43, %s44
    %p48 = pneg %p42
    %p49 = scmp.eq.s32.totalorder %s10, 1
    %p50 = por %p48, %p49
    %p51 = scmp.ne.s32.totalorder %s43, %s46
    %p52 = scmp.eq.s32.totalorder %s10, 0
    %p53 = por %p51, %p52
    %p54 = scmp.ne.s32.totalorder %s43, %s46
    %p55 = scmp.eq.s32.totalorder %s15, 1
    %p56 = por %p54, %p55
    %p57 = scmp.ne.s32.totalorder %s46, %s47
    %p58 = scmp.eq.s32.totalorder %s15, 0
    %p59 = por %p57, %p58
    %p60 = scmp.ne.s32.totalorder %s46, %s47
    %p61 = scmp.eq.s32.totalorder %s16, 1
    %p62 = por %p60, %p61
    %p64 = scmp.ne.s32.totalorder %s47, %s63
    %p65 = scmp.eq.s32.totalorder %s16, 0
    %p66 = por %p64, %p65
    %s67 = ssub.s32 %s19, %s28
    %p68 = scmp.eq.s32.totalorder %s67, 0
    %s70 = sadd.s32 %s69, 1
    %s71 = scalar_select %p68, %s69, %s70
    %p74 = pneg %p68
    %p75 = scmp.eq.s32.totalorder %s10, 1
    %p76 = por %p74, %p75
    %p77 = scmp.ne.s32.totalorder %s69, %s72
    %p78 = scmp.eq.s32.totalorder %s10, 0
    %p79 = por %p77, %p78
    %p80 = scmp.ne.s32.totalorder %s69, %s72
    %p81 = scmp.eq.s32.totalorder %s15, 1
    %p82 = por %p80, %p81
    %p83 = scmp.ne.s32.totalorder %s72, %s73
    %p84 = scmp.eq.s32.totalorder %s15, 0
    %p85 = por %p83, %p84
    %p86 = scmp.ne.s32.totalorder %s72, %s73
    %p87 = scmp.eq.s32.totalorder %s16, 1
    %p88 = por %p86, %p87
    %p90 = scmp.ne.s32.totalorder %s73, %s89
    %p91 = scmp.eq.s32.totalorder %s16, 0
    %p92 = por %p90, %p91
    %s93 = ssub.s32 %s17, %s36
    %s94 = ssub.s32 %s18, %s32
    %s95 = sor.u32 %s93, %s94
    %p96 = scmp.eq.s32.totalorder %s95, 0
    %s98 = sadd.s32 %s97, 1
    %s99 = scalar_select %p96, %s97, %s98
    %p102 = pneg %p96
    %p103 = scmp.eq.s32.totalorder %s10, 1
    %p104 = por %p102, %p103
    %p105 = scmp.ne.s32.totalorder %s97, %s100
    %p106 = scmp.eq.s32.totalorder %s10, 0
    %p107 = por %p105, %p106
    %p108 = scmp.ne.s32.totalorder %s97, %s100
    %p109 = scmp.eq.s32.totalorder %s15, 1
    %p110 = por %p108, %p109
    %p111 = scmp.ne.s32.totalorder %s100, %s101
    %p112 = scmp.eq.s32.totalorder %s15, 0
    %p113 = por %p111, %p112
    %p114 = scmp.ne.s32.totalorder %s100, %s101
    %p115 = scmp.eq.s32.totalorder %s16, 1
    %p116 = por %p114, %p115
    %p118 = scmp.ne.s32.totalorder %s101, %s117
    %p119 = scmp.eq.s32.totalorder %s16, 0
    %p120 = por %p118, %p119
    %s121 = ssub.s32 %s17, %s36
    %s122 = ssub.s32 %s18, %s32
    %s123 = sor.u32 %s121, %s122
    %p124 = scmp.eq.s32.totalorder %s123, 0
    %s126 = sadd.s32 %s125, 1
    %s127 = scalar_select %p124, %s125, %s126
    %p130 = pneg %p124
    %p131 = scmp.eq.s32.totalorder %s10, 1
    %p132 = por %p130, %p131
    %p133 = scmp.ne.s32.totalorder %s125, %s128
    %p134 = scmp.eq.s32.totalorder %s10, 0
    %p135 = por %p133, %p134
    %p136 = scmp.ne.s32.totalorder %s125, %s128
    %p137 = scmp.eq.s32.totalorder %s15, 1
    %p138 = por %p136, %p137
    %p139 = scmp.ne.s32.totalorder %s128, %s129
    %p140 = scmp.eq.s32.totalorder %s15, 0
    %p141 = por %p139, %p140
    %p142 = scmp.ne.s32.totalorder %s128, %s129
    %p143 = scmp.eq.s32.totalorder %s16, 1
    %p144 = por %p142, %p143
    %p146 = scmp.ne.s32.totalorder %s129, %s145
    %p147 = scmp.eq.s32.totalorder %s16, 0
    %p148 = por %p146, %p147
    %p149 = scmp.le.s32.totalorder 1, %s10
    %p150 = scmp.lt.s32.totalorder %s10, 3
    %p151 = pnand %p149, %p150
    %p152 = pneg %p151
    // Predicated region
    $region9: #{generator_forward.27} parent=5 // pred_check
      _
    $region10: #{generator_forward.27} parent=5 // pred_check_branch
      %154 = sbr.rel (%p151) target = $region12
    $region11: #{generator_forward.27} parent=5 // pred_region
      %s155 = ssub.s32 %s10, 1
      // Predicated region
      $region13: #{generator_forward.27} parent=11 // pred_check
        %p156 = pneg %p85
      $region14: #{generator_forward.27} parent=11 // pred_check_branch
        %158 = sbr.rel (%p156) target = $region16
      $region15: #{generator_forward.27} parent=11 // pred_region
        %s159 = smul.u32 16, %s22
        %p160 = scmp.lt.s32.totalorder %s159, 15
        %s161 = scalar_select %p160, %s159, 15
        %s162 = smul.addr %s161, 4
        %s163 = smul.addr %s162, 4
        %s164 = scalar_lea.vmem %s1, %s163
        %s165 = smul.u32 16, %s22
      $region16: #{generator_forward.27} parent=11 // pred_fallthru
        _
    $region12: #{generator_forward.27} parent=5 // pred_fallthru
      _
    %p166 = scmp.lt.s32.totalorder %s10, 2
    // Predicated region
    $region17: #{generator_forward.27} parent=5 // pred_check
      %p167 = pneg %p166
    $region18: #{generator_forward.27} parent=5 // pred_check_branch
      %169 = sbr.rel (%p167) target = $region20
    $region19: #{generator_forward.27} parent=5 // pred_region
      // Predicated region
      $region21: #{generator_forward.27} parent=19 // pred_check
        %p170 = pneg %p53
      $region22: #{generator_forward.27} parent=19 // pred_check_branch
        %172 = sbr.rel (%p170) target = $region24
      $region23: #{generator_forward.27} parent=19 // pred_region
        %s173 = smul.u32 8, %s18
        %p174 = scmp.lt.s32.totalorder %s17, 1
        %s175 = scalar_select %p174, %s17, 1
        %p176 = scmp.lt.s32.totalorder %s173, 7
        %s177 = scalar_select %p176, %s173, 7
        %p178 = scmp.lt.s32.totalorder %s19, 0
        %s179 = scalar_select %p178, %s19, 0
        %s180 = sadd.s32 %s179, %s177
        %s181 = smul.addr %s175, 8
        %s182 = sadd.s32 %s180, %s181
        %s183 = smul.addr %s182, 4
        %s184 = scalar_lea.vmem %s0, %s183
        %s185 = smul.u32 8, %s18
      $region24: #{generator_forward.27} parent=19 // pred_fallthru
        _
    $region20: #{generator_forward.27} parent=5 // pred_fallthru
      _
    %p186 = scmp.le.s32.totalorder 1, %s10
    %p187 = scmp.lt.s32.totalorder %s10, 3
    %p188 = pnand %p186, %p187
    %p189 = pneg %p188
    // Predicated region
    $region25: #{generator_forward.27} parent=5 // pred_check
      _
    $region26: #{generator_forward.27} parent=5 // pred_check_branch
      %191 = sbr.rel (%p188) target = $region28
    $region27: #{generator_forward.27} parent=5 // pred_region
      %s192 = ssub.s32 %s10, 1
      %s193 = smul.u32 8, %s21
      %p194 = scmp.lt.s32.totalorder %s20, 1
      %s195 = scalar_select %p194, %s20, 1
      %p196 = scmp.lt.s32.totalorder %s193, 7
      %s197 = scalar_select %p196, %s193, 7
      %p198 = scmp.lt.s32.totalorder %s22, 0
      %s199 = scalar_select %p198, %s22, 0
      %s200 = sadd.s32 %s199, %s197
      %s201 = smul.addr %s195, 8
      %s202 = sadd.s32 %s200, %s201
      %s203 = smul.addr %s202, 4
      %s204 = scalar_lea.vmem %s0, %s203
      %p205 = pneg %p59
      %p206 = pneg %p56
      %s207 = smul.u32 16, %s22
      %p208 = scmp.lt.s32.totalorder %s207, 15
      %s209 = scalar_select %p208, %s207, 15
      %s210 = smul.addr %s209, 4
      %s211 = smul.addr %s210, 4
      %s212 = scalar_lea.vmem %s1, %s211
      %p213 = pneg %p85
      %p214 = pneg %p82
      %p215 = pneg %p113
      %p216 = pneg %p110
      %s217 = smul.u32 8, %s21
      %p218 = scmp.lt.s32.totalorder %s20, 1
      %s219 = scalar_select %p218, %s20, 1
      %p220 = scmp.lt.s32.totalorder %s217, 7
      %s221 = scalar_select %p220, %s217, 7
      %s222 = smul.addr %s221, 4
      %s223 = smul.addr %s219, 32
      %s224 = sadd.s32 %s222, %s223
      %s225 = smul.addr %s224, 8
      %s226 = scalar_lea.vmem %s2, %s225
      %p227 = pneg %p141
      %p228 = pneg %p138
      %p229 = scmp.lt.s32.totalorder %s20, 1
      %s230 = scalar_select %p229, %s20, 1
      %p231 = scmp.lt.s32.totalorder %s21, 0
      %s232 = scalar_select %p231, %s21, 0
      %s233 = smul.addr %s232, 4
      %s234 = smul.addr %s230, 4
      %s235 = sadd.s32 %s233, %s234
      %s236 = smul.addr %s235, 2
      %s237 = scalar_lea.vmem %s3, %s236
      %s238 = smul.u32 8, %s21
      %p239 = scmp.lt.s32.totalorder %s20, 1
      %s240 = scalar_select %p239, %s20, 1
      %p241 = scmp.lt.s32.totalorder %s238, 7
      %s242 = scalar_select %p241, %s238, 7
      %p243 = scmp.lt.s32.totalorder %s22, 0
      %s244 = scalar_select %p243, %s22, 0
      %s245 = sadd.s32 %s244, %s242
      %s246 = smul.addr %s240, 8
      %s247 = sadd.s32 %s245, %s246
      %s248 = smul.addr %s247, 4
      %s249 = scalar_lea.vmem %s0, %s248
      %s250 = smul.u32 8, %s21
      %s251 = smul.u32 16, %s22
      %p252 = scmp.lt.s32.totalorder %s251, 15
      %s253 = scalar_select %p252, %s251, 15
      %s254 = smul.addr %s253, 4
      %s255 = smul.addr %s254, 4
      %s256 = scalar_lea.vmem %s1, %s255
      %s257 = smul.u32 16, %s22
      %s258 = smul.u32 8, %s21
      %p259 = scmp.lt.s32.totalorder %s20, 1
      %s260 = scalar_select %p259, %s20, 1
      %p261 = scmp.lt.s32.totalorder %s258, 7
      %s262 = scalar_select %p261, %s258, 7
      %s263 = smul.addr %s262, 4
      %s264 = smul.addr %s260, 32
      %s265 = sadd.s32 %s263, %s264
      %s266 = smul.addr %s265, 8
      %s267 = scalar_lea.vmem %s2, %s266
      %s268 = smul.u32 8, %s21
      %p269 = scmp.lt.s32.totalorder %s20, 1
      %s270 = scalar_select %p269, %s20, 1
      %p271 = scmp.lt.s32.totalorder %s21, 0
      %s272 = scalar_select %p271, %s21, 0
      %s273 = smul.addr %s272, 4
      %s274 = smul.addr %s270, 4
      %s275 = sadd.s32 %s273, %s274
      %s276 = smul.addr %s275, 2
      %s277 = scalar_lea.vmem %s3, %s276
      %p278 = scmp.eq.s32.totalorder %s22, 0
      // Predicated region
      $region29: #{generator_forward.27} parent=27 // pred_check
        %p279 = pneg %p278
      $region30: #{generator_forward.27} parent=27 // pred_check_branch
        %281 = sbr.rel (%p279) target = $region32
      $region31: #{generator_forward.27} parent=27 // pred_region
        %282 = vst [vmem:[#allocation2] sm:$0xff] 0.0
        %283 = vst [vmem:[#allocation2 + $0x8] sm:$0xff] 0.0
        %284 = vst [vmem:[#allocation2 + $0x10] sm:$0xff] 0.0
        %285 = vst [vmem:[#allocation2 + $0x18] sm:$0xff] 0.0
        %286 = vst [vmem:[#allocation2 + $0x20] sm:$0xff] 0.0
        %287 = vst [vmem:[#allocation2 + $0x28] sm:$0xff] 0.0
        %288 = vst [vmem:[#allocation2 + $0x30] sm:$0xff] 0.0
        %289 = vst [vmem:[#allocation2 + $0x38] sm:$0xff] 0.0
        %290 = vst [vmem:[#allocation2 + $0x40] sm:$0xff] 0.0
        %291 = vst [vmem:[#allocation2 + $0x48] sm:$0xff] 0.0
        %292 = vst [vmem:[#allocation2 + $0x50] sm:$0xff] 0.0
        %293 = vst [vmem:[#allocation2 + $0x58] sm:$0xff] 0.0
        %294 = vst [vmem:[#allocation2 + $0x60] sm:$0xff] 0.0
        %295 = vst [vmem:[#allocation2 + $0x68] sm:$0xff] 0.0
        %296 = vst [vmem:[#allocation2 + $0x70] sm:$0xff] 0.0
        %297 = vst [vmem:[#allocation2 + $0x78] sm:$0xff] 0.0
        %298 = vst [vmem:[#allocation2 + $0x80] sm:$0xff] 0.0
        %299 = vst [vmem:[#allocation2 + $0x88] sm:$0xff] 0.0
        %300 = vst [vmem:[#allocation2 + $0x90] sm:$0xff] 0.0
        %301 = vst [vmem:[#allocation2 + $0x98] sm:$0xff] 0.0
        %302 = vst [vmem:[#allocation2 + $0xa0] sm:$0xff] 0.0
        %303 = vst [vmem:[#allocation2 + $0xa8] sm:$0xff] 0.0
        %304 = vst [vmem:[#allocation2 + $0xb0] sm:$0xff] 0.0
        %305 = vst [vmem:[#allocation2 + $0xb8] sm:$0xff] 0.0
        %306 = vst [vmem:[#allocation2 + $0xc0] sm:$0xff] 0.0
        %307 = vst [vmem:[#allocation2 + $0xc8] sm:$0xff] 0.0
        %308 = vst [vmem:[#allocation2 + $0xd0] sm:$0xff] 0.0
        %309 = vst [vmem:[#allocation2 + $0xd8] sm:$0xff] 0.0
        %310 = vst [vmem:[#allocation2 + $0xe0] sm:$0xff] 0.0
        %311 = vst [vmem:[#allocation2 + $0xe8] sm:$0xff] 0.0
        %312 = vst [vmem:[#allocation2 + $0xf0] sm:$0xff] 0.0
        %313 = vst [vmem:[#allocation2 + $0xf8] sm:$0xff] 0.0
      $region32: #{generator_forward.27} parent=27 // pred_fallthru
        _
      %v314 = vld [vmem:[#allocation2] sm:$0xff]
      %v315 = vld [vmem:[#allocation2 + $0x8] sm:$0xff]
      %v316 = vld [vmem:[#allocation2 + $0x10] sm:$0xff]
      %v317 = vld [vmem:[#allocation2 + $0x18] sm:$0xff]
      %v318 = vld [vmem:[#allocation2 + $0x20] sm:$0xff]
      %v319 = vld [vmem:[#allocation2 + $0x28] sm:$0xff]
      %v320 = vld [vmem:[#allocation2 + $0x30] sm:$0xff]
      %v321 = vld [vmem:[#allocation2 + $0x38] sm:$0xff]
      %v322 = vld [vmem:[#allocation2 + $0x40] sm:$0xff]
      %v323 = vld [vmem:[#allocation2 + $0x48] sm:$0xff]
      %v324 = vld [vmem:[#allocation2 + $0x50] sm:$0xff]
      %v325 = vld [vmem:[#allocation2 + $0x58] sm:$0xff]
      %v326 = vld [vmem:[#allocation2 + $0x60] sm:$0xff]
      %v327 = vld [vmem:[#allocation2 + $0x68] sm:$0xff]
      %v328 = vld [vmem:[#allocation2 + $0x70] sm:$0xff]
      %v329 = vld [vmem:[#allocation2 + $0x78] sm:$0xff]
      %v330 = vld [vmem:[#allocation2 + $0x80] sm:$0xff]
      %v331 = vld [vmem:[#allocation2 + $0x88] sm:$0xff]
      %v332 = vld [vmem:[#allocation2 + $0x90] sm:$0xff]
      %v333 = vld [vmem:[#allocation2 + $0x98] sm:$0xff]
      %v334 = vld [vmem:[#allocation2 + $0xa0] sm:$0xff]
      %v335 = vld [vmem:[#allocation2 + $0xa8] sm:$0xff]
      %v336 = vld [vmem:[#allocation2 + $0xb0] sm:$0xff]
      %v337 = vld [vmem:[#allocation2 + $0xb8] sm:$0xff]
      %v338 = vld [vmem:[#allocation2 + $0xc0] sm:$0xff]
      %v339 = vld [vmem:[#allocation2 + $0xc8] sm:$0xff]
      %v340 = vld [vmem:[#allocation2 + $0xd0] sm:$0xff]
      %v341 = vld [vmem:[#allocation2 + $0xd8] sm:$0xff]
      %v342 = vld [vmem:[#allocation2 + $0xe0] sm:$0xff]
      %v343 = vld [vmem:[#allocation2 + $0xe8] sm:$0xff]
      %v344 = vld [vmem:[#allocation2 + $0xf0] sm:$0xff]
      %v345 = vld [vmem:[#allocation2 + $0xf8] sm:$0xff]
      %v346 = vld [vmem:[%s249] sm:$0xf]
      %v347 = vld [vmem:[%s249 + $0x4] sm:$0xf]
      %v348 = vld [vmem:[%s249 + $0x8] sm:$0xf]
      %v349 = vld [vmem:[%s249 + $0xc] sm:$0xf]
      %v350 = vld [vmem:[%s249 + $0x10] sm:$0xf]
      %v351 = vld [vmem:[%s249 + $0x14] sm:$0xf]
      %v352 = vld [vmem:[%s249 + $0x18] sm:$0xf]
      %v353 = vld [vmem:[%s249 + $0x1c] sm:$0xf]
      %v354 = vld [vmem:[%s256] sm:$0xff]
      %v355 = vld [vmem:[%s256 + $0x8] sm:$0xff]
      %v356 = vld [vmem:[%s256 + $0x10] sm:$0xff]
      %v357 = vld [vmem:[%s256 + $0x18] sm:$0xff]
      %v358 = vld [vmem:[%s256 + $0x20] sm:$0xff]
      %v359 = vld [vmem:[%s256 + $0x28] sm:$0xff]
      %v360 = vld [vmem:[%s256 + $0x30] sm:$0xff]
      %v361 = vld [vmem:[%s256 + $0x38] sm:$0xff]
      %v362 = vld [vmem:[%s256 + $0x40] sm:$0xff]
      %v363 = vld [vmem:[%s256 + $0x48] sm:$0xff]
      %v364 = vld [vmem:[%s256 + $0x50] sm:$0xff]
      %v365 = vld [vmem:[%s256 + $0x58] sm:$0xff]
      %v366 = vld [vmem:[%s256 + $0x60] sm:$0xff]
      %v367 = vld [vmem:[%s256 + $0x68] sm:$0xff]
      %v368 = vld [vmem:[%s256 + $0x70] sm:$0xff]
      %v369 = vld [vmem:[%s256 + $0x78] sm:$0xff]
      %v370 = vld [vmem:[%s256 + $0x80] sm:$0xff]
      %v371 = vld [vmem:[%s256 + $0x88] sm:$0xff]
      %v372 = vld [vmem:[%s256 + $0x90] sm:$0xff]
      %v373 = vld [vmem:[%s256 + $0x98] sm:$0xff]
      %v374 = vld [vmem:[%s256 + $0xa0] sm:$0xff]
      %v375 = vld [vmem:[%s256 + $0xa8] sm:$0xff]
      %v376 = vld [vmem:[%s256 + $0xb0] sm:$0xff]
      %v377 = vld [vmem:[%s256 + $0xb8] sm:$0xff]
      %v378 = vld [vmem:[%s256 + $0xc0] sm:$0xff]
      %v379 = vld [vmem:[%s256 + $0xc8] sm:$0xff]
      %v380 = vld [vmem:[%s256 + $0xd0] sm:$0xff]
      %v381 = vld [vmem:[%s256 + $0xd8] sm:$0xff]
      %v382 = vld [vmem:[%s256 + $0xe0] sm:$0xff]
      %v383 = vld [vmem:[%s256 + $0xe8] sm:$0xff]
      %v384 = vld [vmem:[%s256 + $0xf0] sm:$0xff]
      %v385 = vld [vmem:[%s256 + $0xf8] sm:$0xff]
      %v394 = vunpack.c.l.b16 %v346
      %v395 = vunpack.c.l.b16 %v347
      %v396 = vunpack.c.l.b16 %v348
      %v397 = vunpack.c.l.b16 %v349
      %v398 = vunpack.c.l.b16 %v350
      %v399 = vunpack.c.l.b16 %v351
      %v400 = vunpack.c.l.b16 %v352
      %v401 = vunpack.c.l.b16 %v353
      %v402 = vpack.c.b16 %v395, %v394
      %v403 = vpack.c.b16 %v397, %v396
      %v404 = vpack.c.b16 %v399, %v398
      %v405 = vpack.c.b16 %v401, %v400
      %v442 = vunpack.c.l.b16 %v354
      %v443 = vunpack.c.h.b16 %v354
      %v444 = vunpack.c.l.b16 %v355
      %v445 = vunpack.c.h.b16 %v355
      %v446 = vunpack.c.l.b16 %v356
      %v447 = vunpack.c.h.b16 %v356
      %v448 = vunpack.c.l.b16 %v357
      %v449 = vunpack.c.h.b16 %v357
      %v450 = vunpack.c.l.b16 %v358
      %v451 = vunpack.c.h.b16 %v358
      %v452 = vunpack.c.l.b16 %v359
      %v453 = vunpack.c.h.b16 %v359
      %v454 = vunpack.c.l.b16 %v360
      %v455 = vunpack.c.h.b16 %v360
      %v456 = vunpack.c.l.b16 %v361
      %v457 = vunpack.c.h.b16 %v361
      %v458 = vunpack.c.l.b16 %v362
      %v459 = vunpack.c.h.b16 %v362
      %v460 = vunpack.c.l.b16 %v363
      %v461 = vunpack.c.h.b16 %v363
      %v462 = vunpack.c.l.b16 %v364
      %v463 = vunpack.c.h.b16 %v364
      %v464 = vunpack.c.l.b16 %v365
      %v465 = vunpack.c.h.b16 %v365
      %v466 = vunpack.c.l.b16 %v366
      %v467 = vunpack.c.h.b16 %v366
      %v468 = vunpack.c.l.b16 %v367
      %v469 = vunpack.c.h.b16 %v367
      %v470 = vunpack.c.l.b16 %v368
      %v471 = vunpack.c.h.b16 %v368
      %v472 = vunpack.c.l.b16 %v369
      %v473 = vunpack.c.h.b16 %v369
      %v474 = vunpack.c.l.b16 %v370
      %v475 = vunpack.c.h.b16 %v370
      %v476 = vunpack.c.l.b16 %v371
      %v477 = vunpack.c.h.b16 %v371
      %v478 = vunpack.c.l.b16 %v372
      %v479 = vunpack.c.h.b16 %v372
      %v480 = vunpack.c.l.b16 %v373
      %v481 = vunpack.c.h.b16 %v373
      %v482 = vunpack.c.l.b16 %v374
      %v483 = vunpack.c.h.b16 %v374
      %v484 = vunpack.c.l.b16 %v375
      %v485 = vunpack.c.h.b16 %v375
      %v486 = vunpack.c.l.b16 %v376
      %v487 = vunpack.c.h.b16 %v376
      %v488 = vunpack.c.l.b16 %v377
      %v489 = vunpack.c.h.b16 %v377
      %v490 = vunpack.c.l.b16 %v378
      %v491 = vunpack.c.h.b16 %v378
      %v492 = vunpack.c.l.b16 %v379
      %v493 = vunpack.c.h.b16 %v379
      %v494 = vunpack.c.l.b16 %v380
      %v495 = vunpack.c.h.b16 %v380
      %v496 = vunpack.c.l.b16 %v381
      %v497 = vunpack.c.h.b16 %v381
      %v498 = vunpack.c.l.b16 %v382
      %v499 = vunpack.c.h.b16 %v382
      %v500 = vunpack.c.l.b16 %v383
      %v501 = vunpack.c.h.b16 %v383
      %v502 = vunpack.c.l.b16 %v384
      %v503 = vunpack.c.h.b16 %v384
      %v504 = vunpack.c.l.b16 %v385
      %v505 = vunpack.c.h.b16 %v385
      %v506 = vpack.c.b16 %v446, %v442
      %v507 = vpack.c.b16 %v447, %v443
      %v508 = vpack.c.b16 %v448, %v444
      %v509 = vpack.c.b16 %v449, %v445
      %v510 = vpack.c.b16 %v454, %v450
      %v511 = vpack.c.b16 %v455, %v451
      %v512 = vpack.c.b16 %v456, %v452
      %v513 = vpack.c.b16 %v457, %v453
      %v514 = vpack.c.b16 %v462, %v458
      %v515 = vpack.c.b16 %v463, %v459
      %v516 = vpack.c.b16 %v464, %v460
      %v517 = vpack.c.b16 %v465, %v461
      %v518 = vpack.c.b16 %v470, %v466
      %v519 = vpack.c.b16 %v471, %v467
      %v520 = vpack.c.b16 %v472, %v468
      %v521 = vpack.c.b16 %v473, %v469
      %v522 = vpack.c.b16 %v478, %v474
      %v523 = vpack.c.b16 %v479, %v475
      %v524 = vpack.c.b16 %v480, %v476
      %v525 = vpack.c.b16 %v481, %v477
      %v526 = vpack.c.b16 %v486, %v482
      %v527 = vpack.c.b16 %v487, %v483
      %v528 = vpack.c.b16 %v488, %v484
      %v529 = vpack.c.b16 %v489, %v485
      %v530 = vpack.c.b16 %v494, %v490
      %v531 = vpack.c.b16 %v495, %v491
      %v532 = vpack.c.b16 %v496, %v492
      %v533 = vpack.c.b16 %v497, %v493
      %v534 = vpack.c.b16 %v502, %v498
      %v535 = vpack.c.b16 %v503, %v499
      %v536 = vpack.c.b16 %v504, %v500
      %v537 = vpack.c.b16 %v505, %v501
      %570 = vmatpush.bf16.msra.mxu0 %v534
      %571 = vmatpush.bf16.msra.mxu0 %v530
      %572 = vmatpush.bf16.msra.mxu0 %v526
      %573 = vmatpush.bf16.msra.mxu0 %v522
      %574 = vmatpush.bf16.msra.mxu0 %v518
      %575 = vmatpush.bf16.msra.mxu0 %v514
      %576 = vmatpush.bf16.msra.mxu0 %v510
      %577 = vmatpush.bf16.msra.mxu0 %v506
      %578 = vmatmul.bf16.gmra.mxu0 %v402
      %v579 = vpop.f32.mrf.mxu0
      %v580 = vadd.f32 0.0, %v579
      %v581 = vpop.f32.mrf.mxu0
      %v582 = vadd.f32 0.0, %v581
      %583 = vmatmul.bf16.gmra.mxu0 %v403
      %v584 = vpop.f32.mrf.mxu0
      %v585 = vadd.f32 0.0, %v584
      %v586 = vpop.f32.mrf.mxu0
      %v587 = vadd.f32 0.0, %v586
      %588 = vmatmul.bf16.gmra.mxu0 %v404
      %v589 = vpop.f32.mrf.mxu0
      %v590 = vadd.f32 0.0, %v589
      %v591 = vpop.f32.mrf.mxu0
      %v592 = vadd.f32 0.0, %v591
      %593 = vmatmul.bf16.gmra.mxu0 %v405
      %v594 = vpop.f32.mrf.mxu0
      %v595 = vadd.f32 0.0, %v594
      %v596 = vpop.f32.mrf.mxu0
      %v597 = vadd.f32 0.0, %v596
      %598 = vdwg.mxu0
      %599 = vmatpush.bf16.msra.mxu0 %v535
      %600 = vmatpush.bf16.msra.mxu0 %v531
      %601 = vmatpush.bf16.msra.mxu0 %v527
      %602 = vmatpush.bf16.msra.mxu0 %v523
      %603 = vmatpush.bf16.msra.mxu0 %v519
      %604 = vmatpush.bf16.msra.mxu0 %v515
      %605 = vmatpush.bf16.msra.mxu0 %v511
      %606 = vmatpush.bf16.msra.mxu0 %v507
      %607 = vmatmul.bf16.gmra.mxu0 %v402
      %v608 = vpop.f32.mrf.mxu0
      %v609 = vadd.f32 0.0, %v608
      %v610 = vpop.f32.mrf.mxu0
      %v611 = vadd.f32 0.0, %v610
      %612 = vmatmul.bf16.gmra.mxu0 %v403
      %v613 = vpop.f32.mrf.mxu0
      %v614 = vadd.f32 0.0, %v613
      %v615 = vpop.f32.mrf.mxu0
      %v616 = vadd.f32 0.0, %v615
      %617 = vmatmul.bf16.gmra.mxu0 %v404
      %v618 = vpop.f32.mrf.mxu0
      %v619 = vadd.f32 0.0, %v618
      %v620 = vpop.f32.mrf.mxu0
      %v621 = vadd.f32 0.0, %v620
      %622 = vmatmul.bf16.gmra.mxu0 %v405
      %v623 = vpop.f32.mrf.mxu0
      %v624 = vadd.f32 0.0, %v623
      %v625 = vpop.f32.mrf.mxu0
      %v626 = vadd.f32 0.0, %v625
      %627 = vdwg.mxu0
      %628 = vmatpush.bf16.msra.mxu0 %v536
      %629 = vmatpush.bf16.msra.mxu0 %v532
      %630 = vmatpush.bf16.msra.mxu0 %v528
      %631 = vmatpush.bf16.msra.mxu0 %v524
      %632 = vmatpush.bf16.msra.mxu0 %v520
      %633 = vmatpush.bf16.msra.mxu0 %v516
      %634 = vmatpush.bf16.msra.mxu0 %v512
      %635 = vmatpush.bf16.msra.mxu0 %v508
      %636 = vmatmul.bf16.gmra.mxu0 %v402
      %v637 = vpop.f32.mrf.mxu0
      %v638 = vadd.f32 0.0, %v637
      %v639 = vpop.f32.mrf.mxu0
      %v640 = vadd.f32 0.0, %v639
      %641 = vmatmul.bf16.gmra.mxu0 %v403
      %v642 = vpop.f32.mrf.mxu0
      %v643 = vadd.f32 0.0, %v642
      %v644 = vpop.f32.mrf.mxu0
      %v645 = vadd.f32 0.0, %v644
      %646 = vmatmul.bf16.gmra.mxu0 %v404
      %v647 = vpop.f32.mrf.mxu0
      %v648 = vadd.f32 0.0, %v647
      %v649 = vpop.f32.mrf.mxu0
      %v650 = vadd.f32 0.0, %v649
      %651 = vmatmul.bf16.gmra.mxu0 %v405
      %v652 = vpop.f32.mrf.mxu0
      %v653 = vadd.f32 0.0, %v652
      %v654 = vpop.f32.mrf.mxu0
      %v655 = vadd.f32 0.0, %v654
      %656 = vdwg.mxu0
      %657 = vmatpush.bf16.msra.mxu0 %v537
      %658 = vmatpush.bf16.msra.mxu0 %v533
      %659 = vmatpush.bf16.msra.mxu0 %v529
      %660 = vmatpush.bf16.msra.mxu0 %v525
      %661 = vmatpush.bf16.msra.mxu0 %v521
      %662 = vmatpush.bf16.msra.mxu0 %v517
      %663 = vmatpush.bf16.msra.mxu0 %v513
      %664 = vmatpush.bf16.msra.mxu0 %v509
      %665 = vmatmul.bf16.gmra.mxu0 %v402
      %v666 = vpop.f32.mrf.mxu0
      %v667 = vadd.f32 0.0, %v666
      %v668 = vpop.f32.mrf.mxu0
      %v669 = vadd.f32 0.0, %v668
      %670 = vmatmul.bf16.gmra.mxu0 %v403
      %v671 = vpop.f32.mrf.mxu0
      %v672 = vadd.f32 0.0, %v671
      %v673 = vpop.f32.mrf.mxu0
      %v674 = vadd.f32 0.0, %v673
      %675 = vmatmul.bf16.gmra.mxu0 %v404
      %v676 = vpop.f32.mrf.mxu0
      %v677 = vadd.f32 0.0, %v676
      %v678 = vpop.f32.mrf.mxu0
      %v679 = vadd.f32 0.0, %v678
      %680 = vmatmul.bf16.gmra.mxu0 %v405
      %v681 = vpop.f32.mrf.mxu0
      %v682 = vadd.f32 0.0, %v681
      %v683 = vpop.f32.mrf.mxu0
      %v684 = vadd.f32 0.0, %v683
      %685 = vdwg.mxu0
      %v686 = vadd.f32 %v314, %v580
      %v687 = vadd.f32 %v315, %v609
      %v688 = vadd.f32 %v316, %v638
      %v689 = vadd.f32 %v317, %v667
      %v690 = vadd.f32 %v318, %v582
      %v691 = vadd.f32 %v319, %v611
      %v692 = vadd.f32 %v320, %v640
      %v693 = vadd.f32 %v321, %v669
      %v694 = vadd.f32 %v322, %v585
      %v695 = vadd.f32 %v323, %v614
      %v696 = vadd.f32 %v324, %v643
      %v697 = vadd.f32 %v325, %v672
      %v698 = vadd.f32 %v326, %v587
      %v699 = vadd.f32 %v327, %v616
      %v700 = vadd.f32 %v328, %v645
      %v701 = vadd.f32 %v329, %v674
      %v702 = vadd.f32 %v330, %v590
      %v703 = vadd.f32 %v331, %v619
      %v704 = vadd.f32 %v332, %v648
      %v705 = vadd.f32 %v333, %v677
      %v706 = vadd.f32 %v334, %v592
      %v707 = vadd.f32 %v335, %v621
      %v708 = vadd.f32 %v336, %v650
      %v709 = vadd.f32 %v337, %v679
      %v710 = vadd.f32 %v338, %v595
      %v711 = vadd.f32 %v339, %v624
      %v712 = vadd.f32 %v340, %v653
      %v713 = vadd.f32 %v341, %v682
      %v714 = vadd.f32 %v342, %v597
      %v715 = vadd.f32 %v343, %v626
      %v716 = vadd.f32 %v344, %v655
      %v717 = vadd.f32 %v345, %v684
      %718 = vst [vmem:[#allocation2] sm:$0xff] %v686
      %719 = vst [vmem:[#allocation2 + $0x8] sm:$0xff] %v687
      %720 = vst [vmem:[#allocation2 + $0x10] sm:$0xff] %v688
      %721 = vst [vmem:[#allocation2 + $0x18] sm:$0xff] %v689
      %722 = vst [vmem:[#allocation2 + $0x20] sm:$0xff] %v690
      %723 = vst [vmem:[#allocation2 + $0x28] sm:$0xff] %v691
      %724 = vst [vmem:[#allocation2 + $0x30] sm:$0xff] %v692
      %725 = vst [vmem:[#allocation2 + $0x38] sm:$0xff] %v693
      %726 = vst [vmem:[#allocation2 + $0x40] sm:$0xff] %v694
      %727 = vst [vmem:[#allocation2 + $0x48] sm:$0xff] %v695
      %728 = vst [vmem:[#allocation2 + $0x50] sm:$0xff] %v696
      %729 = vst [vmem:[#allocation2 + $0x58] sm:$0xff] %v697
      %730 = vst [vmem:[#allocation2 + $0x60] sm:$0xff] %v698
      %731 = vst [vmem:[#allocation2 + $0x68] sm:$0xff] %v699
      %732 = vst [vmem:[#allocation2 + $0x70] sm:$0xff] %v700
      %733 = vst [vmem:[#allocation2 + $0x78] sm:$0xff] %v701
      %734 = vst [vmem:[#allocation2 + $0x80] sm:$0xff] %v702
      %735 = vst [vmem:[#allocation2 + $0x88] sm:$0xff] %v703
      %736 = vst [vmem:[#allocation2 + $0x90] sm:$0xff] %v704
      %737 = vst [vmem:[#allocation2 + $0x98] sm:$0xff] %v705
      %738 = vst [vmem:[#allocation2 + $0xa0] sm:$0xff] %v706
      %739 = vst [vmem:[#allocation2 + $0xa8] sm:$0xff] %v707
      %740 = vst [vmem:[#allocation2 + $0xb0] sm:$0xff] %v708
      %741 = vst [vmem:[#allocation2 + $0xb8] sm:$0xff] %v709
      %742 = vst [vmem:[#allocation2 + $0xc0] sm:$0xff] %v710
      %743 = vst [vmem:[#allocation2 + $0xc8] sm:$0xff] %v711
      %744 = vst [vmem:[#allocation2 + $0xd0] sm:$0xff] %v712
      %745 = vst [vmem:[#allocation2 + $0xd8] sm:$0xff] %v713
      %746 = vst [vmem:[#allocation2 + $0xe0] sm:$0xff] %v714
      %747 = vst [vmem:[#allocation2 + $0xe8] sm:$0xff] %v715
      %748 = vst [vmem:[#allocation2 + $0xf0] sm:$0xff] %v716
      %749 = vst [vmem:[#allocation2 + $0xf8] sm:$0xff] %v717
      // Predicated region
      $region33: #{generator_forward.27} parent=27 // pred_check
        %p750 = pneg %p278
      $region34: #{generator_forward.27} parent=27 // pred_check_branch
        %752 = sbr.rel (%p750) target = $region36
      $region35: #{generator_forward.27} parent=27 // pred_region
        %v753 = vld [vmem:[#allocation2] sm:$0xff]
        %v754 = vld [vmem:[#allocation2 + $0x8] sm:$0xff]
        %v755 = vld [vmem:[#allocation2 + $0x10] sm:$0xff]
        %v756 = vld [vmem:[#allocation2 + $0x18] sm:$0xff]
        %v757 = vld [vmem:[#allocation2 + $0x20] sm:$0xff]
        %v758 = vld [vmem:[#allocation2 + $0x28] sm:$0xff]
        %v759 = vld [vmem:[#allocation2 + $0x30] sm:$0xff]
        %v760 = vld [vmem:[#allocation2 + $0x38] sm:$0xff]
        %v761 = vld [vmem:[#allocation2 + $0x40] sm:$0xff]
        %v762 = vld [vmem:[#allocation2 + $0x48] sm:$0xff]
        %v763 = vld [vmem:[#allocation2 + $0x50] sm:$0xff]
        %v764 = vld [vmem:[#allocation2 + $0x58] sm:$0xff]
        %v765 = vld [vmem:[#allocation2 + $0x60] sm:$0xff]
        %v766 = vld [vmem:[#allocation2 + $0x68] sm:$0xff]
        %v767 = vld [vmem:[#allocation2 + $0x70] sm:$0xff]
        %v768 = vld [vmem:[#allocation2 + $0x78] sm:$0xff]
        %v769 = vld [vmem:[#allocation2 + $0x80] sm:$0xff]
        %v770 = vld [vmem:[#allocation2 + $0x88] sm:$0xff]
        %v771 = vld [vmem:[#allocation2 + $0x90] sm:$0xff]
        %v772 = vld [vmem:[#allocation2 + $0x98] sm:$0xff]
        %v773 = vld [vmem:[#allocation2 + $0xa0] sm:$0xff]
        %v774 = vld [vmem:[#allocation2 + $0xa8] sm:$0xff]
        %v775 = vld [vmem:[#allocation2 + $0xb0] sm:$0xff]
        %v776 = vld [vmem:[#allocation2 + $0xb8] sm:$0xff]
        %v777 = vld [vmem:[#allocation2 + $0xc0] sm:$0xff]
        %v778 = vld [vmem:[#allocation2 + $0xc8] sm:$0xff]
        %v779 = vld [vmem:[#allocation2 + $0xd0] sm:$0xff]
        %v780 = vld [vmem:[#allocation2 + $0xd8] sm:$0xff]
        %v781 = vld [vmem:[#allocation2 + $0xe0] sm:$0xff]
        %v782 = vld [vmem:[#allocation2 + $0xe8] sm:$0xff]
        %v783 = vld [vmem:[#allocation2 + $0xf0] sm:$0xff]
        %v784 = vld [vmem:[#allocation2 + $0xf8] sm:$0xff]
        %785 = vst [vmem:[%s267] sm:$0xff] %v753
        %786 = vst [vmem:[%s267 + $0x8] sm:$0xff] %v754
        %787 = vst [vmem:[%s267 + $0x10] sm:$0xff] %v755
        %788 = vst [vmem:[%s267 + $0x18] sm:$0xff] %v756
        %789 = vst [vmem:[%s267 + $0x20] sm:$0xff] %v757
        %790 = vst [vmem:[%s267 + $0x28] sm:$0xff] %v758
        %791 = vst [vmem:[%s267 + $0x30] sm:$0xff] %v759
        %792 = vst [vmem:[%s267 + $0x38] sm:$0xff] %v760
        %793 = vst [vmem:[%s267 + $0x40] sm:$0xff] %v761
        %794 = vst [vmem:[%s267 + $0x48] sm:$0xff] %v762
        %795 = vst [vmem:[%s267 + $0x50] sm:$0xff] %v763
        %796 = vst [vmem:[%s267 + $0x58] sm:$0xff] %v764
        %797 = vst [vmem:[%s267 + $0x60] sm:$0xff] %v765
        %798 = vst [vmem:[%s267 + $0x68] sm:$0xff] %v766
        %799 = vst [vmem:[%s267 + $0x70] sm:$0xff] %v767
        %800 = vst [vmem:[%s267 + $0x78] sm:$0xff] %v768
        %801 = vst [vmem:[%s267 + $0x80] sm:$0xff] %v769
        %802 = vst [vmem:[%s267 + $0x88] sm:$0xff] %v770
        %803 = vst [vmem:[%s267 + $0x90] sm:$0xff] %v771
        %804 = vst [vmem:[%s267 + $0x98] sm:$0xff] %v772
        %805 = vst [vmem:[%s267 + $0xa0] sm:$0xff] %v773
        %806 = vst [vmem:[%s267 + $0xa8] sm:$0xff] %v774
        %807 = vst [vmem:[%s267 + $0xb0] sm:$0xff] %v775
        %808 = vst [vmem:[%s267 + $0xb8] sm:$0xff] %v776
        %809 = vst [vmem:[%s267 + $0xc0] sm:$0xff] %v777
        %810 = vst [vmem:[%s267 + $0xc8] sm:$0xff] %v778
        %811 = vst [vmem:[%s267 + $0xd0] sm:$0xff] %v779
        %812 = vst [vmem:[%s267 + $0xd8] sm:$0xff] %v780
        %813 = vst [vmem:[%s267 + $0xe0] sm:$0xff] %v781
        %814 = vst [vmem:[%s267 + $0xe8] sm:$0xff] %v782
        %815 = vst [vmem:[%s267 + $0xf0] sm:$0xff] %v783
        %816 = vst [vmem:[%s267 + $0xf8] sm:$0xff] %v784
        %v817 = vadd.f32 %v753, %v757
        %v818 = vadd.f32 %v817, %v761
        %v819 = vadd.f32 %v818, %v765
        %v820 = vadd.f32 %v819, %v769
        %v821 = vadd.f32 %v820, %v773
        %v822 = vadd.f32 %v821, %v777
        %v823 = vadd.f32 %v822, %v781
        %v824 = vrot.slane %v823, 4
        %v825 = vadd.f32 %v823, %v824
        %v826 = vrot.slane %v825, 2
        %v827 = vadd.f32 %v825, %v826
        %v828 = vrot.slane %v827, 1
        %v829 = vadd.f32 %v827, %v828
        %v830 = vadd.f32 %v754, %v758
        %v831 = vadd.f32 %v830, %v762
        %v832 = vadd.f32 %v831, %v766
        %v833 = vadd.f32 %v832, %v770
        %v834 = vadd.f32 %v833, %v774
        %v835 = vadd.f32 %v834, %v778
        %v836 = vadd.f32 %v835, %v782
        %v837 = vrot.slane %v836, 4
        %v838 = vadd.f32 %v836, %v837
        %v839 = vrot.slane %v838, 2
        %v840 = vadd.f32 %v838, %v839
        %v841 = vrot.slane %v840, 1
        %v842 = vadd.f32 %v840, %v841
        %v843 = vadd.f32 %v755, %v759
        %v844 = vadd.f32 %v843, %v763
        %v845 = vadd.f32 %v844, %v767
        %v846 = vadd.f32 %v845, %v771
        %v847 = vadd.f32 %v846, %v775
        %v848 = vadd.f32 %v847, %v779
        %v849 = vadd.f32 %v848, %v783
        %v850 = vrot.slane %v849, 4
        %v851 = vadd.f32 %v849, %v850
        %v852 = vrot.slane %v851, 2
        %v853 = vadd.f32 %v851, %v852
        %v854 = vrot.slane %v853, 1
        %v855 = vadd.f32 %v853, %v854
        %v856 = vadd.f32 %v756, %v760
        %v857 = vadd.f32 %v856, %v764
        %v858 = vadd.f32 %v857, %v768
        %v859 = vadd.f32 %v858, %v772
        %v860 = vadd.f32 %v859, %v776
        %v861 = vadd.f32 %v860, %v780
        %v862 = vadd.f32 %v861, %v784
        %v863 = vrot.slane %v862, 4
        %v864 = vadd.f32 %v862, %v863
        %v865 = vrot.slane %v864, 2
        %v866 = vadd.f32 %v864, %v865
        %v867 = vrot.slane %v866, 1
        %v868 = vadd.f32 %v866, %v867
        %v869 = vmul.f32 %v753, %v753
        %v870 = vmul.f32 %v754, %v754
        %v871 = vmul.f32 %v755, %v755
        %v872 = vmul.f32 %v756, %v756
        %v873 = vmul.f32 %v757, %v757
        %v874 = vmul.f32 %v758, %v758
        %v875 = vmul.f32 %v759, %v759
        %v876 = vmul.f32 %v760, %v760
        %v877 = vmul.f32 %v761, %v761
        %v878 = vmul.f32 %v762, %v762
        %v879 = vmul.f32 %v763, %v763
        %v880 = vmul.f32 %v764, %v764
        %v881 = vmul.f32 %v765, %v765
        %v882 = vmul.f32 %v766, %v766
        %v883 = vmul.f32 %v767, %v767
        %v884 = vmul.f32 %v768, %v768
        %v885 = vmul.f32 %v769, %v769
        %v886 = vmul.f32 %v770, %v770
        %v887 = vmul.f32 %v771, %v771
        %v888 = vmul.f32 %v772, %v772
        %v889 = vmul.f32 %v773, %v773
        %v890 = vmul.f32 %v774, %v774
        %v891 = vmul.f32 %v775, %v775
        %v892 = vmul.f32 %v776, %v776
        %v893 = vmul.f32 %v777, %v777
        %v894 = vmul.f32 %v778, %v778
        %v895 = vmul.f32 %v779, %v779
        %v896 = vmul.f32 %v780, %v780
        %v897 = vmul.f32 %v781, %v781
        %v898 = vmul.f32 %v782, %v782
        %v899 = vmul.f32 %v783, %v783
        %v900 = vmul.f32 %v784, %v784
        %v901 = vadd.f32 %v869, %v873
        %v902 = vadd.f32 %v901, %v877
        %v903 = vadd.f32 %v902, %v881
        %v904 = vadd.f32 %v903, %v885
        %v905 = vadd.f32 %v904, %v889
        %v906 = vadd.f32 %v905, %v893
        %v907 = vadd.f32 %v906, %v897
        %v908 = vrot.slane %v907, 4
        %v909 = vadd.f32 %v907, %v908
        %v910 = vrot.slane %v909, 2
        %v911 = vadd.f32 %v909, %v910
        %v912 = vrot.slane %v911, 1
        %v913 = vadd.f32 %v911, %v912
        %v914 = vadd.f32 %v870, %v874
        %v915 = vadd.f32 %v914, %v878
        %v916 = vadd.f32 %v915, %v882
        %v917 = vadd.f32 %v916, %v886
        %v918 = vadd.f32 %v917, %v890
        %v919 = vadd.f32 %v918, %v894
        %v920 = vadd.f32 %v919, %v898
        %v921 = vrot.slane %v920, 4
        %v922 = vadd.f32 %v920, %v921
        %v923 = vrot.slane %v922, 2
        %v924 = vadd.f32 %v922, %v923
        %v925 = vrot.slane %v924, 1
        %v926 = vadd.f32 %v924, %v925
        %v927 = vadd.f32 %v871, %v875
        %v928 = vadd.f32 %v927, %v879
        %v929 = vadd.f32 %v928, %v883
        %v930 = vadd.f32 %v929, %v887
        %v931 = vadd.f32 %v930, %v891
        %v932 = vadd.f32 %v931, %v895
        %v933 = vadd.f32 %v932, %v899
        %v934 = vrot.slane %v933, 4
        %v935 = vadd.f32 %v933, %v934
        %v936 = vrot.slane %v935, 2
        %v937 = vadd.f32 %v935, %v936
        %v938 = vrot.slane %v937, 1
        %v939 = vadd.f32 %v937, %v938
        %v940 = vadd.f32 %v872, %v876
        %v941 = vadd.f32 %v940, %v880
        %v942 = vadd.f32 %v941, %v884
        %v943 = vadd.f32 %v942, %v888
        %v944 = vadd.f32 %v943, %v892
        %v945 = vadd.f32 %v944, %v896
        %v946 = vadd.f32 %v945, %v900
        %v947 = vrot.slane %v946, 4
        %v948 = vadd.f32 %v946, %v947
        %v949 = vrot.slane %v948, 2
        %v950 = vadd.f32 %v948, %v949
        %v951 = vrot.slane %v950, 1
        %v952 = vadd.f32 %v950, %v951
        %vm953 = vcmask 1040384
        %v954 = vsel %vm953, %v829, %v913
        %v955 = vsel %vm953, %v842, %v926
        %v956 = vsel %vm953, %v855, %v939
        %v957 = vsel %vm953, %v868, %v952
        %v962 = vrot.slane %v955, 6
        %v963 = vrot.slane %v956, 4
        %v964 = vrot.slane %v957, 2
        %vm965 = vcmask 1041408
        %v966 = vsel %vm965, %v954, %v962
        %vm967 = vcmask 1045508
        %v968 = vsel %vm967, %v963, %v964
        %vm969 = vcmask 1043456
        %v970 = vsel %vm969, %v966, %v968
        %972 = vst [vmem:[%s277] sm:$0xff] %v970
      $region36: #{generator_forward.27} parent=27 // pred_fallthru
        _
      %s973 = smul.u32 8, %s21
      %p974 = scmp.lt.s32.totalorder %s20, 1
      %s975 = scalar_select %p974, %s20, 1
      %p976 = scmp.lt.s32.totalorder %s973, 7
      %s977 = scalar_select %p976, %s973, 7
      %s978 = smul.addr %s977, 4
      %s979 = smul.addr %s975, 32
      %s980 = sadd.s32 %s978, %s979
      %s981 = smul.addr %s980, 8
      %s982 = scalar_lea.vmem %s2, %s981
      %p983 = scmp.lt.s32.totalorder %s20, 1
      %s984 = scalar_select %p983, %s20, 1
      %p985 = scmp.lt.s32.totalorder %s21, 0
      %s986 = scalar_select %p985, %s21, 0
      %s987 = smul.addr %s986, 4
      %s988 = smul.addr %s984, 4
      %s989 = sadd.s32 %s987, %s988
      %s990 = smul.addr %s989, 2
      %s991 = scalar_lea.vmem %s3, %s990
      // Predicated region
      $region37: #{generator_forward.27} parent=27 // pred_check
        %p992 = pneg %p110
      $region38: #{generator_forward.27} parent=27 // pred_check_branch
        %994 = sbr.rel (%p992) target = $region40
      $region39: #{generator_forward.27} parent=27 // pred_region
        %s995 = smul.u32 8, %s21
      $region40: #{generator_forward.27} parent=27 // pred_fallthru
        _
      // Predicated region
      $region41: #{generator_forward.27} parent=27 // pred_check
        %p996 = pneg %p138
      $region42: #{generator_forward.27} parent=27 // pred_check_branch
        %998 = sbr.rel (%p996) target = $region44
      $region43: #{generator_forward.27} parent=27 // pred_region
        _
      $region44: #{generator_forward.27} parent=27 // pred_fallthru
        _
    $region28: #{generator_forward.27} parent=5 // pred_fallthru
      _
    %p999 = scmp.le.s32.totalorder 2, %s10
    // Predicated region
    $region45: #{generator_forward.27} parent=5 // pred_check
      %p1000 = pneg %p999
    $region46: #{generator_forward.27} parent=5 // pred_check_branch
      %1002 = sbr.rel (%p1000) target = $region48
    $region47: #{generator_forward.27} parent=5 // pred_region
      %s1003 = ssub.s32 %s10, 2
      // Predicated region
      $region49: #{generator_forward.27} parent=47 // pred_check
        %p1004 = pneg %p116
      $region50: #{generator_forward.27} parent=47 // pred_check_branch
        %1006 = sbr.rel (%p1004) target = $region52
      $region51: #{generator_forward.27} parent=47 // pred_region
        %s1007 = smul.u32 8, %s24
        %p1008 = scmp.lt.s32.totalorder %s23, 1
        %s1009 = scalar_select %p1008, %s23, 1
        %p1010 = scmp.lt.s32.totalorder %s1007, 7
        %s1011 = scalar_select %p1010, %s1007, 7
        %s1012 = smul.addr %s1011, 4
        %s1013 = smul.addr %s1009, 32
        %s1014 = sadd.s32 %s1012, %s1013
        %s1015 = smul.addr %s1014, 8
        %s1016 = scalar_lea.vmem %s2, %s1015
      $region52: #{generator_forward.27} parent=47 // pred_fallthru
        _
      // Predicated region
      $region53: #{generator_forward.27} parent=47 // pred_check
        %p1017 = pneg %p144
      $region54: #{generator_forward.27} parent=47 // pred_check_branch
        %1019 = sbr.rel (%p1017) target = $region56
      $region55: #{generator_forward.27} parent=47 // pred_region
        %p1020 = scmp.lt.s32.totalorder %s23, 1
        %s1021 = scalar_select %p1020, %s23, 1
        %p1022 = scmp.lt.s32.totalorder %s24, 0
        %s1023 = scalar_select %p1022, %s24, 0
        %s1024 = smul.addr %s1023, 4
        %s1025 = smul.addr %s1021, 4
        %s1026 = sadd.s32 %s1024, %s1025
        %s1027 = smul.addr %s1026, 2
        %s1028 = scalar_lea.vmem %s3, %s1027
      $region56: #{generator_forward.27} parent=47 // pred_fallthru
        _
    $region48: #{generator_forward.27} parent=5 // pred_fallthru
      _
  $region6: #{generator_forward.27} parent=0 // loop_footer
    %s14 = sadd.s32 1, %s10
  $region7: #{generator_forward.27} parent=0 // loop_footer_branch
    %9 = sbr.rel target = $region3
  $region8: #{generator_forward.27} parent=0 // loop_exit
    _

// kernel: generator_forward.29
$region0: #{generator_forward.29}
  #allocation0 [shape = 'u32[]', space=smem, size = 0x4, offset = 0x4, fixed_abs, tag = 'smem constant byte address 0x4 - core index']
  #allocation1 [shape = 'u32[72,128]{1,0:T(1,128)}', space=vmem, size = 0x9000, scoped, tag = 'internal scratch']
  #allocation2 [shape = 'f32[256,128]{1,0:T(8,128)}', space=vmem, size = 0x20000, scoped, tag = 'scratch operand']
  %s0 = inlined_call_operand.vmem [shape: bf16[2,256,512], index: 0, kind: input, shape index: {}]
  %s1 = inlined_call_operand.vmem [shape: bf16[512,128], index: 1, kind: input, shape index: {}]
  %s2 = inlined_call_operand.vmem [shape: f32[1,128], index: 2, kind: input, shape index: {}]
  %s3 = inlined_call_operand.vmem [shape: f32[2,256,128], index: 3, kind: output, shape index: {}]
  %s4 = sld [smem:[#allocation0]]
  $region53: #{generator_forward.29} parent=0
    _
  %s6 = ssub.s32 1, %s4
  %s7 = scalar_select 0, %s6, %s4
  loop: start=0, step=1, limit=4
  $region2: #{generator_forward.29} parent=0 // loop_pre_header
    _
  $region3: #{generator_forward.29} parent=0 // loop_header
    %s9 = sphi 0, %s13
    %p10 = scmp.ge.s32.totalorder %s9, 4
    %s16 = sphi 0, %s35
    %s17 = sphi 0, %s31
    %s18 = sphi 0, %s27
    %s19 = sphi 0, %s16
    %s20 = sphi 0, %s17
    %s21 = sphi 0, %s18
    %s22 = sphi 0, %s19
    %s23 = sphi 0, %s20
    %s24 = sphi 0, %s21
    %s42 = sphi 0, %s44
    %s45 = sphi 0, %s42
    %s46 = sphi 0, %s45
    %s62 = sphi 0, %s46
    %s68 = sphi 0, %s70
    %s71 = sphi 0, %s68
    %s72 = sphi 0, %s71
    %s88 = sphi 0, %s72
    %s92 = sphi 0, %s92
    %s94 = sphi 0, %s92
    %s95 = sphi 0, %s94
    %s109 = sphi 0, %s95
    %s117 = sphi 0, %s119
    %s120 = sphi 0, %s117
    %s121 = sphi 0, %s120
    %s137 = sphi 0, %s121
  $region4: #{generator_forward.29} parent=0 // loop_header_branch
    %12 = sbr.rel (%p10) target = $region8
  $region5: #{generator_forward.29} parent=0 // loop_body
    %s14 = ssub.s32 %s9, 1
    %s15 = ssub.s32 %s9, 2
    %s25 = sadd.s32 1, %s18
    %p26 = scmp.ge.s32.totalorder %s25, 1
    %s27 = scalar_select %p26, 0, %s25
    %s28 = sadd.s32 1, %s17
    %s29 = scalar_select %p26, %s28, %s17
    %p30 = scmp.ge.s32.totalorder %s29, 1
    %s31 = scalar_select %p30, 0, %s29
    %s32 = sadd.s32 1, %s16
    %s33 = scalar_select %p30, %s32, %s16
    %p34 = scmp.ge.s32.totalorder %s33, 2
    %s35 = scalar_select %p34, 0, %s33
    %s36 = ssub.s32 %s16, %s35
    %s37 = ssub.s32 %s17, %s31
    %s38 = sor.u32 %s36, %s37
    %s39 = ssub.s32 %s18, %s27
    %s40 = sor.u32 %s38, %s39
    %p41 = scmp.eq.s32.totalorder %s40, 0
    %s43 = sadd.s32 %s42, 1
    %s44 = scalar_select %p41, %s42, %s43
    %p47 = pneg %p41
    %p48 = scmp.eq.s32.totalorder %s9, 1
    %p49 = por %p47, %p48
    %p50 = scmp.ne.s32.totalorder %s42, %s45
    %p51 = scmp.eq.s32.totalorder %s9, 0
    %p52 = por %p50, %p51
    %p53 = scmp.ne.s32.totalorder %s42, %s45
    %p54 = scmp.eq.s32.totalorder %s14, 1
    %p55 = por %p53, %p54
    %p56 = scmp.ne.s32.totalorder %s45, %s46
    %p57 = scmp.eq.s32.totalorder %s14, 0
    %p58 = por %p56, %p57
    %p59 = scmp.ne.s32.totalorder %s45, %s46
    %p60 = scmp.eq.s32.totalorder %s15, 1
    %p61 = por %p59, %p60
    %p63 = scmp.ne.s32.totalorder %s46, %s62
    %p64 = scmp.eq.s32.totalorder %s15, 0
    %p65 = por %p63, %p64
    %s66 = ssub.s32 %s18, %s27
    %p67 = scmp.eq.s32.totalorder %s66, 0
    %s69 = sadd.s32 %s68, 1
    %s70 = scalar_select %p67, %s68, %s69
    %p73 = pneg %p67
    %p74 = scmp.eq.s32.totalorder %s9, 1
    %p75 = por %p73, %p74
    %p76 = scmp.ne.s32.totalorder %s68, %s71
    %p77 = scmp.eq.s32.totalorder %s9, 0
    %p78 = por %p76, %p77
    %p79 = scmp.ne.s32.totalorder %s68, %s71
    %p80 = scmp.eq.s32.totalorder %s14, 1
    %p81 = por %p79, %p80
    %p82 = scmp.ne.s32.totalorder %s71, %s72
    %p83 = scmp.eq.s32.totalorder %s14, 0
    %p84 = por %p82, %p83
    %p85 = scmp.ne.s32.totalorder %s71, %s72
    %p86 = scmp.eq.s32.totalorder %s15, 1
    %p87 = por %p85, %p86
    %p89 = scmp.ne.s32.totalorder %s72, %s88
    %p90 = scmp.eq.s32.totalorder %s15, 0
    %p91 = por %p89, %p90
    %s93 = sadd.s32 %s92, 1
    %p96 = scmp.eq.s32.totalorder %s9, 1
    %p97 = scmp.ne.s32.totalorder %s92, %s94
    %p98 = scmp.eq.s32.totalorder %s9, 0
    %p99 = por %p97, %p98
    %p100 = scmp.ne.s32.totalorder %s92, %s94
    %p101 = scmp.eq.s32.totalorder %s14, 1
    %p102 = por %p100, %p101
    %p103 = scmp.ne.s32.totalorder %s94, %s95
    %p104 = scmp.eq.s32.totalorder %s14, 0
    %p105 = por %p103, %p104
    %p106 = scmp.ne.s32.totalorder %s94, %s95
    %p107 = scmp.eq.s32.totalorder %s15, 1
    %p108 = por %p106, %p107
    %p110 = scmp.ne.s32.totalorder %s95, %s109
    %p111 = scmp.eq.s32.totalorder %s15, 0
    %p112 = por %p110, %p111
    %s113 = ssub.s32 %s16, %s35
    %s114 = ssub.s32 %s17, %s31
    %s115 = sor.u32 %s113, %s114
    %p116 = scmp.eq.s32.totalorder %s115, 0
    %s118 = sadd.s32 %s117, 1
    %s119 = scalar_select %p116, %s117, %s118
    %p122 = pneg %p116
    %p123 = scmp.eq.s32.totalorder %s9, 1
    %p124 = por %p122, %p123
    %p125 = scmp.ne.s32.totalorder %s117, %s120
    %p126 = scmp.eq.s32.totalorder %s9, 0
    %p127 = por %p125, %p126
    %p128 = scmp.ne.s32.totalorder %s117, %s120
    %p129 = scmp.eq.s32.totalorder %s14, 1
    %p130 = por %p128, %p129
    %p131 = scmp.ne.s32.totalorder %s120, %s121
    %p132 = scmp.eq.s32.totalorder %s14, 0
    %p133 = por %p131, %p132
    %p134 = scmp.ne.s32.totalorder %s120, %s121
    %p135 = scmp.eq.s32.totalorder %s15, 1
    %p136 = por %p134, %p135
    %p138 = scmp.ne.s32.totalorder %s121, %s137
    %p139 = scmp.eq.s32.totalorder %s15, 0
    %p140 = por %p138, %p139
    %p141 = scmp.le.s32.totalorder 1, %s9
    %p142 = scmp.lt.s32.totalorder %s9, 3
    %p143 = pnand %p141, %p142
    %p144 = pneg %p143
    // Predicated region
    $region9: #{generator_forward.29} parent=5 // pred_check
      _
    $region10: #{generator_forward.29} parent=5 // pred_check_branch
      %146 = sbr.rel (%p143) target = $region12
    $region11: #{generator_forward.29} parent=5 // pred_region
      %s147 = ssub.s32 %s9, 1
      // Predicated region
      $region13: #{generator_forward.29} parent=11 // pred_check
        %p148 = pneg %p84
      $region14: #{generator_forward.29} parent=11 // pred_check_branch
        %150 = sbr.rel (%p148) target = $region16
      $region15: #{generator_forward.29} parent=11 // pred_region
        %s151 = smul.u32 64, %s21
        %p152 = scmp.lt.s32.totalorder %s151, 63
        %s153 = scalar_select %p152, %s151, 63
        %s154 = smul.addr %s153, 4
        %s155 = scalar_lea.vmem %s1, %s154
        %s156 = smul.u32 64, %s21
      $region16: #{generator_forward.29} parent=11 // pred_fallthru
        _
      // Predicated region
      $region17: #{generator_forward.29} parent=11 // pred_check
        %p157 = pneg %p105
      $region18: #{generator_forward.29} parent=11 // pred_check_branch
        %159 = sbr.rel (%p157) target = $region20
      $region19: #{generator_forward.29} parent=11 // pred_region
        _
      $region20: #{generator_forward.29} parent=11 // pred_fallthru
        _
    $region12: #{generator_forward.29} parent=5 // pred_fallthru
      _
    %p160 = scmp.lt.s32.totalorder %s9, 2
    // Predicated region
    $region21: #{generator_forward.29} parent=5 // pred_check
      %p161 = pneg %p160
    $region22: #{generator_forward.29} parent=5 // pred_check_branch
      %163 = sbr.rel (%p161) target = $region24
    $region23: #{generator_forward.29} parent=5 // pred_region
      // Predicated region
      $region25: #{generator_forward.29} parent=23 // pred_check
        %p164 = pneg %p52
      $region26: #{generator_forward.29} parent=23 // pred_check_branch
        %166 = sbr.rel (%p164) target = $region28
      $region27: #{generator_forward.29} parent=23 // pred_region
        %s167 = smul.u32 32, %s17
        %s168 = smul.u32 4, %s18
        %p169 = scmp.lt.s32.totalorder %s16, 1
        %s170 = scalar_select %p169, %s16, 1
        %p171 = scmp.lt.s32.totalorder %s167, 31
        %s172 = scalar_select %p171, %s167, 31
        %p173 = scmp.lt.s32.totalorder %s168, 3
        %s174 = scalar_select %p173, %s168, 3
        %s175 = smul.addr %s172, 4
        %s176 = sadd.s32 %s174, %s175
        %s177 = smul.addr %s170, 128
        %s178 = sadd.s32 %s176, %s177
        %s179 = smul.addr %s178, 4
        %s180 = scalar_lea.vmem %s0, %s179
        %s181 = smul.u32 32, %s17
        %s182 = smul.u32 4, %s18
      $region28: #{generator_forward.29} parent=23 // pred_fallthru
        _
    $region24: #{generator_forward.29} parent=5 // pred_fallthru
      _
    %p183 = scmp.le.s32.totalorder 1, %s9
    %p184 = scmp.lt.s32.totalorder %s9, 3
    %p185 = pnand %p183, %p184
    %p186 = pneg %p185
    // Predicated region
    $region29: #{generator_forward.29} parent=5 // pred_check
      _
    $region30: #{generator_forward.29} parent=5 // pred_check_branch
      %188 = sbr.rel (%p185) target = $region32
    $region31: #{generator_forward.29} parent=5 // pred_region
      %s189 = ssub.s32 %s9, 1
      %s190 = smul.u32 32, %s20
      %s191 = smul.u32 4, %s21
      %p192 = scmp.lt.s32.totalorder %s19, 1
      %s193 = scalar_select %p192, %s19, 1
      %p194 = scmp.lt.s32.totalorder %s190, 31
      %s195 = scalar_select %p194, %s190, 31
      %p196 = scmp.lt.s32.totalorder %s191, 3
      %s197 = scalar_select %p196, %s191, 3
      %s198 = smul.addr %s195, 4
      %s199 = sadd.s32 %s197, %s198
      %s200 = smul.addr %s193, 128
      %s201 = sadd.s32 %s199, %s200
      %s202 = smul.addr %s201, 4
      %s203 = scalar_lea.vmem %s0, %s202
      %p204 = pneg %p58
      %p205 = pneg %p55
      %s206 = smul.u32 64, %s21
      %p207 = scmp.lt.s32.totalorder %s206, 63
      %s208 = scalar_select %p207, %s206, 63
      %s209 = smul.addr %s208, 4
      %s210 = scalar_lea.vmem %s1, %s209
      %p211 = pneg %p84
      %p212 = pneg %p81
      %p213 = pneg %p105
      %p214 = pneg %p102
      %p215 = pneg %p133
      %p216 = pneg %p130
      %s217 = smul.u32 32, %s20
      %p218 = scmp.lt.s32.totalorder %s19, 1
      %s219 = scalar_select %p218, %s19, 1
      %p220 = scmp.lt.s32.totalorder %s217, 31
      %s221 = scalar_select %p220, %s217, 31
      %s222 = smul.addr %s219, 32
      %s223 = sadd.s32 %s221, %s222
      %s224 = smul.addr %s223, 8
      %s225 = scalar_lea.vmem %s3, %s224
      %s226 = smul.u32 32, %s20
      %s227 = smul.u32 4, %s21
      %p228 = scmp.lt.s32.totalorder %s19, 1
      %s229 = scalar_select %p228, %s19, 1
      %p230 = scmp.lt.s32.totalorder %s226, 31
      %s231 = scalar_select %p230, %s226, 31
      %p232 = scmp.lt.s32.totalorder %s227, 3
      %s233 = scalar_select %p232, %s227, 3
      %s234 = smul.addr %s231, 4
      %s235 = sadd.s32 %s233, %s234
      %s236 = smul.addr %s229, 128
      %s237 = sadd.s32 %s235, %s236
      %s238 = smul.addr %s237, 4
      %s239 = scalar_lea.vmem %s0, %s238
      %s240 = smul.u32 32, %s20
      %s241 = smul.u32 4, %s21
      %s242 = smul.u32 64, %s21
      %p243 = scmp.lt.s32.totalorder %s242, 63
      %s244 = scalar_select %p243, %s242, 63
      %s245 = smul.addr %s244, 4
      %s246 = scalar_lea.vmem %s1, %s245
      %s247 = smul.u32 64, %s21
      %s248 = smul.u32 32, %s20
      %p249 = scmp.lt.s32.totalorder %s19, 1
      %s250 = scalar_select %p249, %s19, 1
      %p251 = scmp.lt.s32.totalorder %s248, 31
      %s252 = scalar_select %p251, %s248, 31
      %s253 = smul.addr %s250, 32
      %s254 = sadd.s32 %s252, %s253
      %s255 = smul.addr %s254, 8
      %s256 = scalar_lea.vmem %s3, %s255
      %s257 = smul.u32 32, %s20
      %p258 = scmp.eq.s32.totalorder %s21, 0
      // Predicated region
      $region33: #{generator_forward.29} parent=31 // pred_check
        %p259 = pneg %p258
      $region34: #{generator_forward.29} parent=31 // pred_check_branch
        %261 = sbr.rel (%p259) target = $region36
      $region35: #{generator_forward.29} parent=31 // pred_region
        %262 = vst [vmem:[#allocation2] sm:$0xff] 0.0
        %263 = vst [vmem:[#allocation2 + $0x8] sm:$0xff] 0.0
        %264 = vst [vmem:[#allocation2 + $0x10] sm:$0xff] 0.0
        %265 = vst [vmem:[#allocation2 + $0x18] sm:$0xff] 0.0
        %266 = vst [vmem:[#allocation2 + $0x20] sm:$0xff] 0.0
        %267 = vst [vmem:[#allocation2 + $0x28] sm:$0xff] 0.0
        %268 = vst [vmem:[#allocation2 + $0x30] sm:$0xff] 0.0
        %269 = vst [vmem:[#allocation2 + $0x38] sm:$0xff] 0.0
        %270 = vst [vmem:[#allocation2 + $0x40] sm:$0xff] 0.0
        %271 = vst [vmem:[#allocation2 + $0x48] sm:$0xff] 0.0
        %272 = vst [vmem:[#allocation2 + $0x50] sm:$0xff] 0.0
        %273 = vst [vmem:[#allocation2 + $0x58] sm:$0xff] 0.0
        %274 = vst [vmem:[#allocation2 + $0x60] sm:$0xff] 0.0
        %275 = vst [vmem:[#allocation2 + $0x68] sm:$0xff] 0.0
        %276 = vst [vmem:[#allocation2 + $0x70] sm:$0xff] 0.0
        %277 = vst [vmem:[#allocation2 + $0x78] sm:$0xff] 0.0
        %278 = vst [vmem:[#allocation2 + $0x80] sm:$0xff] 0.0
        %279 = vst [vmem:[#allocation2 + $0x88] sm:$0xff] 0.0
        %280 = vst [vmem:[#allocation2 + $0x90] sm:$0xff] 0.0
        %281 = vst [vmem:[#allocation2 + $0x98] sm:$0xff] 0.0
        %282 = vst [vmem:[#allocation2 + $0xa0] sm:$0xff] 0.0
        %283 = vst [vmem:[#allocation2 + $0xa8] sm:$0xff] 0.0
        %284 = vst [vmem:[#allocation2 + $0xb0] sm:$0xff] 0.0
        %285 = vst [vmem:[#allocation2 + $0xb8] sm:$0xff] 0.0
        %286 = vst [vmem:[#allocation2 + $0xc0] sm:$0xff] 0.0
        %287 = vst [vmem:[#allocation2 + $0xc8] sm:$0xff] 0.0
        %288 = vst [vmem:[#allocation2 + $0xd0] sm:$0xff] 0.0
        %289 = vst [vmem:[#allocation2 + $0xd8] sm:$0xff] 0.0
        %290 = vst [vmem:[#allocation2 + $0xe0] sm:$0xff] 0.0
        %291 = vst [vmem:[#allocation2 + $0xe8] sm:$0xff] 0.0
        %292 = vst [vmem:[#allocation2 + $0xf0] sm:$0xff] 0.0
        %293 = vst [vmem:[#allocation2 + $0xf8] sm:$0xff] 0.0
      $region36: #{generator_forward.29} parent=31 // pred_fallthru
        _
      %v294 = vld [vmem:[#allocation2] sm:$0xff]
      %v295 = vld [vmem:[#allocation2 + $0x8] sm:$0xff]
      %v296 = vld [vmem:[#allocation2 + $0x10] sm:$0xff]
      %v297 = vld [vmem:[#allocation2 + $0x18] sm:$0xff]
      %v298 = vld [vmem:[#allocation2 + $0x20] sm:$0xff]
      %v299 = vld [vmem:[#allocation2 + $0x28] sm:$0xff]
      %v300 = vld [vmem:[#allocation2 + $0x30] sm:$0xff]
      %v301 = vld [vmem:[#allocation2 + $0x38] sm:$0xff]
      %v302 = vld [vmem:[#allocation2 + $0x40] sm:$0xff]
      %v303 = vld [vmem:[#allocation2 + $0x48] sm:$0xff]
      %v304 = vld [vmem:[#allocation2 + $0x50] sm:$0xff]
      %v305 = vld [vmem:[#allocation2 + $0x58] sm:$0xff]
      %v306 = vld [vmem:[#allocation2 + $0x60] sm:$0xff]
      %v307 = vld [vmem:[#allocation2 + $0x68] sm:$0xff]
      %v308 = vld [vmem:[#allocation2 + $0x70] sm:$0xff]
      %v309 = vld [vmem:[#allocation2 + $0x78] sm:$0xff]
      %v310 = vld [vmem:[#allocation2 + $0x80] sm:$0xff]
      %v311 = vld [vmem:[#allocation2 + $0x88] sm:$0xff]
      %v312 = vld [vmem:[#allocation2 + $0x90] sm:$0xff]
      %v313 = vld [vmem:[#allocation2 + $0x98] sm:$0xff]
      %v314 = vld [vmem:[#allocation2 + $0xa0] sm:$0xff]
      %v315 = vld [vmem:[#allocation2 + $0xa8] sm:$0xff]
      %v316 = vld [vmem:[#allocation2 + $0xb0] sm:$0xff]
      %v317 = vld [vmem:[#allocation2 + $0xb8] sm:$0xff]
      %v318 = vld [vmem:[#allocation2 + $0xc0] sm:$0xff]
      %v319 = vld [vmem:[#allocation2 + $0xc8] sm:$0xff]
      %v320 = vld [vmem:[#allocation2 + $0xd0] sm:$0xff]
      %v321 = vld [vmem:[#allocation2 + $0xd8] sm:$0xff]
      %v322 = vld [vmem:[#allocation2 + $0xe0] sm:$0xff]
      %v323 = vld [vmem:[#allocation2 + $0xe8] sm:$0xff]
      %v324 = vld [vmem:[#allocation2 + $0xf0] sm:$0xff]
      %v325 = vld [vmem:[#allocation2 + $0xf8] sm:$0xff]
      %v326 = vld [vmem:[%s239] sm:$0xff]
      %v327 = vld [vmem:[%s239 + $0x8] sm:$0xff]
      %v328 = vld [vmem:[%s239 + $0x10] sm:$0xff]
      %v329 = vld [vmem:[%s239 + $0x18] sm:$0xff]
      %v330 = vld [vmem:[%s239 + $0x20] sm:$0xff]
      %v331 = vld [vmem:[%s239 + $0x28] sm:$0xff]
      %v332 = vld [vmem:[%s239 + $0x30] sm:$0xff]
      %v333 = vld [vmem:[%s239 + $0x38] sm:$0xff]
      %v334 = vld [vmem:[%s239 + $0x40] sm:$0xff]
      %v335 = vld [vmem:[%s239 + $0x48] sm:$0xff]
      %v336 = vld [vmem:[%s239 + $0x50] sm:$0xff]
      %v337 = vld [vmem:[%s239 + $0x58] sm:$0xff]
      %v338 = vld [vmem:[%s239 + $0x60] sm:$0xff]
      %v339 = vld [vmem:[%s239 + $0x68] sm:$0xff]
      %v340 = vld [vmem:[%s239 + $0x70] sm:$0xff]
      %v341 = vld [vmem:[%s239 + $0x78] sm:$0xff]
      %v342 = vld [vmem:[%s239 + $0x80] sm:$0xff]
      %v343 = vld [vmem:[%s239 + $0x88] sm:$0xff]
      %v344 = vld [vmem:[%s239 + $0x90] sm:$0xff]
      %v345 = vld [vmem:[%s239 + $0x98] sm:$0xff]
      %v346 = vld [vmem:[%s239 + $0xa0] sm:$0xff]
      %v347 = vld [vmem:[%s239 + $0xa8] sm:$0xff]
      %v348 = vld [vmem:[%s239 + $0xb0] sm:$0xff]
      %v349 = vld [vmem:[%s239 + $0xb8] sm:$0xff]
      %v350 = vld [vmem:[%s239 + $0xc0] sm:$0xff]
      %v351 = vld [vmem:[%s239 + $0xc8] sm:$0xff]
      %v352 = vld [vmem:[%s239 + $0xd0] sm:$0xff]
      %v353 = vld [vmem:[%s239 + $0xd8] sm:$0xff]
      %v354 = vld [vmem:[%s239 + $0xe0] sm:$0xff]
      %v355 = vld [vmem:[%s239 + $0xe8] sm:$0xff]
      %v356 = vld [vmem:[%s239 + $0xf0] sm:$0xff]
      %v357 = vld [vmem:[%s239 + $0xf8] sm:$0xff]
      %v358 = vld [vmem:[%s239 + $0x100] sm:$0xff]
      %v359 = vld [vmem:[%s239 + $0x108] sm:$0xff]
      %v360 = vld [vmem:[%s239 + $0x110] sm:$0xff]
      %v361 = vld [vmem:[%s239 + $0x118] sm:$0xff]
      %v362 = vld [vmem:[%s239 + $0x120] sm:$0xff]
      %v363 = vld [vmem:[%s239 + $0x128] sm:$0xff]
      %v364 = vld [vmem:[%s239 + $0x130] sm:$0xff]
      %v365 = vld [vmem:[%s239 + $0x138] sm:$0xff]
      %v366 = vld [vmem:[%s239 + $0x140] sm:$0xff]
      %v367 = vld [vmem:[%s239 + $0x148] sm:$0xff]
      %v368 = vld [vmem:[%s239 + $0x150] sm:$0xff]
      %v369 = vld [vmem:[%s239 + $0x158] sm:$0xff]
      %v370 = vld [vmem:[%s239 + $0x160] sm:$0xff]
      %v371 = vld [vmem:[%s239 + $0x168] sm:$0xff]
      %v372 = vld [vmem:[%s239 + $0x170] sm:$0xff]
      %v373 = vld [vmem:[%s239 + $0x178] sm:$0xff]
      %v374 = vld [vmem:[%s239 + $0x180] sm:$0xff]
      %v375 = vld [vmem:[%s239 + $0x188] sm:$0xff]
      %v376 = vld [vmem:[%s239 + $0x190] sm:$0xff]
      %v377 = vld [vmem:[%s239 + $0x198] sm:$0xff]
      %v378 = vld [vmem:[%s239 + $0x1a0] sm:$0xff]
      %v379 = vld [vmem:[%s239 + $0x1a8] sm:$0xff]
      %v380 = vld [vmem:[%s239 + $0x1b0] sm:$0xff]
      %v381 = vld [vmem:[%s239 + $0x1b8] sm:$0xff]
      %v382 = vld [vmem:[%s239 + $0x1c0] sm:$0xff]
      %v383 = vld [vmem:[%s239 + $0x1c8] sm:$0xff]
      %v384 = vld [vmem:[%s239 + $0x1d0] sm:$0xff]
      %v385 = vld [vmem:[%s239 + $0x1d8] sm:$0xff]
      %v386 = vld [vmem:[%s239 + $0x1e0] sm:$0xff]
      %v387 = vld [vmem:[%s239 + $0x1e8] sm:$0xff]
      %v388 = vld [vmem:[%s239 + $0x1f0] sm:$0xff]
      %v389 = vld [vmem:[%s239 + $0x1f8] sm:$0xff]
      %v390 = vld [vmem:[%s246] sm:$0xf]
      %v391 = vld [vmem:[%s246 + $0x4] sm:$0xf]
      %v392 = vld [vmem:[%s246 + $0x8] sm:$0xf]
      %v393 = vld [vmem:[%s246 + $0xc] sm:$0xf]
      %v394 = vld [vmem:[%s246 + $0x10] sm:$0xf]
      %v395 = vld [vmem:[%s246 + $0x14] sm:$0xf]
      %v396 = vld [vmem:[%s246 + $0x18] sm:$0xf]
      %v397 = vld [vmem:[%s246 + $0x1c] sm:$0xf]
      %v398 = vld [vmem:[%s246 + $0x20] sm:$0xf]
      %v399 = vld [vmem:[%s246 + $0x24] sm:$0xf]
      %v400 = vld [vmem:[%s246 + $0x28] sm:$0xf]
      %v401 = vld [vmem:[%s246 + $0x2c] sm:$0xf]
      %v402 = vld [vmem:[%s246 + $0x30] sm:$0xf]
      %v403 = vld [vmem:[%s246 + $0x34] sm:$0xf]
      %v404 = vld [vmem:[%s246 + $0x38] sm:$0xf]
      %v405 = vld [vmem:[%s246 + $0x3c] sm:$0xf]
      %v406 = vld [vmem:[%s246 + $0x40] sm:$0xf]
      %v407 = vld [vmem:[%s246 + $0x44] sm:$0xf]
      %v408 = vld [vmem:[%s246 + $0x48] sm:$0xf]
      %v409 = vld [vmem:[%s246 + $0x4c] sm:$0xf]
      %v410 = vld [vmem:[%s246 + $0x50] sm:$0xf]
      %v411 = vld [vmem:[%s246 + $0x54] sm:$0xf]
      %v412 = vld [vmem:[%s246 + $0x58] sm:$0xf]
      %v413 = vld [vmem:[%s246 + $0x5c] sm:$0xf]
      %v414 = vld [vmem:[%s246 + $0x60] sm:$0xf]
      %v415 = vld [vmem:[%s246 + $0x64] sm:$0xf]
      %v416 = vld [vmem:[%s246 + $0x68] sm:$0xf]
      %v417 = vld [vmem:[%s246 + $0x6c] sm:$0xf]
      %v418 = vld [vmem:[%s246 + $0x70] sm:$0xf]
      %v419 = vld [vmem:[%s246 + $0x74] sm:$0xf]
      %v420 = vld [vmem:[%s246 + $0x78] sm:$0xf]
      %v421 = vld [vmem:[%s246 + $0x7c] sm:$0xf]
      %v422 = vld [vmem:[%s246 + $0x80] sm:$0xf]
      %v423 = vld [vmem:[%s246 + $0x84] sm:$0xf]
      %v424 = vld [vmem:[%s246 + $0x88] sm:$0xf]
      %v425 = vld [vmem:[%s246 + $0x8c] sm:$0xf]
      %v426 = vld [vmem:[%s246 + $0x90] sm:$0xf]
      %v427 = vld [vmem:[%s246 + $0x94] sm:$0xf]
      %v428 = vld [vmem:[%s246 + $0x98] sm:$0xf]
      %v429 = vld [vmem:[%s246 + $0x9c] sm:$0xf]
      %v430 = vld [vmem:[%s246 + $0xa0] sm:$0xf]
      %v431 = vld [vmem:[%s246 + $0xa4] sm:$0xf]
      %v432 = vld [vmem:[%s246 + $0xa8] sm:$0xf]
      %v433 = vld [vmem:[%s246 + $0xac] sm:$0xf]
      %v434 = vld [vmem:[%s246 + $0xb0] sm:$0xf]
      %v435 = vld [vmem:[%s246 + $0xb4] sm:$0xf]
      %v436 = vld [vmem:[%s246 + $0xb8] sm:$0xf]
      %v437 = vld [vmem:[%s246 + $0xbc] sm:$0xf]
      %v438 = vld [vmem:[%s246 + $0xc0] sm:$0xf]
      %v439 = vld [vmem:[%s246 + $0xc4] sm:$0xf]
      %v440 = vld [vmem:[%s246 + $0xc8] sm:$0xf]
      %v441 = vld [vmem:[%s246 + $0xcc] sm:$0xf]
      %v442 = vld [vmem:[%s246 + $0xd0] sm:$0xf]
      %v443 = vld [vmem:[%s246 + $0xd4] sm:$0xf]
      %v444 = vld [vmem:[%s246 + $0xd8] sm:$0xf]
      %v445 = vld [vmem:[%s246 + $0xdc] sm:$0xf]
      %v446 = vld [vmem:[%s246 + $0xe0] sm:$0xf]
      %v447 = vld [vmem:[%s246 + $0xe4] sm:$0xf]
      %v448 = vld [vmem:[%s246 + $0xe8] sm:$0xf]
      %v449 = vld [vmem:[%s246 + $0xec] sm:$0xf]
      %v450 = vld [vmem:[%s246 + $0xf0] sm:$0xf]
      %v451 = vld [vmem:[%s246 + $0xf4] sm:$0xf]
      %v452 = vld [vmem:[%s246 + $0xf8] sm:$0xf]
      %v453 = vld [vmem:[%s246 + $0xfc] sm:$0xf]
      %v518 = vunpack.c.l.b16 %v326
      %v519 = vunpack.c.h.b16 %v326
      %v520 = vunpack.c.l.b16 %v327
      %v521 = vunpack.c.h.b16 %v327
      %v522 = vunpack.c.l.b16 %v328
      %v523 = vunpack.c.h.b16 %v328
      %v524 = vunpack.c.l.b16 %v329
      %v525 = vunpack.c.h.b16 %v329
      %v526 = vunpack.c.l.b16 %v330
      %v527 = vunpack.c.h.b16 %v330
      %v528 = vunpack.c.l.b16 %v331
      %v529 = vunpack.c.h.b16 %v331
      %v530 = vunpack.c.l.b16 %v332
      %v531 = vunpack.c.h.b16 %v332
      %v532 = vunpack.c.l.b16 %v333
      %v533 = vunpack.c.h.b16 %v333
      %v534 = vunpack.c.l.b16 %v334
      %v535 = vunpack.c.h.b16 %v334
      %v536 = vunpack.c.l.b16 %v335
      %v537 = vunpack.c.h.b16 %v335
      %v538 = vunpack.c.l.b16 %v336
      %v539 = vunpack.c.h.b16 %v336
      %v540 = vunpack.c.l.b16 %v337
      %v541 = vunpack.c.h.b16 %v337
      %v542 = vunpack.c.l.b16 %v338
      %v543 = vunpack.c.h.b16 %v338
      %v544 = vunpack.c.l.b16 %v339
      %v545 = vunpack.c.h.b16 %v339
      %v546 = vunpack.c.l.b16 %v340
      %v547 = vunpack.c.h.b16 %v340
      %v548 = vunpack.c.l.b16 %v341
      %v549 = vunpack.c.h.b16 %v341
      %v550 = vunpack.c.l.b16 %v342
      %v551 = vunpack.c.h.b16 %v342
      %v552 = vunpack.c.l.b16 %v343
      %v553 = vunpack.c.h.b16 %v343
      %v554 = vunpack.c.l.b16 %v344
      %v555 = vunpack.c.h.b16 %v344
      %v556 = vunpack.c.l.b16 %v345
      %v557 = vunpack.c.h.b16 %v345
      %v558 = vunpack.c.l.b16 %v346
      %v559 = vunpack.c.h.b16 %v346
      %v560 = vunpack.c.l.b16 %v347
      %v561 = vunpack.c.h.b16 %v347
      %v562 = vunpack.c.l.b16 %v348
      %v563 = vunpack.c.h.b16 %v348
      %v564 = vunpack.c.l.b16 %v349
      %v565 = vunpack.c.h.b16 %v349
      %v566 = vunpack.c.l.b16 %v350
      %v567 = vunpack.c.h.b16 %v350
      %v568 = vunpack.c.l.b16 %v351
      %v569 = vunpack.c.h.b16 %v351
      %v570 = vunpack.c.l.b16 %v352
      %v571 = vunpack.c.h.b16 %v352
      %v572 = vunpack.c.l.b16 %v353
      %v573 = vunpack.c.h.b16 %v353
      %v574 = vunpack.c.l.b16 %v354
      %v575 = vunpack.c.h.b16 %v354
      %v576 = vunpack.c.l.b16 %v355
      %v577 = vunpack.c.h.b16 %v355
      %v578 = vunpack.c.l.b16 %v356
      %v579 = vunpack.c.h.b16 %v356
      %v580 = vunpack.c.l.b16 %v357
      %v581 = vunpack.c.h.b16 %v357
      %v582 = vunpack.c.l.b16 %v358
      %v583 = vunpack.c.h.b16 %v358
      %v584 = vunpack.c.l.b16 %v359
      %v585 = vunpack.c.h.b16 %v359
      %v586 = vunpack.c.l.b16 %v360
      %v587 = vunpack.c.h.b16 %v360
      %v588 = vunpack.c.l.b16 %v361
      %v589 = vunpack.c.h.b16 %v361
      %v590 = vunpack.c.l.b16 %v362
      %v591 = vunpack.c.h.b16 %v362
      %v592 = vunpack.c.l.b16 %v363
      %v593 = vunpack.c.h.b16 %v363
      %v594 = vunpack.c.l.b16 %v364
      %v595 = vunpack.c.h.b16 %v364
      %v596 = vunpack.c.l.b16 %v365
      %v597 = vunpack.c.h.b16 %v365
      %v598 = vunpack.c.l.b16 %v366
      %v599 = vunpack.c.h.b16 %v366
      %v600 = vunpack.c.l.b16 %v367
      %v601 = vunpack.c.h.b16 %v367
      %v602 = vunpack.c.l.b16 %v368
      %v603 = vunpack.c.h.b16 %v368
      %v604 = vunpack.c.l.b16 %v369
      %v605 = vunpack.c.h.b16 %v369
      %v606 = vunpack.c.l.b16 %v370
      %v607 = vunpack.c.h.b16 %v370
      %v608 = vunpack.c.l.b16 %v371
      %v609 = vunpack.c.h.b16 %v371
      %v610 = vunpack.c.l.b16 %v372
      %v611 = vunpack.c.h.b16 %v372
      %v612 = vunpack.c.l.b16 %v373
      %v613 = vunpack.c.h.b16 %v373
      %v614 = vunpack.c.l.b16 %v374
      %v615 = vunpack.c.h.b16 %v374
      %v616 = vunpack.c.l.b16 %v375
      %v617 = vunpack.c.h.b16 %v375
      %v618 = vunpack.c.l.b16 %v376
      %v619 = vunpack.c.h.b16 %v376
      %v620 = vunpack.c.l.b16 %v377
      %v621 = vunpack.c.h.b16 %v377
      %v622 = vunpack.c.l.b16 %v378
      %v623 = vunpack.c.h.b16 %v378
      %v624 = vunpack.c.l.b16 %v379
      %v625 = vunpack.c.h.b16 %v379
      %v626 = vunpack.c.l.b16 %v380
      %v627 = vunpack.c.h.b16 %v380
      %v628 = vunpack.c.l.b16 %v381
      %v629 = vunpack.c.h.b16 %v381
      %v630 = vunpack.c.l.b16 %v382
      %v631 = vunpack.c.h.b16 %v382
      %v632 = vunpack.c.l.b16 %v383
      %v633 = vunpack.c.h.b16 %v383
      %v634 = vunpack.c.l.b16 %v384
      %v635 = vunpack.c.h.b16 %v384
      %v636 = vunpack.c.l.b16 %v385
      %v637 = vunpack.c.h.b16 %v385
      %v638 = vunpack.c.l.b16 %v386
      %v639 = vunpack.c.h.b16 %v386
      %v640 = vunpack.c.l.b16 %v387
      %v641 = vunpack.c.h.b16 %v387
      %v642 = vunpack.c.l.b16 %v388
      %v643 = vunpack.c.h.b16 %v388
      %v644 = vunpack.c.l.b16 %v389
      %v645 = vunpack.c.h.b16 %v389
      %v646 = vpack.c.b16 %v522, %v518
      %v647 = vpack.c.b16 %v523, %v519
      %v648 = vpack.c.b16 %v524, %v520
      %v649 = vpack.c.b16 %v525, %v521
      %v650 = vpack.c.b16 %v530, %v526
      %v651 = vpack.c.b16 %v531, %v527
      %v652 = vpack.c.b16 %v532, %v528
      %v653 = vpack.c.b16 %v533, %v529
      %v654 = vpack.c.b16 %v538, %v534
      %v655 = vpack.c.b16 %v539, %v535
      %v656 = vpack.c.b16 %v540, %v536
      %v657 = vpack.c.b16 %v541, %v537
      %v658 = vpack.c.b16 %v546, %v542
      %v659 = vpack.c.b16 %v547, %v543
      %v660 = vpack.c.b16 %v548, %v544
      %v661 = vpack.c.b16 %v549, %v545
      %v662 = vpack.c.b16 %v554, %v550
      %v663 = vpack.c.b16 %v555, %v551
      %v664 = vpack.c.b16 %v556, %v552
      %v665 = vpack.c.b16 %v557, %v553
      %v666 = vpack.c.b16 %v562, %v558
      %v667 = vpack.c.b16 %v563, %v559
      %v668 = vpack.c.b16 %v564, %v560
      %v669 = vpack.c.b16 %v565, %v561
      %v670 = vpack.c.b16 %v570, %v566
      %v671 = vpack.c.b16 %v571, %v567
      %v672 = vpack.c.b16 %v572, %v568
      %v673 = vpack.c.b16 %v573, %v569
      %v674 = vpack.c.b16 %v578, %v574
      %v675 = vpack.c.b16 %v579, %v575
      %v676 = vpack.c.b16 %v580, %v576
      %v677 = vpack.c.b16 %v581, %v577
      %v678 = vpack.c.b16 %v586, %v582
      %v679 = vpack.c.b16 %v587, %v583
      %v680 = vpack.c.b16 %v588, %v584
      %v681 = vpack.c.b16 %v589, %v585
      %v682 = vpack.c.b16 %v594, %v590
      %v683 = vpack.c.b16 %v595, %v591
      %v684 = vpack.c.b16 %v596, %v592
      %v685 = vpack.c.b16 %v597, %v593
      %v686 = vpack.c.b16 %v602, %v598
      %v687 = vpack.c.b16 %v603, %v599
      %v688 = vpack.c.b16 %v604, %v600
      %v689 = vpack.c.b16 %v605, %v601
      %v690 = vpack.c.b16 %v610, %v606
      %v691 = vpack.c.b16 %v611, %v607
      %v692 = vpack.c.b16 %v612, %v608
      %v693 = vpack.c.b16 %v613, %v609
      %v694 = vpack.c.b16 %v618, %v614
      %v695 = vpack.c.b16 %v619, %v615
      %v696 = vpack.c.b16 %v620, %v616
      %v697 = vpack.c.b16 %v621, %v617
      %v698 = vpack.c.b16 %v626, %v622
      %v699 = vpack.c.b16 %v627, %v623
      %v700 = vpack.c.b16 %v628, %v624
      %v701 = vpack.c.b16 %v629, %v625
      %v702 = vpack.c.b16 %v634, %v630
      %v703 = vpack.c.b16 %v635, %v631
      %v704 = vpack.c.b16 %v636, %v632
      %v705 = vpack.c.b16 %v637, %v633
      %v706 = vpack.c.b16 %v642, %v638
      %v707 = vpack.c.b16 %v643, %v639
      %v708 = vpack.c.b16 %v644, %v640
      %v709 = vpack.c.b16 %v645, %v641
      %v838 = vunpack.c.l.b16 %v390
      %v839 = vunpack.c.l.b16 %v391
      %v840 = vunpack.c.l.b16 %v392
      %v841 = vunpack.c.l.b16 %v393
      %v842 = vunpack.c.l.b16 %v394
      %v843 = vunpack.c.l.b16 %v395
      %v844 = vunpack.c.l.b16 %v396
      %v845 = vunpack.c.l.b16 %v397
      %v846 = vunpack.c.l.b16 %v398
      %v847 = vunpack.c.l.b16 %v399
      %v848 = vunpack.c.l.b16 %v400
      %v849 = vunpack.c.l.b16 %v401
      %v850 = vunpack.c.l.b16 %v402
      %v851 = vunpack.c.l.b16 %v403
      %v852 = vunpack.c.l.b16 %v404
      %v853 = vunpack.c.l.b16 %v405
      %v854 = vunpack.c.l.b16 %v406
      %v855 = vunpack.c.l.b16 %v407
      %v856 = vunpack.c.l.b16 %v408
      %v857 = vunpack.c.l.b16 %v409
      %v858 = vunpack.c.l.b16 %v410
      %v859 = vunpack.c.l.b16 %v411
      %v860 = vunpack.c.l.b16 %v412
      %v861 = vunpack.c.l.b16 %v413
      %v862 = vunpack.c.l.b16 %v414
      %v863 = vunpack.c.l.b16 %v415
      %v864 = vunpack.c.l.b16 %v416
      %v865 = vunpack.c.l.b16 %v417
      %v866 = vunpack.c.l.b16 %v418
      %v867 = vunpack.c.l.b16 %v419
      %v868 = vunpack.c.l.b16 %v420
      %v869 = vunpack.c.l.b16 %v421
      %v870 = vunpack.c.l.b16 %v422
      %v871 = vunpack.c.l.b16 %v423
      %v872 = vunpack.c.l.b16 %v424
      %v873 = vunpack.c.l.b16 %v425
      %v874 = vunpack.c.l.b16 %v426
      %v875 = vunpack.c.l.b16 %v427
      %v876 = vunpack.c.l.b16 %v428
      %v877 = vunpack.c.l.b16 %v429
      %v878 = vunpack.c.l.b16 %v430
      %v879 = vunpack.c.l.b16 %v431
      %v880 = vunpack.c.l.b16 %v432
      %v881 = vunpack.c.l.b16 %v433
      %v882 = vunpack.c.l.b16 %v434
      %v883 = vunpack.c.l.b16 %v435
      %v884 = vunpack.c.l.b16 %v436
      %v885 = vunpack.c.l.b16 %v437
      %v886 = vunpack.c.l.b16 %v438
      %v887 = vunpack.c.l.b16 %v439
      %v888 = vunpack.c.l.b16 %v440
      %v889 = vunpack.c.l.b16 %v441
      %v890 = vunpack.c.l.b16 %v442
      %v891 = vunpack.c.l.b16 %v443
      %v892 = vunpack.c.l.b16 %v444
      %v893 = vunpack.c.l.b16 %v445
      %v894 = vunpack.c.l.b16 %v446
      %v895 = vunpack.c.l.b16 %v447
      %v896 = vunpack.c.l.b16 %v448
      %v897 = vunpack.c.l.b16 %v449
      %v898 = vunpack.c.l.b16 %v450
      %v899 = vunpack.c.l.b16 %v451
      %v900 = vunpack.c.l.b16 %v452
      %v901 = vunpack.c.l.b16 %v453
      %v902 = vpack.c.b16 %v839, %v838
      %v903 = vpack.c.b16 %v841, %v840
      %v904 = vpack.c.b16 %v843, %v842
      %v905 = vpack.c.b16 %v845, %v844
      %v906 = vpack.c.b16 %v847, %v846
      %v907 = vpack.c.b16 %v849, %v848
      %v908 = vpack.c.b16 %v851, %v850
      %v909 = vpack.c.b16 %v853, %v852
      %v910 = vpack.c.b16 %v855, %v854
      %v911 = vpack.c.b16 %v857, %v856
      %v912 = vpack.c.b16 %v859, %v858
      %v913 = vpack.c.b16 %v861, %v860
      %v914 = vpack.c.b16 %v863, %v862
      %v915 = vpack.c.b16 %v865, %v864
      %v916 = vpack.c.b16 %v867, %v866
      %v917 = vpack.c.b16 %v869, %v868
      %v918 = vpack.c.b16 %v871, %v870
      %v919 = vpack.c.b16 %v873, %v872
      %v920 = vpack.c.b16 %v875, %v874
      %v921 = vpack.c.b16 %v877, %v876
      %v922 = vpack.c.b16 %v879, %v878
      %v923 = vpack.c.b16 %v881, %v880
      %v924 = vpack.c.b16 %v883, %v882
      %v925 = vpack.c.b16 %v885, %v884
      %v926 = vpack.c.b16 %v887, %v886
      %v927 = vpack.c.b16 %v889, %v888
      %v928 = vpack.c.b16 %v891, %v890
      %v929 = vpack.c.b16 %v893, %v892
      %v930 = vpack.c.b16 %v895, %v894
      %v931 = vpack.c.b16 %v897, %v896
      %v932 = vpack.c.b16 %v899, %v898
      %v933 = vpack.c.b16 %v901, %v900
      %966 = vmatpush.bf16.msra.mxu0 %v909
      %967 = vmatpush.bf16.msra.mxu0 %v908
      %968 = vmatpush.bf16.msra.mxu0 %v907
      %969 = vmatpush.bf16.msra.mxu0 %v906
      %970 = vmatpush.bf16.msra.mxu0 %v905
      %971 = vmatpush.bf16.msra.mxu0 %v904
      %972 = vmatpush.bf16.msra.mxu0 %v903
      %973 = vmatpush.bf16.msra.mxu0 %v902
      %974 = vmatmul.bf16.gmra.mxu0 %v646
      %v975 = vpop.f32.mrf.mxu0
      %v976 = vadd.f32 0.0, %v975
      %v977 = vpop.f32.mrf.mxu0
      %v978 = vadd.f32 0.0, %v977
      %979 = vmatmul.bf16.gmra.mxu0 %v650
      %v980 = vpop.f32.mrf.mxu0
      %v981 = vadd.f32 0.0, %v980
      %v982 = vpop.f32.mrf.mxu0
      %v983 = vadd.f32 0.0, %v982
      %984 = vmatmul.bf16.gmra.mxu0 %v654
      %v985 = vpop.f32.mrf.mxu0
      %v986 = vadd.f32 0.0, %v985
      %v987 = vpop.f32.mrf.mxu0
      %v988 = vadd.f32 0.0, %v987
      %989 = vmatmul.bf16.gmra.mxu0 %v658
      %v990 = vpop.f32.mrf.mxu0
      %v991 = vadd.f32 0.0, %v990
      %v992 = vpop.f32.mrf.mxu0
      %v993 = vadd.f32 0.0, %v992
      %994 = vmatmul.bf16.gmra.mxu0 %v662
      %v995 = vpop.f32.mrf.mxu0
      %v996 = vadd.f32 0.0, %v995
      %v997 = vpop.f32.mrf.mxu0
      %v998 = vadd.f32 0.0, %v997
      %999 = vmatmul.bf16.gmra.mxu0 %v666
      %v1000 = vpop.f32.mrf.mxu0
      %v1001 = vadd.f32 0.0, %v1000
      %v1002 = vpop.f32.mrf.mxu0
      %v1003 = vadd.f32 0.0, %v1002
      %1004 = vmatmul.bf16.gmra.mxu0 %v670
      %v1005 = vpop.f32.mrf.mxu0
      %v1006 = vadd.f32 0.0, %v1005
      %v1007 = vpop.f32.mrf.mxu0
      %v1008 = vadd.f32 0.0, %v1007
      %1009 = vmatmul.bf16.gmra.mxu0 %v674
      %v1010 = vpop.f32.mrf.mxu0
      %v1011 = vadd.f32 0.0, %v1010
      %v1012 = vpop.f32.mrf.mxu0
      %v1013 = vadd.f32 0.0, %v1012
      %1014 = vmatmul.bf16.gmra.mxu0 %v678
      %v1015 = vpop.f32.mrf.mxu0
      %v1016 = vadd.f32 0.0, %v1015
      %v1017 = vpop.f32.mrf.mxu0
      %v1018 = vadd.f32 0.0, %v1017
      %1019 = vmatmul.bf16.gmra.mxu0 %v682
      %v1020 = vpop.f32.mrf.mxu0
      %v1021 = vadd.f32 0.0, %v1020
      %v1022 = vpop.f32.mrf.mxu0
      %v1023 = vadd.f32 0.0, %v1022
      %1024 = vmatmul.bf16.gmra.mxu0 %v686
      %v1025 = vpop.f32.mrf.mxu0
      %v1026 = vadd.f32 0.0, %v1025
      %v1027 = vpop.f32.mrf.mxu0
      %v1028 = vadd.f32 0.0, %v1027
      %1029 = vmatmul.bf16.gmra.mxu0 %v690
      %v1030 = vpop.f32.mrf.mxu0
      %v1031 = vadd.f32 0.0, %v1030
      %v1032 = vpop.f32.mrf.mxu0
      %v1033 = vadd.f32 0.0, %v1032
      %1034 = vmatmul.bf16.gmra.mxu0 %v694
      %v1035 = vpop.f32.mrf.mxu0
      %v1036 = vadd.f32 0.0, %v1035
      %v1037 = vpop.f32.mrf.mxu0
      %v1038 = vadd.f32 0.0, %v1037
      %1039 = vmatmul.bf16.gmra.mxu0 %v698
      %v1040 = vpop.f32.mrf.mxu0
      %v1041 = vadd.f32 0.0, %v1040
      %v1042 = vpop.f32.mrf.mxu0
      %v1043 = vadd.f32 0.0, %v1042
      %1044 = vmatmul.bf16.gmra.mxu0 %v702
      %v1045 = vpop.f32.mrf.mxu0
      %v1046 = vadd.f32 0.0, %v1045
      %v1047 = vpop.f32.mrf.mxu0
      %v1048 = vadd.f32 0.0, %v1047
      %1049 = vmatmul.bf16.gmra.mxu0 %v706
      %v1050 = vpop.f32.mrf.mxu0
      %v1051 = vadd.f32 0.0, %v1050
      %v1052 = vpop.f32.mrf.mxu0
      %v1053 = vadd.f32 0.0, %v1052
      %1054 = vdwg.mxu0
      %1055 = vmatpush.bf16.msra.mxu0 %v917
      %1056 = vmatpush.bf16.msra.mxu0 %v916
      %1057 = vmatpush.bf16.msra.mxu0 %v915
      %1058 = vmatpush.bf16.msra.mxu0 %v914
      %1059 = vmatpush.bf16.msra.mxu0 %v913
      %1060 = vmatpush.bf16.msra.mxu0 %v912
      %1061 = vmatpush.bf16.msra.mxu0 %v911
      %1062 = vmatpush.bf16.msra.mxu0 %v910
      %1063 = vmatmul.bf16.gmra.mxu0 %v647
      %v1064 = vpop.f32.mrf.mxu0
      %v1065 = vadd.f32 %v976, %v1064
      %v1066 = vpop.f32.mrf.mxu0
      %v1067 = vadd.f32 %v978, %v1066
      %1068 = vmatmul.bf16.gmra.mxu0 %v651
      %v1069 = vpop.f32.mrf.mxu0
      %v1070 = vadd.f32 %v981, %v1069
      %v1071 = vpop.f32.mrf.mxu0
      %v1072 = vadd.f32 %v983, %v1071
      %1073 = vmatmul.bf16.gmra.mxu0 %v655
      %v1074 = vpop.f32.mrf.mxu0
      %v1075 = vadd.f32 %v986, %v1074
      %v1076 = vpop.f32.mrf.mxu0
      %v1077 = vadd.f32 %v988, %v1076
      %1078 = vmatmul.bf16.gmra.mxu0 %v659
      %v1079 = vpop.f32.mrf.mxu0
      %v1080 = vadd.f32 %v991, %v1079
      %v1081 = vpop.f32.mrf.mxu0
      %v1082 = vadd.f32 %v993, %v1081
      %1083 = vmatmul.bf16.gmra.mxu0 %v663
      %v1084 = vpop.f32.mrf.mxu0
      %v1085 = vadd.f32 %v996, %v1084
      %v1086 = vpop.f32.mrf.mxu0
      %v1087 = vadd.f32 %v998, %v1086
      %1088 = vmatmul.bf16.gmra.mxu0 %v667
      %v1089 = vpop.f32.mrf.mxu0
      %v1090 = vadd.f32 %v1001, %v1089
      %v1091 = vpop.f32.mrf.mxu0
      %v1092 = vadd.f32 %v1003, %v1091
      %1093 = vmatmul.bf16.gmra.mxu0 %v671
      %v1094 = vpop.f32.mrf.mxu0
      %v1095 = vadd.f32 %v1006, %v1094
      %v1096 = vpop.f32.mrf.mxu0
      %v1097 = vadd.f32 %v1008, %v1096
      %1098 = vmatmul.bf16.gmra.mxu0 %v675
      %v1099 = vpop.f32.mrf.mxu0
      %v1100 = vadd.f32 %v1011, %v1099
      %v1101 = vpop.f32.mrf.mxu0
      %v1102 = vadd.f32 %v1013, %v1101
      %1103 = vmatmul.bf16.gmra.mxu0 %v679
      %v1104 = vpop.f32.mrf.mxu0
      %v1105 = vadd.f32 %v1016, %v1104
      %v1106 = vpop.f32.mrf.mxu0
      %v1107 = vadd.f32 %v1018, %v1106
      %1108 = vmatmul.bf16.gmra.mxu0 %v683
      %v1109 = vpop.f32.mrf.mxu0
      %v1110 = vadd.f32 %v1021, %v1109
      %v1111 = vpop.f32.mrf.mxu0
      %v1112 = vadd.f32 %v1023, %v1111
      %1113 = vmatmul.bf16.gmra.mxu0 %v687
      %v1114 = vpop.f32.mrf.mxu0
      %v1115 = vadd.f32 %v1026, %v1114
      %v1116 = vpop.f32.mrf.mxu0
      %v1117 = vadd.f32 %v1028, %v1116
      %1118 = vmatmul.bf16.gmra.mxu0 %v691
      %v1119 = vpop.f32.mrf.mxu0
      %v1120 = vadd.f32 %v1031, %v1119
      %v1121 = vpop.f32.mrf.mxu0
      %v1122 = vadd.f32 %v1033, %v1121
      %1123 = vmatmul.bf16.gmra.mxu0 %v695
      %v1124 = vpop.f32.mrf.mxu0
      %v1125 = vadd.f32 %v1036, %v1124
      %v1126 = vpop.f32.mrf.mxu0
      %v1127 = vadd.f32 %v1038, %v1126
      %1128 = vmatmul.bf16.gmra.mxu0 %v699
      %v1129 = vpop.f32.mrf.mxu0
      %v1130 = vadd.f32 %v1041, %v1129
      %v1131 = vpop.f32.mrf.mxu0
      %v1132 = vadd.f32 %v1043, %v1131
      %1133 = vmatmul.bf16.gmra.mxu0 %v703
      %v1134 = vpop.f32.mrf.mxu0
      %v1135 = vadd.f32 %v1046, %v1134
      %v1136 = vpop.f32.mrf.mxu0
      %v1137 = vadd.f32 %v1048, %v1136
      %1138 = vmatmul.bf16.gmra.mxu0 %v707
      %v1139 = vpop.f32.mrf.mxu0
      %v1140 = vadd.f32 %v1051, %v1139
      %v1141 = vpop.f32.mrf.mxu0
      %v1142 = vadd.f32 %v1053, %v1141
      %1143 = vdwg.mxu0
      %1144 = vmatpush.bf16.msra.mxu0 %v925
      %1145 = vmatpush.bf16.msra.mxu0 %v924
      %1146 = vmatpush.bf16.msra.mxu0 %v923
      %1147 = vmatpush.bf16.msra.mxu0 %v922
      %1148 = vmatpush.bf16.msra.mxu0 %v921
      %1149 = vmatpush.bf16.msra.mxu0 %v920
      %1150 = vmatpush.bf16.msra.mxu0 %v919
      %1151 = vmatpush.bf16.msra.mxu0 %v918
      %1152 = vmatmul.bf16.gmra.mxu0 %v648
      %v1153 = vpop.f32.mrf.mxu0
      %v1154 = vadd.f32 %v1065, %v1153
      %v1155 = vpop.f32.mrf.mxu0
      %v1156 = vadd.f32 %v1067, %v1155
      %1157 = vmatmul.bf16.gmra.mxu0 %v652
      %v1158 = vpop.f32.mrf.mxu0
      %v1159 = vadd.f32 %v1070, %v1158
      %v1160 = vpop.f32.mrf.mxu0
      %v1161 = vadd.f32 %v1072, %v1160
      %1162 = vmatmul.bf16.gmra.mxu0 %v656
      %v1163 = vpop.f32.mrf.mxu0
      %v1164 = vadd.f32 %v1075, %v1163
      %v1165 = vpop.f32.mrf.mxu0
      %v1166 = vadd.f32 %v1077, %v1165
      %1167 = vmatmul.bf16.gmra.mxu0 %v660
      %v1168 = vpop.f32.mrf.mxu0
      %v1169 = vadd.f32 %v1080, %v1168
      %v1170 = vpop.f32.mrf.mxu0
      %v1171 = vadd.f32 %v1082, %v1170
      %1172 = vmatmul.bf16.gmra.mxu0 %v664
      %v1173 = vpop.f32.mrf.mxu0
      %v1174 = vadd.f32 %v1085, %v1173
      %v1175 = vpop.f32.mrf.mxu0
      %v1176 = vadd.f32 %v1087, %v1175
      %1177 = vmatmul.bf16.gmra.mxu0 %v668
      %v1178 = vpop.f32.mrf.mxu0
      %v1179 = vadd.f32 %v1090, %v1178
      %v1180 = vpop.f32.mrf.mxu0
      %v1181 = vadd.f32 %v1092, %v1180
      %1182 = vmatmul.bf16.gmra.mxu0 %v672
      %v1183 = vpop.f32.mrf.mxu0
      %v1184 = vadd.f32 %v1095, %v1183
      %v1185 = vpop.f32.mrf.mxu0
      %v1186 = vadd.f32 %v1097, %v1185
      %1187 = vmatmul.bf16.gmra.mxu0 %v676
      %v1188 = vpop.f32.mrf.mxu0
      %v1189 = vadd.f32 %v1100, %v1188
      %v1190 = vpop.f32.mrf.mxu0
      %v1191 = vadd.f32 %v1102, %v1190
      %1192 = vmatmul.bf16.gmra.mxu0 %v680
      %v1193 = vpop.f32.mrf.mxu0
      %v1194 = vadd.f32 %v1105, %v1193
      %v1195 = vpop.f32.mrf.mxu0
      %v1196 = vadd.f32 %v1107, %v1195
      %1197 = vmatmul.bf16.gmra.mxu0 %v684
      %v1198 = vpop.f32.mrf.mxu0
      %v1199 = vadd.f32 %v1110, %v1198
      %v1200 = vpop.f32.mrf.mxu0
      %v1201 = vadd.f32 %v1112, %v1200
      %1202 = vmatmul.bf16.gmra.mxu0 %v688
      %v1203 = vpop.f32.mrf.mxu0
      %v1204 = vadd.f32 %v1115, %v1203
      %v1205 = vpop.f32.mrf.mxu0
      %v1206 = vadd.f32 %v1117, %v1205
      %1207 = vmatmul.bf16.gmra.mxu0 %v692
      %v1208 = vpop.f32.mrf.mxu0
      %v1209 = vadd.f32 %v1120, %v1208
      %v1210 = vpop.f32.mrf.mxu0
      %v1211 = vadd.f32 %v1122, %v1210
      %1212 = vmatmul.bf16.gmra.mxu0 %v696
      %v1213 = vpop.f32.mrf.mxu0
      %v1214 = vadd.f32 %v1125, %v1213
      %v1215 = vpop.f32.mrf.mxu0
      %v1216 = vadd.f32 %v1127, %v1215
      %1217 = vmatmul.bf16.gmra.mxu0 %v700
      %v1218 = vpop.f32.mrf.mxu0
      %v1219 = vadd.f32 %v1130, %v1218
      %v1220 = vpop.f32.mrf.mxu0
      %v1221 = vadd.f32 %v1132, %v1220
      %1222 = vmatmul.bf16.gmra.mxu0 %v704
      %v1223 = vpop.f32.mrf.mxu0
      %v1224 = vadd.f32 %v1135, %v1223
      %v1225 = vpop.f32.mrf.mxu0
      %v1226 = vadd.f32 %v1137, %v1225
      %1227 = vmatmul.bf16.gmra.mxu0 %v708
      %v1228 = vpop.f32.mrf.mxu0
      %v1229 = vadd.f32 %v1140, %v1228
      %v1230 = vpop.f32.mrf.mxu0
      %v1231 = vadd.f32 %v1142, %v1230
      %1232 = vdwg.mxu0
      %1233 = vmatpush.bf16.msra.mxu0 %v933
      %1234 = vmatpush.bf16.msra.mxu0 %v932
      %1235 = vmatpush.bf16.msra.mxu0 %v931
      %1236 = vmatpush.bf16.msra.mxu0 %v930
      %1237 = vmatpush.bf16.msra.mxu0 %v929
      %1238 = vmatpush.bf16.msra.mxu0 %v928
      %1239 = vmatpush.bf16.msra.mxu0 %v927
      %1240 = vmatpush.bf16.msra.mxu0 %v926
      %1241 = vmatmul.bf16.gmra.mxu0 %v649
      %v1242 = vpop.f32.mrf.mxu0
      %v1243 = vadd.f32 %v1154, %v1242
      %v1244 = vpop.f32.mrf.mxu0
      %v1245 = vadd.f32 %v1156, %v1244
      %1246 = vmatmul.bf16.gmra.mxu0 %v653
      %v1247 = vpop.f32.mrf.mxu0
      %v1248 = vadd.f32 %v1159, %v1247
      %v1249 = vpop.f32.mrf.mxu0
      %v1250 = vadd.f32 %v1161, %v1249
      %1251 = vmatmul.bf16.gmra.mxu0 %v657
      %v1252 = vpop.f32.mrf.mxu0
      %v1253 = vadd.f32 %v1164, %v1252
      %v1254 = vpop.f32.mrf.mxu0
      %v1255 = vadd.f32 %v1166, %v1254
      %1256 = vmatmul.bf16.gmra.mxu0 %v661
      %v1257 = vpop.f32.mrf.mxu0
      %v1258 = vadd.f32 %v1169, %v1257
      %v1259 = vpop.f32.mrf.mxu0
      %v1260 = vadd.f32 %v1171, %v1259
      %1261 = vmatmul.bf16.gmra.mxu0 %v665
      %v1262 = vpop.f32.mrf.mxu0
      %v1263 = vadd.f32 %v1174, %v1262
      %v1264 = vpop.f32.mrf.mxu0
      %v1265 = vadd.f32 %v1176, %v1264
      %1266 = vmatmul.bf16.gmra.mxu0 %v669
      %v1267 = vpop.f32.mrf.mxu0
      %v1268 = vadd.f32 %v1179, %v1267
      %v1269 = vpop.f32.mrf.mxu0
      %v1270 = vadd.f32 %v1181, %v1269
      %1271 = vmatmul.bf16.gmra.mxu0 %v673
      %v1272 = vpop.f32.mrf.mxu0
      %v1273 = vadd.f32 %v1184, %v1272
      %v1274 = vpop.f32.mrf.mxu0
      %v1275 = vadd.f32 %v1186, %v1274
      %1276 = vmatmul.bf16.gmra.mxu0 %v677
      %v1277 = vpop.f32.mrf.mxu0
      %v1278 = vadd.f32 %v1189, %v1277
      %v1279 = vpop.f32.mrf.mxu0
      %v1280 = vadd.f32 %v1191, %v1279
      %1281 = vmatmul.bf16.gmra.mxu0 %v681
      %v1282 = vpop.f32.mrf.mxu0
      %v1283 = vadd.f32 %v1194, %v1282
      %v1284 = vpop.f32.mrf.mxu0
      %v1285 = vadd.f32 %v1196, %v1284
      %1286 = vmatmul.bf16.gmra.mxu0 %v685
      %v1287 = vpop.f32.mrf.mxu0
      %v1288 = vadd.f32 %v1199, %v1287
      %v1289 = vpop.f32.mrf.mxu0
      %v1290 = vadd.f32 %v1201, %v1289
      %1291 = vmatmul.bf16.gmra.mxu0 %v689
      %v1292 = vpop.f32.mrf.mxu0
      %v1293 = vadd.f32 %v1204, %v1292
      %v1294 = vpop.f32.mrf.mxu0
      %v1295 = vadd.f32 %v1206, %v1294
      %1296 = vmatmul.bf16.gmra.mxu0 %v693
      %v1297 = vpop.f32.mrf.mxu0
      %v1298 = vadd.f32 %v1209, %v1297
      %v1299 = vpop.f32.mrf.mxu0
      %v1300 = vadd.f32 %v1211, %v1299
      %1301 = vmatmul.bf16.gmra.mxu0 %v697
      %v1302 = vpop.f32.mrf.mxu0
      %v1303 = vadd.f32 %v1214, %v1302
      %v1304 = vpop.f32.mrf.mxu0
      %v1305 = vadd.f32 %v1216, %v1304
      %1306 = vmatmul.bf16.gmra.mxu0 %v701
      %v1307 = vpop.f32.mrf.mxu0
      %v1308 = vadd.f32 %v1219, %v1307
      %v1309 = vpop.f32.mrf.mxu0
      %v1310 = vadd.f32 %v1221, %v1309
      %1311 = vmatmul.bf16.gmra.mxu0 %v705
      %v1312 = vpop.f32.mrf.mxu0
      %v1313 = vadd.f32 %v1224, %v1312
      %v1314 = vpop.f32.mrf.mxu0
      %v1315 = vadd.f32 %v1226, %v1314
      %1316 = vmatmul.bf16.gmra.mxu0 %v709
      %v1317 = vpop.f32.mrf.mxu0
      %v1318 = vadd.f32 %v1229, %v1317
      %v1319 = vpop.f32.mrf.mxu0
      %v1320 = vadd.f32 %v1231, %v1319
      %1321 = vdwg.mxu0
      %v1322 = vadd.f32 %v294, %v1243
      %v1323 = vadd.f32 %v295, %v1245
      %v1324 = vadd.f32 %v296, %v1248
      %v1325 = vadd.f32 %v297, %v1250
      %v1326 = vadd.f32 %v298, %v1253
      %v1327 = vadd.f32 %v299, %v1255
      %v1328 = vadd.f32 %v300, %v1258
      %v1329 = vadd.f32 %v301, %v1260
      %v1330 = vadd.f32 %v302, %v1263
      %v1331 = vadd.f32 %v303, %v1265
      %v1332 = vadd.f32 %v304, %v1268
      %v1333 = vadd.f32 %v305, %v1270
      %v1334 = vadd.f32 %v306, %v1273
      %v1335 = vadd.f32 %v307, %v1275
      %v1336 = vadd.f32 %v308, %v1278
      %v1337 = vadd.f32 %v309, %v1280
      %v1338 = vadd.f32 %v310, %v1283
      %v1339 = vadd.f32 %v311, %v1285
      %v1340 = vadd.f32 %v312, %v1288
      %v1341 = vadd.f32 %v313, %v1290
      %v1342 = vadd.f32 %v314, %v1293
      %v1343 = vadd.f32 %v315, %v1295
      %v1344 = vadd.f32 %v316, %v1298
      %v1345 = vadd.f32 %v317, %v1300
      %v1346 = vadd.f32 %v318, %v1303
      %v1347 = vadd.f32 %v319, %v1305
      %v1348 = vadd.f32 %v320, %v1308
      %v1349 = vadd.f32 %v321, %v1310
      %v1350 = vadd.f32 %v322, %v1313
      %v1351 = vadd.f32 %v323, %v1315
      %v1352 = vadd.f32 %v324, %v1318
      %v1353 = vadd.f32 %v325, %v1320
      %1354 = vst [vmem:[#allocation2] sm:$0xff] %v1322
      %1355 = vst [vmem:[#allocation2 + $0x8] sm:$0xff] %v1323
      %1356 = vst [vmem:[#allocation2 + $0x10] sm:$0xff] %v1324
      %1357 = vst [vmem:[#allocation2 + $0x18] sm:$0xff] %v1325
      %1358 = vst [vmem:[#allocation2 + $0x20] sm:$0xff] %v1326
      %1359 = vst [vmem:[#allocation2 + $0x28] sm:$0xff] %v1327
      %1360 = vst [vmem:[#allocation2 + $0x30] sm:$0xff] %v1328
      %1361 = vst [vmem:[#allocation2 + $0x38] sm:$0xff] %v1329
      %1362 = vst [vmem:[#allocation2 + $0x40] sm:$0xff] %v1330
      %1363 = vst [vmem:[#allocation2 + $0x48] sm:$0xff] %v1331
      %1364 = vst [vmem:[#allocation2 + $0x50] sm:$0xff] %v1332
      %1365 = vst [vmem:[#allocation2 + $0x58] sm:$0xff] %v1333
      %1366 = vst [vmem:[#allocation2 + $0x60] sm:$0xff] %v1334
      %1367 = vst [vmem:[#allocation2 + $0x68] sm:$0xff] %v1335
      %1368 = vst [vmem:[#allocation2 + $0x70] sm:$0xff] %v1336
      %1369 = vst [vmem:[#allocation2 + $0x78] sm:$0xff] %v1337
      %1370 = vst [vmem:[#allocation2 + $0x80] sm:$0xff] %v1338
      %1371 = vst [vmem:[#allocation2 + $0x88] sm:$0xff] %v1339
      %1372 = vst [vmem:[#allocation2 + $0x90] sm:$0xff] %v1340
      %1373 = vst [vmem:[#allocation2 + $0x98] sm:$0xff] %v1341
      %1374 = vst [vmem:[#allocation2 + $0xa0] sm:$0xff] %v1342
      %1375 = vst [vmem:[#allocation2 + $0xa8] sm:$0xff] %v1343
      %1376 = vst [vmem:[#allocation2 + $0xb0] sm:$0xff] %v1344
      %1377 = vst [vmem:[#allocation2 + $0xb8] sm:$0xff] %v1345
      %1378 = vst [vmem:[#allocation2 + $0xc0] sm:$0xff] %v1346
      %1379 = vst [vmem:[#allocation2 + $0xc8] sm:$0xff] %v1347
      %1380 = vst [vmem:[#allocation2 + $0xd0] sm:$0xff] %v1348
      %1381 = vst [vmem:[#allocation2 + $0xd8] sm:$0xff] %v1349
      %1382 = vst [vmem:[#allocation2 + $0xe0] sm:$0xff] %v1350
      %1383 = vst [vmem:[#allocation2 + $0xe8] sm:$0xff] %v1351
      %1384 = vst [vmem:[#allocation2 + $0xf0] sm:$0xff] %v1352
      %1385 = vst [vmem:[#allocation2 + $0xf8] sm:$0xff] %v1353
      // Predicated region
      $region37: #{generator_forward.29} parent=31 // pred_check
        %p1386 = pneg %p258
      $region38: #{generator_forward.29} parent=31 // pred_check_branch
        %1388 = sbr.rel (%p1386) target = $region40
      $region39: #{generator_forward.29} parent=31 // pred_region
        %v1389 = vld [vmem:[#allocation2] sm:$0xff]
        %v1390 = vld [vmem:[#allocation2 + $0x8] sm:$0xff]
        %v1391 = vld [vmem:[#allocation2 + $0x10] sm:$0xff]
        %v1392 = vld [vmem:[#allocation2 + $0x18] sm:$0xff]
        %v1393 = vld [vmem:[#allocation2 + $0x20] sm:$0xff]
        %v1394 = vld [vmem:[#allocation2 + $0x28] sm:$0xff]
        %v1395 = vld [vmem:[#allocation2 + $0x30] sm:$0xff]
        %v1396 = vld [vmem:[#allocation2 + $0x38] sm:$0xff]
        %v1397 = vld [vmem:[#allocation2 + $0x40] sm:$0xff]
        %v1398 = vld [vmem:[#allocation2 + $0x48] sm:$0xff]
        %v1399 = vld [vmem:[#allocation2 + $0x50] sm:$0xff]
        %v1400 = vld [vmem:[#allocation2 + $0x58] sm:$0xff]
        %v1401 = vld [vmem:[#allocation2 + $0x60] sm:$0xff]
        %v1402 = vld [vmem:[#allocation2 + $0x68] sm:$0xff]
        %v1403 = vld [vmem:[#allocation2 + $0x70] sm:$0xff]
        %v1404 = vld [vmem:[#allocation2 + $0x78] sm:$0xff]
        %v1405 = vld [vmem:[#allocation2 + $0x80] sm:$0xff]
        %v1406 = vld [vmem:[#allocation2 + $0x88] sm:$0xff]
        %v1407 = vld [vmem:[#allocation2 + $0x90] sm:$0xff]
        %v1408 = vld [vmem:[#allocation2 + $0x98] sm:$0xff]
        %v1409 = vld [vmem:[#allocation2 + $0xa0] sm:$0xff]
        %v1410 = vld [vmem:[#allocation2 + $0xa8] sm:$0xff]
        %v1411 = vld [vmem:[#allocation2 + $0xb0] sm:$0xff]
        %v1412 = vld [vmem:[#allocation2 + $0xb8] sm:$0xff]
        %v1413 = vld [vmem:[#allocation2 + $0xc0] sm:$0xff]
        %v1414 = vld [vmem:[#allocation2 + $0xc8] sm:$0xff]
        %v1415 = vld [vmem:[#allocation2 + $0xd0] sm:$0xff]
        %v1416 = vld [vmem:[#allocation2 + $0xd8] sm:$0xff]
        %v1417 = vld [vmem:[#allocation2 + $0xe0] sm:$0xff]
        %v1418 = vld [vmem:[#allocation2 + $0xe8] sm:$0xff]
        %v1419 = vld [vmem:[#allocation2 + $0xf0] sm:$0xff]
        %v1420 = vld [vmem:[#allocation2 + $0xf8] sm:$0xff]
        %v1421 = vld [vmem:[%s2] sm:$0x1]
        %v1423 = vperm.slane %v1421, 0
        %v1425 = vadd.f32 %v1389, %v1423
        %v1426 = vadd.f32 %v1390, %v1423
        %v1427 = vadd.f32 %v1391, %v1423
        %v1428 = vadd.f32 %v1392, %v1423
        %v1429 = vadd.f32 %v1393, %v1423
        %v1430 = vadd.f32 %v1394, %v1423
        %v1431 = vadd.f32 %v1395, %v1423
        %v1432 = vadd.f32 %v1396, %v1423
        %v1433 = vadd.f32 %v1397, %v1423
        %v1434 = vadd.f32 %v1398, %v1423
        %v1435 = vadd.f32 %v1399, %v1423
        %v1436 = vadd.f32 %v1400, %v1423
        %v1437 = vadd.f32 %v1401, %v1423
        %v1438 = vadd.f32 %v1402, %v1423
        %v1439 = vadd.f32 %v1403, %v1423
        %v1440 = vadd.f32 %v1404, %v1423
        %v1441 = vadd.f32 %v1405, %v1423
        %v1442 = vadd.f32 %v1406, %v1423
        %v1443 = vadd.f32 %v1407, %v1423
        %v1444 = vadd.f32 %v1408, %v1423
        %v1445 = vadd.f32 %v1409, %v1423
        %v1446 = vadd.f32 %v1410, %v1423
        %v1447 = vadd.f32 %v1411, %v1423
        %v1448 = vadd.f32 %v1412, %v1423
        %v1449 = vadd.f32 %v1413, %v1423
        %v1450 = vadd.f32 %v1414, %v1423
        %v1451 = vadd.f32 %v1415, %v1423
        %v1452 = vadd.f32 %v1416, %v1423
        %v1453 = vadd.f32 %v1417, %v1423
        %v1454 = vadd.f32 %v1418, %v1423
        %v1455 = vadd.f32 %v1419, %v1423
        %v1456 = vadd.f32 %v1420, %v1423
        %v1457 = vtanh.pop %v1425
        %v1458 = vtanh.pop %v1426
        %v1459 = vtanh.pop %v1427
        %v1460 = vtanh.pop %v1428
        %v1461 = vtanh.pop %v1429
        %v1462 = vtanh.pop %v1430
        %v1463 = vtanh.pop %v1431
        %v1464 = vtanh.pop %v1432
        %v1465 = vtanh.pop %v1433
        %v1466 = vtanh.pop %v1434
        %v1467 = vtanh.pop %v1435
        %v1468 = vtanh.pop %v1436
        %v1469 = vtanh.pop %v1437
        %v1470 = vtanh.pop %v1438
        %v1471 = vtanh.pop %v1439
        %v1472 = vtanh.pop %v1440
        %v1473 = vtanh.pop %v1441
        %v1474 = vtanh.pop %v1442
        %v1475 = vtanh.pop %v1443
        %v1476 = vtanh.pop %v1444
        %v1477 = vtanh.pop %v1445
        %v1478 = vtanh.pop %v1446
        %v1479 = vtanh.pop %v1447
        %v1480 = vtanh.pop %v1448
        %v1481 = vtanh.pop %v1449
        %v1482 = vtanh.pop %v1450
        %v1483 = vtanh.pop %v1451
        %v1484 = vtanh.pop %v1452
        %v1485 = vtanh.pop %v1453
        %v1486 = vtanh.pop %v1454
        %v1487 = vtanh.pop %v1455
        %v1488 = vtanh.pop %v1456
        %1489 = vst [vmem:[%s256] sm:$0xff] %v1457
        %1490 = vst [vmem:[%s256 + $0x8] sm:$0xff] %v1458
        %1491 = vst [vmem:[%s256 + $0x10] sm:$0xff] %v1459
        %1492 = vst [vmem:[%s256 + $0x18] sm:$0xff] %v1460
        %1493 = vst [vmem:[%s256 + $0x20] sm:$0xff] %v1461
        %1494 = vst [vmem:[%s256 + $0x28] sm:$0xff] %v1462
        %1495 = vst [vmem:[%s256 + $0x30] sm:$0xff] %v1463
        %1496 = vst [vmem:[%s256 + $0x38] sm:$0xff] %v1464
        %1497 = vst [vmem:[%s256 + $0x40] sm:$0xff] %v1465
        %1498 = vst [vmem:[%s256 + $0x48] sm:$0xff] %v1466
        %1499 = vst [vmem:[%s256 + $0x50] sm:$0xff] %v1467
        %1500 = vst [vmem:[%s256 + $0x58] sm:$0xff] %v1468
        %1501 = vst [vmem:[%s256 + $0x60] sm:$0xff] %v1469
        %1502 = vst [vmem:[%s256 + $0x68] sm:$0xff] %v1470
        %1503 = vst [vmem:[%s256 + $0x70] sm:$0xff] %v1471
        %1504 = vst [vmem:[%s256 + $0x78] sm:$0xff] %v1472
        %1505 = vst [vmem:[%s256 + $0x80] sm:$0xff] %v1473
        %1506 = vst [vmem:[%s256 + $0x88] sm:$0xff] %v1474
        %1507 = vst [vmem:[%s256 + $0x90] sm:$0xff] %v1475
        %1508 = vst [vmem:[%s256 + $0x98] sm:$0xff] %v1476
        %1509 = vst [vmem:[%s256 + $0xa0] sm:$0xff] %v1477
        %1510 = vst [vmem:[%s256 + $0xa8] sm:$0xff] %v1478
        %1511 = vst [vmem:[%s256 + $0xb0] sm:$0xff] %v1479
        %1512 = vst [vmem:[%s256 + $0xb8] sm:$0xff] %v1480
        %1513 = vst [vmem:[%s256 + $0xc0] sm:$0xff] %v1481
        %1514 = vst [vmem:[%s256 + $0xc8] sm:$0xff] %v1482
        %1515 = vst [vmem:[%s256 + $0xd0] sm:$0xff] %v1483
        %1516 = vst [vmem:[%s256 + $0xd8] sm:$0xff] %v1484
        %1517 = vst [vmem:[%s256 + $0xe0] sm:$0xff] %v1485
        %1518 = vst [vmem:[%s256 + $0xe8] sm:$0xff] %v1486
        %1519 = vst [vmem:[%s256 + $0xf0] sm:$0xff] %v1487
        %1520 = vst [vmem:[%s256 + $0xf8] sm:$0xff] %v1488
      $region40: #{generator_forward.29} parent=31 // pred_fallthru
        _
      %s1521 = smul.u32 32, %s20
      %p1522 = scmp.lt.s32.totalorder %s19, 1
      %s1523 = scalar_select %p1522, %s19, 1
      %p1524 = scmp.lt.s32.totalorder %s1521, 31
      %s1525 = scalar_select %p1524, %s1521, 31
      %s1526 = smul.addr %s1523, 32
      %s1527 = sadd.s32 %s1525, %s1526
      %s1528 = smul.addr %s1527, 8
      %s1529 = scalar_lea.vmem %s3, %s1528
      // Predicated region
      $region41: #{generator_forward.29} parent=31 // pred_check
        %p1530 = pneg %p130
      $region42: #{generator_forward.29} parent=31 // pred_check_branch
        %1532 = sbr.rel (%p1530) target = $region44
      $region43: #{generator_forward.29} parent=31 // pred_region
        %s1533 = smul.u32 32, %s20
      $region44: #{generator_forward.29} parent=31 // pred_fallthru
        _
    $region32: #{generator_forward.29} parent=5 // pred_fallthru
      _
    %p1534 = scmp.le.s32.totalorder 2, %s9
    // Predicated region
    $region45: #{generator_forward.29} parent=5 // pred_check
      %p1535 = pneg %p1534
    $region46: #{generator_forward.29} parent=5 // pred_check_branch
      %1537 = sbr.rel (%p1535) target = $region48
    $region47: #{generator_forward.29} parent=5 // pred_region
      %s1538 = ssub.s32 %s9, 2
      // Predicated region
      $region49: #{generator_forward.29} parent=47 // pred_check
        %p1539 = pneg %p136
      $region50: #{generator_forward.29} parent=47 // pred_check_branch
        %1541 = sbr.rel (%p1539) target = $region52
      $region51: #{generator_forward.29} parent=47 // pred_region
        %s1542 = smul.u32 32, %s23
        %p1543 = scmp.lt.s32.totalorder %s22, 1
        %s1544 = scalar_select %p1543, %s22, 1
        %p1545 = scmp.lt.s32.totalorder %s1542, 31
        %s1546 = scalar_select %p1545, %s1542, 31
        %s1547 = smul.addr %s1544, 32
        %s1548 = sadd.s32 %s1546, %s1547
        %s1549 = smul.addr %s1548, 8
        %s1550 = scalar_lea.vmem %s3, %s1549
      $region52: #{generator_forward.29} parent=47 // pred_fallthru
        _
    $region48: #{generator_forward.29} parent=5 // pred_fallthru
      _
  $region6: #{generator_forward.29} parent=0 // loop_footer
    %s13 = sadd.s32 1, %s9
  $region7: #{generator_forward.29} parent=0 // loop_footer_branch
    %8 = sbr.rel target = $region3
  $region8: #{generator_forward.29} parent=0 // loop_exit
    _

</llo_original>
